<compile_context>
chip_gen: v5e
topology: v5e:2x2
jax: 0.10.0
libtpu: 0.0.40
codegen_flags: <defaults>
</compile_context>

<pallas_src>
import functools

import jax
import jax.numpy as jnp
from jax import lax
from jax.experimental import pallas as pl
from jax.experimental.pallas import tpu as pltpu

CDIM, HDIM = 32, 16


# ------------------------------ tiling helpers -------------------------------

def _tile_and_pad(n, max_tile=2048):
    """Choose a lane tile (multiple of 128, <= max_tile) and the padded extent."""
    t = min(((n + 127) // 128) * 128, max_tile)
    n_pad = ((n + t - 1) // t) * t
    return t, n_pad


def make_coords(D, H, W):
    zz, yy, xx = jnp.meshgrid(jnp.arange(D, dtype=jnp.float32),
                              jnp.arange(H, dtype=jnp.float32),
                              jnp.arange(W, dtype=jnp.float32), indexing="ij")
    return jnp.stack([zz.reshape(-1), yy.reshape(-1), xx.reshape(-1)], axis=0)  # (3, N)


# ----------------------------- Pallas kernels --------------------------------

def _context_kernel(x_ref, w1_ref, b1_ref, w2c_ref, b2c_ref, w2h_ref, b2h_ref,
                    cont_ref, hidt_ref, hidr_ref):
    """Fused ContextNet: conv1(1->CMID)+relu -> conv2 -> [relu cont | tanh hid]."""
    x = x_ref[...]                                              # (1, TN)
    f = jnp.maximum(w1_ref[...] * x + b1_ref[...], 0.0)         # (CMID, TN)
    cont_ref[...] = jnp.maximum(
        jnp.dot(w2c_ref[...], f, preferred_element_type=jnp.float32) + b2c_ref[...],
        0.0)                                                    # (CDIM, TN)
    hr = jnp.dot(w2h_ref[...], f, preferred_element_type=jnp.float32) + b2h_ref[...]
    hidr_ref[...] = hr                                          # (HDIM, TN) pre-tanh
    hidt_ref[...] = jnp.tanh(hr)                                # (HDIM, TN)


def _sdhnet_kernel(img_ref, wrp_ref, cont_ref, hid_ref,
                   w1i_ref, w1w_ref, w1c_ref, w1h_ref, b1_ref,
                   w2f_ref, w2h_ref, b2_ref, w3_ref, b3_ref,
                   flow_ref, newh_ref):
    """Fused SDHNet cell: feature conv -> hidden update -> flow head."""
    f = (w1i_ref[...] * img_ref[...]
         + w1w_ref[...] * wrp_ref[...]
         + jnp.dot(w1c_ref[...], cont_ref[...], preferred_element_type=jnp.float32)
         + jnp.dot(w1h_ref[...], hid_ref[...], preferred_element_type=jnp.float32)
         + b1_ref[...])
    f = jnp.maximum(f, 0.0)                                     # (32, TN)
    h = jnp.tanh(jnp.dot(w2f_ref[...], f, preferred_element_type=jnp.float32)
                 + jnp.dot(w2h_ref[...], hid_ref[...], preferred_element_type=jnp.float32)
                 + b2_ref[...])                                 # (HDIM, TN)
    flow_ref[...] = jnp.dot(w3_ref[...], h, preferred_element_type=jnp.float32) + b3_ref[...]
    newh_ref[...] = h


def _warp_prep_kernel(flow_ref, coords_ref, idx_ref, frac_ref, *, D, H, W):
    """Compute clamped base corner linear index + trilinear fractions."""
    flw = flow_ref[0]                                           # (3, TN)
    crd = coords_ref[...]                                       # (3, TN)
    z = jnp.clip(crd[0:1] + flw[0:1], 0.0, D - 1.0)
    y = jnp.clip(crd[1:2] + flw[1:2], 0.0, H - 1.0)
    x = jnp.clip(crd[2:3] + flw[2:3], 0.0, W - 1.0)
    z0 = jnp.clip(jnp.floor(z), 0.0, float(max(D - 2, 0)))
    y0 = jnp.clip(jnp.floor(y), 0.0, float(max(H - 2, 0)))
    x0 = jnp.clip(jnp.floor(x), 0.0, float(max(W - 2, 0)))
    idx_ref[0] = (z0.astype(jnp.int32) * (H * W)
                  + y0.astype(jnp.int32) * W
                  + x0.astype(jnp.int32))                       # (1, TN)
    frac_ref[0] = jnp.concatenate([z - z0, y - y0, x - x0], axis=0)   # (3, TN)


def _warp_combine_kernel(g_ref, frac_ref, o_ref, *, C):
    """Weighted sum of the 8 gathered corner volumes."""
    g = g_ref[0]                                                # (8*C, TN)
    fr = frac_ref[0]                                            # (3, TN)
    wz, wy, wx = fr[0:1, :], fr[1:2, :], fr[2:3, :]
    acc = None
    for k in range(8):
        dz, dy, dx = (k >> 2) & 1, (k >> 1) & 1, k & 1
        w = ((wz if dz else 1.0 - wz)
             * (wy if dy else 1.0 - wy)
             * (wx if dx else 1.0 - wx))                        # (1, TN)
        term = g[k * C:(k + 1) * C, :] * w
        acc = term if acc is None else acc + term
    o_ref[0] = acc


def _affine_head_kernel(x_ref, w_ref, b_ref, o_ref, acc_ref, *, inv_n):
    """Tiled global mean pool over N + tiny linear head -> 12 affine params."""
    i = pl.program_id(1)

    @pl.when(i == 0)
    def _():
        acc_ref[...] = jnp.zeros_like(acc_ref)

    acc_ref[...] += jnp.sum(x_ref[0], axis=1, keepdims=True)    # (2, 1)

    @pl.when(i == pl.num_programs(1) - 1)
    def _():
        feat = acc_ref[...] * inv_n                             # (2, 1)
        o_ref[0] = jnp.sum(w_ref[...] * feat, axis=0, keepdims=True) + b_ref[...]


def _affine_flow_kernel(par_ref, coords_ref, o_ref):
    """flow = W @ coords + t, single dense (3, TN) store."""
    A = par_ref[0]                                              # (3, 4) = [W | t]
    crd = coords_ref[...]                                       # (3, TN)
    o_ref[0] = (A[:, 0:1] * crd[0:1, :]
                + A[:, 1:2] * crd[1:2, :]
                + A[:, 2:3] * crd[2:3, :]
                + A[:, 3:4])


def _flow_compose_kernel(a_ref, d_ref, f_ref, o_ref):
    """einsum('bij,bjn->bin', W+I, deform) + affine, single dense store."""
    A = a_ref[0]                                                # (3, 3)
    df = d_ref[0]                                               # (3, TN)
    o_ref[0] = (A[:, 0:1] * df[0:1, :]
                + A[:, 1:2] * df[1:2, :]
                + A[:, 2:3] * df[2:3, :]) + f_ref[0]


def _pool_tanh_kernel(x_ref, o_ref):
    # window elements on sublanes, output elements lane-dense
    o_ref[...] = jnp.tanh(jnp.max(x_ref[...], axis=0, keepdims=True))


# ----------------------------- module wrappers --------------------------------

def context_forward(params, img1_cb, TN):
    """img1_cb: (1, B*Np) -> cont (CDIM, B*Np), hid_tanh, hid_raw (HDIM, B*Np)."""
    CMID = params["ctx_w1"].shape[0]
    _, BN = img1_cb.shape
    w2, b2 = params["ctx_w2"], params["ctx_b2"]
    return pl.pallas_call(
        _context_kernel,
        out_shape=(jax.ShapeDtypeStruct((CDIM, BN), jnp.float32),
                   jax.ShapeDtypeStruct((HDIM, BN), jnp.float32),
                   jax.ShapeDtypeStruct((HDIM, BN), jnp.float32)),
        grid=(BN // TN,),
        in_specs=[pl.BlockSpec((1, TN), lambda i: (0, i)),
                  pl.BlockSpec((CMID, 1), lambda i: (0, 0)),
                  pl.BlockSpec((CMID, 1), lambda i: (0, 0)),
                  pl.BlockSpec((CDIM, CMID), lambda i: (0, 0)),
                  pl.BlockSpec((CDIM, 1), lambda i: (0, 0)),
                  pl.BlockSpec((HDIM, CMID), lambda i: (0, 0)),
                  pl.BlockSpec((HDIM, 1), lambda i: (0, 0))],
        out_specs=(pl.BlockSpec((CDIM, TN), lambda i: (0, i)),
                   pl.BlockSpec((HDIM, TN), lambda i: (0, i)),
                   pl.BlockSpec((HDIM, TN), lambda i: (0, i))),
        compiler_params=pltpu.CompilerParams(dimension_semantics=("parallel",)),
    )(img1_cb, params["ctx_w1"], params["ctx_b1"],
      w2[:CDIM], b2[:CDIM], w2[CDIM:], b2[CDIM:])


def sdhnet_forward(dp, img1_cb, warp_cb, cont_f, hid, TN, B, Np):
    """Fused SDHNet cell.  Inputs in (C, B*Np) layout; flow returned as (B,3,Np)."""
    _, BN = img1_cb.shape
    w1, w2 = dp["w1"], dp["w2"]
    flow_f, h_f = pl.pallas_call(
        _sdhnet_kernel,
        out_shape=(jax.ShapeDtypeStruct((3, BN), jnp.float32),
                   jax.ShapeDtypeStruct((HDIM, BN), jnp.float32)),
        grid=(BN // TN,),
        in_specs=[pl.BlockSpec((1, TN), lambda i: (0, i)),
                  pl.BlockSpec((1, TN), lambda i: (0, i)),
                  pl.BlockSpec((CDIM, TN), lambda i: (0, i)),
                  pl.BlockSpec((HDIM, TN), lambda i: (0, i)),
                  pl.BlockSpec((32, 1), lambda i: (0, 0)),
                  pl.BlockSpec((32, 1), lambda i: (0, 0)),
                  pl.BlockSpec((32, CDIM), lambda i: (0, 0)),
                  pl.BlockSpec((32, HDIM), lambda i: (0, 0)),
                  pl.BlockSpec((32, 1), lambda i: (0, 0)),
                  pl.BlockSpec((HDIM, 32), lambda i: (0, 0)),
                  pl.BlockSpec((HDIM, HDIM), lambda i: (0, 0)),
                  pl.BlockSpec((HDIM, 1), lambda i: (0, 0)),
                  pl.BlockSpec((3, HDIM), lambda i: (0, 0)),
                  pl.BlockSpec((3, 1), lambda i: (0, 0))],
        out_specs=(pl.BlockSpec((3, TN), lambda i: (0, i)),
                   pl.BlockSpec((HDIM, TN), lambda i: (0, i))),
        compiler_params=pltpu.CompilerParams(dimension_semantics=("parallel",)),
    )(img1_cb, warp_cb, cont_f, hid[0],
      w1[:, 0:1], w1[:, 1:2], w1[:, 2:2 + CDIM], w1[:, 2 + CDIM:],
      dp["b1"], w2[:, :32], w2[:, 32:], dp["b2"], dp["w3"], dp["b3"])
    flow = flow_f.reshape(3, B, Np).transpose(1, 0, 2)           # (B, 3, Np)
    return {"flow": flow}, [h_f, hid[1], hid[2]]


def warp3d(vol, flow, coords, dims, TN):
    """Trilinear backward warp: out(p) = vol(p + flow(p)), border-clamped.

    vol: (B, C, Np), flow: (B, 3, Np), coords: (3, Np).  Index/weight math and
    the 8-corner weighted combine are Pallas kernels; the per-voxel gather
    itself uses XLA take_along_axis."""
    # TODO(synk): the dynamic per-voxel gather has no general Pallas TPU lane
    # gather; it is performed with XLA take_along_axis between the two kernels.
    D, H, W = dims
    B, C, Np = vol.shape
    grid = (B, Np // TN)

    idx0, frac = pl.pallas_call(
        functools.partial(_warp_prep_kernel, D=D, H=H, W=W),
        out_shape=(jax.ShapeDtypeStruct((B, 1, Np), jnp.int32),
                   jax.ShapeDtypeStruct((B, 3, Np), jnp.float32)),
        grid=grid,
        in_specs=[pl.BlockSpec((1, 3, TN), lambda b, i: (b, 0, i)),
                  pl.BlockSpec((3, TN), lambda b, i: (0, i))],
        out_specs=(pl.BlockSpec((1, 1, TN), lambda b, i: (b, 0, i)),
                   pl.BlockSpec((1, 3, TN), lambda b, i: (b, 0, i))),
        compiler_params=pltpu.CompilerParams(
            dimension_semantics=("parallel", "parallel")),
    )(flow, coords)

    idx0 = idx0[:, 0, :]                                         # (B, Np)
    gathered = []
    for k in range(8):
        dz, dy, dx = (k >> 2) & 1, (k >> 1) & 1, k & 1
        idx_k = idx0 + (dz * (H * W) + dy * W + dx)
        gathered.append(jnp.take_along_axis(
            vol, jnp.broadcast_to(idx_k[:, None, :], (B, C, Np)), axis=2))
    gathered = jnp.concatenate(gathered, axis=1)                 # (B, 8*C, Np)

    return pl.pallas_call(
        functools.partial(_warp_combine_kernel, C=C),
        out_shape=jax.ShapeDtypeStruct((B, C, Np), jnp.float32),
        grid=grid,
        in_specs=[pl.BlockSpec((1, 8 * C, TN), lambda b, i: (b, 0, i)),
                  pl.BlockSpec((1, 3, TN), lambda b, i: (b, 0, i))],
        out_specs=pl.BlockSpec((1, C, TN), lambda b, i: (b, 0, i)),
        compiler_params=pltpu.CompilerParams(
            dimension_semantics=("parallel", "parallel")),
    )(gathered, frac)


def affnet_forward(params, img1_p, img2_p, coords, n_true, TN):
    B, _, Np = img1_p.shape
    x = jnp.concatenate([img1_p, img2_p], axis=1)                # (B, 2, Np)
    raw = pl.pallas_call(
        functools.partial(_affine_head_kernel, inv_n=1.0 / float(n_true)),
        out_shape=jax.ShapeDtypeStruct((B, 1, 12), jnp.float32),
        grid=(B, Np // TN),
        in_specs=[pl.BlockSpec((1, 2, TN), lambda b, i: (b, 0, i)),
                  pl.BlockSpec((2, 12), lambda b, i: (0, 0)),
                  pl.BlockSpec((1, 12), lambda b, i: (0, 0))],
        out_specs=pl.BlockSpec((1, 1, 12), lambda b, i: (b, 0, 0)),
        scratch_shapes=[pltpu.VMEM((2, 1), jnp.float32)],
        compiler_params=pltpu.CompilerParams(
            dimension_semantics=("parallel", "arbitrary")),
    )(x, params["aff_w"], params["aff_b"]).reshape(B, 12)

    Wmat = 0.1 * raw[:, :9].reshape(B, 3, 3)                     # residual affine
    t = 0.5 * raw[:, 9:]                                         # translation
    par = jnp.concatenate([Wmat, t[:, :, None]], axis=2)         # (B, 3, 4)

    flow = pl.pallas_call(
        _affine_flow_kernel,
        out_shape=jax.ShapeDtypeStruct((B, 3, Np), jnp.float32),
        grid=(B, Np // TN),
        in_specs=[pl.BlockSpec((1, 3, 4), lambda b, i: (b, 0, 0)),
                  pl.BlockSpec((3, TN), lambda b, i: (0, i))],
        out_specs=pl.BlockSpec((1, 3, TN), lambda b, i: (b, 0, i)),
        compiler_params=pltpu.CompilerParams(
            dimension_semantics=("parallel", "parallel")),
    )(par, coords)
    return {"W": Wmat, "b": t, "flow": flow}


def compose_affine_deform(Wmat, dflow, aflow, TN):
    B, _, Np = dflow.shape
    A = Wmat + jnp.eye(3, dtype=jnp.float32)[None]               # (B, 3, 3)
    return pl.pallas_call(
        _flow_compose_kernel,
        out_shape=jax.ShapeDtypeStruct((B, 3, Np), jnp.float32),
        grid=(B, Np // TN),
        in_specs=[pl.BlockSpec((1, 3, 3), lambda b, i: (b, 0, 0)),
                  pl.BlockSpec((1, 3, TN), lambda b, i: (b, 0, i)),
                  pl.BlockSpec((1, 3, TN), lambda b, i: (b, 0, i))],
        out_specs=pl.BlockSpec((1, 3, TN), lambda b, i: (b, 0, i)),
        compiler_params=pltpu.CompilerParams(
            dimension_semantics=("parallel", "parallel")),
    )(A, dflow, aflow)


def maxpool3d_tanh(x, k):
    """tanh(max_pool3d(x, kernel=k, stride=k)); lane-dense (1, M) output."""
    B, C, D, H, W = x.shape
    Do, Ho, Wo = D // k, H // k, W // k
    xr = x.reshape(B, C, Do, k, Ho, k, Wo, k)
    xr = xr.transpose(3, 5, 7, 0, 1, 2, 4, 6).reshape(k ** 3, B * C * Do * Ho * Wo)
    K3, M = xr.shape
    TM, Mp = _tile_and_pad(M)
    if Mp != M:
        xr = jnp.pad(xr, ((0, 0), (0, Mp - M)))
    out = pl.pallas_call(
        _pool_tanh_kernel,
        out_shape=jax.ShapeDtypeStruct((1, Mp), jnp.float32),
        grid=(Mp // TM,),
        in_specs=[pl.BlockSpec((K3, TM), lambda i: (0, i))],
        out_specs=pl.BlockSpec((1, TM), lambda i: (0, i)),
        compiler_params=pltpu.CompilerParams(dimension_semantics=("parallel",)),
    )(xr)
    return out[0, :M].reshape(B, C, Do, Ho, Wo)


# ------------------------------- parameters ----------------------------------

def make_params(key, iters):
    ks = jax.random.split(key, 4 + iters)
    fm = 1.0 / iters
    p = {
        "ctx_w1": 0.3 * jax.random.normal(ks[0], (24, 1), jnp.float32),
        "ctx_b1": jnp.zeros((24, 1), jnp.float32),
        "ctx_w2": 0.2 * jax.random.normal(ks[1], (CDIM + HDIM, 24), jnp.float32),
        "ctx_b2": jnp.zeros((CDIM + HDIM, 1), jnp.float32),
        "aff_w": 0.5 * jax.random.normal(ks[2], (2, 12), jnp.float32),
        "aff_b": 0.05 * jax.random.normal(ks[3], (1, 12), jnp.float32),
        "def": [],
    }
    for i in range(iters):
        k1, k2, k3 = jax.random.split(ks[4 + i], 3)
        p["def"].append(dict(
            w1=0.2 * jax.random.normal(k1, (32, 2 + CDIM + HDIM), jnp.float32),
            b1=jnp.zeros((32, 1), jnp.float32),
            w2=0.2 * jax.random.normal(k2, (HDIM, 32 + HDIM), jnp.float32),
            b2=jnp.zeros((HDIM, 1), jnp.float32),
            w3=fm * 0.3 * jax.random.normal(k3, (3, HDIM), jnp.float32),
            b3=jnp.zeros((3, 1), jnp.float32),
        ))
    return p


# ----------------------------- Framework forward -----------------------------

def framework_forward(params, Img1, Img2, iters, augment=False):
    # TODO(synk): augment=True branch (sample_power + free_form_fields B-spline
    # augmentation) not implemented; the augment=False path is reproduced.
    B, _, D, H, W = Img1.shape
    N = D * H * W
    TN, Np = _tile_and_pad(N)
    pad = Np - N

    def pad_lanes(a):
        return jnp.pad(a, [(0, 0)] * (a.ndim - 1) + [(0, pad)]) if pad else a

    coords = pad_lanes(make_coords(D, H, W))                     # (3, Np)
    img1_p = pad_lanes(Img1.reshape(B, 1, N))                    # (B, 1, Np)
    img2_p = pad_lanes(Img2.reshape(B, 1, N))
    img1_cb = img1_p.reshape(1, B * Np)                          # batch folded on lanes

    augImg2 = Img2
    augimg2_p = img2_p

    affines = affnet_forward(params, img1_p, augimg2_p, coords, N, TN)
    cont_f, hidt_f, hidr_f = context_forward(params, img1_cb, TN)

    hid_raw = (hidr_f.reshape(HDIM, B, Np)[:, :, :N]
               .transpose(1, 0, 2).reshape(B, HDIM, D, H, W))
    hid = [hidt_f, maxpool3d_tanh(hid_raw, 2), maxpool3d_tanh(hid_raw, 4)]

    dims = (D, H, W)
    augImg2_affine = warp3d(augimg2_p, affines["flow"], coords, dims, TN)   # (B,1,Np)
    deforms_0, hid = sdhnet_forward(params["def"][0], img1_cb,
                                    augImg2_affine.reshape(1, B * Np),
                                    cont_f, hid, TN, B, Np)

    agg_flow_0 = compose_affine_deform(affines["W"], deforms_0["flow"],
                                       affines["flow"], TN)
    warpImg = warp3d(augimg2_p, agg_flow_0, coords, dims, TN)

    agg_flow = agg_flow_0
    Deforms = [deforms_0]
    agg_flows = []
    for i in range(iters - 1):
        deforms, hid = sdhnet_forward(params["def"][i + 1], img1_cb,
                                      warpImg.reshape(1, B * Np),
                                      cont_f, hid, TN, B, Np)
        agg_flow = warp3d(agg_flow, deforms["flow"], coords, dims, TN) + deforms["flow"]
        warpImg = warp3d(augimg2_p, agg_flow, coords, dims, TN)
        Deforms.append(deforms)
        agg_flows.append(agg_flow)

    def to5d(f):
        return f[:, :, :N].reshape(B, 3, D, H, W)

    affines_out = {"W": affines["W"], "b": affines["b"], "flow": to5d(affines["flow"])}
    Deforms_out = [{"flow": to5d(d["flow"])} for d in Deforms]
    agg_flows_out = [to5d(f) for f in agg_flows]
    return augImg2, affines_out, Deforms_out, to5d(agg_flow), agg_flows_out


if __name__ == "__main__":
    key = jax.random.PRNGKey(0)
    k1, k2, kp = jax.random.split(key, 3)
    B, D, H, W = 2, 8, 8, 8
    iters = 3
    Img1 = jax.random.uniform(k1, (B, 1, D, H, W), jnp.float32)
    Img2 = jax.random.uniform(k2, (B, 1, D, H, W), jnp.float32)
    params = make_params(kp, iters)

    fwd = jax.jit(lambda p, a, b: framework_forward(p, a, b, iters, augment=False))
    out = fwd(params, Img1, Img2)
    jax.block_until_ready(out)
    print("KERNEL_OK")
</pallas_src>

<mosaic_0001>
module attributes {stable_mosaic.version = 11 : i64} {
  func.func @_affine_head_kernel(%arg0: i32, %arg1: i32, %arg2: memref<1x2x512xf32, #tpu.memory_space<vmem>>, %arg3: memref<2x12xf32, #tpu.memory_space<vmem>>, %arg4: memref<1x12xf32, #tpu.memory_space<vmem>>, %arg5: memref<1x1x12xf32, #tpu.memory_space<vmem>>, %arg6: memref<2x1xf32, #tpu.memory_space<vmem>>) attributes {dimension_semantics = [#tpu.dimension_semantics<parallel>, #tpu.dimension_semantics<arbitrary>], iteration_bounds = array<i64: 2, 1>, scalar_prefetch = 0 : i64, scratch_operands = 1 : i64, tpu.core_type = #tpu.core_type<tc>, window_params = [{transform_indices = @transform_0, window_bounds = array<i64: 1, 2, 512>}, {pipeline_mode = #tpu.pipeline_mode<synchronous>, transform_indices = @transform_1, window_bounds = array<i64: 2, 12>}, {pipeline_mode = #tpu.pipeline_mode<synchronous>, transform_indices = @transform_2, window_bounds = array<i64: 1, 12>}, {transform_indices = @transform_3, window_bounds = array<i64: 1, 1, 12>}]} {
    %c0_i32 = arith.constant 0 : i32
    %0 = arith.cmpi eq, %arg1, %c0_i32 : i32
    %1 = arith.extui %0 : i1 to i32
    %c0_i32_0 = arith.constant 0 : i32
    %2 = arith.cmpi ne, %1, %c0_i32_0 : i32
    scf.if %2 {
      %cst_9 = arith.constant 0.000000e+00 : f32
      %13 = vector.broadcast %cst_9 : f32 to vector<2x1xf32>
      %c0_10 = arith.constant 0 : index
      %c0_11 = arith.constant 0 : index
      %14 = vector.load %arg6[%c0_10, %c0_11] : memref<2x1xf32, #tpu.memory_space<vmem>>, vector<2x1xf32>
      tpu.vector_store %arg6[%c0_10, %c0_11], %13 {strides = array<i32>} : memref<2x1xf32, #tpu.memory_space<vmem>>, vector<2x1xf32>,
    } else {
    }
    %c0 = arith.constant 0 : index
    %c0_1 = arith.constant 0 : index
    %3 = vector.load %arg6[%c0, %c0_1] : memref<2x1xf32, #tpu.memory_space<vmem>>, vector<2x1xf32>
    %c0_2 = arith.constant 0 : index
    %c0_3 = arith.constant 0 : index
    %c0_4 = arith.constant 0 : index
    %4 = vector.load %arg2[%c0_2, %c0_3, %c0_4] : memref<1x2x512xf32, #tpu.memory_space<vmem>>, vector<1x2x512xf32>
    %5 = vector.shape_cast %4 : vector<1x2x512xf32> to vector<2x512xf32>
    %cst = arith.constant dense<0.000000e+00> : vector<2xf32>
    %6 = vector.multi_reduction <add>, %5, %cst [1] : vector<2x512xf32> to vector<2xf32>
    %7 = vector.shape_cast %6 : vector<2xf32> to vector<2x1xf32>
    %8 = arith.addf %3, %7 : vector<2x1xf32>
    %c0_5 = arith.constant 0 : index
    %c0_6 = arith.constant 0 : index
    %9 = vector.load %arg6[%c0_5, %c0_6] : memref<2x1xf32, #tpu.memory_space<vmem>>, vector<2x1xf32>
    tpu.vector_store %arg6[%c0_5, %c0_6], %8 {strides = array<i32>} : memref<2x1xf32, #tpu.memory_space<vmem>>, vector<2x1xf32>,
    %c0_i32_7 = arith.constant 0 : i32
    %10 = arith.cmpi eq, %arg1, %c0_i32_7 : i32
    %11 = arith.extui %10 : i1 to i32
    %c0_i32_8 = arith.constant 0 : i32
    %12 = arith.cmpi ne, %11, %c0_i32_8 : i32
    scf.if %12 {
      %c0_9 = arith.constant 0 : index
      %c0_10 = arith.constant 0 : index
      %13 = vector.load %arg6[%c0_9, %c0_10] : memref<2x1xf32, #tpu.memory_space<vmem>>, vector<2x1xf32>
      %cst_11 = arith.constant 0.001953125 : f32
      %14 = vector.broadcast %cst_11 : f32 to vector<2x1xf32>
      %15 = arith.mulf %13, %14 : vector<2x1xf32>
      %c0_12 = arith.constant 0 : index
      %c0_13 = arith.constant 0 : index
      %16 = vector.load %arg3[%c0_12, %c0_13] : memref<2x12xf32, #tpu.memory_space<vmem>>, vector<2x12xf32>
      %17 = vector.broadcast %15 : vector<2x1xf32> to vector<2x12xf32>
      %18 = arith.mulf %16, %17 : vector<2x12xf32>
      %cst_14 = arith.constant dense<0.000000e+00> : vector<12xf32>
      %19 = vector.multi_reduction <add>, %18, %cst_14 [0] : vector<2x12xf32> to vector<12xf32>
      %20 = vector.shape_cast %19 : vector<12xf32> to vector<1x12xf32>
      %c0_15 = arith.constant 0 : index
      %c0_16 = arith.constant 0 : index
      %21 = vector.load %arg4[%c0_15, %c0_16] : memref<1x12xf32, #tpu.memory_space<vmem>>, vector<1x12xf32>
      %22 = arith.addf %20, %21 : vector<1x12xf32>
      %c0_17 = arith.constant 0 : index
      %c0_18 = arith.constant 0 : index
      %c0_19 = arith.constant 0 : index
      %23 = vector.load %arg5[%c0_17, %c0_18, %c0_19] : memref<1x1x12xf32, #tpu.memory_space<vmem>>, vector<1x1x12xf32>
      %24 = vector.shape_cast %23 : vector<1x1x12xf32> to vector<1x12xf32>
      %25 = vector.shape_cast %22 : vector<1x12xf32> to vector<1x1x12xf32>
      tpu.vector_store %arg5[%c0_17, %c0_18, %c0_19], %25 {strides = array<i32>} : memref<1x1x12xf32, #tpu.memory_space<vmem>>, vector<1x1x12xf32>,
    } else {
    }
    return
  }
  func.func @transform_0(%arg0: i32, %arg1: i32) -> (i32, i32, i32) {
    %c0_i32 = arith.constant 0 : i32
    %c0_i32_0 = arith.constant 0 : i32
    return %arg0, %c0_i32, %arg1 : i32, i32, i32
  }
  func.func @transform_1(%arg0: i32, %arg1: i32) -> (i32, i32) {
    %c0_i32 = arith.constant 0 : i32
    %c0_i32_0 = arith.constant 0 : i32
    %c0_i32_1 = arith.constant 0 : i32
    return %c0_i32, %c0_i32_0 : i32, i32
  }
  func.func @transform_2(%arg0: i32, %arg1: i32) -> (i32, i32) {
    %c0_i32 = arith.constant 0 : i32
    %c0_i32_0 = arith.constant 0 : i32
    %c0_i32_1 = arith.constant 0 : i32
    return %c0_i32, %c0_i32_0 : i32, i32
  }
  func.func @transform_3(%arg0: i32, %arg1: i32) -> (i32, i32, i32) {
    %c0_i32 = arith.constant 0 : i32
    %c0_i32_0 = arith.constant 0 : i32
    %c0_i32_1 = arith.constant 0 : i32
    return %arg0, %c0_i32, %c0_i32_0 : i32, i32, i32
  }
}

module attributes {stable_mosaic.version = 11 : i64} {
  func.func @_affine_flow_kernel(%arg0: i32, %arg1: i32, %arg2: memref<1x3x4xf32, #tpu.memory_space<vmem>>, %arg3: memref<3x512xf32, #tpu.memory_space<vmem>>, %arg4: memref<1x3x512xf32, #tpu.memory_space<vmem>>) attributes {dimension_semantics = [#tpu.dimension_semantics<parallel>, #tpu.dimension_semantics<parallel>], iteration_bounds = array<i64: 2, 1>, scalar_prefetch = 0 : i64, scratch_operands = 0 : i64, tpu.core_type = #tpu.core_type<tc>, window_params = [{transform_indices = @transform_0, window_bounds = array<i64: 1, 3, 4>}, {transform_indices = @transform_1, window_bounds = array<i64: 3, 512>}, {transform_indices = @transform_2, window_bounds = array<i64: 1, 3, 512>}]} {
    %c0 = arith.constant 0 : index
    %c0_0 = arith.constant 0 : index
    %c0_1 = arith.constant 0 : index
    %0 = vector.load %arg2[%c0, %c0_0, %c0_1] : memref<1x3x4xf32, #tpu.memory_space<vmem>>, vector<1x3x4xf32>
    %1 = vector.shape_cast %0 : vector<1x3x4xf32> to vector<3x4xf32>
    %c0_2 = arith.constant 0 : index
    %c0_3 = arith.constant 0 : index
    %2 = vector.load %arg3[%c0_2, %c0_3] : memref<3x512xf32, #tpu.memory_space<vmem>>, vector<3x512xf32>
    %3 = vector.extract_strided_slice %1 {offsets = [0, 0], sizes = [3, 1], strides = [1, 1]} : vector<3x4xf32> to vector<3x1xf32>
    %4 = vector.extract_strided_slice %2 {offsets = [0, 0], sizes = [1, 512], strides = [1, 1]} : vector<3x512xf32> to vector<1x512xf32>
    %5 = vector.broadcast %3 : vector<3x1xf32> to vector<3x512xf32>
    %6 = vector.broadcast %4 : vector<1x512xf32> to vector<3x512xf32>
    %7 = arith.mulf %5, %6 : vector<3x512xf32>
    %8 = vector.extract_strided_slice %1 {offsets = [0, 1], sizes = [3, 1], strides = [1, 1]} : vector<3x4xf32> to vector<3x1xf32>
    %9 = vector.extract_strided_slice %2 {offsets = [1, 0], sizes = [1, 512], strides = [1, 1]} : vector<3x512xf32> to vector<1x512xf32>
    %10 = vector.broadcast %8 : vector<3x1xf32> to vector<3x512xf32>
    %11 = vector.broadcast %9 : vector<1x512xf32> to vector<3x512xf32>
    %12 = arith.mulf %10, %11 : vector<3x512xf32>
    %13 = arith.addf %7, %12 : vector<3x512xf32>
    %14 = vector.extract_strided_slice %1 {offsets = [0, 2], sizes = [3, 1], strides = [1, 1]} : vector<3x4xf32> to vector<3x1xf32>
    %15 = vector.extract_strided_slice %2 {offsets = [2, 0], sizes = [1, 512], strides = [1, 1]} : vector<3x512xf32> to vector<1x512xf32>
    %16 = vector.broadcast %14 : vector<3x1xf32> to vector<3x512xf32>
    %17 = vector.broadcast %15 : vector<1x512xf32> to vector<3x512xf32>
    %18 = arith.mulf %16, %17 : vector<3x512xf32>
    %19 = arith.addf %13, %18 : vector<3x512xf32>
    %20 = vector.extract_strided_slice %1 {offsets = [0, 3], sizes = [3, 1], strides = [1, 1]} : vector<3x4xf32> to vector<3x1xf32>
    %21 = vector.broadcast %20 : vector<3x1xf32> to vector<3x512xf32>
    %22 = arith.addf %19, %21 : vector<3x512xf32>
    %c0_4 = arith.constant 0 : index
    %c0_5 = arith.constant 0 : index
    %c0_6 = arith.constant 0 : index
    %23 = vector.load %arg4[%c0_4, %c0_5, %c0_6] : memref<1x3x512xf32, #tpu.memory_space<vmem>>, vector<1x3x512xf32>
    %24 = vector.shape_cast %23 : vector<1x3x512xf32> to vector<3x512xf32>
    %25 = vector.shape_cast %22 : vector<3x512xf32> to vector<1x3x512xf32>
    tpu.vector_store %arg4[%c0_4, %c0_5, %c0_6], %25 {strides = array<i32>} : memref<1x3x512xf32, #tpu.memory_space<vmem>>, vector<1x3x512xf32>,
    return
  }
  func.func @transform_0(%arg0: i32, %arg1: i32) -> (i32, i32, i32) {
    %c0_i32 = arith.constant 0 : i32
    %c0_i32_0 = arith.constant 0 : i32
    %c0_i32_1 = arith.constant 0 : i32
    return %arg0, %c0_i32, %c0_i32_0 : i32, i32, i32
  }
  func.func @transform_1(%arg0: i32, %arg1: i32) -> (i32, i32) {
    %c0_i32 = arith.constant 0 : i32
    %c0_i32_0 = arith.constant 0 : i32
    return %c0_i32, %arg1 : i32, i32
  }
  func.func @transform_2(%arg0: i32, %arg1: i32) -> (i32, i32, i32) {
    %c0_i32 = arith.constant 0 : i32
    %c0_i32_0 = arith.constant 0 : i32
    return %arg0, %c0_i32, %arg1 : i32, i32, i32
  }
}

module attributes {stable_mosaic.version = 11 : i64} {
  func.func @_warp_prep_kernel(%arg0: i32, %arg1: i32, %arg2: memref<1x3x512xf32, #tpu.memory_space<vmem>>, %arg3: memref<3x512xf32, #tpu.memory_space<vmem>>, %arg4: memref<1x1x512xi32, #tpu.memory_space<vmem>>, %arg5: memref<1x3x512xf32, #tpu.memory_space<vmem>>) attributes {dimension_semantics = [#tpu.dimension_semantics<parallel>, #tpu.dimension_semantics<parallel>], iteration_bounds = array<i64: 2, 1>, scalar_prefetch = 0 : i64, scratch_operands = 0 : i64, tpu.core_type = #tpu.core_type<tc>, window_params = [{transform_indices = @transform_0, window_bounds = array<i64: 1, 3, 512>}, {transform_indices = @transform_1, window_bounds = array<i64: 3, 512>}, {transform_indices = @transform_2, window_bounds = array<i64: 1, 1, 512>}, {transform_indices = @transform_3, window_bounds = array<i64: 1, 3, 512>}]} {
    %c0 = arith.constant 0 : index
    %c0_0 = arith.constant 0 : index
    %c0_1 = arith.constant 0 : index
    %0 = vector.load %arg2[%c0, %c0_0, %c0_1] : memref<1x3x512xf32, #tpu.memory_space<vmem>>, vector<1x3x512xf32>
    %1 = vector.shape_cast %0 : vector<1x3x512xf32> to vector<3x512xf32>
    %c0_2 = arith.constant 0 : index
    %c0_3 = arith.constant 0 : index
    %2 = vector.load %arg3[%c0_2, %c0_3] : memref<3x512xf32, #tpu.memory_space<vmem>>, vector<3x512xf32>
    %3 = vector.extract_strided_slice %2 {offsets = [0, 0], sizes = [1, 512], strides = [1, 1]} : vector<3x512xf32> to vector<1x512xf32>
    %4 = vector.extract_strided_slice %1 {offsets = [0, 0], sizes = [1, 512], strides = [1, 1]} : vector<3x512xf32> to vector<1x512xf32>
    %5 = arith.addf %3, %4 : vector<1x512xf32>
    %cst = arith.constant 0.000000e+00 : f32
    %cst_4 = arith.constant 7.000000e+00 : f32
    %6 = vector.broadcast %cst : f32 to vector<1x512xf32>
    %7 = arith.maximumf %6, %5 : vector<1x512xf32>
    %8 = vector.broadcast %cst_4 : f32 to vector<1x512xf32>
    %9 = arith.minimumf %8, %7 : vector<1x512xf32>
    %10 = vector.extract_strided_slice %2 {offsets = [1, 0], sizes = [1, 512], strides = [1, 1]} : vector<3x512xf32> to vector<1x512xf32>
    %11 = vector.extract_strided_slice %1 {offsets = [1, 0], sizes = [1, 512], strides = [1, 1]} : vector<3x512xf32> to vector<1x512xf32>
    %12 = arith.addf %10, %11 : vector<1x512xf32>
    %cst_5 = arith.constant 0.000000e+00 : f32
    %cst_6 = arith.constant 7.000000e+00 : f32
    %13 = vector.broadcast %cst_5 : f32 to vector<1x512xf32>
    %14 = arith.maximumf %13, %12 : vector<1x512xf32>
    %15 = vector.broadcast %cst_6 : f32 to vector<1x512xf32>
    %16 = arith.minimumf %15, %14 : vector<1x512xf32>
    %17 = vector.extract_strided_slice %2 {offsets = [2, 0], sizes = [1, 512], strides = [1, 1]} : vector<3x512xf32> to vector<1x512xf32>
    %18 = vector.extract_strided_slice %1 {offsets = [2, 0], sizes = [1, 512], strides = [1, 1]} : vector<3x512xf32> to vector<1x512xf32>
    %19 = arith.addf %17, %18 : vector<1x512xf32>
    %cst_7 = arith.constant 0.000000e+00 : f32
    %cst_8 = arith.constant 7.000000e+00 : f32
    %20 = vector.broadcast %cst_7 : f32 to vector<1x512xf32>
    %21 = arith.maximumf %20, %19 : vector<1x512xf32>
    %22 = vector.broadcast %cst_8 : f32 to vector<1x512xf32>
    %23 = arith.minimumf %22, %21 : vector<1x512xf32>
    %24 = math.floor %9 : vector<1x512xf32>
    %cst_9 = arith.constant 0.000000e+00 : f32
    %cst_10 = arith.constant 6.000000e+00 : f32
    %25 = vector.broadcast %cst_9 : f32 to vector<1x512xf32>
    %26 = arith.maximumf %25, %24 : vector<1x512xf32>
    %27 = vector.broadcast %cst_10 : f32 to vector<1x512xf32>
    %28 = arith.minimumf %27, %26 : vector<1x512xf32>
    %29 = math.floor %16 : vector<1x512xf32>
    %cst_11 = arith.constant 0.000000e+00 : f32
    %cst_12 = arith.constant 6.000000e+00 : f32
    %30 = vector.broadcast %cst_11 : f32 to vector<1x512xf32>
    %31 = arith.maximumf %30, %29 : vector<1x512xf32>
    %32 = vector.broadcast %cst_12 : f32 to vector<1x512xf32>
    %33 = arith.minimumf %32, %31 : vector<1x512xf32>
    %34 = math.floor %23 : vector<1x512xf32>
    %cst_13 = arith.constant 0.000000e+00 : f32
    %cst_14 = arith.constant 6.000000e+00 : f32
    %35 = vector.broadcast %cst_13 : f32 to vector<1x512xf32>
    %36 = arith.maximumf %35, %34 : vector<1x512xf32>
    %37 = vector.broadcast %cst_14 : f32 to vector<1x512xf32>
    %38 = arith.minimumf %37, %36 : vector<1x512xf32>
    %39 = arith.fptosi %28 : vector<1x512xf32> to vector<1x512xi32>
    %c64_i32 = arith.constant 64 : i32
    %40 = vector.broadcast %c64_i32 : i32 to vector<1x512xi32>
    %41 = arith.muli %39, %40 : vector<1x512xi32>
    %42 = arith.fptosi %33 : vector<1x512xf32> to vector<1x512xi32>
    %c8_i32 = arith.constant 8 : i32
    %43 = vector.broadcast %c8_i32 : i32 to vector<1x512xi32>
    %44 = arith.muli %42, %43 : vector<1x512xi32>
    %45 = arith.addi %41, %44 : vector<1x512xi32>
    %46 = arith.fptosi %38 : vector<1x512xf32> to vector<1x512xi32>
    %47 = arith.addi %45, %46 : vector<1x512xi32>
    %c0_15 = arith.constant 0 : index
    %c0_16 = arith.constant 0 : index
    %c0_17 = arith.constant 0 : index
    %48 = vector.load %arg4[%c0_15, %c0_16, %c0_17] : memref<1x1x512xi32, #tpu.memory_space<vmem>>, vector<1x1x512xi32>
    %49 = vector.shape_cast %48 : vector<1x1x512xi32> to vector<1x512xi32>
    %50 = vector.shape_cast %47 : vector<1x512xi32> to vector<1x1x512xi32>
    tpu.vector_store %arg4[%c0_15, %c0_16, %c0_17], %50 {strides = array<i32>} : memref<1x1x512xi32, #tpu.memory_space<vmem>>, vector<1x1x512xi32>,
    %51 = arith.subf %9, %28 : vector<1x512xf32>
    %52 = arith.subf %16, %33 : vector<1x512xf32>
    %53 = arith.subf %23, %38 : vector<1x512xf32>
    %54 = tpu.concatenate %51, %52, %53 in 0 : vector<1x512xf32>, vector<1x512xf32>, vector<1x512xf32> -> vector<3x512xf32>
    %c0_18 = arith.constant 0 : index
    %c0_19 = arith.constant 0 : index
    %c0_20 = arith.constant 0 : index
    %55 = vector.load %arg5[%c0_18, %c0_19, %c0_20] : memref<1x3x512xf32, #tpu.memory_space<vmem>>, vector<1x3x512xf32>
    %56 = vector.shape_cast %55 : vector<1x3x512xf32> to vector<3x512xf32>
    %57 = vector.shape_cast %54 : vector<3x512xf32> to vector<1x3x512xf32>
    tpu.vector_store %arg5[%c0_18, %c0_19, %c0_20], %57 {strides = array<i32>} : memref<1x3x512xf32, #tpu.memory_space<vmem>>, vector<1x3x512xf32>,
    return
  }
  func.func @transform_0(%arg0: i32, %arg1: i32) -> (i32, i32, i32) {
    %c0_i32 = arith.constant 0 : i32
    %c0_i32_0 = arith.constant 0 : i32
    return %arg0, %c0_i32, %arg1 : i32, i32, i32
  }
  func.func @transform_1(%arg0: i32, %arg1: i32) -> (i32, i32) {
    %c0_i32 = arith.constant 0 : i32
    %c0_i32_0 = arith.constant 0 : i32
    return %c0_i32, %arg1 : i32, i32
  }
  func.func @transform_2(%arg0: i32, %arg1: i32) -> (i32, i32, i32) {
    %c0_i32 = arith.constant 0 : i32
    %c0_i32_0 = arith.constant 0 : i32
    return %arg0, %c0_i32, %arg1 : i32, i32, i32
  }
  func.func @transform_3(%arg0: i32, %arg1: i32) -> (i32, i32, i32) {
    %c0_i32 = arith.constant 0 : i32
    %c0_i32_0 = arith.constant 0 : i32
    return %arg0, %c0_i32, %arg1 : i32, i32, i32
  }
}

module attributes {stable_mosaic.version = 11 : i64} {
  func.func @_warp_combine_kernel(%arg0: i32, %arg1: i32, %arg2: memref<1x8x512xf32, #tpu.memory_space<vmem>>, %arg3: memref<1x3x512xf32, #tpu.memory_space<vmem>>, %arg4: memref<1x1x512xf32, #tpu.memory_space<vmem>>) attributes {dimension_semantics = [#tpu.dimension_semantics<parallel>, #tpu.dimension_semantics<parallel>], iteration_bounds = array<i64: 2, 1>, scalar_prefetch = 0 : i64, scratch_operands = 0 : i64, tpu.core_type = #tpu.core_type<tc>, window_params = [{transform_indices = @transform_0, window_bounds = array<i64: 1, 8, 512>}, {transform_indices = @transform_1, window_bounds = array<i64: 1, 3, 512>}, {transform_indices = @transform_2, window_bounds = array<i64: 1, 1, 512>}]} {
    %c0 = arith.constant 0 : index
    %c0_0 = arith.constant 0 : index
    %c0_1 = arith.constant 0 : index
    %0 = vector.load %arg2[%c0, %c0_0, %c0_1] : memref<1x8x512xf32, #tpu.memory_space<vmem>>, vector<1x8x512xf32>
    %1 = vector.shape_cast %0 : vector<1x8x512xf32> to vector<8x512xf32>
    %c0_2 = arith.constant 0 : index
    %c0_3 = arith.constant 0 : index
    %c0_4 = arith.constant 0 : index
    %2 = vector.load %arg3[%c0_2, %c0_3, %c0_4] : memref<1x3x512xf32, #tpu.memory_space<vmem>>, vector<1x3x512xf32>
    %3 = vector.shape_cast %2 : vector<1x3x512xf32> to vector<3x512xf32>
    %4 = vector.extract_strided_slice %3 {offsets = [0, 0], sizes = [1, 512], strides = [1, 1]} : vector<3x512xf32> to vector<1x512xf32>
    %5 = vector.extract_strided_slice %3 {offsets = [1, 0], sizes = [1, 512], strides = [1, 1]} : vector<3x512xf32> to vector<1x512xf32>
    %6 = vector.extract_strided_slice %3 {offsets = [2, 0], sizes = [1, 512], strides = [1, 1]} : vector<3x512xf32> to vector<1x512xf32>
    %cst = arith.constant 1.000000e+00 : f32
    %7 = vector.broadcast %cst : f32 to vector<1x512xf32>
    %8 = arith.subf %7, %4 : vector<1x512xf32>
    %cst_5 = arith.constant 1.000000e+00 : f32
    %9 = vector.broadcast %cst_5 : f32 to vector<1x512xf32>
    %10 = arith.subf %9, %5 : vector<1x512xf32>
    %11 = arith.mulf %8, %10 : vector<1x512xf32>
    %cst_6 = arith.constant 1.000000e+00 : f32
    %12 = vector.broadcast %cst_6 : f32 to vector<1x512xf32>
    %13 = arith.subf %12, %6 : vector<1x512xf32>
    %14 = arith.mulf %11, %13 : vector<1x512xf32>
    %15 = vector.extract_strided_slice %1 {offsets = [0, 0], sizes = [1, 512], strides = [1, 1]} : vector<8x512xf32> to vector<1x512xf32>
    %16 = arith.mulf %15, %14 : vector<1x512xf32>
    %cst_7 = arith.constant 1.000000e+00 : f32
    %17 = vector.broadcast %cst_7 : f32 to vector<1x512xf32>
    %18 = arith.subf %17, %4 : vector<1x512xf32>
    %cst_8 = arith.constant 1.000000e+00 : f32
    %19 = vector.broadcast %cst_8 : f32 to vector<1x512xf32>
    %20 = arith.subf %19, %5 : vector<1x512xf32>
    %21 = arith.mulf %18, %20 : vector<1x512xf32>
    %22 = arith.mulf %21, %6 : vector<1x512xf32>
    %23 = vector.extract_strided_slice %1 {offsets = [1, 0], sizes = [1, 512], strides = [1, 1]} : vector<8x512xf32> to vector<1x512xf32>
    %24 = arith.mulf %23, %22 : vector<1x512xf32>
    %25 = arith.addf %16, %24 : vector<1x512xf32>
    %cst_9 = arith.constant 1.000000e+00 : f32
    %26 = vector.broadcast %cst_9 : f32 to vector<1x512xf32>
    %27 = arith.subf %26, %4 : vector<1x512xf32>
    %28 = arith.mulf %27, %5 : vector<1x512xf32>
    %cst_10 = arith.constant 1.000000e+00 : f32
    %29 = vector.broadcast %cst_10 : f32 to vector<1x512xf32>
    %30 = arith.subf %29, %6 : vector<1x512xf32>
    %31 = arith.mulf %28, %30 : vector<1x512xf32>
    %32 = vector.extract_strided_slice %1 {offsets = [2, 0], sizes = [1, 512], strides = [1, 1]} : vector<8x512xf32> to vector<1x512xf32>
    %33 = arith.mulf %32, %31 : vector<1x512xf32>
    %34 = arith.addf %25, %33 : vector<1x512xf32>
    %cst_11 = arith.constant 1.000000e+00 : f32
    %35 = vector.broadcast %cst_11 : f32 to vector<1x512xf32>
    %36 = arith.subf %35, %4 : vector<1x512xf32>
    %37 = arith.mulf %36, %5 : vector<1x512xf32>
    %38 = arith.mulf %37, %6 : vector<1x512xf32>
    %39 = vector.extract_strided_slice %1 {offsets = [3, 0], sizes = [1, 512], strides = [1, 1]} : vector<8x512xf32> to vector<1x512xf32>
    %40 = arith.mulf %39, %38 : vector<1x512xf32>
    %41 = arith.addf %34, %40 : vector<1x512xf32>
    %cst_12 = arith.constant 1.000000e+00 : f32
    %42 = vector.broadcast %cst_12 : f32 to vector<1x512xf32>
    %43 = arith.subf %42, %5 : vector<1x512xf32>
    %44 = arith.mulf %4, %43 : vector<1x512xf32>
    %cst_13 = arith.constant 1.000000e+00 : f32
    %45 = vector.broadcast %cst_13 : f32 to vector<1x512xf32>
    %46 = arith.subf %45, %6 : vector<1x512xf32>
    %47 = arith.mulf %44, %46 : vector<1x512xf32>
    %48 = vector.extract_strided_slice %1 {offsets = [4, 0], sizes = [1, 512], strides = [1, 1]} : vector<8x512xf32> to vector<1x512xf32>
    %49 = arith.mulf %48, %47 : vector<1x512xf32>
    %50 = arith.addf %41, %49 : vector<1x512xf32>
    %cst_14 = arith.constant 1.000000e+00 : f32
    %51 = vector.broadcast %cst_14 : f32 to vector<1x512xf32>
    %52 = arith.subf %51, %5 : vector<1x512xf32>
    %53 = arith.mulf %4, %52 : vector<1x512xf32>
    %54 = arith.mulf %53, %6 : vector<1x512xf32>
    %55 = vector.extract_strided_slice %1 {offsets = [5, 0], sizes = [1, 512], strides = [1, 1]} : vector<8x512xf32> to vector<1x512xf32>
    %56 = arith.mulf %55, %54 : vector<1x512xf32>
    %57 = arith.addf %50, %56 : vector<1x512xf32>
    %58 = arith.mulf %4, %5 : vector<1x512xf32>
    %cst_15 = arith.constant 1.000000e+00 : f32
    %59 = vector.broadcast %cst_15 : f32 to vector<1x512xf32>
    %60 = arith.subf %59, %6 : vector<1x512xf32>
    %61 = arith.mulf %58, %60 : vector<1x512xf32>
    %62 = vector.extract_strided_slice %1 {offsets = [6, 0], sizes = [1, 512], strides = [1, 1]} : vector<8x512xf32> to vector<1x512xf32>
    %63 = arith.mulf %62, %61 : vector<1x512xf32>
    %64 = arith.addf %57, %63 : vector<1x512xf32>
    %65 = arith.mulf %4, %5 : vector<1x512xf32>
    %66 = arith.mulf %65, %6 : vector<1x512xf32>
    %67 = vector.extract_strided_slice %1 {offsets = [7, 0], sizes = [1, 512], strides = [1, 1]} : vector<8x512xf32> to vector<1x512xf32>
    %68 = arith.mulf %67, %66 : vector<1x512xf32>
    %69 = arith.addf %64, %68 : vector<1x512xf32>
    %c0_16 = arith.constant 0 : index
    %c0_17 = arith.constant 0 : index
    %c0_18 = arith.constant 0 : index
    %70 = vector.load %arg4[%c0_16, %c0_17, %c0_18] : memref<1x1x512xf32, #tpu.memory_space<vmem>>, vector<1x1x512xf32>
    %71 = vector.shape_cast %70 : vector<1x1x512xf32> to vector<1x512xf32>
    %72 = vector.shape_cast %69 : vector<1x512xf32> to vector<1x1x512xf32>
    tpu.vector_store %arg4[%c0_16, %c0_17, %c0_18], %72 {strides = array<i32>} : memref<1x1x512xf32, #tpu.memory_space<vmem>>, vector<1x1x512xf32>,
    return
  }
  func.func @transform_0(%arg0: i32, %arg1: i32) -> (i32, i32, i32) {
    %c0_i32 = arith.constant 0 : i32
    %c0_i32_0 = arith.constant 0 : i32
    return %arg0, %c0_i32, %arg1 : i32, i32, i32
  }
  func.func @transform_1(%arg0: i32, %arg1: i32) -> (i32, i32, i32) {
    %c0_i32 = arith.constant 0 : i32
    %c0_i32_0 = arith.constant 0 : i32
    return %arg0, %c0_i32, %arg1 : i32, i32, i32
  }
  func.func @transform_2(%arg0: i32, %arg1: i32) -> (i32, i32, i32) {
    %c0_i32 = arith.constant 0 : i32
    %c0_i32_0 = arith.constant 0 : i32
    return %arg0, %c0_i32, %arg1 : i32, i32, i32
  }
}

module attributes {stable_mosaic.version = 11 : i64} {
  func.func @_flow_compose_kernel(%arg0: i32, %arg1: i32, %arg2: memref<1x3x3xf32, #tpu.memory_space<vmem>>, %arg3: memref<1x3x512xf32, #tpu.memory_space<vmem>>, %arg4: memref<1x3x512xf32, #tpu.memory_space<vmem>>, %arg5: memref<1x3x512xf32, #tpu.memory_space<vmem>>) attributes {dimension_semantics = [#tpu.dimension_semantics<parallel>, #tpu.dimension_semantics<parallel>], iteration_bounds = array<i64: 2, 1>, scalar_prefetch = 0 : i64, scratch_operands = 0 : i64, tpu.core_type = #tpu.core_type<tc>, window_params = [{transform_indices = @transform_0, window_bounds = array<i64: 1, 3, 3>}, {transform_indices = @transform_1, window_bounds = array<i64: 1, 3, 512>}, {transform_indices = @transform_2, window_bounds = array<i64: 1, 3, 512>}, {transform_indices = @transform_3, window_bounds = array<i64: 1, 3, 512>}]} {
    %c0 = arith.constant 0 : index
    %c0_0 = arith.constant 0 : index
    %c0_1 = arith.constant 0 : index
    %0 = vector.load %arg2[%c0, %c0_0, %c0_1] : memref<1x3x3xf32, #tpu.memory_space<vmem>>, vector<1x3x3xf32>
    %1 = vector.shape_cast %0 : vector<1x3x3xf32> to vector<3x3xf32>
    %c0_2 = arith.constant 0 : index
    %c0_3 = arith.constant 0 : index
    %c0_4 = arith.constant 0 : index
    %2 = vector.load %arg3[%c0_2, %c0_3, %c0_4] : memref<1x3x512xf32, #tpu.memory_space<vmem>>, vector<1x3x512xf32>
    %3 = vector.shape_cast %2 : vector<1x3x512xf32> to vector<3x512xf32>
    %4 = vector.extract_strided_slice %1 {offsets = [0, 0], sizes = [3, 1], strides = [1, 1]} : vector<3x3xf32> to vector<3x1xf32>
    %5 = vector.extract_strided_slice %3 {offsets = [0, 0], sizes = [1, 512], strides = [1, 1]} : vector<3x512xf32> to vector<1x512xf32>
    %6 = vector.broadcast %4 : vector<3x1xf32> to vector<3x512xf32>
    %7 = vector.broadcast %5 : vector<1x512xf32> to vector<3x512xf32>
    %8 = arith.mulf %6, %7 : vector<3x512xf32>
    %9 = vector.extract_strided_slice %1 {offsets = [0, 1], sizes = [3, 1], strides = [1, 1]} : vector<3x3xf32> to vector<3x1xf32>
    %10 = vector.extract_strided_slice %3 {offsets = [1, 0], sizes = [1, 512], strides = [1, 1]} : vector<3x512xf32> to vector<1x512xf32>
    %11 = vector.broadcast %9 : vector<3x1xf32> to vector<3x512xf32>
    %12 = vector.broadcast %10 : vector<1x512xf32> to vector<3x512xf32>
    %13 = arith.mulf %11, %12 : vector<3x512xf32>
    %14 = arith.addf %8, %13 : vector<3x512xf32>
    %15 = vector.extract_strided_slice %1 {offsets = [0, 2], sizes = [3, 1], strides = [1, 1]} : vector<3x3xf32> to vector<3x1xf32>
    %16 = vector.extract_strided_slice %3 {offsets = [2, 0], sizes = [1, 512], strides = [1, 1]} : vector<3x512xf32> to vector<1x512xf32>
    %17 = vector.broadcast %15 : vector<3x1xf32> to vector<3x512xf32>
    %18 = vector.broadcast %16 : vector<1x512xf32> to vector<3x512xf32>
    %19 = arith.mulf %17, %18 : vector<3x512xf32>
    %20 = arith.addf %14, %19 : vector<3x512xf32>
    %c0_5 = arith.constant 0 : index
    %c0_6 = arith.constant 0 : index
    %c0_7 = arith.constant 0 : index
    %21 = vector.load %arg4[%c0_5, %c0_6, %c0_7] : memref<1x3x512xf32, #tpu.memory_space<vmem>>, vector<1x3x512xf32>
    %22 = vector.shape_cast %21 : vector<1x3x512xf32> to vector<3x512xf32>
    %23 = arith.addf %20, %22 : vector<3x512xf32>
    %c0_8 = arith.constant 0 : index
    %c0_9 = arith.constant 0 : index
    %c0_10 = arith.constant 0 : index
    %24 = vector.load %arg5[%c0_8, %c0_9, %c0_10] : memref<1x3x512xf32, #tpu.memory_space<vmem>>, vector<1x3x512xf32>
    %25 = vector.shape_cast %24 : vector<1x3x512xf32> to vector<3x512xf32>
    %26 = vector.shape_cast %23 : vector<3x512xf32> to vector<1x3x512xf32>
    tpu.vector_store %arg5[%c0_8, %c0_9, %c0_10], %26 {strides = array<i32>} : memref<1x3x512xf32, #tpu.memory_space<vmem>>, vector<1x3x512xf32>,
    return
  }
  func.func @transform_0(%arg0: i32, %arg1: i32) -> (i32, i32, i32) {
    %c0_i32 = arith.constant 0 : i32
    %c0_i32_0 = arith.constant 0 : i32
    %c0_i32_1 = arith.constant 0 : i32
    return %arg0, %c0_i32, %c0_i32_0 : i32, i32, i32
  }
  func.func @transform_1(%arg0: i32, %arg1: i32) -> (i32, i32, i32) {
    %c0_i32 = arith.constant 0 : i32
    %c0_i32_0 = arith.constant 0 : i32
    return %arg0, %c0_i32, %arg1 : i32, i32, i32
  }
  func.func @transform_2(%arg0: i32, %arg1: i32) -> (i32, i32, i32) {
    %c0_i32 = arith.constant 0 : i32
    %c0_i32_0 = arith.constant 0 : i32
    return %arg0, %c0_i32, %arg1 : i32, i32, i32
  }
  func.func @transform_3(%arg0: i32, %arg1: i32) -> (i32, i32, i32) {
    %c0_i32 = arith.constant 0 : i32
    %c0_i32_0 = arith.constant 0 : i32
    return %arg0, %c0_i32, %arg1 : i32, i32, i32
  }
}

module attributes {stable_mosaic.version = 11 : i64} {
  func.func @_context_kernel(%arg0: i32, %arg1: memref<1x512xf32, #tpu.memory_space<vmem>>, %arg2: memref<24x1xf32, #tpu.memory_space<vmem>>, %arg3: memref<24x1xf32, #tpu.memory_space<vmem>>, %arg4: memref<32x24xf32, #tpu.memory_space<vmem>>, %arg5: memref<32x1xf32, #tpu.memory_space<vmem>>, %arg6: memref<16x24xf32, #tpu.memory_space<vmem>>, %arg7: memref<16x1xf32, #tpu.memory_space<vmem>>, %arg8: memref<32x512xf32, #tpu.memory_space<vmem>>, %arg9: memref<16x512xf32, #tpu.memory_space<vmem>>, %arg10: memref<16x512xf32, #tpu.memory_space<vmem>>) attributes {dimension_semantics = [#tpu.dimension_semantics<parallel>], iteration_bounds = array<i64: 2>, scalar_prefetch = 0 : i64, scratch_operands = 0 : i64, tpu.core_type = #tpu.core_type<tc>, window_params = [{transform_indices = @transform_0, window_bounds = array<i64: 1, 512>}, {pipeline_mode = #tpu.pipeline_mode<synchronous>, transform_indices = @transform_1, window_bounds = array<i64: 24, 1>}, {pipeline_mode = #tpu.pipeline_mode<synchronous>, transform_indices = @transform_2, window_bounds = array<i64: 24, 1>}, {pipeline_mode = #tpu.pipeline_mode<synchronous>, transform_indices = @transform_3, window_bounds = array<i64: 32, 24>}, {pipeline_mode = #tpu.pipeline_mode<synchronous>, transform_indices = @transform_4, window_bounds = array<i64: 32, 1>}, {pipeline_mode = #tpu.pipeline_mode<synchronous>, transform_indices = @transform_5, window_bounds = array<i64: 16, 24>}, {pipeline_mode = #tpu.pipeline_mode<synchronous>, transform_indices = @transform_6, window_bounds = array<i64: 16, 1>}, {transform_indices = @transform_7, window_bounds = array<i64: 32, 512>}, {transform_indices = @transform_8, window_bounds = array<i64: 16, 512>}, {transform_indices = @transform_9, window_bounds = array<i64: 16, 512>}]} {
    %c0 = arith.constant 0 : index
    %c0_0 = arith.constant 0 : index
    %0 = vector.load %arg1[%c0, %c0_0] : memref<1x512xf32, #tpu.memory_space<vmem>>, vector<1x512xf32>
    %c0_1 = arith.constant 0 : index
    %c0_2 = arith.constant 0 : index
    %1 = vector.load %arg2[%c0_1, %c0_2] : memref<24x1xf32, #tpu.memory_space<vmem>>, vector<24x1xf32>
    %2 = vector.broadcast %1 : vector<24x1xf32> to vector<24x512xf32>
    %3 = vector.broadcast %0 : vector<1x512xf32> to vector<24x512xf32>
    %4 = arith.mulf %2, %3 : vector<24x512xf32>
    %c0_3 = arith.constant 0 : index
    %c0_4 = arith.constant 0 : index
    %5 = vector.load %arg3[%c0_3, %c0_4] : memref<24x1xf32, #tpu.memory_space<vmem>>, vector<24x1xf32>
    %6 = vector.broadcast %5 : vector<24x1xf32> to vector<24x512xf32>
    %7 = arith.addf %4, %6 : vector<24x512xf32>
    %cst = arith.constant 0.000000e+00 : f32
    %8 = vector.broadcast %cst : f32 to vector<24x512xf32>
    %9 = arith.maximumf %7, %8 : vector<24x512xf32>
    %c0_5 = arith.constant 0 : index
    %c0_6 = arith.constant 0 : index
    %10 = vector.load %arg4[%c0_5, %c0_6] : memref<32x24xf32, #tpu.memory_space<vmem>>, vector<32x24xf32>
    %cst_7 = arith.constant dense<0.000000e+00> : vector<32x512xf32>
    %11 = tpu.matmul %10, %9, %cst_7 {dimension_numbers = #tpu.dot_dimension_numbers<[1], [0], [0], [1], [0, 0, 1, 1], [], []>} : vector<32x24xf32>, vector<24x512xf32>, vector<32x512xf32> -> vector<32x512xf32>
    %c0_8 = arith.constant 0 : index
    %c0_9 = arith.constant 0 : index
    %12 = vector.load %arg5[%c0_8, %c0_9] : memref<32x1xf32, #tpu.memory_space<vmem>>, vector<32x1xf32>
    %13 = vector.broadcast %12 : vector<32x1xf32> to vector<32x512xf32>
    %14 = arith.addf %11, %13 : vector<32x512xf32>
    %cst_10 = arith.constant 0.000000e+00 : f32
    %15 = vector.broadcast %cst_10 : f32 to vector<32x512xf32>
    %16 = arith.maximumf %14, %15 : vector<32x512xf32>
    %c0_11 = arith.constant 0 : index
    %c0_12 = arith.constant 0 : index
    %17 = vector.load %arg8[%c0_11, %c0_12] : memref<32x512xf32, #tpu.memory_space<vmem>>, vector<32x512xf32>
    tpu.vector_store %arg8[%c0_11, %c0_12], %16 {strides = array<i32>} : memref<32x512xf32, #tpu.memory_space<vmem>>, vector<32x512xf32>,
    %c0_13 = arith.constant 0 : index
    %c0_14 = arith.constant 0 : index
    %18 = vector.load %arg6[%c0_13, %c0_14] : memref<16x24xf32, #tpu.memory_space<vmem>>, vector<16x24xf32>
    %cst_15 = arith.constant dense<0.000000e+00> : vector<16x512xf32>
    %19 = tpu.matmul %18, %9, %cst_15 {dimension_numbers = #tpu.dot_dimension_numbers<[1], [0], [0], [1], [0, 0, 1, 1], [], []>} : vector<16x24xf32>, vector<24x512xf32>, vector<16x512xf32> -> vector<16x512xf32>
    %c0_16 = arith.constant 0 : index
    %c0_17 = arith.constant 0 : index
    %20 = vector.load %arg7[%c0_16, %c0_17] : memref<16x1xf32, #tpu.memory_space<vmem>>, vector<16x1xf32>
    %21 = vector.broadcast %20 : vector<16x1xf32> to vector<16x512xf32>
    %22 = arith.addf %19, %21 : vector<16x512xf32>
    %c0_18 = arith.constant 0 : index
    %c0_19 = arith.constant 0 : index
    %23 = vector.load %arg10[%c0_18, %c0_19] : memref<16x512xf32, #tpu.memory_space<vmem>>, vector<16x512xf32>
    tpu.vector_store %arg10[%c0_18, %c0_19], %22 {strides = array<i32>} : memref<16x512xf32, #tpu.memory_space<vmem>>, vector<16x512xf32>,
    %24 = math.tanh %22 : vector<16x512xf32>
    %c0_20 = arith.constant 0 : index
    %c0_21 = arith.constant 0 : index
    %25 = vector.load %arg9[%c0_20, %c0_21] : memref<16x512xf32, #tpu.memory_space<vmem>>, vector<16x512xf32>
    tpu.vector_store %arg9[%c0_20, %c0_21], %24 {strides = array<i32>} : memref<16x512xf32, #tpu.memory_space<vmem>>, vector<16x512xf32>,
    return
  }
  func.func @transform_0(%arg0: i32) -> (i32, i32) {
    %c0_i32 = arith.constant 0 : i32
    %c0_i32_0 = arith.constant 0 : i32
    return %c0_i32, %arg0 : i32, i32
  }
  func.func @transform_1(%arg0: i32) -> (i32, i32) {
    %c0_i32 = arith.constant 0 : i32
    %c0_i32_0 = arith.constant 0 : i32
    %c0_i32_1 = arith.constant 0 : i32
    return %c0_i32, %c0_i32_0 : i32, i32
  }
  func.func @transform_2(%arg0: i32) -> (i32, i32) {
    %c0_i32 = arith.constant 0 : i32
    %c0_i32_0 = arith.constant 0 : i32
    %c0_i32_1 = arith.constant 0 : i32
    return %c0_i32, %c0_i32_0 : i32, i32
  }
  func.func @transform_3(%arg0: i32) -> (i32, i32) {
    %c0_i32 = arith.constant 0 : i32
    %c0_i32_0 = arith.constant 0 : i32
    %c0_i32_1 = arith.constant 0 : i32
    return %c0_i32, %c0_i32_0 : i32, i32
  }
  func.func @transform_4(%arg0: i32) -> (i32, i32) {
    %c0_i32 = arith.constant 0 : i32
    %c0_i32_0 = arith.constant 0 : i32
    %c0_i32_1 = arith.constant 0 : i32
    return %c0_i32, %c0_i32_0 : i32, i32
  }
  func.func @transform_5(%arg0: i32) -> (i32, i32) {
    %c0_i32 = arith.constant 0 : i32
    %c0_i32_0 = arith.constant 0 : i32
    %c0_i32_1 = arith.constant 0 : i32
    return %c0_i32, %c0_i32_0 : i32, i32
  }
  func.func @transform_6(%arg0: i32) -> (i32, i32) {
    %c0_i32 = arith.constant 0 : i32
    %c0_i32_0 = arith.constant 0 : i32
    %c0_i32_1 = arith.constant 0 : i32
    return %c0_i32, %c0_i32_0 : i32, i32
  }
  func.func @transform_7(%arg0: i32) -> (i32, i32) {
    %c0_i32 = arith.constant 0 : i32
    %c0_i32_0 = arith.constant 0 : i32
    return %c0_i32, %arg0 : i32, i32
  }
  func.func @transform_8(%arg0: i32) -> (i32, i32) {
    %c0_i32 = arith.constant 0 : i32
    %c0_i32_0 = arith.constant 0 : i32
    return %c0_i32, %arg0 : i32, i32
  }
  func.func @transform_9(%arg0: i32) -> (i32, i32) {
    %c0_i32 = arith.constant 0 : i32
    %c0_i32_0 = arith.constant 0 : i32
    return %c0_i32, %arg0 : i32, i32
  }
}

module attributes {stable_mosaic.version = 11 : i64} {
  func.func @_sdhnet_kernel(%arg0: i32, %arg1: memref<1x512xf32, #tpu.memory_space<vmem>>, %arg2: memref<1x512xf32, #tpu.memory_space<vmem>>, %arg3: memref<32x512xf32, #tpu.memory_space<vmem>>, %arg4: memref<16x512xf32, #tpu.memory_space<vmem>>, %arg5: memref<32x1xf32, #tpu.memory_space<vmem>>, %arg6: memref<32x1xf32, #tpu.memory_space<vmem>>, %arg7: memref<32x32xf32, #tpu.memory_space<vmem>>, %arg8: memref<32x16xf32, #tpu.memory_space<vmem>>, %arg9: memref<32x1xf32, #tpu.memory_space<vmem>>, %arg10: memref<16x32xf32, #tpu.memory_space<vmem>>, %arg11: memref<16x16xf32, #tpu.memory_space<vmem>>, %arg12: memref<16x1xf32, #tpu.memory_space<vmem>>, %arg13: memref<3x16xf32, #tpu.memory_space<vmem>>, %arg14: memref<3x1xf32, #tpu.memory_space<vmem>>, %arg15: memref<3x512xf32, #tpu.memory_space<vmem>>, %arg16: memref<16x512xf32, #tpu.memory_space<vmem>>) attributes {dimension_semantics = [#tpu.dimension_semantics<parallel>], iteration_bounds = array<i64: 2>, scalar_prefetch = 0 : i64, scratch_operands = 0 : i64, tpu.core_type = #tpu.core_type<tc>, window_params = [{transform_indices = @transform_0, window_bounds = array<i64: 1, 512>}, {transform_indices = @transform_1, window_bounds = array<i64: 1, 512>}, {transform_indices = @transform_2, window_bounds = array<i64: 32, 512>}, {transform_indices = @transform_3, window_bounds = array<i64: 16, 512>}, {pipeline_mode = #tpu.pipeline_mode<synchronous>, transform_indices = @transform_4, window_bounds = array<i64: 32, 1>}, {pipeline_mode = #tpu.pipeline_mode<synchronous>, transform_indices = @transform_5, window_bounds = array<i64: 32, 1>}, {pipeline_mode = #tpu.pipeline_mode<synchronous>, transform_indices = @transform_6, window_bounds = array<i64: 32, 32>}, {pipeline_mode = #tpu.pipeline_mode<synchronous>, transform_indices = @transform_7, window_bounds = array<i64: 32, 16>}, {pipeline_mode = #tpu.pipeline_mode<synchronous>, transform_indices = @transform_8, window_bounds = array<i64: 32, 1>}, {pipeline_mode = #tpu.pipeline_mode<synchronous>, transform_indices = @transform_9, window_bounds = array<i64: 16, 32>}, {pipeline_mode = #tpu.pipeline_mode<synchronous>, transform_indices = @transform_10, window_bounds = array<i64: 16, 16>}, {pipeline_mode = #tpu.pipeline_mode<synchronous>, transform_indices = @transform_11, window_bounds = array<i64: 16, 1>}, {pipeline_mode = #tpu.pipeline_mode<synchronous>, transform_indices = @transform_12, window_bounds = array<i64: 3, 16>}, {pipeline_mode = #tpu.pipeline_mode<synchronous>, transform_indices = @transform_13, window_bounds = array<i64: 3, 1>}, {transform_indices = @transform_14, window_bounds = array<i64: 3, 512>}, {transform_indices = @transform_15, window_bounds = array<i64: 16, 512>}]} {
    %c0 = arith.constant 0 : index
    %c0_0 = arith.constant 0 : index
    %0 = vector.load %arg5[%c0, %c0_0] : memref<32x1xf32, #tpu.memory_space<vmem>>, vector<32x1xf32>
    %c0_1 = arith.constant 0 : index
    %c0_2 = arith.constant 0 : index
    %1 = vector.load %arg1[%c0_1, %c0_2] : memref<1x512xf32, #tpu.memory_space<vmem>>, vector<1x512xf32>
    %2 = vector.broadcast %0 : vector<32x1xf32> to vector<32x512xf32>
    %3 = vector.broadcast %1 : vector<1x512xf32> to vector<32x512xf32>
    %4 = arith.mulf %2, %3 : vector<32x512xf32>
    %c0_3 = arith.constant 0 : index
    %c0_4 = arith.constant 0 : index
    %5 = vector.load %arg6[%c0_3, %c0_4] : memref<32x1xf32, #tpu.memory_space<vmem>>, vector<32x1xf32>
    %c0_5 = arith.constant 0 : index
    %c0_6 = arith.constant 0 : index
    %6 = vector.load %arg2[%c0_5, %c0_6] : memref<1x512xf32, #tpu.memory_space<vmem>>, vector<1x512xf32>
    %7 = vector.broadcast %5 : vector<32x1xf32> to vector<32x512xf32>
    %8 = vector.broadcast %6 : vector<1x512xf32> to vector<32x512xf32>
    %9 = arith.mulf %7, %8 : vector<32x512xf32>
    %10 = arith.addf %4, %9 : vector<32x512xf32>
    %c0_7 = arith.constant 0 : index
    %c0_8 = arith.constant 0 : index
    %11 = vector.load %arg7[%c0_7, %c0_8] : memref<32x32xf32, #tpu.memory_space<vmem>>, vector<32x32xf32>
    %c0_9 = arith.constant 0 : index
    %c0_10 = arith.constant 0 : index
    %12 = vector.load %arg3[%c0_9, %c0_10] : memref<32x512xf32, #tpu.memory_space<vmem>>, vector<32x512xf32>
    %cst = arith.constant dense<0.000000e+00> : vector<32x512xf32>
    %13 = tpu.matmul %11, %12, %cst {dimension_numbers = #tpu.dot_dimension_numbers<[1], [0], [0], [1], [0, 0, 1, 1], [], []>} : vector<32x32xf32>, vector<32x512xf32>, vector<32x512xf32> -> vector<32x512xf32>
    %14 = arith.addf %10, %13 : vector<32x512xf32>
    %c0_11 = arith.constant 0 : index
    %c0_12 = arith.constant 0 : index
    %15 = vector.load %arg8[%c0_11, %c0_12] : memref<32x16xf32, #tpu.memory_space<vmem>>, vector<32x16xf32>
    %c0_13 = arith.constant 0 : index
    %c0_14 = arith.constant 0 : index
    %16 = vector.load %arg4[%c0_13, %c0_14] : memref<16x512xf32, #tpu.memory_space<vmem>>, vector<16x512xf32>
    %cst_15 = arith.constant dense<0.000000e+00> : vector<32x512xf32>
    %17 = tpu.matmul %15, %16, %cst_15 {dimension_numbers = #tpu.dot_dimension_numbers<[1], [0], [0], [1], [0, 0, 1, 1], [], []>} : vector<32x16xf32>, vector<16x512xf32>, vector<32x512xf32> -> vector<32x512xf32>
    %18 = arith.addf %14, %17 : vector<32x512xf32>
    %c0_16 = arith.constant 0 : index
    %c0_17 = arith.constant 0 : index
    %19 = vector.load %arg9[%c0_16, %c0_17] : memref<32x1xf32, #tpu.memory_space<vmem>>, vector<32x1xf32>
    %20 = vector.broadcast %19 : vector<32x1xf32> to vector<32x512xf32>
    %21 = arith.addf %18, %20 : vector<32x512xf32>
    %cst_18 = arith.constant 0.000000e+00 : f32
    %22 = vector.broadcast %cst_18 : f32 to vector<32x512xf32>
    %23 = arith.maximumf %21, %22 : vector<32x512xf32>
    %c0_19 = arith.constant 0 : index
    %c0_20 = arith.constant 0 : index
    %24 = vector.load %arg10[%c0_19, %c0_20] : memref<16x32xf32, #tpu.memory_space<vmem>>, vector<16x32xf32>
    %cst_21 = arith.constant dense<0.000000e+00> : vector<16x512xf32>
    %25 = tpu.matmul %24, %23, %cst_21 {dimension_numbers = #tpu.dot_dimension_numbers<[1], [0], [0], [1], [0, 0, 1, 1], [], []>} : vector<16x32xf32>, vector<32x512xf32>, vector<16x512xf32> -> vector<16x512xf32>
    %c0_22 = arith.constant 0 : index
    %c0_23 = arith.constant 0 : index
    %26 = vector.load %arg11[%c0_22, %c0_23] : memref<16x16xf32, #tpu.memory_space<vmem>>, vector<16x16xf32>
    %c0_24 = arith.constant 0 : index
    %c0_25 = arith.constant 0 : index
    %27 = vector.load %arg4[%c0_24, %c0_25] : memref<16x512xf32, #tpu.memory_space<vmem>>, vector<16x512xf32>
    %cst_26 = arith.constant dense<0.000000e+00> : vector<16x512xf32>
    %28 = tpu.matmul %26, %27, %cst_26 {dimension_numbers = #tpu.dot_dimension_numbers<[1], [0], [0], [1], [0, 0, 1, 1], [], []>} : vector<16x16xf32>, vector<16x512xf32>, vector<16x512xf32> -> vector<16x512xf32>
    %29 = arith.addf %25, %28 : vector<16x512xf32>
    %c0_27 = arith.constant 0 : index
    %c0_28 = arith.constant 0 : index
    %30 = vector.load %arg12[%c0_27, %c0_28] : memref<16x1xf32, #tpu.memory_space<vmem>>, vector<16x1xf32>
    %31 = vector.broadcast %30 : vector<16x1xf32> to vector<16x512xf32>
    %32 = arith.addf %29, %31 : vector<16x512xf32>
    %33 = math.tanh %32 : vector<16x512xf32>
    %c0_29 = arith.constant 0 : index
    %c0_30 = arith.constant 0 : index
    %34 = vector.load %arg13[%c0_29, %c0_30] : memref<3x16xf32, #tpu.memory_space<vmem>>, vector<3x16xf32>
    %cst_31 = arith.constant dense<0.000000e+00> : vector<3x512xf32>
    %35 = tpu.matmul %34, %33, %cst_31 {dimension_numbers = #tpu.dot_dimension_numbers<[1], [0], [0], [1], [0, 0, 1, 1], [], []>} : vector<3x16xf32>, vector<16x512xf32>, vector<3x512xf32> -> vector<3x512xf32>
    %c0_32 = arith.constant 0 : index
    %c0_33 = arith.constant 0 : index
    %36 = vector.load %arg14[%c0_32, %c0_33] : memref<3x1xf32, #tpu.memory_space<vmem>>, vector<3x1xf32>
    %37 = vector.broadcast %36 : vector<3x1xf32> to vector<3x512xf32>
    %38 = arith.addf %35, %37 : vector<3x512xf32>
    %c0_34 = arith.constant 0 : index
    %c0_35 = arith.constant 0 : index
    %39 = vector.load %arg15[%c0_34, %c0_35] : memref<3x512xf32, #tpu.memory_space<vmem>>, vector<3x512xf32>
    tpu.vector_store %arg15[%c0_34, %c0_35], %38 {strides = array<i32>} : memref<3x512xf32, #tpu.memory_space<vmem>>, vector<3x512xf32>,
    %c0_36 = arith.constant 0 : index
    %c0_37 = arith.constant 0 : index
    %40 = vector.load %arg16[%c0_36, %c0_37] : memref<16x512xf32, #tpu.memory_space<vmem>>, vector<16x512xf32>
    tpu.vector_store %arg16[%c0_36, %c0_37], %33 {strides = array<i32>} : memref<16x512xf32, #tpu.memory_space<vmem>>, vector<16x512xf32>,
    return
  }
  func.func @transform_0(%arg0: i32) -> (i32, i32) {
    %c0_i32 = arith.constant 0 : i32
    %c0_i32_0 = arith.constant 0 : i32
    return %c0_i32, %arg0 : i32, i32
  }
  func.func @transform_1(%arg0: i32) -> (i32, i32) {
    %c0_i32 = arith.constant 0 : i32
    %c0_i32_0 = arith.constant 0 : i32
    return %c0_i32, %arg0 : i32, i32
  }
  func.func @transform_2(%arg0: i32) -> (i32, i32) {
    %c0_i32 = arith.constant 0 : i32
    %c0_i32_0 = arith.constant 0 : i32
    return %c0_i32, %arg0 : i32, i32
  }
  func.func @transform_3(%arg0: i32) -> (i32, i32) {
    %c0_i32 = arith.constant 0 : i32
    %c0_i32_0 = arith.constant 0 : i32
    return %c0_i32, %arg0 : i32, i32
  }
  func.func @transform_4(%arg0: i32) -> (i32, i32) {
    %c0_i32 = arith.constant 0 : i32
    %c0_i32_0 = arith.constant 0 : i32
    %c0_i32_1 = arith.constant 0 : i32
    return %c0_i32, %c0_i32_0 : i32, i32
  }
  func.func @transform_5(%arg0: i32) -> (i32, i32) {
    %c0_i32 = arith.constant 0 : i32
    %c0_i32_0 = arith.constant 0 : i32
    %c0_i32_1 = arith.constant 0 : i32
    return %c0_i32, %c0_i32_0 : i32, i32
  }
  func.func @transform_6(%arg0: i32) -> (i32, i32) {
    %c0_i32 = arith.constant 0 : i32
    %c0_i32_0 = arith.constant 0 : i32
    %c0_i32_1 = arith.constant 0 : i32
    return %c0_i32, %c0_i32_0 : i32, i32
  }
  func.func @transform_7(%arg0: i32) -> (i32, i32) {
    %c0_i32 = arith.constant 0 : i32
    %c0_i32_0 = arith.constant 0 : i32
    %c0_i32_1 = arith.constant 0 : i32
    return %c0_i32, %c0_i32_0 : i32, i32
  }
  func.func @transform_8(%arg0: i32) -> (i32, i32) {
    %c0_i32 = arith.constant 0 : i32
    %c0_i32_0 = arith.constant 0 : i32
    %c0_i32_1 = arith.constant 0 : i32
    return %c0_i32, %c0_i32_0 : i32, i32
  }
  func.func @transform_9(%arg0: i32) -> (i32, i32) {
    %c0_i32 = arith.constant 0 : i32
    %c0_i32_0 = arith.constant 0 : i32
    %c0_i32_1 = arith.constant 0 : i32
    return %c0_i32, %c0_i32_0 : i32, i32
  }
  func.func @transform_10(%arg0: i32) -> (i32, i32) {
    %c0_i32 = arith.constant 0 : i32
    %c0_i32_0 = arith.constant 0 : i32
    %c0_i32_1 = arith.constant 0 : i32
    return %c0_i32, %c0_i32_0 : i32, i32
  }
  func.func @transform_11(%arg0: i32) -> (i32, i32) {
    %c0_i32 = arith.constant 0 : i32
    %c0_i32_0 = arith.constant 0 : i32
    %c0_i32_1 = arith.constant 0 : i32
    return %c0_i32, %c0_i32_0 : i32, i32
  }
  func.func @transform_12(%arg0: i32) -> (i32, i32) {
    %c0_i32 = arith.constant 0 : i32
    %c0_i32_0 = arith.constant 0 : i32
    %c0_i32_1 = arith.constant 0 : i32
    return %c0_i32, %c0_i32_0 : i32, i32
  }
  func.func @transform_13(%arg0: i32) -> (i32, i32) {
    %c0_i32 = arith.constant 0 : i32
    %c0_i32_0 = arith.constant 0 : i32
    %c0_i32_1 = arith.constant 0 : i32
    return %c0_i32, %c0_i32_0 : i32, i32
  }
  func.func @transform_14(%arg0: i32) -> (i32, i32) {
    %c0_i32 = arith.constant 0 : i32
    %c0_i32_0 = arith.constant 0 : i32
    return %c0_i32, %arg0 : i32, i32
  }
  func.func @transform_15(%arg0: i32) -> (i32, i32) {
    %c0_i32 = arith.constant 0 : i32
    %c0_i32_0 = arith.constant 0 : i32
    return %c0_i32, %arg0 : i32, i32
  }
}

module attributes {stable_mosaic.version = 11 : i64} {
  func.func @_sdhnet_kernel(%arg0: i32, %arg1: memref<1x512xf32, #tpu.memory_space<vmem>>, %arg2: memref<1x512xf32, #tpu.memory_space<vmem>>, %arg3: memref<32x512xf32, #tpu.memory_space<vmem>>, %arg4: memref<16x512xf32, #tpu.memory_space<vmem>>, %arg5: memref<32x1xf32, #tpu.memory_space<vmem>>, %arg6: memref<32x1xf32, #tpu.memory_space<vmem>>, %arg7: memref<32x32xf32, #tpu.memory_space<vmem>>, %arg8: memref<32x16xf32, #tpu.memory_space<vmem>>, %arg9: memref<32x1xf32, #tpu.memory_space<vmem>>, %arg10: memref<16x32xf32, #tpu.memory_space<vmem>>, %arg11: memref<16x16xf32, #tpu.memory_space<vmem>>, %arg12: memref<16x1xf32, #tpu.memory_space<vmem>>, %arg13: memref<3x16xf32, #tpu.memory_space<vmem>>, %arg14: memref<3x1xf32, #tpu.memory_space<vmem>>, %arg15: memref<3x512xf32, #tpu.memory_space<vmem>>, %arg16: memref<16x512xf32, #tpu.memory_space<vmem>>) attributes {dimension_semantics = [#tpu.dimension_semantics<parallel>], iteration_bounds = array<i64: 2>, scalar_prefetch = 0 : i64, scratch_operands = 0 : i64, tpu.core_type = #tpu.core_type<tc>, window_params = [{transform_indices = @transform_0, window_bounds = array<i64: 1, 512>}, {transform_indices = @transform_1, window_bounds = array<i64: 1, 512>}, {transform_indices = @transform_2, window_bounds = array<i64: 32, 512>}, {transform_indices = @transform_3, window_bounds = array<i64: 16, 512>}, {pipeline_mode = #tpu.pipeline_mode<synchronous>, transform_indices = @transform_4, window_bounds = array<i64: 32, 1>}, {pipeline_mode = #tpu.pipeline_mode<synchronous>, transform_indices = @transform_5, window_bounds = array<i64: 32, 1>}, {pipeline_mode = #tpu.pipeline_mode<synchronous>, transform_indices = @transform_6, window_bounds = array<i64: 32, 32>}, {pipeline_mode = #tpu.pipeline_mode<synchronous>, transform_indices = @transform_7, window_bounds = array<i64: 32, 16>}, {pipeline_mode = #tpu.pipeline_mode<synchronous>, transform_indices = @transform_8, window_bounds = array<i64: 32, 1>}, {pipeline_mode = #tpu.pipeline_mode<synchronous>, transform_indices = @transform_9, window_bounds = array<i64: 16, 32>}, {pipeline_mode = #tpu.pipeline_mode<synchronous>, transform_indices = @transform_10, window_bounds = array<i64: 16, 16>}, {pipeline_mode = #tpu.pipeline_mode<synchronous>, transform_indices = @transform_11, window_bounds = array<i64: 16, 1>}, {pipeline_mode = #tpu.pipeline_mode<synchronous>, transform_indices = @transform_12, window_bounds = array<i64: 3, 16>}, {pipeline_mode = #tpu.pipeline_mode<synchronous>, transform_indices = @transform_13, window_bounds = array<i64: 3, 1>}, {transform_indices = @transform_14, window_bounds = array<i64: 3, 512>}, {transform_indices = @transform_15, window_bounds = array<i64: 16, 512>}]} {
    %c0 = arith.constant 0 : index
    %c0_0 = arith.constant 0 : index
    %0 = vector.load %arg5[%c0, %c0_0] : memref<32x1xf32, #tpu.memory_space<vmem>>, vector<32x1xf32>
    %c0_1 = arith.constant 0 : index
    %c0_2 = arith.constant 0 : index
    %1 = vector.load %arg1[%c0_1, %c0_2] : memref<1x512xf32, #tpu.memory_space<vmem>>, vector<1x512xf32>
    %2 = vector.broadcast %0 : vector<32x1xf32> to vector<32x512xf32>
    %3 = vector.broadcast %1 : vector<1x512xf32> to vector<32x512xf32>
    %4 = arith.mulf %2, %3 : vector<32x512xf32>
    %c0_3 = arith.constant 0 : index
    %c0_4 = arith.constant 0 : index
    %5 = vector.load %arg6[%c0_3, %c0_4] : memref<32x1xf32, #tpu.memory_space<vmem>>, vector<32x1xf32>
    %c0_5 = arith.constant 0 : index
    %c0_6 = arith.constant 0 : index
    %6 = vector.load %arg2[%c0_5, %c0_6] : memref<1x512xf32, #tpu.memory_space<vmem>>, vector<1x512xf32>
    %7 = vector.broadcast %5 : vector<32x1xf32> to vector<32x512xf32>
    %8 = vector.broadcast %6 : vector<1x512xf32> to vector<32x512xf32>
    %9 = arith.mulf %7, %8 : vector<32x512xf32>
    %10 = arith.addf %4, %9 : vector<32x512xf32>
    %c0_7 = arith.constant 0 : index
    %c0_8 = arith.constant 0 : index
    %11 = vector.load %arg7[%c0_7, %c0_8] : memref<32x32xf32, #tpu.memory_space<vmem>>, vector<32x32xf32>
    %c0_9 = arith.constant 0 : index
    %c0_10 = arith.constant 0 : index
    %12 = vector.load %arg3[%c0_9, %c0_10] : memref<32x512xf32, #tpu.memory_space<vmem>>, vector<32x512xf32>
    %cst = arith.constant dense<0.000000e+00> : vector<32x512xf32>
    %13 = tpu.matmul %11, %12, %cst {dimension_numbers = #tpu.dot_dimension_numbers<[1], [0], [0], [1], [0, 0, 1, 1], [], []>} : vector<32x32xf32>, vector<32x512xf32>, vector<32x512xf32> -> vector<32x512xf32>
    %14 = arith.addf %10, %13 : vector<32x512xf32>
    %c0_11 = arith.constant 0 : index
    %c0_12 = arith.constant 0 : index
    %15 = vector.load %arg8[%c0_11, %c0_12] : memref<32x16xf32, #tpu.memory_space<vmem>>, vector<32x16xf32>
    %c0_13 = arith.constant 0 : index
    %c0_14 = arith.constant 0 : index
    %16 = vector.load %arg4[%c0_13, %c0_14] : memref<16x512xf32, #tpu.memory_space<vmem>>, vector<16x512xf32>
    %cst_15 = arith.constant dense<0.000000e+00> : vector<32x512xf32>
    %17 = tpu.matmul %15, %16, %cst_15 {dimension_numbers = #tpu.dot_dimension_numbers<[1], [0], [0], [1], [0, 0, 1, 1], [], []>} : vector<32x16xf32>, vector<16x512xf32>, vector<32x512xf32> -> vector<32x512xf32>
    %18 = arith.addf %14, %17 : vector<32x512xf32>
    %c0_16 = arith.constant 0 : index
    %c0_17 = arith.constant 0 : index
    %19 = vector.load %arg9[%c0_16, %c0_17] : memref<32x1xf32, #tpu.memory_space<vmem>>, vector<32x1xf32>
    %20 = vector.broadcast %19 : vector<32x1xf32> to vector<32x512xf32>
    %21 = arith.addf %18, %20 : vector<32x512xf32>
    %cst_18 = arith.constant 0.000000e+00 : f32
    %22 = vector.broadcast %cst_18 : f32 to vector<32x512xf32>
    %23 = arith.maximumf %21, %22 : vector<32x512xf32>
    %c0_19 = arith.constant 0 : index
    %c0_20 = arith.constant 0 : index
    %24 = vector.load %arg10[%c0_19, %c0_20] : memref<16x32xf32, #tpu.memory_space<vmem>>, vector<16x32xf32>
    %cst_21 = arith.constant dense<0.000000e+00> : vector<16x512xf32>
    %25 = tpu.matmul %24, %23, %cst_21 {dimension_numbers = #tpu.dot_dimension_numbers<[1], [0], [0], [1], [0, 0, 1, 1], [], []>} : vector<16x32xf32>, vector<32x512xf32>, vector<16x512xf32> -> vector<16x512xf32>
    %c0_22 = arith.constant 0 : index
    %c0_23 = arith.constant 0 : index
    %26 = vector.load %arg11[%c0_22, %c0_23] : memref<16x16xf32, #tpu.memory_space<vmem>>, vector<16x16xf32>
    %c0_24 = arith.constant 0 : index
    %c0_25 = arith.constant 0 : index
    %27 = vector.load %arg4[%c0_24, %c0_25] : memref<16x512xf32, #tpu.memory_space<vmem>>, vector<16x512xf32>
    %cst_26 = arith.constant dense<0.000000e+00> : vector<16x512xf32>
    %28 = tpu.matmul %26, %27, %cst_26 {dimension_numbers = #tpu.dot_dimension_numbers<[1], [0], [0], [1], [0, 0, 1, 1], [], []>} : vector<16x16xf32>, vector<16x512xf32>, vector<16x512xf32> -> vector<16x512xf32>
    %29 = arith.addf %25, %28 : vector<16x512xf32>
    %c0_27 = arith.constant 0 : index
    %c0_28 = arith.constant 0 : index
    %30 = vector.load %arg12[%c0_27, %c0_28] : memref<16x1xf32, #tpu.memory_space<vmem>>, vector<16x1xf32>
    %31 = vector.broadcast %30 : vector<16x1xf32> to vector<16x512xf32>
    %32 = arith.addf %29, %31 : vector<16x512xf32>
    %33 = math.tanh %32 : vector<16x512xf32>
    %c0_29 = arith.constant 0 : index
    %c0_30 = arith.constant 0 : index
    %34 = vector.load %arg13[%c0_29, %c0_30] : memref<3x16xf32, #tpu.memory_space<vmem>>, vector<3x16xf32>
    %cst_31 = arith.constant dense<0.000000e+00> : vector<3x512xf32>
    %35 = tpu.matmul %34, %33, %cst_31 {dimension_numbers = #tpu.dot_dimension_numbers<[1], [0], [0], [1], [0, 0, 1, 1], [], []>} : vector<3x16xf32>, vector<16x512xf32>, vector<3x512xf32> -> vector<3x512xf32>
    %c0_32 = arith.constant 0 : index
    %c0_33 = arith.constant 0 : index
    %36 = vector.load %arg14[%c0_32, %c0_33] : memref<3x1xf32, #tpu.memory_space<vmem>>, vector<3x1xf32>
    %37 = vector.broadcast %36 : vector<3x1xf32> to vector<3x512xf32>
    %38 = arith.addf %35, %37 : vector<3x512xf32>
    %c0_34 = arith.constant 0 : index
    %c0_35 = arith.constant 0 : index
    %39 = vector.load %arg15[%c0_34, %c0_35] : memref<3x512xf32, #tpu.memory_space<vmem>>, vector<3x512xf32>
    tpu.vector_store %arg15[%c0_34, %c0_35], %38 {strides = array<i32>} : memref<3x512xf32, #tpu.memory_space<vmem>>, vector<3x512xf32>,
    %c0_36 = arith.constant 0 : index
    %c0_37 = arith.constant 0 : index
    %40 = vector.load %arg16[%c0_36, %c0_37] : memref<16x512xf32, #tpu.memory_space<vmem>>, vector<16x512xf32>
    tpu.vector_store %arg16[%c0_36, %c0_37], %33 {strides = array<i32>} : memref<16x512xf32, #tpu.memory_space<vmem>>, vector<16x512xf32>,
    return
  }
  func.func @transform_0(%arg0: i32) -> (i32, i32) {
    %c0_i32 = arith.constant 0 : i32
    %c0_i32_0 = arith.constant 0 : i32
    return %c0_i32, %arg0 : i32, i32
  }
  func.func @transform_1(%arg0: i32) -> (i32, i32) {
    %c0_i32 = arith.constant 0 : i32
    %c0_i32_0 = arith.constant 0 : i32
    return %c0_i32, %arg0 : i32, i32
  }
  func.func @transform_2(%arg0: i32) -> (i32, i32) {
    %c0_i32 = arith.constant 0 : i32
    %c0_i32_0 = arith.constant 0 : i32
    return %c0_i32, %arg0 : i32, i32
  }
  func.func @transform_3(%arg0: i32) -> (i32, i32) {
    %c0_i32 = arith.constant 0 : i32
    %c0_i32_0 = arith.constant 0 : i32
    return %c0_i32, %arg0 : i32, i32
  }
  func.func @transform_4(%arg0: i32) -> (i32, i32) {
    %c0_i32 = arith.constant 0 : i32
    %c0_i32_0 = arith.constant 0 : i32
    %c0_i32_1 = arith.constant 0 : i32
    return %c0_i32, %c0_i32_0 : i32, i32
  }
  func.func @transform_5(%arg0: i32) -> (i32, i32) {
    %c0_i32 = arith.constant 0 : i32
    %c0_i32_0 = arith.constant 0 : i32
    %c0_i32_1 = arith.constant 0 : i32
    return %c0_i32, %c0_i32_0 : i32, i32
  }
  func.func @transform_6(%arg0: i32) -> (i32, i32) {
    %c0_i32 = arith.constant 0 : i32
    %c0_i32_0 = arith.constant 0 : i32
    %c0_i32_1 = arith.constant 0 : i32
    return %c0_i32, %c0_i32_0 : i32, i32
  }
  func.func @transform_7(%arg0: i32) -> (i32, i32) {
    %c0_i32 = arith.constant 0 : i32
    %c0_i32_0 = arith.constant 0 : i32
    %c0_i32_1 = arith.constant 0 : i32
    return %c0_i32, %c0_i32_0 : i32, i32
  }
  func.func @transform_8(%arg0: i32) -> (i32, i32) {
    %c0_i32 = arith.constant 0 : i32
    %c0_i32_0 = arith.constant 0 : i32
    %c0_i32_1 = arith.constant 0 : i32
    return %c0_i32, %c0_i32_0 : i32, i32
  }
  func.func @transform_9(%arg0: i32) -> (i32, i32) {
    %c0_i32 = arith.constant 0 : i32
    %c0_i32_0 = arith.constant 0 : i32
    %c0_i32_1 = arith.constant 0 : i32
    return %c0_i32, %c0_i32_0 : i32, i32
  }
  func.func @transform_10(%arg0: i32) -> (i32, i32) {
    %c0_i32 = arith.constant 0 : i32
    %c0_i32_0 = arith.constant 0 : i32
    %c0_i32_1 = arith.constant 0 : i32
    return %c0_i32, %c0_i32_0 : i32, i32
  }
  func.func @transform_11(%arg0: i32) -> (i32, i32) {
    %c0_i32 = arith.constant 0 : i32
    %c0_i32_0 = arith.constant 0 : i32
    %c0_i32_1 = arith.constant 0 : i32
    return %c0_i32, %c0_i32_0 : i32, i32
  }
  func.func @transform_12(%arg0: i32) -> (i32, i32) {
    %c0_i32 = arith.constant 0 : i32
    %c0_i32_0 = arith.constant 0 : i32
    %c0_i32_1 = arith.constant 0 : i32
    return %c0_i32, %c0_i32_0 : i32, i32
  }
  func.func @transform_13(%arg0: i32) -> (i32, i32) {
    %c0_i32 = arith.constant 0 : i32
    %c0_i32_0 = arith.constant 0 : i32
    %c0_i32_1 = arith.constant 0 : i32
    return %c0_i32, %c0_i32_0 : i32, i32
  }
  func.func @transform_14(%arg0: i32) -> (i32, i32) {
    %c0_i32 = arith.constant 0 : i32
    %c0_i32_0 = arith.constant 0 : i32
    return %c0_i32, %arg0 : i32, i32
  }
  func.func @transform_15(%arg0: i32) -> (i32, i32) {
    %c0_i32 = arith.constant 0 : i32
    %c0_i32_0 = arith.constant 0 : i32
    return %c0_i32, %arg0 : i32, i32
  }
}

module attributes {stable_mosaic.version = 11 : i64} {
  func.func @_warp_combine_kernel(%arg0: i32, %arg1: i32, %arg2: memref<1x24x512xf32, #tpu.memory_space<vmem>>, %arg3: memref<1x3x512xf32, #tpu.memory_space<vmem>>, %arg4: memref<1x3x512xf32, #tpu.memory_space<vmem>>) attributes {dimension_semantics = [#tpu.dimension_semantics<parallel>, #tpu.dimension_semantics<parallel>], iteration_bounds = array<i64: 2, 1>, scalar_prefetch = 0 : i64, scratch_operands = 0 : i64, tpu.core_type = #tpu.core_type<tc>, window_params = [{transform_indices = @transform_0, window_bounds = array<i64: 1, 24, 512>}, {transform_indices = @transform_1, window_bounds = array<i64: 1, 3, 512>}, {transform_indices = @transform_2, window_bounds = array<i64: 1, 3, 512>}]} {
    %c0 = arith.constant 0 : index
    %c0_0 = arith.constant 0 : index
    %c0_1 = arith.constant 0 : index
    %0 = vector.load %arg2[%c0, %c0_0, %c0_1] : memref<1x24x512xf32, #tpu.memory_space<vmem>>, vector<1x24x512xf32>
    %1 = vector.shape_cast %0 : vector<1x24x512xf32> to vector<24x512xf32>
    %c0_2 = arith.constant 0 : index
    %c0_3 = arith.constant 0 : index
    %c0_4 = arith.constant 0 : index
    %2 = vector.load %arg3[%c0_2, %c0_3, %c0_4] : memref<1x3x512xf32, #tpu.memory_space<vmem>>, vector<1x3x512xf32>
    %3 = vector.shape_cast %2 : vector<1x3x512xf32> to vector<3x512xf32>
    %4 = vector.extract_strided_slice %3 {offsets = [0, 0], sizes = [1, 512], strides = [1, 1]} : vector<3x512xf32> to vector<1x512xf32>
    %5 = vector.extract_strided_slice %3 {offsets = [1, 0], sizes = [1, 512], strides = [1, 1]} : vector<3x512xf32> to vector<1x512xf32>
    %6 = vector.extract_strided_slice %3 {offsets = [2, 0], sizes = [1, 512], strides = [1, 1]} : vector<3x512xf32> to vector<1x512xf32>
    %cst = arith.constant 1.000000e+00 : f32
    %7 = vector.broadcast %cst : f32 to vector<1x512xf32>
    %8 = arith.subf %7, %4 : vector<1x512xf32>
    %cst_5 = arith.constant 1.000000e+00 : f32
    %9 = vector.broadcast %cst_5 : f32 to vector<1x512xf32>
    %10 = arith.subf %9, %5 : vector<1x512xf32>
    %11 = arith.mulf %8, %10 : vector<1x512xf32>
    %cst_6 = arith.constant 1.000000e+00 : f32
    %12 = vector.broadcast %cst_6 : f32 to vector<1x512xf32>
    %13 = arith.subf %12, %6 : vector<1x512xf32>
    %14 = arith.mulf %11, %13 : vector<1x512xf32>
    %15 = vector.extract_strided_slice %1 {offsets = [0, 0], sizes = [3, 512], strides = [1, 1]} : vector<24x512xf32> to vector<3x512xf32>
    %16 = vector.broadcast %14 : vector<1x512xf32> to vector<3x512xf32>
    %17 = arith.mulf %15, %16 : vector<3x512xf32>
    %cst_7 = arith.constant 1.000000e+00 : f32
    %18 = vector.broadcast %cst_7 : f32 to vector<1x512xf32>
    %19 = arith.subf %18, %4 : vector<1x512xf32>
    %cst_8 = arith.constant 1.000000e+00 : f32
    %20 = vector.broadcast %cst_8 : f32 to vector<1x512xf32>
    %21 = arith.subf %20, %5 : vector<1x512xf32>
    %22 = arith.mulf %19, %21 : vector<1x512xf32>
    %23 = arith.mulf %22, %6 : vector<1x512xf32>
    %24 = vector.extract_strided_slice %1 {offsets = [3, 0], sizes = [3, 512], strides = [1, 1]} : vector<24x512xf32> to vector<3x512xf32>
    %25 = vector.broadcast %23 : vector<1x512xf32> to vector<3x512xf32>
    %26 = arith.mulf %24, %25 : vector<3x512xf32>
    %27 = arith.addf %17, %26 : vector<3x512xf32>
    %cst_9 = arith.constant 1.000000e+00 : f32
    %28 = vector.broadcast %cst_9 : f32 to vector<1x512xf32>
    %29 = arith.subf %28, %4 : vector<1x512xf32>
    %30 = arith.mulf %29, %5 : vector<1x512xf32>
    %cst_10 = arith.constant 1.000000e+00 : f32
    %31 = vector.broadcast %cst_10 : f32 to vector<1x512xf32>
    %32 = arith.subf %31, %6 : vector<1x512xf32>
    %33 = arith.mulf %30, %32 : vector<1x512xf32>
    %34 = vector.extract_strided_slice %1 {offsets = [6, 0], sizes = [3, 512], strides = [1, 1]} : vector<24x512xf32> to vector<3x512xf32>
    %35 = vector.broadcast %33 : vector<1x512xf32> to vector<3x512xf32>
    %36 = arith.mulf %34, %35 : vector<3x512xf32>
    %37 = arith.addf %27, %36 : vector<3x512xf32>
    %cst_11 = arith.constant 1.000000e+00 : f32
    %38 = vector.broadcast %cst_11 : f32 to vector<1x512xf32>
    %39 = arith.subf %38, %4 : vector<1x512xf32>
    %40 = arith.mulf %39, %5 : vector<1x512xf32>
    %41 = arith.mulf %40, %6 : vector<1x512xf32>
    %42 = vector.extract_strided_slice %1 {offsets = [9, 0], sizes = [3, 512], strides = [1, 1]} : vector<24x512xf32> to vector<3x512xf32>
    %43 = vector.broadcast %41 : vector<1x512xf32> to vector<3x512xf32>
    %44 = arith.mulf %42, %43 : vector<3x512xf32>
    %45 = arith.addf %37, %44 : vector<3x512xf32>
    %cst_12 = arith.constant 1.000000e+00 : f32
    %46 = vector.broadcast %cst_12 : f32 to vector<1x512xf32>
    %47 = arith.subf %46, %5 : vector<1x512xf32>
    %48 = arith.mulf %4, %47 : vector<1x512xf32>
    %cst_13 = arith.constant 1.000000e+00 : f32
    %49 = vector.broadcast %cst_13 : f32 to vector<1x512xf32>
    %50 = arith.subf %49, %6 : vector<1x512xf32>
    %51 = arith.mulf %48, %50 : vector<1x512xf32>
    %52 = vector.extract_strided_slice %1 {offsets = [12, 0], sizes = [3, 512], strides = [1, 1]} : vector<24x512xf32> to vector<3x512xf32>
    %53 = vector.broadcast %51 : vector<1x512xf32> to vector<3x512xf32>
    %54 = arith.mulf %52, %53 : vector<3x512xf32>
    %55 = arith.addf %45, %54 : vector<3x512xf32>
    %cst_14 = arith.constant 1.000000e+00 : f32
    %56 = vector.broadcast %cst_14 : f32 to vector<1x512xf32>
    %57 = arith.subf %56, %5 : vector<1x512xf32>
    %58 = arith.mulf %4, %57 : vector<1x512xf32>
    %59 = arith.mulf %58, %6 : vector<1x512xf32>
    %60 = vector.extract_strided_slice %1 {offsets = [15, 0], sizes = [3, 512], strides = [1, 1]} : vector<24x512xf32> to vector<3x512xf32>
    %61 = vector.broadcast %59 : vector<1x512xf32> to vector<3x512xf32>
    %62 = arith.mulf %60, %61 : vector<3x512xf32>
    %63 = arith.addf %55, %62 : vector<3x512xf32>
    %64 = arith.mulf %4, %5 : vector<1x512xf32>
    %cst_15 = arith.constant 1.000000e+00 : f32
    %65 = vector.broadcast %cst_15 : f32 to vector<1x512xf32>
    %66 = arith.subf %65, %6 : vector<1x512xf32>
    %67 = arith.mulf %64, %66 : vector<1x512xf32>
    %68 = vector.extract_strided_slice %1 {offsets = [18, 0], sizes = [3, 512], strides = [1, 1]} : vector<24x512xf32> to vector<3x512xf32>
    %69 = vector.broadcast %67 : vector<1x512xf32> to vector<3x512xf32>
    %70 = arith.mulf %68, %69 : vector<3x512xf32>
    %71 = arith.addf %63, %70 : vector<3x512xf32>
    %72 = arith.mulf %4, %5 : vector<1x512xf32>
    %73 = arith.mulf %72, %6 : vector<1x512xf32>
    %74 = vector.extract_strided_slice %1 {offsets = [21, 0], sizes = [3, 512], strides = [1, 1]} : vector<24x512xf32> to vector<3x512xf32>
    %75 = vector.broadcast %73 : vector<1x512xf32> to vector<3x512xf32>
    %76 = arith.mulf %74, %75 : vector<3x512xf32>
    %77 = arith.addf %71, %76 : vector<3x512xf32>
    %c0_16 = arith.constant 0 : index
    %c0_17 = arith.constant 0 : index
    %c0_18 = arith.constant 0 : index
    %78 = vector.load %arg4[%c0_16, %c0_17, %c0_18] : memref<1x3x512xf32, #tpu.memory_space<vmem>>, vector<1x3x512xf32>
    %79 = vector.shape_cast %78 : vector<1x3x512xf32> to vector<3x512xf32>
    %80 = vector.shape_cast %77 : vector<3x512xf32> to vector<1x3x512xf32>
    tpu.vector_store %arg4[%c0_16, %c0_17, %c0_18], %80 {strides = array<i32>} : memref<1x3x512xf32, #tpu.memory_space<vmem>>, vector<1x3x512xf32>,
    return
  }
  func.func @transform_0(%arg0: i32, %arg1: i32) -> (i32, i32, i32) {
    %c0_i32 = arith.constant 0 : i32
    %c0_i32_0 = arith.constant 0 : i32
    return %arg0, %c0_i32, %arg1 : i32, i32, i32
  }
  func.func @transform_1(%arg0: i32, %arg1: i32) -> (i32, i32, i32) {
    %c0_i32 = arith.constant 0 : i32
    %c0_i32_0 = arith.constant 0 : i32
    return %arg0, %c0_i32, %arg1 : i32, i32, i32
  }
  func.func @transform_2(%arg0: i32, %arg1: i32) -> (i32, i32, i32) {
    %c0_i32 = arith.constant 0 : i32
    %c0_i32_0 = arith.constant 0 : i32
    return %arg0, %c0_i32, %arg1 : i32, i32, i32
  }
}

</mosaic_0001>

<llo_original>
// kernel: _lambda_.18
$region0: #{_lambda_.18}
  #allocation0 [shape = 'u32[]', space=smem, size = 0x4, offset = 0x4, fixed_abs, tag = 'smem constant byte address 0x4 - core index']
  #allocation1 [shape = 'u32[72,128]{1,0:T(1,128)}', space=vmem, size = 0x9000, scoped, tag = 'internal scratch']
  %s0 = inlined_call_operand.vmem [shape: f32[2,3,4], index: 0, kind: input, shape index: {}]
  %s1 = inlined_call_operand.vmem [shape: f32[3,512], index: 1, kind: input, shape index: {}]
  %s2 = inlined_call_operand.vmem [shape: f32[2,3,512], index: 2, kind: output, shape index: {}]
  %s3 = sld [smem:[#allocation0]]
  $region41: #{_lambda_.18} parent=0
    _
  %s5 = ssub.s32 1, %s3
  %s6 = scalar_select 0, %s5, %s3
  loop: start=0, step=1, limit=4
  $region2: #{_lambda_.18} parent=0 // loop_pre_header
    _
  $region3: #{_lambda_.18} parent=0 // loop_header
    %s8 = sphi 0, %s12
    %p9 = scmp.ge.s32.totalorder %s8, 4
    %s15 = sphi 0, %s27
    %s16 = sphi 0, %s23
    %s17 = sphi 0, %s15
    %s18 = sphi 0, %s16
    %s19 = sphi 0, %s17
    %s20 = sphi 0, %s18
    %s30 = sphi 0, %s32
    %s33 = sphi 0, %s30
    %s34 = sphi 0, %s33
    %s50 = sphi 0, %s34
    %s56 = sphi 0, %s58
    %s59 = sphi 0, %s56
    %s60 = sphi 0, %s59
    %s76 = sphi 0, %s60
    %s84 = sphi 0, %s86
    %s87 = sphi 0, %s84
    %s88 = sphi 0, %s87
    %s104 = sphi 0, %s88
  $region4: #{_lambda_.18} parent=0 // loop_header_branch
    %11 = sbr.rel (%p9) target = $region8
  $region5: #{_lambda_.18} parent=0 // loop_body
    %s13 = ssub.s32 %s8, 1
    %s14 = ssub.s32 %s8, 2
    %s21 = sadd.s32 1, %s16
    %p22 = scmp.ge.s32.totalorder %s21, 1
    %s23 = scalar_select %p22, 0, %s21
    %s24 = sadd.s32 1, %s15
    %s25 = scalar_select %p22, %s24, %s15
    %p26 = scmp.ge.s32.totalorder %s25, 2
    %s27 = scalar_select %p26, 0, %s25
    %s28 = ssub.s32 %s15, %s27
    %p29 = scmp.eq.s32.totalorder %s28, 0
    %s31 = sadd.s32 %s30, 1
    %s32 = scalar_select %p29, %s30, %s31
    %p35 = pneg %p29
    %p36 = scmp.eq.s32.totalorder %s8, 1
    %p37 = por %p35, %p36
    %p38 = scmp.ne.s32.totalorder %s30, %s33
    %p39 = scmp.eq.s32.totalorder %s8, 0
    %p40 = por %p38, %p39
    %p41 = scmp.ne.s32.totalorder %s30, %s33
    %p42 = scmp.eq.s32.totalorder %s13, 1
    %p43 = por %p41, %p42
    %p44 = scmp.ne.s32.totalorder %s33, %s34
    %p45 = scmp.eq.s32.totalorder %s13, 0
    %p46 = por %p44, %p45
    %p47 = scmp.ne.s32.totalorder %s33, %s34
    %p48 = scmp.eq.s32.totalorder %s14, 1
    %p49 = por %p47, %p48
    %p51 = scmp.ne.s32.totalorder %s34, %s50
    %p52 = scmp.eq.s32.totalorder %s14, 0
    %p53 = por %p51, %p52
    %s54 = ssub.s32 %s16, %s23
    %p55 = scmp.eq.s32.totalorder %s54, 0
    %s57 = sadd.s32 %s56, 1
    %s58 = scalar_select %p55, %s56, %s57
    %p61 = pneg %p55
    %p62 = scmp.eq.s32.totalorder %s8, 1
    %p63 = por %p61, %p62
    %p64 = scmp.ne.s32.totalorder %s56, %s59
    %p65 = scmp.eq.s32.totalorder %s8, 0
    %p66 = por %p64, %p65
    %p67 = scmp.ne.s32.totalorder %s56, %s59
    %p68 = scmp.eq.s32.totalorder %s13, 1
    %p69 = por %p67, %p68
    %p70 = scmp.ne.s32.totalorder %s59, %s60
    %p71 = scmp.eq.s32.totalorder %s13, 0
    %p72 = por %p70, %p71
    %p73 = scmp.ne.s32.totalorder %s59, %s60
    %p74 = scmp.eq.s32.totalorder %s14, 1
    %p75 = por %p73, %p74
    %p77 = scmp.ne.s32.totalorder %s60, %s76
    %p78 = scmp.eq.s32.totalorder %s14, 0
    %p79 = por %p77, %p78
    %s80 = ssub.s32 %s15, %s27
    %s81 = ssub.s32 %s16, %s23
    %s82 = sor.u32 %s80, %s81
    %p83 = scmp.eq.s32.totalorder %s82, 0
    %s85 = sadd.s32 %s84, 1
    %s86 = scalar_select %p83, %s84, %s85
    %p89 = pneg %p83
    %p90 = scmp.eq.s32.totalorder %s8, 1
    %p91 = por %p89, %p90
    %p92 = scmp.ne.s32.totalorder %s84, %s87
    %p93 = scmp.eq.s32.totalorder %s8, 0
    %p94 = por %p92, %p93
    %p95 = scmp.ne.s32.totalorder %s84, %s87
    %p96 = scmp.eq.s32.totalorder %s13, 1
    %p97 = por %p95, %p96
    %p98 = scmp.ne.s32.totalorder %s87, %s88
    %p99 = scmp.eq.s32.totalorder %s13, 0
    %p100 = por %p98, %p99
    %p101 = scmp.ne.s32.totalorder %s87, %s88
    %p102 = scmp.eq.s32.totalorder %s14, 1
    %p103 = por %p101, %p102
    %p105 = scmp.ne.s32.totalorder %s88, %s104
    %p106 = scmp.eq.s32.totalorder %s14, 0
    %p107 = por %p105, %p106
    %p108 = scmp.le.s32.totalorder 1, %s8
    %p109 = scmp.lt.s32.totalorder %s8, 3
    %p110 = pnand %p108, %p109
    %p111 = pneg %p110
    // Predicated region
    $region9: #{_lambda_.18} parent=5 // pred_check
      _
    $region10: #{_lambda_.18} parent=5 // pred_check_branch
      %113 = sbr.rel (%p110) target = $region12
    $region11: #{_lambda_.18} parent=5 // pred_region
      %s114 = ssub.s32 %s8, 1
      // Predicated region
      $region13: #{_lambda_.18} parent=11 // pred_check
        %p115 = pneg %p72
      $region14: #{_lambda_.18} parent=11 // pred_check_branch
        %117 = sbr.rel (%p115) target = $region16
      $region15: #{_lambda_.18} parent=11 // pred_region
        %s118 = smul.u32 4, %s18
        %p119 = scmp.lt.s32.totalorder %s118, 3
        %s120 = scalar_select %p119, %s118, 3
        %s121 = smul.addr %s120, 4
        %s122 = scalar_lea.vmem %s1, %s121
        %s123 = smul.u32 4, %s18
      $region16: #{_lambda_.18} parent=11 // pred_fallthru
        _
    $region12: #{_lambda_.18} parent=5 // pred_fallthru
      _
    %p124 = scmp.lt.s32.totalorder %s8, 2
    // Predicated region
    $region17: #{_lambda_.18} parent=5 // pred_check
      %p125 = pneg %p124
    $region18: #{_lambda_.18} parent=5 // pred_check_branch
      %127 = sbr.rel (%p125) target = $region20
    $region19: #{_lambda_.18} parent=5 // pred_region
      // Predicated region
      $region21: #{_lambda_.18} parent=19 // pred_check
        %p128 = pneg %p40
      $region22: #{_lambda_.18} parent=19 // pred_check_branch
        %130 = sbr.rel (%p128) target = $region24
      $region23: #{_lambda_.18} parent=19 // pred_region
        %p131 = scmp.lt.s32.totalorder %s15, 1
        %s132 = scalar_select %p131, %s15, 1
        %s133 = smul.addr %s132, 4
        %s134 = scalar_lea.vmem %s0, %s133
      $region24: #{_lambda_.18} parent=19 // pred_fallthru
        _
    $region20: #{_lambda_.18} parent=5 // pred_fallthru
      _
    %p135 = scmp.le.s32.totalorder 1, %s8
    %p136 = scmp.lt.s32.totalorder %s8, 3
    %p137 = pnand %p135, %p136
    %p138 = pneg %p137
    // Predicated region
    $region25: #{_lambda_.18} parent=5 // pred_check
      _
    $region26: #{_lambda_.18} parent=5 // pred_check_branch
      %140 = sbr.rel (%p137) target = $region28
    $region27: #{_lambda_.18} parent=5 // pred_region
      %s141 = ssub.s32 %s8, 1
      %p142 = scmp.lt.s32.totalorder %s17, 1
      %s143 = scalar_select %p142, %s17, 1
      %s144 = smul.addr %s143, 4
      %s145 = scalar_lea.vmem %s0, %s144
      %p146 = pneg %p46
      %p147 = pneg %p43
      %s148 = smul.u32 4, %s18
      %p149 = scmp.lt.s32.totalorder %s148, 3
      %s150 = scalar_select %p149, %s148, 3
      %s151 = smul.addr %s150, 4
      %s152 = scalar_lea.vmem %s1, %s151
      %p153 = pneg %p72
      %p154 = pneg %p69
      %p155 = pneg %p100
      %p156 = pneg %p97
      %s157 = smul.u32 4, %s18
      %p158 = scmp.lt.s32.totalorder %s17, 1
      %s159 = scalar_select %p158, %s17, 1
      %p160 = scmp.lt.s32.totalorder %s157, 3
      %s161 = scalar_select %p160, %s157, 3
      %s162 = smul.addr %s159, 4
      %s163 = sadd.s32 %s161, %s162
      %s164 = smul.addr %s163, 4
      %s165 = scalar_lea.vmem %s2, %s164
      %p166 = scmp.lt.s32.totalorder %s17, 1
      %s167 = scalar_select %p166, %s17, 1
      %s168 = smul.addr %s167, 4
      %s169 = scalar_lea.vmem %s0, %s168
      %s170 = smul.u32 4, %s18
      %p171 = scmp.lt.s32.totalorder %s170, 3
      %s172 = scalar_select %p171, %s170, 3
      %s173 = smul.addr %s172, 4
      %s174 = scalar_lea.vmem %s1, %s173
      %s175 = smul.u32 4, %s18
      %s176 = smul.u32 4, %s18
      %p177 = scmp.lt.s32.totalorder %s17, 1
      %s178 = scalar_select %p177, %s17, 1
      %p179 = scmp.lt.s32.totalorder %s176, 3
      %s180 = scalar_select %p179, %s176, 3
      %s181 = smul.addr %s178, 4
      %s182 = sadd.s32 %s180, %s181
      %s183 = smul.addr %s182, 4
      %s184 = scalar_lea.vmem %s2, %s183
      %s185 = smul.u32 4, %s18
      %v186 = vld [vmem:[%s169] sm:$0x7]
      %v187 = vld [vmem:[%s174] sm:$0x77]
      %v188 = vld [vmem:[%s174 + $0x8] sm:$0x77]
      %190 = vset.pattern.permute.xlu0 0
      %191 = vperm.xlu0 %190, %v186
      %v192 = vpop.permute.xlu0 %191
      %v196 = vperm.slane %v187, 0
      %v197 = vperm.slane %v187, 4
      %v198 = vperm.slane %v188, 0
      %v199 = vperm.slane %v188, 4
      %v204 = vperm.slane %v196, 0
      %v205 = vperm.slane %v197, 0
      %v206 = vperm.slane %v198, 0
      %v207 = vperm.slane %v199, 0
      %v208 = vmul.f32 %v192, %v204
      %v209 = vmul.f32 %v192, %v205
      %v210 = vmul.f32 %v192, %v206
      %v211 = vmul.f32 %v192, %v207
      %212 = vset.pattern.permute.xlu0 1
      %213 = vperm.xlu0 %212, %v186
      %v214 = vpop.permute.xlu0 %213
      %v216 = vperm.slane %v187, 1
      %v217 = vperm.slane %v187, 5
      %v218 = vperm.slane %v188, 1
      %v219 = vperm.slane %v188, 5
      %v224 = vperm.slane %v216, 1
      %v225 = vperm.slane %v217, 1
      %v226 = vperm.slane %v218, 1
      %v227 = vperm.slane %v219, 1
      %v228 = vmul.f32 %v214, %v224
      %v229 = vmul.f32 %v214, %v225
      %v230 = vmul.f32 %v214, %v226
      %v231 = vmul.f32 %v214, %v227
      %v232 = vadd.f32 %v208, %v228
      %v233 = vadd.f32 %v209, %v229
      %v234 = vadd.f32 %v210, %v230
      %v235 = vadd.f32 %v211, %v231
      %236 = vset.pattern.permute.xlu0 2
      %237 = vperm.xlu0 %236, %v186
      %v238 = vpop.permute.xlu0 %237
      %v240 = vperm.slane %v187, 2
      %v241 = vperm.slane %v187, 6
      %v242 = vperm.slane %v188, 2
      %v243 = vperm.slane %v188, 6
      %v248 = vperm.slane %v240, 2
      %v249 = vperm.slane %v241, 2
      %v250 = vperm.slane %v242, 2
      %v251 = vperm.slane %v243, 2
      %v252 = vmul.f32 %v238, %v248
      %v253 = vmul.f32 %v238, %v249
      %v254 = vmul.f32 %v238, %v250
      %v255 = vmul.f32 %v238, %v251
      %v256 = vadd.f32 %v232, %v252
      %v257 = vadd.f32 %v233, %v253
      %v258 = vadd.f32 %v234, %v254
      %v259 = vadd.f32 %v235, %v255
      %260 = vset.pattern.permute.xlu0 3
      %261 = vperm.xlu0 %260, %v186
      %v262 = vpop.permute.xlu0 %261
      %v264 = vadd.f32 %v256, %v262
      %v265 = vadd.f32 %v257, %v262
      %v266 = vadd.f32 %v258, %v262
      %v267 = vadd.f32 %v259, %v262
      %v272 = vrot.slane %v265, 4
      %v273 = vrot.slane %v267, 4
      %vm274 = vcmask 1043456
      %v275 = vsel %vm274, %v264, %v272
      %v276 = vsel %vm274, %v266, %v273
      %279 = vst [vmem:[%s184] sm:$0x77] %v275
      %280 = vst [vmem:[%s184 + $0x8] sm:$0x77] %v276
      %s281 = smul.u32 4, %s18
      %p282 = scmp.lt.s32.totalorder %s17, 1
      %s283 = scalar_select %p282, %s17, 1
      %p284 = scmp.lt.s32.totalorder %s281, 3
      %s285 = scalar_select %p284, %s281, 3
      %s286 = smul.addr %s283, 4
      %s287 = sadd.s32 %s285, %s286
      %s288 = smul.addr %s287, 4
      %s289 = scalar_lea.vmem %s2, %s288
      // Predicated region
      $region29: #{_lambda_.18} parent=27 // pred_check
        %p290 = pneg %p97
      $region30: #{_lambda_.18} parent=27 // pred_check_branch
        %292 = sbr.rel (%p290) target = $region32
      $region31: #{_lambda_.18} parent=27 // pred_region
        %s293 = smul.u32 4, %s18
      $region32: #{_lambda_.18} parent=27 // pred_fallthru
        _
    $region28: #{_lambda_.18} parent=5 // pred_fallthru
      _
    %p294 = scmp.le.s32.totalorder 2, %s8
    // Predicated region
    $region33: #{_lambda_.18} parent=5 // pred_check
      %p295 = pneg %p294
    $region34: #{_lambda_.18} parent=5 // pred_check_branch
      %297 = sbr.rel (%p295) target = $region36
    $region35: #{_lambda_.18} parent=5 // pred_region
      %s298 = ssub.s32 %s8, 2
      // Predicated region
      $region37: #{_lambda_.18} parent=35 // pred_check
        %p299 = pneg %p103
      $region38: #{_lambda_.18} parent=35 // pred_check_branch
        %301 = sbr.rel (%p299) target = $region40
      $region39: #{_lambda_.18} parent=35 // pred_region
        %s302 = smul.u32 4, %s20
        %p303 = scmp.lt.s32.totalorder %s19, 1
        %s304 = scalar_select %p303, %s19, 1
        %p305 = scmp.lt.s32.totalorder %s302, 3
        %s306 = scalar_select %p305, %s302, 3
        %s307 = smul.addr %s304, 4
        %s308 = sadd.s32 %s306, %s307
        %s309 = smul.addr %s308, 4
        %s310 = scalar_lea.vmem %s2, %s309
      $region40: #{_lambda_.18} parent=35 // pred_fallthru
        _
    $region36: #{_lambda_.18} parent=5 // pred_fallthru
      _
  $region6: #{_lambda_.18} parent=0 // loop_footer
    %s12 = sadd.s32 1, %s8
  $region7: #{_lambda_.18} parent=0 // loop_footer_branch
    %7 = sbr.rel target = $region3
  $region8: #{_lambda_.18} parent=0 // loop_exit
    _

// kernel: _lambda_.17
$region0: #{_lambda_.17}
  #allocation0 [shape = 'u32[]', space=smem, size = 0x4, offset = 0x4, fixed_abs, tag = 'smem constant byte address 0x4 - core index']
  #allocation1 [shape = 'u32[72,128]{1,0:T(1,128)}', space=vmem, size = 0x9000, scoped, tag = 'internal scratch']
  #allocation2 [shape = 'f32[2,1]{1,0:T(2,128)}', space=vmem, size = 0x400, scoped, tag = 'scratch operand']
  %s0 = inlined_call_operand.vmem [shape: f32[2,2,512], index: 0, kind: input, shape index: {}]
  %s1 = inlined_call_operand.vmem [shape: f32[2,12], index: 1, kind: input, shape index: {}]
  %s2 = inlined_call_operand.vmem [shape: f32[1,12], index: 2, kind: input, shape index: {}]
  %s3 = inlined_call_operand.vmem [shape: f32[2,1,12], index: 3, kind: output, shape index: {}]
  %s4 = sld [smem:[#allocation0]]
  $region53: #{_lambda_.17} parent=0
    _
  %s6 = ssub.s32 1, %s4
  %s7 = scalar_select 0, %s6, %s4
  loop: start=0, step=1, limit=4
  $region2: #{_lambda_.17} parent=0 // loop_pre_header
    _
  $region3: #{_lambda_.17} parent=0 // loop_header
    %s9 = sphi 0, %s13
    %p10 = scmp.ge.s32.totalorder %s9, 4
    %s16 = sphi 0, %s28
    %s17 = sphi 0, %s24
    %s18 = sphi 0, %s16
    %s19 = sphi 0, %s17
    %s20 = sphi 0, %s18
    %s21 = sphi 0, %s19
    %s33 = sphi 0, %s35
    %s36 = sphi 0, %s33
    %s37 = sphi 0, %s36
    %s53 = sphi 0, %s37
    %s57 = sphi 0, %s57
    %s59 = sphi 0, %s57
    %s60 = sphi 0, %s59
    %s74 = sphi 0, %s60
    %s78 = sphi 0, %s78
    %s80 = sphi 0, %s78
    %s81 = sphi 0, %s80
    %s95 = sphi 0, %s81
    %s101 = sphi 0, %s103
    %s104 = sphi 0, %s101
    %s105 = sphi 0, %s104
    %s121 = sphi 0, %s105
  $region4: #{_lambda_.17} parent=0 // loop_header_branch
    %12 = sbr.rel (%p10) target = $region8
  $region5: #{_lambda_.17} parent=0 // loop_body
    %s14 = ssub.s32 %s9, 1
    %s15 = ssub.s32 %s9, 2
    %s22 = sadd.s32 1, %s17
    %p23 = scmp.ge.s32.totalorder %s22, 1
    %s24 = scalar_select %p23, 0, %s22
    %s25 = sadd.s32 1, %s16
    %s26 = scalar_select %p23, %s25, %s16
    %p27 = scmp.ge.s32.totalorder %s26, 2
    %s28 = scalar_select %p27, 0, %s26
    %s29 = ssub.s32 %s16, %s28
    %s30 = ssub.s32 %s17, %s24
    %s31 = sor.u32 %s29, %s30
    %p32 = scmp.eq.s32.totalorder %s31, 0
    %s34 = sadd.s32 %s33, 1
    %s35 = scalar_select %p32, %s33, %s34
    %p38 = pneg %p32
    %p39 = scmp.eq.s32.totalorder %s9, 1
    %p40 = por %p38, %p39
    %p41 = scmp.ne.s32.totalorder %s33, %s36
    %p42 = scmp.eq.s32.totalorder %s9, 0
    %p43 = por %p41, %p42
    %p44 = scmp.ne.s32.totalorder %s33, %s36
    %p45 = scmp.eq.s32.totalorder %s14, 1
    %p46 = por %p44, %p45
    %p47 = scmp.ne.s32.totalorder %s36, %s37
    %p48 = scmp.eq.s32.totalorder %s14, 0
    %p49 = por %p47, %p48
    %p50 = scmp.ne.s32.totalorder %s36, %s37
    %p51 = scmp.eq.s32.totalorder %s15, 1
    %p52 = por %p50, %p51
    %p54 = scmp.ne.s32.totalorder %s37, %s53
    %p55 = scmp.eq.s32.totalorder %s15, 0
    %p56 = por %p54, %p55
    %s58 = sadd.s32 %s57, 1
    %p61 = scmp.eq.s32.totalorder %s9, 1
    %p62 = scmp.ne.s32.totalorder %s57, %s59
    %p63 = scmp.eq.s32.totalorder %s9, 0
    %p64 = por %p62, %p63
    %p65 = scmp.ne.s32.totalorder %s57, %s59
    %p66 = scmp.eq.s32.totalorder %s14, 1
    %p67 = por %p65, %p66
    %p68 = scmp.ne.s32.totalorder %s59, %s60
    %p69 = scmp.eq.s32.totalorder %s14, 0
    %p70 = por %p68, %p69
    %p71 = scmp.ne.s32.totalorder %s59, %s60
    %p72 = scmp.eq.s32.totalorder %s15, 1
    %p73 = por %p71, %p72
    %p75 = scmp.ne.s32.totalorder %s60, %s74
    %p76 = scmp.eq.s32.totalorder %s15, 0
    %p77 = por %p75, %p76
    %s79 = sadd.s32 %s78, 1
    %p82 = scmp.eq.s32.totalorder %s9, 1
    %p83 = scmp.ne.s32.totalorder %s78, %s80
    %p84 = scmp.eq.s32.totalorder %s9, 0
    %p85 = por %p83, %p84
    %p86 = scmp.ne.s32.totalorder %s78, %s80
    %p87 = scmp.eq.s32.totalorder %s14, 1
    %p88 = por %p86, %p87
    %p89 = scmp.ne.s32.totalorder %s80, %s81
    %p90 = scmp.eq.s32.totalorder %s14, 0
    %p91 = por %p89, %p90
    %p92 = scmp.ne.s32.totalorder %s80, %s81
    %p93 = scmp.eq.s32.totalorder %s15, 1
    %p94 = por %p92, %p93
    %p96 = scmp.ne.s32.totalorder %s81, %s95
    %p97 = scmp.eq.s32.totalorder %s15, 0
    %p98 = por %p96, %p97
    %s99 = ssub.s32 %s16, %s28
    %p100 = scmp.eq.s32.totalorder %s99, 0
    %s102 = sadd.s32 %s101, 1
    %s103 = scalar_select %p100, %s101, %s102
    %p106 = pneg %p100
    %p107 = scmp.eq.s32.totalorder %s9, 1
    %p108 = por %p106, %p107
    %p109 = scmp.ne.s32.totalorder %s101, %s104
    %p110 = scmp.eq.s32.totalorder %s9, 0
    %p111 = por %p109, %p110
    %p112 = scmp.ne.s32.totalorder %s101, %s104
    %p113 = scmp.eq.s32.totalorder %s14, 1
    %p114 = por %p112, %p113
    %p115 = scmp.ne.s32.totalorder %s104, %s105
    %p116 = scmp.eq.s32.totalorder %s14, 0
    %p117 = por %p115, %p116
    %p118 = scmp.ne.s32.totalorder %s104, %s105
    %p119 = scmp.eq.s32.totalorder %s15, 1
    %p120 = por %p118, %p119
    %p122 = scmp.ne.s32.totalorder %s105, %s121
    %p123 = scmp.eq.s32.totalorder %s15, 0
    %p124 = por %p122, %p123
    %p125 = scmp.le.s32.totalorder 1, %s9
    %p126 = scmp.lt.s32.totalorder %s9, 3
    %p127 = pnand %p125, %p126
    %p128 = pneg %p127
    // Predicated region
    $region9: #{_lambda_.17} parent=5 // pred_check
      _
    $region10: #{_lambda_.17} parent=5 // pred_check_branch
      %130 = sbr.rel (%p127) target = $region12
    $region11: #{_lambda_.17} parent=5 // pred_region
      %s131 = ssub.s32 %s9, 1
      // Predicated region
      $region13: #{_lambda_.17} parent=11 // pred_check
        %p132 = pneg %p70
      $region14: #{_lambda_.17} parent=11 // pred_check_branch
        %134 = sbr.rel (%p132) target = $region16
      $region15: #{_lambda_.17} parent=11 // pred_region
        _
      $region16: #{_lambda_.17} parent=11 // pred_fallthru
        _
      // Predicated region
      $region17: #{_lambda_.17} parent=11 // pred_check
        %p135 = pneg %p91
      $region18: #{_lambda_.17} parent=11 // pred_check_branch
        %137 = sbr.rel (%p135) target = $region20
      $region19: #{_lambda_.17} parent=11 // pred_region
        _
      $region20: #{_lambda_.17} parent=11 // pred_fallthru
        _
    $region12: #{_lambda_.17} parent=5 // pred_fallthru
      _
    %p138 = scmp.lt.s32.totalorder %s9, 2
    // Predicated region
    $region21: #{_lambda_.17} parent=5 // pred_check
      %p139 = pneg %p138
    $region22: #{_lambda_.17} parent=5 // pred_check_branch
      %141 = sbr.rel (%p139) target = $region24
    $region23: #{_lambda_.17} parent=5 // pred_region
      // Predicated region
      $region25: #{_lambda_.17} parent=23 // pred_check
        %p142 = pneg %p43
      $region26: #{_lambda_.17} parent=23 // pred_check_branch
        %144 = sbr.rel (%p142) target = $region28
      $region27: #{_lambda_.17} parent=23 // pred_region
        %s145 = smul.u32 4, %s17
        %p146 = scmp.lt.s32.totalorder %s16, 1
        %s147 = scalar_select %p146, %s16, 1
        %p148 = scmp.lt.s32.totalorder %s145, 3
        %s149 = scalar_select %p148, %s145, 3
        %s150 = smul.addr %s147, 4
        %s151 = sadd.s32 %s149, %s150
        %s152 = smul.addr %s151, 2
        %s153 = scalar_lea.vmem %s0, %s152
        %s154 = smul.u32 4, %s17
      $region28: #{_lambda_.17} parent=23 // pred_fallthru
        _
    $region24: #{_lambda_.17} parent=5 // pred_fallthru
      _
    %p155 = scmp.le.s32.totalorder 1, %s9
    %p156 = scmp.lt.s32.totalorder %s9, 3
    %p157 = pnand %p155, %p156
    %p158 = pneg %p157
    // Predicated region
    $region29: #{_lambda_.17} parent=5 // pred_check
      _
    $region30: #{_lambda_.17} parent=5 // pred_check_branch
      %160 = sbr.rel (%p157) target = $region32
    $region31: #{_lambda_.17} parent=5 // pred_region
      %s161 = ssub.s32 %s9, 1
      %s162 = smul.u32 4, %s19
      %p163 = scmp.lt.s32.totalorder %s18, 1
      %s164 = scalar_select %p163, %s18, 1
      %p165 = scmp.lt.s32.totalorder %s162, 3
      %s166 = scalar_select %p165, %s162, 3
      %s167 = smul.addr %s164, 4
      %s168 = sadd.s32 %s166, %s167
      %s169 = smul.addr %s168, 2
      %s170 = scalar_lea.vmem %s0, %s169
      %p171 = pneg %p49
      %p172 = pneg %p46
      %p173 = pneg %p70
      %p174 = pneg %p67
      %p175 = pneg %p91
      %p176 = pneg %p88
      %p177 = pneg %p117
      %p178 = pneg %p114
      %p179 = scmp.lt.s32.totalorder %s18, 1
      %s180 = scalar_select %p179, %s18, 1
      %s181 = scalar_lea.vmem %s3, %s180
      %s182 = smul.u32 4, %s19
      %p183 = scmp.lt.s32.totalorder %s18, 1
      %s184 = scalar_select %p183, %s18, 1
      %p185 = scmp.lt.s32.totalorder %s182, 3
      %s186 = scalar_select %p185, %s182, 3
      %s187 = smul.addr %s184, 4
      %s188 = sadd.s32 %s186, %s187
      %s189 = smul.addr %s188, 2
      %s190 = scalar_lea.vmem %s0, %s189
      %s191 = smul.u32 4, %s19
      %p192 = scmp.lt.s32.totalorder %s18, 1
      %s193 = scalar_select %p192, %s18, 1
      %s194 = scalar_lea.vmem %s3, %s193
      %p195 = scmp.eq.s32.totalorder %s19, 0
      // Predicated region
      $region33: #{_lambda_.17} parent=31 // pred_check
        %p196 = pneg %p195
      $region34: #{_lambda_.17} parent=31 // pred_check_branch
        %198 = sbr.rel (%p196) target = $region36
      $region35: #{_lambda_.17} parent=31 // pred_region
        %vm199 = vcmask 1024
        %200 = vst.msk [vmem:[#allocation2] sm:$0x3] %vm199, 0.0
      $region36: #{_lambda_.17} parent=31 // pred_fallthru
        _
      %v201 = vld [vmem:[#allocation2] sm:$0x3]
      %v202 = vld [vmem:[%s190] sm:$0xff]
      %204 = vst [vmem:[#allocation1] ss:$4 sm:$0xff] %v202
      %v205 = vld.sshfl [vmem:[#allocation1] sm:$0xff pattern:$0x73625140]
      %v206 = vld.sshfl [vmem:[#allocation1 + $0x8] sm:$0xff pattern:$0x73625140]
      %v207 = vld.sshfl [vmem:[#allocation1 + $0x10] sm:$0xff pattern:$0x73625140]
      %v208 = vld.sshfl [vmem:[#allocation1 + $0x18] sm:$0xff pattern:$0x73625140]
      %vm213 = vcmask 1041408
      %v214 = vsel %vm213, %v205, 0.0
      %v215 = vsel %vm213, %v206, 0.0
      %v216 = vadd.f32 %v214, %v215
      %v217 = vsel %vm213, %v207, 0.0
      %v218 = vadd.f32 %v216, %v217
      %v219 = vsel %vm213, %v208, 0.0
      %v220 = vadd.f32 %v218, %v219
      %221 = vadd.xlane.f32.xlu0 %v220
      %v222 = vpop.xlane.xlu0 %221
      %v223 = vadd.f32 %v201, %v222
      %vm224 = vcmask 1024
      %225 = vst.msk [vmem:[#allocation2] sm:$0x3] %vm224, %v223
      // Predicated region
      $region37: #{_lambda_.17} parent=31 // pred_check
        %p226 = pneg %p195
      $region38: #{_lambda_.17} parent=31 // pred_check_branch
        %228 = sbr.rel (%p226) target = $region40
      $region39: #{_lambda_.17} parent=31 // pred_region
        %v229 = vld [vmem:[#allocation2] sm:$0x3]
        %v230 = vmul.f32 %v229, 0.001953125
        %v231 = vld [vmem:[%s1] sm:$0x3]
        %233 = vset.pattern.permute.xlu0 0
        %234 = vperm.xlu0 %233, %v230
        %v235 = vpop.permute.xlu0 %234
        %v237 = vmul.f32 %v231, %v235
        %vm238 = vcmask 91136
        %v239 = vsel %vm238, %v237, 0.0
        %v240 = vrot.slane %v239, 4
        %v241 = vadd.f32 %v239, %v240
        %v242 = vrot.slane %v241, 2
        %v243 = vadd.f32 %v241, %v242
        %v244 = vrot.slane %v243, 1
        %v245 = vadd.f32 %v243, %v244
        %v246 = vld [vmem:[%s2] sm:$0x1]
        %v247 = vadd.f32 %v245, %v246
        %vm248 = vcmask 90112
        %249 = vst.msk [vmem:[%s194] sm:$0x1] %vm248, %v247
      $region40: #{_lambda_.17} parent=31 // pred_fallthru
        _
      %p250 = scmp.lt.s32.totalorder %s18, 1
      %s251 = scalar_select %p250, %s18, 1
      %s252 = scalar_lea.vmem %s3, %s251
      // Predicated region
      $region41: #{_lambda_.17} parent=31 // pred_check
        %p253 = pneg %p114
      $region42: #{_lambda_.17} parent=31 // pred_check_branch
        %255 = sbr.rel (%p253) target = $region44
      $region43: #{_lambda_.17} parent=31 // pred_region
        _
      $region44: #{_lambda_.17} parent=31 // pred_fallthru
        _
    $region32: #{_lambda_.17} parent=5 // pred_fallthru
      _
    %p256 = scmp.le.s32.totalorder 2, %s9
    // Predicated region
    $region45: #{_lambda_.17} parent=5 // pred_check
      %p257 = pneg %p256
    $region46: #{_lambda_.17} parent=5 // pred_check_branch
      %259 = sbr.rel (%p257) target = $region48
    $region47: #{_lambda_.17} parent=5 // pred_region
      %s260 = ssub.s32 %s9, 2
      // Predicated region
      $region49: #{_lambda_.17} parent=47 // pred_check
        %p261 = pneg %p120
      $region50: #{_lambda_.17} parent=47 // pred_check_branch
        %263 = sbr.rel (%p261) target = $region52
      $region51: #{_lambda_.17} parent=47 // pred_region
        %p264 = scmp.lt.s32.totalorder %s20, 1
        %s265 = scalar_select %p264, %s20, 1
        %s266 = scalar_lea.vmem %s3, %s265
      $region52: #{_lambda_.17} parent=47 // pred_fallthru
        _
    $region48: #{_lambda_.17} parent=5 // pred_fallthru
      _
  $region6: #{_lambda_.17} parent=0 // loop_footer
    %s13 = sadd.s32 1, %s9
  $region7: #{_lambda_.17} parent=0 // loop_footer_branch
    %8 = sbr.rel target = $region3
  $region8: #{_lambda_.17} parent=0 // loop_exit
    _

// kernel: _lambda_.20
$region0: #{_lambda_.20}
  #allocation0 [shape = 'u32[]', space=smem, size = 0x4, offset = 0x4, fixed_abs, tag = 'smem constant byte address 0x4 - core index']
  #allocation1 [shape = 'u32[72,128]{1,0:T(1,128)}', space=vmem, size = 0x9000, scoped, tag = 'internal scratch']
  %s0 = inlined_call_operand.vmem [shape: f32[2,3,512], index: 0, kind: input, shape index: {}]
  %s1 = inlined_call_operand.vmem [shape: f32[3,512], index: 1, kind: input, shape index: {}]
  %s2 = inlined_call_operand.vmem [shape: s32[2,1,512], index: 2, kind: output, shape index: {0}]
  %s3 = inlined_call_operand.vmem [shape: f32[2,3,512], index: 3, kind: output, shape index: {1}]
  %4 = xla_tuple %s2, %s3
  %s5 = sld [smem:[#allocation0]]
  $region49: #{_lambda_.20} parent=0
    _
  %s7 = ssub.s32 1, %s5
  %s8 = scalar_select 0, %s7, %s5
  loop: start=0, step=1, limit=4
  $region2: #{_lambda_.20} parent=0 // loop_pre_header
    _
  $region3: #{_lambda_.20} parent=0 // loop_header
    %s10 = sphi 0, %s14
    %p11 = scmp.ge.s32.totalorder %s10, 4
    %s17 = sphi 0, %s29
    %s18 = sphi 0, %s25
    %s19 = sphi 0, %s17
    %s20 = sphi 0, %s18
    %s21 = sphi 0, %s19
    %s22 = sphi 0, %s20
    %s34 = sphi 0, %s36
    %s37 = sphi 0, %s34
    %s38 = sphi 0, %s37
    %s54 = sphi 0, %s38
    %s60 = sphi 0, %s62
    %s63 = sphi 0, %s60
    %s64 = sphi 0, %s63
    %s80 = sphi 0, %s64
    %s88 = sphi 0, %s90
    %s91 = sphi 0, %s88
    %s92 = sphi 0, %s91
    %s108 = sphi 0, %s92
    %s116 = sphi 0, %s118
    %s119 = sphi 0, %s116
    %s120 = sphi 0, %s119
    %s136 = sphi 0, %s120
  $region4: #{_lambda_.20} parent=0 // loop_header_branch
    %13 = sbr.rel (%p11) target = $region8
  $region5: #{_lambda_.20} parent=0 // loop_body
    %s15 = ssub.s32 %s10, 1
    %s16 = ssub.s32 %s10, 2
    %s23 = sadd.s32 1, %s18
    %p24 = scmp.ge.s32.totalorder %s23, 1
    %s25 = scalar_select %p24, 0, %s23
    %s26 = sadd.s32 1, %s17
    %s27 = scalar_select %p24, %s26, %s17
    %p28 = scmp.ge.s32.totalorder %s27, 2
    %s29 = scalar_select %p28, 0, %s27
    %s30 = ssub.s32 %s17, %s29
    %s31 = ssub.s32 %s18, %s25
    %s32 = sor.u32 %s30, %s31
    %p33 = scmp.eq.s32.totalorder %s32, 0
    %s35 = sadd.s32 %s34, 1
    %s36 = scalar_select %p33, %s34, %s35
    %p39 = pneg %p33
    %p40 = scmp.eq.s32.totalorder %s10, 1
    %p41 = por %p39, %p40
    %p42 = scmp.ne.s32.totalorder %s34, %s37
    %p43 = scmp.eq.s32.totalorder %s10, 0
    %p44 = por %p42, %p43
    %p45 = scmp.ne.s32.totalorder %s34, %s37
    %p46 = scmp.eq.s32.totalorder %s15, 1
    %p47 = por %p45, %p46
    %p48 = scmp.ne.s32.totalorder %s37, %s38
    %p49 = scmp.eq.s32.totalorder %s15, 0
    %p50 = por %p48, %p49
    %p51 = scmp.ne.s32.totalorder %s37, %s38
    %p52 = scmp.eq.s32.totalorder %s16, 1
    %p53 = por %p51, %p52
    %p55 = scmp.ne.s32.totalorder %s38, %s54
    %p56 = scmp.eq.s32.totalorder %s16, 0
    %p57 = por %p55, %p56
    %s58 = ssub.s32 %s18, %s25
    %p59 = scmp.eq.s32.totalorder %s58, 0
    %s61 = sadd.s32 %s60, 1
    %s62 = scalar_select %p59, %s60, %s61
    %p65 = pneg %p59
    %p66 = scmp.eq.s32.totalorder %s10, 1
    %p67 = por %p65, %p66
    %p68 = scmp.ne.s32.totalorder %s60, %s63
    %p69 = scmp.eq.s32.totalorder %s10, 0
    %p70 = por %p68, %p69
    %p71 = scmp.ne.s32.totalorder %s60, %s63
    %p72 = scmp.eq.s32.totalorder %s15, 1
    %p73 = por %p71, %p72
    %p74 = scmp.ne.s32.totalorder %s63, %s64
    %p75 = scmp.eq.s32.totalorder %s15, 0
    %p76 = por %p74, %p75
    %p77 = scmp.ne.s32.totalorder %s63, %s64
    %p78 = scmp.eq.s32.totalorder %s16, 1
    %p79 = por %p77, %p78
    %p81 = scmp.ne.s32.totalorder %s64, %s80
    %p82 = scmp.eq.s32.totalorder %s16, 0
    %p83 = por %p81, %p82
    %s84 = ssub.s32 %s17, %s29
    %s85 = ssub.s32 %s18, %s25
    %s86 = sor.u32 %s84, %s85
    %p87 = scmp.eq.s32.totalorder %s86, 0
    %s89 = sadd.s32 %s88, 1
    %s90 = scalar_select %p87, %s88, %s89
    %p93 = pneg %p87
    %p94 = scmp.eq.s32.totalorder %s10, 1
    %p95 = por %p93, %p94
    %p96 = scmp.ne.s32.totalorder %s88, %s91
    %p97 = scmp.eq.s32.totalorder %s10, 0
    %p98 = por %p96, %p97
    %p99 = scmp.ne.s32.totalorder %s88, %s91
    %p100 = scmp.eq.s32.totalorder %s15, 1
    %p101 = por %p99, %p100
    %p102 = scmp.ne.s32.totalorder %s91, %s92
    %p103 = scmp.eq.s32.totalorder %s15, 0
    %p104 = por %p102, %p103
    %p105 = scmp.ne.s32.totalorder %s91, %s92
    %p106 = scmp.eq.s32.totalorder %s16, 1
    %p107 = por %p105, %p106
    %p109 = scmp.ne.s32.totalorder %s92, %s108
    %p110 = scmp.eq.s32.totalorder %s16, 0
    %p111 = por %p109, %p110
    %s112 = ssub.s32 %s17, %s29
    %s113 = ssub.s32 %s18, %s25
    %s114 = sor.u32 %s112, %s113
    %p115 = scmp.eq.s32.totalorder %s114, 0
    %s117 = sadd.s32 %s116, 1
    %s118 = scalar_select %p115, %s116, %s117
    %p121 = pneg %p115
    %p122 = scmp.eq.s32.totalorder %s10, 1
    %p123 = por %p121, %p122
    %p124 = scmp.ne.s32.totalorder %s116, %s119
    %p125 = scmp.eq.s32.totalorder %s10, 0
    %p126 = por %p124, %p125
    %p127 = scmp.ne.s32.totalorder %s116, %s119
    %p128 = scmp.eq.s32.totalorder %s15, 1
    %p129 = por %p127, %p128
    %p130 = scmp.ne.s32.totalorder %s119, %s120
    %p131 = scmp.eq.s32.totalorder %s15, 0
    %p132 = por %p130, %p131
    %p133 = scmp.ne.s32.totalorder %s119, %s120
    %p134 = scmp.eq.s32.totalorder %s16, 1
    %p135 = por %p133, %p134
    %p137 = scmp.ne.s32.totalorder %s120, %s136
    %p138 = scmp.eq.s32.totalorder %s16, 0
    %p139 = por %p137, %p138
    %p140 = scmp.le.s32.totalorder 1, %s10
    %p141 = scmp.lt.s32.totalorder %s10, 3
    %p142 = pnand %p140, %p141
    %p143 = pneg %p142
    // Predicated region
    $region9: #{_lambda_.20} parent=5 // pred_check
      _
    $region10: #{_lambda_.20} parent=5 // pred_check_branch
      %145 = sbr.rel (%p142) target = $region12
    $region11: #{_lambda_.20} parent=5 // pred_region
      %s146 = ssub.s32 %s10, 1
      // Predicated region
      $region13: #{_lambda_.20} parent=11 // pred_check
        %p147 = pneg %p76
      $region14: #{_lambda_.20} parent=11 // pred_check_branch
        %149 = sbr.rel (%p147) target = $region16
      $region15: #{_lambda_.20} parent=11 // pred_region
        %s150 = smul.u32 4, %s20
        %p151 = scmp.lt.s32.totalorder %s150, 3
        %s152 = scalar_select %p151, %s150, 3
        %s153 = smul.addr %s152, 4
        %s154 = scalar_lea.vmem %s1, %s153
        %s155 = smul.u32 4, %s20
      $region16: #{_lambda_.20} parent=11 // pred_fallthru
        _
    $region12: #{_lambda_.20} parent=5 // pred_fallthru
      _
    %p156 = scmp.lt.s32.totalorder %s10, 2
    // Predicated region
    $region17: #{_lambda_.20} parent=5 // pred_check
      %p157 = pneg %p156
    $region18: #{_lambda_.20} parent=5 // pred_check_branch
      %159 = sbr.rel (%p157) target = $region20
    $region19: #{_lambda_.20} parent=5 // pred_region
      // Predicated region
      $region21: #{_lambda_.20} parent=19 // pred_check
        %p160 = pneg %p44
      $region22: #{_lambda_.20} parent=19 // pred_check_branch
        %162 = sbr.rel (%p160) target = $region24
      $region23: #{_lambda_.20} parent=19 // pred_region
        %s163 = smul.u32 4, %s18
        %p164 = scmp.lt.s32.totalorder %s17, 1
        %s165 = scalar_select %p164, %s17, 1
        %p166 = scmp.lt.s32.totalorder %s163, 3
        %s167 = scalar_select %p166, %s163, 3
        %s168 = smul.addr %s165, 4
        %s169 = sadd.s32 %s167, %s168
        %s170 = smul.addr %s169, 4
        %s171 = scalar_lea.vmem %s0, %s170
        %s172 = smul.u32 4, %s18
      $region24: #{_lambda_.20} parent=19 // pred_fallthru
        _
    $region20: #{_lambda_.20} parent=5 // pred_fallthru
      _
    %p173 = scmp.le.s32.totalorder 1, %s10
    %p174 = scmp.lt.s32.totalorder %s10, 3
    %p175 = pnand %p173, %p174
    %p176 = pneg %p175
    // Predicated region
    $region25: #{_lambda_.20} parent=5 // pred_check
      _
    $region26: #{_lambda_.20} parent=5 // pred_check_branch
      %178 = sbr.rel (%p175) target = $region28
    $region27: #{_lambda_.20} parent=5 // pred_region
      %s179 = ssub.s32 %s10, 1
      %s180 = smul.u32 4, %s20
      %p181 = scmp.lt.s32.totalorder %s19, 1
      %s182 = scalar_select %p181, %s19, 1
      %p183 = scmp.lt.s32.totalorder %s180, 3
      %s184 = scalar_select %p183, %s180, 3
      %s185 = smul.addr %s182, 4
      %s186 = sadd.s32 %s184, %s185
      %s187 = smul.addr %s186, 4
      %s188 = scalar_lea.vmem %s0, %s187
      %p189 = pneg %p50
      %p190 = pneg %p47
      %s191 = smul.u32 4, %s20
      %p192 = scmp.lt.s32.totalorder %s191, 3
      %s193 = scalar_select %p192, %s191, 3
      %s194 = smul.addr %s193, 4
      %s195 = scalar_lea.vmem %s1, %s194
      %p196 = pneg %p76
      %p197 = pneg %p73
      %p198 = pneg %p104
      %p199 = pneg %p101
      %s200 = smul.u32 4, %s20
      %p201 = scmp.lt.s32.totalorder %s19, 1
      %s202 = scalar_select %p201, %s19, 1
      %p203 = scmp.lt.s32.totalorder %s200, 3
      %s204 = scalar_select %p203, %s200, 3
      %s205 = smul.addr %s202, 4
      %s206 = sadd.s32 %s204, %s205
      %s207 = scalar_lea.vmem %s2, %s206
      %p208 = pneg %p132
      %p209 = pneg %p129
      %s210 = smul.u32 4, %s20
      %p211 = scmp.lt.s32.totalorder %s19, 1
      %s212 = scalar_select %p211, %s19, 1
      %p213 = scmp.lt.s32.totalorder %s210, 3
      %s214 = scalar_select %p213, %s210, 3
      %s215 = smul.addr %s212, 4
      %s216 = sadd.s32 %s214, %s215
      %s217 = smul.addr %s216, 4
      %s218 = scalar_lea.vmem %s3, %s217
      %s219 = smul.u32 4, %s20
      %p220 = scmp.lt.s32.totalorder %s19, 1
      %s221 = scalar_select %p220, %s19, 1
      %p222 = scmp.lt.s32.totalorder %s219, 3
      %s223 = scalar_select %p222, %s219, 3
      %s224 = smul.addr %s221, 4
      %s225 = sadd.s32 %s223, %s224
      %s226 = smul.addr %s225, 4
      %s227 = scalar_lea.vmem %s0, %s226
      %s228 = smul.u32 4, %s20
      %s229 = smul.u32 4, %s20
      %p230 = scmp.lt.s32.totalorder %s229, 3
      %s231 = scalar_select %p230, %s229, 3
      %s232 = smul.addr %s231, 4
      %s233 = scalar_lea.vmem %s1, %s232
      %s234 = smul.u32 4, %s20
      %s235 = smul.u32 4, %s20
      %p236 = scmp.lt.s32.totalorder %s19, 1
      %s237 = scalar_select %p236, %s19, 1
      %p238 = scmp.lt.s32.totalorder %s235, 3
      %s239 = scalar_select %p238, %s235, 3
      %s240 = smul.addr %s237, 4
      %s241 = sadd.s32 %s239, %s240
      %s242 = scalar_lea.vmem %s2, %s241
      %s243 = smul.u32 4, %s20
      %s244 = smul.u32 4, %s20
      %p245 = scmp.lt.s32.totalorder %s19, 1
      %s246 = scalar_select %p245, %s19, 1
      %p247 = scmp.lt.s32.totalorder %s244, 3
      %s248 = scalar_select %p247, %s244, 3
      %s249 = smul.addr %s246, 4
      %s250 = sadd.s32 %s248, %s249
      %s251 = smul.addr %s250, 4
      %s252 = scalar_lea.vmem %s3, %s251
      %s253 = smul.u32 4, %s20
      %v254 = vld [vmem:[%s227] sm:$0x77]
      %v255 = vld [vmem:[%s227 + $0x8] sm:$0x77]
      %v256 = vld [vmem:[%s233] sm:$0x77]
      %v257 = vld [vmem:[%s233 + $0x8] sm:$0x77]
      %v258 = vadd.f32 %v256, %v254
      %v259 = vadd.f32 %v257, %v255
      %v260 = vmax.f32 %v258, 0.0
      %v261 = vmax.f32 %v259, 0.0
      %v262 = vmin.f32 %v260, 7.0
      %v263 = vmin.f32 %v261, 7.0
      %v264 = vfloor.f32 %v262
      %v265 = vfloor.f32 %v263
      %v266 = vmax.f32 %v264, 0.0
      %v267 = vmax.f32 %v265, 0.0
      %v268 = vmin.f32 %v266, 6.0
      %v269 = vmin.f32 %v267, 6.0
      %v270 = vcvt.f32.s32.to.zero.pseudo %v268
      %v271 = vcvt.f32.s32.to.zero.pseudo %v269
      %v272 = vmul.u32 %v270, 64
      %v273 = vmul.u32 %v271, 64
      %v274 = vmul.u32 %v270, 8
      %v275 = vmul.u32 %v271, 8
      %v276 = vrot.slane %v274, 5
      %v277 = vrot.slane %v276, 4
      %v278 = vrot.slane %v275, 5
      %v279 = vrot.slane %v278, 4
      %v280 = vadd.s32 %v272, %v277
      %v281 = vadd.s32 %v273, %v279
      %v282 = vrot.slane %v270, 6
      %v283 = vrot.slane %v282, 4
      %v284 = vrot.slane %v271, 6
      %v285 = vrot.slane %v284, 4
      %v286 = vadd.s32 %v280, %v283
      %v287 = vadd.s32 %v281, %v285
      %v288 = vrot.slane %v286, 3
      %v289 = vrot.slane %v287, 6
      %v290 = vrot.slane %v287, 1
      %vm291 = vcmask 1040384
      %v292 = vsel %vm291, %v286, %v288
      %vm293 = vcmask 1042434
      %v294 = vsel %vm293, %v289, %v290
      %vm295 = vcmask 1041408
      %v296 = vsel %vm295, %v292, %v294
      %v297 = vlaneseq
      %vm298 = vcmp.ge.s32.totalorder %v297, 0
      %vm299 = vcmp.lt.s32.totalorder %v297, 512
      %vm300 = vmand %vm298, %vm299
      %301 = vst.msk [vmem:[%s242] sm:$0xf] %vm300, %v296
      %v302 = vsub.f32 %v262, %v268
      %v303 = vsub.f32 %v263, %v269
      %v306 = vperm.slane %v302, 0
      %v307 = vperm.slane %v302, 4
      %v308 = vperm.slane %v303, 0
      %v309 = vperm.slane %v303, 4
      %v314 = vperm.slane %v302, 1
      %v315 = vperm.slane %v302, 5
      %v316 = vperm.slane %v303, 1
      %v317 = vperm.slane %v303, 5
      %v322 = vperm.slane %v302, 2
      %v323 = vperm.slane %v302, 6
      %v324 = vperm.slane %v303, 2
      %v325 = vperm.slane %v303, 6
      %v330 = vsel %vm291, %v306, %v314
      %v331 = vsel %vm291, %v307, %v315
      %v332 = vsel %vm291, %v308, %v316
      %v333 = vsel %vm291, %v309, %v317
      %v334 = vsel %vm295, %v330, %v322
      %v335 = vsel %vm295, %v331, %v323
      %v336 = vsel %vm295, %v332, %v324
      %v337 = vsel %vm295, %v333, %v325
      %v342 = vrot.slane %v335, 4
      %v343 = vrot.slane %v337, 4
      %vm344 = vcmask 1043456
      %v345 = vsel %vm344, %v334, %v342
      %v346 = vsel %vm344, %v336, %v343
      %349 = vst [vmem:[%s252] sm:$0x77] %v345
      %350 = vst [vmem:[%s252 + $0x8] sm:$0x77] %v346
      %s351 = smul.u32 4, %s20
      %p352 = scmp.lt.s32.totalorder %s19, 1
      %s353 = scalar_select %p352, %s19, 1
      %p354 = scmp.lt.s32.totalorder %s351, 3
      %s355 = scalar_select %p354, %s351, 3
      %s356 = smul.addr %s353, 4
      %s357 = sadd.s32 %s355, %s356
      %s358 = scalar_lea.vmem %s2, %s357
      %s359 = smul.u32 4, %s20
      %p360 = scmp.lt.s32.totalorder %s19, 1
      %s361 = scalar_select %p360, %s19, 1
      %p362 = scmp.lt.s32.totalorder %s359, 3
      %s363 = scalar_select %p362, %s359, 3
      %s364 = smul.addr %s361, 4
      %s365 = sadd.s32 %s363, %s364
      %s366 = smul.addr %s365, 4
      %s367 = scalar_lea.vmem %s3, %s366
      // Predicated region
      $region29: #{_lambda_.20} parent=27 // pred_check
        %p368 = pneg %p101
      $region30: #{_lambda_.20} parent=27 // pred_check_branch
        %370 = sbr.rel (%p368) target = $region32
      $region31: #{_lambda_.20} parent=27 // pred_region
        %s371 = smul.u32 4, %s20
      $region32: #{_lambda_.20} parent=27 // pred_fallthru
        _
      // Predicated region
      $region33: #{_lambda_.20} parent=27 // pred_check
        %p372 = pneg %p129
      $region34: #{_lambda_.20} parent=27 // pred_check_branch
        %374 = sbr.rel (%p372) target = $region36
      $region35: #{_lambda_.20} parent=27 // pred_region
        %s375 = smul.u32 4, %s20
      $region36: #{_lambda_.20} parent=27 // pred_fallthru
        _
    $region28: #{_lambda_.20} parent=5 // pred_fallthru
      _
    %p376 = scmp.le.s32.totalorder 2, %s10
    // Predicated region
    $region37: #{_lambda_.20} parent=5 // pred_check
      %p377 = pneg %p376
    $region38: #{_lambda_.20} parent=5 // pred_check_branch
      %379 = sbr.rel (%p377) target = $region40
    $region39: #{_lambda_.20} parent=5 // pred_region
      %s380 = ssub.s32 %s10, 2
      // Predicated region
      $region41: #{_lambda_.20} parent=39 // pred_check
        %p381 = pneg %p107
      $region42: #{_lambda_.20} parent=39 // pred_check_branch
        %383 = sbr.rel (%p381) target = $region44
      $region43: #{_lambda_.20} parent=39 // pred_region
        %s384 = smul.u32 4, %s22
        %p385 = scmp.lt.s32.totalorder %s21, 1
        %s386 = scalar_select %p385, %s21, 1
        %p387 = scmp.lt.s32.totalorder %s384, 3
        %s388 = scalar_select %p387, %s384, 3
        %s389 = smul.addr %s386, 4
        %s390 = sadd.s32 %s388, %s389
        %s391 = scalar_lea.vmem %s2, %s390
      $region44: #{_lambda_.20} parent=39 // pred_fallthru
        _
      // Predicated region
      $region45: #{_lambda_.20} parent=39 // pred_check
        %p392 = pneg %p135
      $region46: #{_lambda_.20} parent=39 // pred_check_branch
        %394 = sbr.rel (%p392) target = $region48
      $region47: #{_lambda_.20} parent=39 // pred_region
        %s395 = smul.u32 4, %s22
        %p396 = scmp.lt.s32.totalorder %s21, 1
        %s397 = scalar_select %p396, %s21, 1
        %p398 = scmp.lt.s32.totalorder %s395, 3
        %s399 = scalar_select %p398, %s395, 3
        %s400 = smul.addr %s397, 4
        %s401 = sadd.s32 %s399, %s400
        %s402 = smul.addr %s401, 4
        %s403 = scalar_lea.vmem %s3, %s402
      $region48: #{_lambda_.20} parent=39 // pred_fallthru
        _
    $region40: #{_lambda_.20} parent=5 // pred_fallthru
      _
  $region6: #{_lambda_.20} parent=0 // loop_footer
    %s14 = sadd.s32 1, %s10
  $region7: #{_lambda_.20} parent=0 // loop_footer_branch
    %9 = sbr.rel target = $region3
  $region8: #{_lambda_.20} parent=0 // loop_exit
    _

// kernel: _lambda_.21
$region0: #{_lambda_.21}
  #allocation0 [shape = 'u32[]', space=smem, size = 0x4, offset = 0x4, fixed_abs, tag = 'smem constant byte address 0x4 - core index']
  #allocation1 [shape = 'u32[72,128]{1,0:T(1,128)}', space=vmem, size = 0x9000, scoped, tag = 'internal scratch']
  %s0 = inlined_call_operand.vmem [shape: f32[2,8,512], index: 0, kind: input, shape index: {}]
  %s1 = inlined_call_operand.vmem [shape: f32[2,3,512], index: 1, kind: input, shape index: {}]
  %s2 = inlined_call_operand.vmem [shape: f32[2,1,512], index: 2, kind: output, shape index: {}]
  %s3 = sld [smem:[#allocation0]]
  $region41: #{_lambda_.21} parent=0
    _
  %s5 = ssub.s32 1, %s3
  %s6 = scalar_select 0, %s5, %s3
  loop: start=0, step=1, limit=4
  $region2: #{_lambda_.21} parent=0 // loop_pre_header
    _
  $region3: #{_lambda_.21} parent=0 // loop_header
    %s8 = sphi 0, %s12
    %p9 = scmp.ge.s32.totalorder %s8, 4
    %s15 = sphi 0, %s27
    %s16 = sphi 0, %s23
    %s17 = sphi 0, %s15
    %s18 = sphi 0, %s16
    %s19 = sphi 0, %s17
    %s20 = sphi 0, %s18
    %s32 = sphi 0, %s34
    %s35 = sphi 0, %s32
    %s36 = sphi 0, %s35
    %s52 = sphi 0, %s36
    %s60 = sphi 0, %s62
    %s63 = sphi 0, %s60
    %s64 = sphi 0, %s63
    %s80 = sphi 0, %s64
    %s88 = sphi 0, %s90
    %s91 = sphi 0, %s88
    %s92 = sphi 0, %s91
    %s108 = sphi 0, %s92
  $region4: #{_lambda_.21} parent=0 // loop_header_branch
    %11 = sbr.rel (%p9) target = $region8
  $region5: #{_lambda_.21} parent=0 // loop_body
    %s13 = ssub.s32 %s8, 1
    %s14 = ssub.s32 %s8, 2
    %s21 = sadd.s32 1, %s16
    %p22 = scmp.ge.s32.totalorder %s21, 1
    %s23 = scalar_select %p22, 0, %s21
    %s24 = sadd.s32 1, %s15
    %s25 = scalar_select %p22, %s24, %s15
    %p26 = scmp.ge.s32.totalorder %s25, 2
    %s27 = scalar_select %p26, 0, %s25
    %s28 = ssub.s32 %s15, %s27
    %s29 = ssub.s32 %s16, %s23
    %s30 = sor.u32 %s28, %s29
    %p31 = scmp.eq.s32.totalorder %s30, 0
    %s33 = sadd.s32 %s32, 1
    %s34 = scalar_select %p31, %s32, %s33
    %p37 = pneg %p31
    %p38 = scmp.eq.s32.totalorder %s8, 1
    %p39 = por %p37, %p38
    %p40 = scmp.ne.s32.totalorder %s32, %s35
    %p41 = scmp.eq.s32.totalorder %s8, 0
    %p42 = por %p40, %p41
    %p43 = scmp.ne.s32.totalorder %s32, %s35
    %p44 = scmp.eq.s32.totalorder %s13, 1
    %p45 = por %p43, %p44
    %p46 = scmp.ne.s32.totalorder %s35, %s36
    %p47 = scmp.eq.s32.totalorder %s13, 0
    %p48 = por %p46, %p47
    %p49 = scmp.ne.s32.totalorder %s35, %s36
    %p50 = scmp.eq.s32.totalorder %s14, 1
    %p51 = por %p49, %p50
    %p53 = scmp.ne.s32.totalorder %s36, %s52
    %p54 = scmp.eq.s32.totalorder %s14, 0
    %p55 = por %p53, %p54
    %s56 = ssub.s32 %s15, %s27
    %s57 = ssub.s32 %s16, %s23
    %s58 = sor.u32 %s56, %s57
    %p59 = scmp.eq.s32.totalorder %s58, 0
    %s61 = sadd.s32 %s60, 1
    %s62 = scalar_select %p59, %s60, %s61
    %p65 = pneg %p59
    %p66 = scmp.eq.s32.totalorder %s8, 1
    %p67 = por %p65, %p66
    %p68 = scmp.ne.s32.totalorder %s60, %s63
    %p69 = scmp.eq.s32.totalorder %s8, 0
    %p70 = por %p68, %p69
    %p71 = scmp.ne.s32.totalorder %s60, %s63
    %p72 = scmp.eq.s32.totalorder %s13, 1
    %p73 = por %p71, %p72
    %p74 = scmp.ne.s32.totalorder %s63, %s64
    %p75 = scmp.eq.s32.totalorder %s13, 0
    %p76 = por %p74, %p75
    %p77 = scmp.ne.s32.totalorder %s63, %s64
    %p78 = scmp.eq.s32.totalorder %s14, 1
    %p79 = por %p77, %p78
    %p81 = scmp.ne.s32.totalorder %s64, %s80
    %p82 = scmp.eq.s32.totalorder %s14, 0
    %p83 = por %p81, %p82
    %s84 = ssub.s32 %s15, %s27
    %s85 = ssub.s32 %s16, %s23
    %s86 = sor.u32 %s84, %s85
    %p87 = scmp.eq.s32.totalorder %s86, 0
    %s89 = sadd.s32 %s88, 1
    %s90 = scalar_select %p87, %s88, %s89
    %p93 = pneg %p87
    %p94 = scmp.eq.s32.totalorder %s8, 1
    %p95 = por %p93, %p94
    %p96 = scmp.ne.s32.totalorder %s88, %s91
    %p97 = scmp.eq.s32.totalorder %s8, 0
    %p98 = por %p96, %p97
    %p99 = scmp.ne.s32.totalorder %s88, %s91
    %p100 = scmp.eq.s32.totalorder %s13, 1
    %p101 = por %p99, %p100
    %p102 = scmp.ne.s32.totalorder %s91, %s92
    %p103 = scmp.eq.s32.totalorder %s13, 0
    %p104 = por %p102, %p103
    %p105 = scmp.ne.s32.totalorder %s91, %s92
    %p106 = scmp.eq.s32.totalorder %s14, 1
    %p107 = por %p105, %p106
    %p109 = scmp.ne.s32.totalorder %s92, %s108
    %p110 = scmp.eq.s32.totalorder %s14, 0
    %p111 = por %p109, %p110
    %p112 = scmp.le.s32.totalorder 1, %s8
    %p113 = scmp.lt.s32.totalorder %s8, 3
    %p114 = pnand %p112, %p113
    %p115 = pneg %p114
    // Predicated region
    $region9: #{_lambda_.21} parent=5 // pred_check
      _
    $region10: #{_lambda_.21} parent=5 // pred_check_branch
      %117 = sbr.rel (%p114) target = $region12
    $region11: #{_lambda_.21} parent=5 // pred_region
      %s118 = ssub.s32 %s8, 1
    $region12: #{_lambda_.21} parent=5 // pred_fallthru
      _
    %p119 = scmp.lt.s32.totalorder %s8, 2
    // Predicated region
    $region13: #{_lambda_.21} parent=5 // pred_check
      %p120 = pneg %p119
    $region14: #{_lambda_.21} parent=5 // pred_check_branch
      %122 = sbr.rel (%p120) target = $region16
    $region15: #{_lambda_.21} parent=5 // pred_region
      // Predicated region
      $region17: #{_lambda_.21} parent=15 // pred_check
        %p123 = pneg %p42
      $region18: #{_lambda_.21} parent=15 // pred_check_branch
        %125 = sbr.rel (%p123) target = $region20
      $region19: #{_lambda_.21} parent=15 // pred_region
        %s126 = smul.u32 4, %s16
        %p127 = scmp.lt.s32.totalorder %s15, 1
        %s128 = scalar_select %p127, %s15, 1
        %p129 = scmp.lt.s32.totalorder %s126, 3
        %s130 = scalar_select %p129, %s126, 3
        %s131 = smul.addr %s128, 4
        %s132 = sadd.s32 %s130, %s131
        %s133 = smul.addr %s132, 8
        %s134 = scalar_lea.vmem %s0, %s133
        %s135 = smul.u32 4, %s16
      $region20: #{_lambda_.21} parent=15 // pred_fallthru
        _
      // Predicated region
      $region21: #{_lambda_.21} parent=15 // pred_check
        %p136 = pneg %p70
      $region22: #{_lambda_.21} parent=15 // pred_check_branch
        %138 = sbr.rel (%p136) target = $region24
      $region23: #{_lambda_.21} parent=15 // pred_region
        %s139 = smul.u32 4, %s16
        %p140 = scmp.lt.s32.totalorder %s15, 1
        %s141 = scalar_select %p140, %s15, 1
        %p142 = scmp.lt.s32.totalorder %s139, 3
        %s143 = scalar_select %p142, %s139, 3
        %s144 = smul.addr %s141, 4
        %s145 = sadd.s32 %s143, %s144
        %s146 = smul.addr %s145, 4
        %s147 = scalar_lea.vmem %s1, %s146
        %s148 = smul.u32 4, %s16
      $region24: #{_lambda_.21} parent=15 // pred_fallthru
        _
    $region16: #{_lambda_.21} parent=5 // pred_fallthru
      _
    %p149 = scmp.le.s32.totalorder 1, %s8
    %p150 = scmp.lt.s32.totalorder %s8, 3
    %p151 = pnand %p149, %p150
    %p152 = pneg %p151
    // Predicated region
    $region25: #{_lambda_.21} parent=5 // pred_check
      _
    $region26: #{_lambda_.21} parent=5 // pred_check_branch
      %154 = sbr.rel (%p151) target = $region28
    $region27: #{_lambda_.21} parent=5 // pred_region
      %s155 = ssub.s32 %s8, 1
      %s156 = smul.u32 4, %s18
      %p157 = scmp.lt.s32.totalorder %s17, 1
      %s158 = scalar_select %p157, %s17, 1
      %p159 = scmp.lt.s32.totalorder %s156, 3
      %s160 = scalar_select %p159, %s156, 3
      %s161 = smul.addr %s158, 4
      %s162 = sadd.s32 %s160, %s161
      %s163 = smul.addr %s162, 8
      %s164 = scalar_lea.vmem %s0, %s163
      %p165 = pneg %p48
      %p166 = pneg %p45
      %s167 = smul.u32 4, %s18
      %p168 = scmp.lt.s32.totalorder %s17, 1
      %s169 = scalar_select %p168, %s17, 1
      %p170 = scmp.lt.s32.totalorder %s167, 3
      %s171 = scalar_select %p170, %s167, 3
      %s172 = smul.addr %s169, 4
      %s173 = sadd.s32 %s171, %s172
      %s174 = smul.addr %s173, 4
      %s175 = scalar_lea.vmem %s1, %s174
      %p176 = pneg %p76
      %p177 = pneg %p73
      %p178 = pneg %p104
      %p179 = pneg %p101
      %s180 = smul.u32 4, %s18
      %p181 = scmp.lt.s32.totalorder %s17, 1
      %s182 = scalar_select %p181, %s17, 1
      %p183 = scmp.lt.s32.totalorder %s180, 3
      %s184 = scalar_select %p183, %s180, 3
      %s185 = smul.addr %s182, 4
      %s186 = sadd.s32 %s184, %s185
      %s187 = scalar_lea.vmem %s2, %s186
      %s188 = smul.u32 4, %s18
      %p189 = scmp.lt.s32.totalorder %s17, 1
      %s190 = scalar_select %p189, %s17, 1
      %p191 = scmp.lt.s32.totalorder %s188, 3
      %s192 = scalar_select %p191, %s188, 3
      %s193 = smul.addr %s190, 4
      %s194 = sadd.s32 %s192, %s193
      %s195 = smul.addr %s194, 8
      %s196 = scalar_lea.vmem %s0, %s195
      %s197 = smul.u32 4, %s18
      %s198 = smul.u32 4, %s18
      %p199 = scmp.lt.s32.totalorder %s17, 1
      %s200 = scalar_select %p199, %s17, 1
      %p201 = scmp.lt.s32.totalorder %s198, 3
      %s202 = scalar_select %p201, %s198, 3
      %s203 = smul.addr %s200, 4
      %s204 = sadd.s32 %s202, %s203
      %s205 = smul.addr %s204, 4
      %s206 = scalar_lea.vmem %s1, %s205
      %s207 = smul.u32 4, %s18
      %s208 = smul.u32 4, %s18
      %p209 = scmp.lt.s32.totalorder %s17, 1
      %s210 = scalar_select %p209, %s17, 1
      %p211 = scmp.lt.s32.totalorder %s208, 3
      %s212 = scalar_select %p211, %s208, 3
      %s213 = smul.addr %s210, 4
      %s214 = sadd.s32 %s212, %s213
      %s215 = scalar_lea.vmem %s2, %s214
      %s216 = smul.u32 4, %s18
      %v217 = vld [vmem:[%s196] sm:$0xff]
      %v218 = vld [vmem:[%s196 + $0x8] sm:$0xff]
      %v219 = vld [vmem:[%s196 + $0x10] sm:$0xff]
      %v220 = vld [vmem:[%s196 + $0x18] sm:$0xff]
      %v221 = vld [vmem:[%s206] sm:$0x77]
      %v222 = vld [vmem:[%s206 + $0x8] sm:$0x77]
      %v223 = vsub.f32 1.0, %v221
      %v224 = vsub.f32 1.0, %v222
      %v227 = vrot.slane %v223, 5
      %v228 = vrot.slane %v227, 4
      %v229 = vrot.slane %v224, 5
      %v230 = vrot.slane %v229, 4
      %v233 = vmul.f32 %v223, %v228
      %v234 = vmul.f32 %v224, %v230
      %v235 = vrot.slane %v223, 6
      %v236 = vrot.slane %v235, 4
      %v237 = vrot.slane %v224, 6
      %v238 = vrot.slane %v237, 4
      %v241 = vmul.f32 %v233, %v236
      %v242 = vmul.f32 %v234, %v238
      %v245 = vperm.slane %v241, 0
      %v246 = vperm.slane %v241, 4
      %v247 = vperm.slane %v242, 0
      %v248 = vperm.slane %v242, 4
      %v253 = vmul.f32 %v217, %v245
      %v254 = vmul.f32 %v218, %v246
      %v255 = vmul.f32 %v219, %v247
      %v256 = vmul.f32 %v220, %v248
      %v259 = vrot.slane %v221, 6
      %v260 = vrot.slane %v259, 4
      %v261 = vrot.slane %v222, 6
      %v262 = vrot.slane %v261, 4
      %v265 = vmul.f32 %v233, %v260
      %v266 = vmul.f32 %v234, %v262
      %v269 = vperm.slane %v265, 0
      %v270 = vperm.slane %v265, 4
      %v271 = vperm.slane %v266, 0
      %v272 = vperm.slane %v266, 4
      %v277 = vmul.f32 %v217, %v269
      %v278 = vmul.f32 %v218, %v270
      %v279 = vmul.f32 %v219, %v271
      %v280 = vmul.f32 %v220, %v272
      %v285 = vrot.slane %v277, 1
      %v286 = vrot.slane %v278, 1
      %v287 = vrot.slane %v279, 1
      %v288 = vrot.slane %v280, 1
      %v293 = vadd.f32 %v253, %v285
      %v294 = vadd.f32 %v254, %v286
      %v295 = vadd.f32 %v255, %v287
      %v296 = vadd.f32 %v256, %v288
      %v297 = vrot.slane %v221, 5
      %v298 = vrot.slane %v297, 4
      %v299 = vrot.slane %v222, 5
      %v300 = vrot.slane %v299, 4
      %v303 = vmul.f32 %v223, %v298
      %v304 = vmul.f32 %v224, %v300
      %v305 = vmul.f32 %v303, %v236
      %v306 = vmul.f32 %v304, %v238
      %v309 = vperm.slane %v305, 0
      %v310 = vperm.slane %v305, 4
      %v311 = vperm.slane %v306, 0
      %v312 = vperm.slane %v306, 4
      %v317 = vmul.f32 %v217, %v309
      %v318 = vmul.f32 %v218, %v310
      %v319 = vmul.f32 %v219, %v311
      %v320 = vmul.f32 %v220, %v312
      %v325 = vrot.slane %v317, 2
      %v326 = vrot.slane %v318, 2
      %v327 = vrot.slane %v319, 2
      %v328 = vrot.slane %v320, 2
      %v333 = vadd.f32 %v293, %v325
      %v334 = vadd.f32 %v294, %v326
      %v335 = vadd.f32 %v295, %v327
      %v336 = vadd.f32 %v296, %v328
      %v337 = vmul.f32 %v303, %v260
      %v338 = vmul.f32 %v304, %v262
      %v341 = vperm.slane %v337, 0
      %v342 = vperm.slane %v337, 4
      %v343 = vperm.slane %v338, 0
      %v344 = vperm.slane %v338, 4
      %v349 = vmul.f32 %v217, %v341
      %v350 = vmul.f32 %v218, %v342
      %v351 = vmul.f32 %v219, %v343
      %v352 = vmul.f32 %v220, %v344
      %v357 = vrot.slane %v349, 3
      %v358 = vrot.slane %v350, 3
      %v359 = vrot.slane %v351, 3
      %v360 = vrot.slane %v352, 3
      %v365 = vadd.f32 %v333, %v357
      %v366 = vadd.f32 %v334, %v358
      %v367 = vadd.f32 %v335, %v359
      %v368 = vadd.f32 %v336, %v360
      %v369 = vmul.f32 %v221, %v228
      %v370 = vmul.f32 %v222, %v230
      %v371 = vmul.f32 %v369, %v236
      %v372 = vmul.f32 %v370, %v238
      %v375 = vperm.slane %v371, 0
      %v376 = vperm.slane %v371, 4
      %v377 = vperm.slane %v372, 0
      %v378 = vperm.slane %v372, 4
      %v383 = vmul.f32 %v217, %v375
      %v384 = vmul.f32 %v218, %v376
      %v385 = vmul.f32 %v219, %v377
      %v386 = vmul.f32 %v220, %v378
      %v391 = vrot.slane %v383, 4
      %v392 = vrot.slane %v384, 4
      %v393 = vrot.slane %v385, 4
      %v394 = vrot.slane %v386, 4
      %v399 = vadd.f32 %v365, %v391
      %v400 = vadd.f32 %v366, %v392
      %v401 = vadd.f32 %v367, %v393
      %v402 = vadd.f32 %v368, %v394
      %v403 = vmul.f32 %v369, %v260
      %v404 = vmul.f32 %v370, %v262
      %v407 = vperm.slane %v403, 0
      %v408 = vperm.slane %v403, 4
      %v409 = vperm.slane %v404, 0
      %v410 = vperm.slane %v404, 4
      %v415 = vmul.f32 %v217, %v407
      %v416 = vmul.f32 %v218, %v408
      %v417 = vmul.f32 %v219, %v409
      %v418 = vmul.f32 %v220, %v410
      %v423 = vrot.slane %v415, 5
      %v424 = vrot.slane %v416, 5
      %v425 = vrot.slane %v417, 5
      %v426 = vrot.slane %v418, 5
      %v431 = vadd.f32 %v399, %v423
      %v432 = vadd.f32 %v400, %v424
      %v433 = vadd.f32 %v401, %v425
      %v434 = vadd.f32 %v402, %v426
      %v435 = vmul.f32 %v221, %v298
      %v436 = vmul.f32 %v222, %v300
      %v437 = vmul.f32 %v435, %v236
      %v438 = vmul.f32 %v436, %v238
      %v441 = vperm.slane %v437, 0
      %v442 = vperm.slane %v437, 4
      %v443 = vperm.slane %v438, 0
      %v444 = vperm.slane %v438, 4
      %v449 = vmul.f32 %v217, %v441
      %v450 = vmul.f32 %v218, %v442
      %v451 = vmul.f32 %v219, %v443
      %v452 = vmul.f32 %v220, %v444
      %v457 = vrot.slane %v449, 6
      %v458 = vrot.slane %v450, 6
      %v459 = vrot.slane %v451, 6
      %v460 = vrot.slane %v452, 6
      %v465 = vadd.f32 %v431, %v457
      %v466 = vadd.f32 %v432, %v458
      %v467 = vadd.f32 %v433, %v459
      %v468 = vadd.f32 %v434, %v460
      %v469 = vmul.f32 %v435, %v260
      %v470 = vmul.f32 %v436, %v262
      %v473 = vperm.slane %v469, 0
      %v474 = vperm.slane %v469, 4
      %v475 = vperm.slane %v470, 0
      %v476 = vperm.slane %v470, 4
      %v481 = vmul.f32 %v217, %v473
      %v482 = vmul.f32 %v218, %v474
      %v483 = vmul.f32 %v219, %v475
      %v484 = vmul.f32 %v220, %v476
      %v489 = vrot.slane %v481, 7
      %v490 = vrot.slane %v482, 7
      %v491 = vrot.slane %v483, 7
      %v492 = vrot.slane %v484, 7
      %v497 = vadd.f32 %v465, %v489
      %v498 = vadd.f32 %v466, %v490
      %v499 = vadd.f32 %v467, %v491
      %v500 = vadd.f32 %v468, %v492
      %v505 = vrot.slane %v498, 7
      %v506 = vrot.slane %v499, 6
      %v507 = vrot.slane %v500, 5
      %vm508 = vcmask 1040384
      %v509 = vsel %vm508, %v497, %v505
      %vm510 = vcmask 1042434
      %v511 = vsel %vm510, %v506, %v507
      %vm512 = vcmask 1041408
      %v513 = vsel %vm512, %v509, %v511
      %v515 = vlaneseq
      %vm516 = vcmp.ge.s32.totalorder %v515, 0
      %vm517 = vcmp.lt.s32.totalorder %v515, 512
      %vm518 = vmand %vm516, %vm517
      %519 = vst.msk [vmem:[%s215] sm:$0xf] %vm518, %v513
      %s520 = smul.u32 4, %s18
      %p521 = scmp.lt.s32.totalorder %s17, 1
      %s522 = scalar_select %p521, %s17, 1
      %p523 = scmp.lt.s32.totalorder %s520, 3
      %s524 = scalar_select %p523, %s520, 3
      %s525 = smul.addr %s522, 4
      %s526 = sadd.s32 %s524, %s525
      %s527 = scalar_lea.vmem %s2, %s526
      // Predicated region
      $region29: #{_lambda_.21} parent=27 // pred_check
        %p528 = pneg %p101
      $region30: #{_lambda_.21} parent=27 // pred_check_branch
        %530 = sbr.rel (%p528) target = $region32
      $region31: #{_lambda_.21} parent=27 // pred_region
        %s531 = smul.u32 4, %s18
      $region32: #{_lambda_.21} parent=27 // pred_fallthru
        _
    $region28: #{_lambda_.21} parent=5 // pred_fallthru
      _
    %p532 = scmp.le.s32.totalorder 2, %s8
    // Predicated region
    $region33: #{_lambda_.21} parent=5 // pred_check
      %p533 = pneg %p532
    $region34: #{_lambda_.21} parent=5 // pred_check_branch
      %535 = sbr.rel (%p533) target = $region36
    $region35: #{_lambda_.21} parent=5 // pred_region
      %s536 = ssub.s32 %s8, 2
      // Predicated region
      $region37: #{_lambda_.21} parent=35 // pred_check
        %p537 = pneg %p107
      $region38: #{_lambda_.21} parent=35 // pred_check_branch
        %539 = sbr.rel (%p537) target = $region40
      $region39: #{_lambda_.21} parent=35 // pred_region
        %s540 = smul.u32 4, %s20
        %p541 = scmp.lt.s32.totalorder %s19, 1
        %s542 = scalar_select %p541, %s19, 1
        %p543 = scmp.lt.s32.totalorder %s540, 3
        %s544 = scalar_select %p543, %s540, 3
        %s545 = smul.addr %s542, 4
        %s546 = sadd.s32 %s544, %s545
        %s547 = scalar_lea.vmem %s2, %s546
      $region40: #{_lambda_.21} parent=35 // pred_fallthru
        _
    $region36: #{_lambda_.21} parent=5 // pred_fallthru
      _
  $region6: #{_lambda_.21} parent=0 // loop_footer
    %s12 = sadd.s32 1, %s8
  $region7: #{_lambda_.21} parent=0 // loop_footer_branch
    %7 = sbr.rel target = $region3
  $region8: #{_lambda_.21} parent=0 // loop_exit
    _

// kernel: _lambda_.23
$region0: #{_lambda_.23}
  #allocation0 [shape = 'u32[]', space=smem, size = 0x4, offset = 0x4, fixed_abs, tag = 'smem constant byte address 0x4 - core index']
  #allocation1 [shape = 'u32[72,128]{1,0:T(1,128)}', space=vmem, size = 0x9000, scoped, tag = 'internal scratch']
  %s0 = inlined_call_operand.vmem [shape: f32[2,3,3], index: 0, kind: input, shape index: {}]
  %s1 = inlined_call_operand.vmem [shape: f32[2,3,512], index: 1, kind: input, shape index: {}]
  %s2 = inlined_call_operand.vmem [shape: f32[2,3,512], index: 2, kind: input, shape index: {}]
  %s3 = inlined_call_operand.vmem [shape: f32[2,3,512], index: 3, kind: output, shape index: {}]
  %s4 = sld [smem:[#allocation0]]
  $region45: #{_lambda_.23} parent=0
    _
  %s6 = ssub.s32 1, %s4
  %s7 = scalar_select 0, %s6, %s4
  loop: start=0, step=1, limit=4
  $region2: #{_lambda_.23} parent=0 // loop_pre_header
    _
  $region3: #{_lambda_.23} parent=0 // loop_header
    %s9 = sphi 0, %s13
    %p10 = scmp.ge.s32.totalorder %s9, 4
    %s16 = sphi 0, %s28
    %s17 = sphi 0, %s24
    %s18 = sphi 0, %s16
    %s19 = sphi 0, %s17
    %s20 = sphi 0, %s18
    %s21 = sphi 0, %s19
    %s31 = sphi 0, %s33
    %s34 = sphi 0, %s31
    %s35 = sphi 0, %s34
    %s51 = sphi 0, %s35
    %s59 = sphi 0, %s61
    %s62 = sphi 0, %s59
    %s63 = sphi 0, %s62
    %s79 = sphi 0, %s63
    %s87 = sphi 0, %s89
    %s90 = sphi 0, %s87
    %s91 = sphi 0, %s90
    %s107 = sphi 0, %s91
    %s115 = sphi 0, %s117
    %s118 = sphi 0, %s115
    %s119 = sphi 0, %s118
    %s135 = sphi 0, %s119
  $region4: #{_lambda_.23} parent=0 // loop_header_branch
    %12 = sbr.rel (%p10) target = $region8
  $region5: #{_lambda_.23} parent=0 // loop_body
    %s14 = ssub.s32 %s9, 1
    %s15 = ssub.s32 %s9, 2
    %s22 = sadd.s32 1, %s17
    %p23 = scmp.ge.s32.totalorder %s22, 1
    %s24 = scalar_select %p23, 0, %s22
    %s25 = sadd.s32 1, %s16
    %s26 = scalar_select %p23, %s25, %s16
    %p27 = scmp.ge.s32.totalorder %s26, 2
    %s28 = scalar_select %p27, 0, %s26
    %s29 = ssub.s32 %s16, %s28
    %p30 = scmp.eq.s32.totalorder %s29, 0
    %s32 = sadd.s32 %s31, 1
    %s33 = scalar_select %p30, %s31, %s32
    %p36 = pneg %p30
    %p37 = scmp.eq.s32.totalorder %s9, 1
    %p38 = por %p36, %p37
    %p39 = scmp.ne.s32.totalorder %s31, %s34
    %p40 = scmp.eq.s32.totalorder %s9, 0
    %p41 = por %p39, %p40
    %p42 = scmp.ne.s32.totalorder %s31, %s34
    %p43 = scmp.eq.s32.totalorder %s14, 1
    %p44 = por %p42, %p43
    %p45 = scmp.ne.s32.totalorder %s34, %s35
    %p46 = scmp.eq.s32.totalorder %s14, 0
    %p47 = por %p45, %p46
    %p48 = scmp.ne.s32.totalorder %s34, %s35
    %p49 = scmp.eq.s32.totalorder %s15, 1
    %p50 = por %p48, %p49
    %p52 = scmp.ne.s32.totalorder %s35, %s51
    %p53 = scmp.eq.s32.totalorder %s15, 0
    %p54 = por %p52, %p53
    %s55 = ssub.s32 %s16, %s28
    %s56 = ssub.s32 %s17, %s24
    %s57 = sor.u32 %s55, %s56
    %p58 = scmp.eq.s32.totalorder %s57, 0
    %s60 = sadd.s32 %s59, 1
    %s61 = scalar_select %p58, %s59, %s60
    %p64 = pneg %p58
    %p65 = scmp.eq.s32.totalorder %s9, 1
    %p66 = por %p64, %p65
    %p67 = scmp.ne.s32.totalorder %s59, %s62
    %p68 = scmp.eq.s32.totalorder %s9, 0
    %p69 = por %p67, %p68
    %p70 = scmp.ne.s32.totalorder %s59, %s62
    %p71 = scmp.eq.s32.totalorder %s14, 1
    %p72 = por %p70, %p71
    %p73 = scmp.ne.s32.totalorder %s62, %s63
    %p74 = scmp.eq.s32.totalorder %s14, 0
    %p75 = por %p73, %p74
    %p76 = scmp.ne.s32.totalorder %s62, %s63
    %p77 = scmp.eq.s32.totalorder %s15, 1
    %p78 = por %p76, %p77
    %p80 = scmp.ne.s32.totalorder %s63, %s79
    %p81 = scmp.eq.s32.totalorder %s15, 0
    %p82 = por %p80, %p81
    %s83 = ssub.s32 %s16, %s28
    %s84 = ssub.s32 %s17, %s24
    %s85 = sor.u32 %s83, %s84
    %p86 = scmp.eq.s32.totalorder %s85, 0
    %s88 = sadd.s32 %s87, 1
    %s89 = scalar_select %p86, %s87, %s88
    %p92 = pneg %p86
    %p93 = scmp.eq.s32.totalorder %s9, 1
    %p94 = por %p92, %p93
    %p95 = scmp.ne.s32.totalorder %s87, %s90
    %p96 = scmp.eq.s32.totalorder %s9, 0
    %p97 = por %p95, %p96
    %p98 = scmp.ne.s32.totalorder %s87, %s90
    %p99 = scmp.eq.s32.totalorder %s14, 1
    %p100 = por %p98, %p99
    %p101 = scmp.ne.s32.totalorder %s90, %s91
    %p102 = scmp.eq.s32.totalorder %s14, 0
    %p103 = por %p101, %p102
    %p104 = scmp.ne.s32.totalorder %s90, %s91
    %p105 = scmp.eq.s32.totalorder %s15, 1
    %p106 = por %p104, %p105
    %p108 = scmp.ne.s32.totalorder %s91, %s107
    %p109 = scmp.eq.s32.totalorder %s15, 0
    %p110 = por %p108, %p109
    %s111 = ssub.s32 %s16, %s28
    %s112 = ssub.s32 %s17, %s24
    %s113 = sor.u32 %s111, %s112
    %p114 = scmp.eq.s32.totalorder %s113, 0
    %s116 = sadd.s32 %s115, 1
    %s117 = scalar_select %p114, %s115, %s116
    %p120 = pneg %p114
    %p121 = scmp.eq.s32.totalorder %s9, 1
    %p122 = por %p120, %p121
    %p123 = scmp.ne.s32.totalorder %s115, %s118
    %p124 = scmp.eq.s32.totalorder %s9, 0
    %p125 = por %p123, %p124
    %p126 = scmp.ne.s32.totalorder %s115, %s118
    %p127 = scmp.eq.s32.totalorder %s14, 1
    %p128 = por %p126, %p127
    %p129 = scmp.ne.s32.totalorder %s118, %s119
    %p130 = scmp.eq.s32.totalorder %s14, 0
    %p131 = por %p129, %p130
    %p132 = scmp.ne.s32.totalorder %s118, %s119
    %p133 = scmp.eq.s32.totalorder %s15, 1
    %p134 = por %p132, %p133
    %p136 = scmp.ne.s32.totalorder %s119, %s135
    %p137 = scmp.eq.s32.totalorder %s15, 0
    %p138 = por %p136, %p137
    %p139 = scmp.le.s32.totalorder 1, %s9
    %p140 = scmp.lt.s32.totalorder %s9, 3
    %p141 = pnand %p139, %p140
    %p142 = pneg %p141
    // Predicated region
    $region9: #{_lambda_.23} parent=5 // pred_check
      _
    $region10: #{_lambda_.23} parent=5 // pred_check_branch
      %144 = sbr.rel (%p141) target = $region12
    $region11: #{_lambda_.23} parent=5 // pred_region
      %s145 = ssub.s32 %s9, 1
    $region12: #{_lambda_.23} parent=5 // pred_fallthru
      _
    %p146 = scmp.lt.s32.totalorder %s9, 2
    // Predicated region
    $region13: #{_lambda_.23} parent=5 // pred_check
      %p147 = pneg %p146
    $region14: #{_lambda_.23} parent=5 // pred_check_branch
      %149 = sbr.rel (%p147) target = $region16
    $region15: #{_lambda_.23} parent=5 // pred_region
      // Predicated region
      $region17: #{_lambda_.23} parent=15 // pred_check
        %p150 = pneg %p41
      $region18: #{_lambda_.23} parent=15 // pred_check_branch
        %152 = sbr.rel (%p150) target = $region20
      $region19: #{_lambda_.23} parent=15 // pred_region
        %p153 = scmp.lt.s32.totalorder %s16, 1
        %s154 = scalar_select %p153, %s16, 1
        %s155 = smul.addr %s154, 4
        %s156 = scalar_lea.vmem %s0, %s155
      $region20: #{_lambda_.23} parent=15 // pred_fallthru
        _
      // Predicated region
      $region21: #{_lambda_.23} parent=15 // pred_check
        %p157 = pneg %p69
      $region22: #{_lambda_.23} parent=15 // pred_check_branch
        %159 = sbr.rel (%p157) target = $region24
      $region23: #{_lambda_.23} parent=15 // pred_region
        %s160 = smul.u32 4, %s17
        %p161 = scmp.lt.s32.totalorder %s16, 1
        %s162 = scalar_select %p161, %s16, 1
        %p163 = scmp.lt.s32.totalorder %s160, 3
        %s164 = scalar_select %p163, %s160, 3
        %s165 = smul.addr %s162, 4
        %s166 = sadd.s32 %s164, %s165
        %s167 = smul.addr %s166, 4
        %s168 = scalar_lea.vmem %s1, %s167
        %s169 = smul.u32 4, %s17
      $region24: #{_lambda_.23} parent=15 // pred_fallthru
        _
      // Predicated region
      $region25: #{_lambda_.23} parent=15 // pred_check
        %p170 = pneg %p97
      $region26: #{_lambda_.23} parent=15 // pred_check_branch
        %172 = sbr.rel (%p170) target = $region28
      $region27: #{_lambda_.23} parent=15 // pred_region
        %s173 = smul.u32 4, %s17
        %p174 = scmp.lt.s32.totalorder %s16, 1
        %s175 = scalar_select %p174, %s16, 1
        %p176 = scmp.lt.s32.totalorder %s173, 3
        %s177 = scalar_select %p176, %s173, 3
        %s178 = smul.addr %s175, 4
        %s179 = sadd.s32 %s177, %s178
        %s180 = smul.addr %s179, 4
        %s181 = scalar_lea.vmem %s2, %s180
        %s182 = smul.u32 4, %s17
      $region28: #{_lambda_.23} parent=15 // pred_fallthru
        _
    $region16: #{_lambda_.23} parent=5 // pred_fallthru
      _
    %p183 = scmp.le.s32.totalorder 1, %s9
    %p184 = scmp.lt.s32.totalorder %s9, 3
    %p185 = pnand %p183, %p184
    %p186 = pneg %p185
    // Predicated region
    $region29: #{_lambda_.23} parent=5 // pred_check
      _
    $region30: #{_lambda_.23} parent=5 // pred_check_branch
      %188 = sbr.rel (%p185) target = $region32
    $region31: #{_lambda_.23} parent=5 // pred_region
      %s189 = ssub.s32 %s9, 1
      %p190 = scmp.lt.s32.totalorder %s18, 1
      %s191 = scalar_select %p190, %s18, 1
      %s192 = smul.addr %s191, 4
      %s193 = scalar_lea.vmem %s0, %s192
      %p194 = pneg %p47
      %p195 = pneg %p44
      %s196 = smul.u32 4, %s19
      %p197 = scmp.lt.s32.totalorder %s18, 1
      %s198 = scalar_select %p197, %s18, 1
      %p199 = scmp.lt.s32.totalorder %s196, 3
      %s200 = scalar_select %p199, %s196, 3
      %s201 = smul.addr %s198, 4
      %s202 = sadd.s32 %s200, %s201
      %s203 = smul.addr %s202, 4
      %s204 = scalar_lea.vmem %s1, %s203
      %p205 = pneg %p75
      %p206 = pneg %p72
      %s207 = smul.u32 4, %s19
      %p208 = scmp.lt.s32.totalorder %s18, 1
      %s209 = scalar_select %p208, %s18, 1
      %p210 = scmp.lt.s32.totalorder %s207, 3
      %s211 = scalar_select %p210, %s207, 3
      %s212 = smul.addr %s209, 4
      %s213 = sadd.s32 %s211, %s212
      %s214 = smul.addr %s213, 4
      %s215 = scalar_lea.vmem %s2, %s214
      %p216 = pneg %p103
      %p217 = pneg %p100
      %p218 = pneg %p131
      %p219 = pneg %p128
      %s220 = smul.u32 4, %s19
      %p221 = scmp.lt.s32.totalorder %s18, 1
      %s222 = scalar_select %p221, %s18, 1
      %p223 = scmp.lt.s32.totalorder %s220, 3
      %s224 = scalar_select %p223, %s220, 3
      %s225 = smul.addr %s222, 4
      %s226 = sadd.s32 %s224, %s225
      %s227 = smul.addr %s226, 4
      %s228 = scalar_lea.vmem %s3, %s227
      %p229 = scmp.lt.s32.totalorder %s18, 1
      %s230 = scalar_select %p229, %s18, 1
      %s231 = smul.addr %s230, 4
      %s232 = scalar_lea.vmem %s0, %s231
      %s233 = smul.u32 4, %s19
      %p234 = scmp.lt.s32.totalorder %s18, 1
      %s235 = scalar_select %p234, %s18, 1
      %p236 = scmp.lt.s32.totalorder %s233, 3
      %s237 = scalar_select %p236, %s233, 3
      %s238 = smul.addr %s235, 4
      %s239 = sadd.s32 %s237, %s238
      %s240 = smul.addr %s239, 4
      %s241 = scalar_lea.vmem %s1, %s240
      %s242 = smul.u32 4, %s19
      %s243 = smul.u32 4, %s19
      %p244 = scmp.lt.s32.totalorder %s18, 1
      %s245 = scalar_select %p244, %s18, 1
      %p246 = scmp.lt.s32.totalorder %s243, 3
      %s247 = scalar_select %p246, %s243, 3
      %s248 = smul.addr %s245, 4
      %s249 = sadd.s32 %s247, %s248
      %s250 = smul.addr %s249, 4
      %s251 = scalar_lea.vmem %s2, %s250
      %s252 = smul.u32 4, %s19
      %s253 = smul.u32 4, %s19
      %p254 = scmp.lt.s32.totalorder %s18, 1
      %s255 = scalar_select %p254, %s18, 1
      %p256 = scmp.lt.s32.totalorder %s253, 3
      %s257 = scalar_select %p256, %s253, 3
      %s258 = smul.addr %s255, 4
      %s259 = sadd.s32 %s257, %s258
      %s260 = smul.addr %s259, 4
      %s261 = scalar_lea.vmem %s3, %s260
      %s262 = smul.u32 4, %s19
      %v263 = vld [vmem:[%s232] sm:$0x7]
      %v264 = vld [vmem:[%s241] sm:$0x77]
      %v265 = vld [vmem:[%s241 + $0x8] sm:$0x77]
      %267 = vset.pattern.permute.xlu0 0
      %268 = vperm.xlu0 %267, %v263
      %v269 = vpop.permute.xlu0 %268
      %v273 = vperm.slane %v264, 0
      %v274 = vperm.slane %v264, 4
      %v275 = vperm.slane %v265, 0
      %v276 = vperm.slane %v265, 4
      %v281 = vperm.slane %v273, 0
      %v282 = vperm.slane %v274, 0
      %v283 = vperm.slane %v275, 0
      %v284 = vperm.slane %v276, 0
      %v285 = vmul.f32 %v269, %v281
      %v286 = vmul.f32 %v269, %v282
      %v287 = vmul.f32 %v269, %v283
      %v288 = vmul.f32 %v269, %v284
      %289 = vset.pattern.permute.xlu0 1
      %290 = vperm.xlu0 %289, %v263
      %v291 = vpop.permute.xlu0 %290
      %v293 = vperm.slane %v264, 1
      %v294 = vperm.slane %v264, 5
      %v295 = vperm.slane %v265, 1
      %v296 = vperm.slane %v265, 5
      %v301 = vperm.slane %v293, 1
      %v302 = vperm.slane %v294, 1
      %v303 = vperm.slane %v295, 1
      %v304 = vperm.slane %v296, 1
      %v305 = vmul.f32 %v291, %v301
      %v306 = vmul.f32 %v291, %v302
      %v307 = vmul.f32 %v291, %v303
      %v308 = vmul.f32 %v291, %v304
      %v309 = vadd.f32 %v285, %v305
      %v310 = vadd.f32 %v286, %v306
      %v311 = vadd.f32 %v287, %v307
      %v312 = vadd.f32 %v288, %v308
      %313 = vset.pattern.permute.xlu0 2
      %314 = vperm.xlu0 %313, %v263
      %v315 = vpop.permute.xlu0 %314
      %v317 = vperm.slane %v264, 2
      %v318 = vperm.slane %v264, 6
      %v319 = vperm.slane %v265, 2
      %v320 = vperm.slane %v265, 6
      %v325 = vperm.slane %v317, 2
      %v326 = vperm.slane %v318, 2
      %v327 = vperm.slane %v319, 2
      %v328 = vperm.slane %v320, 2
      %v329 = vmul.f32 %v315, %v325
      %v330 = vmul.f32 %v315, %v326
      %v331 = vmul.f32 %v315, %v327
      %v332 = vmul.f32 %v315, %v328
      %v333 = vadd.f32 %v309, %v329
      %v334 = vadd.f32 %v310, %v330
      %v335 = vadd.f32 %v311, %v331
      %v336 = vadd.f32 %v312, %v332
      %v337 = vld [vmem:[%s251] sm:$0x77]
      %v338 = vld [vmem:[%s251 + $0x8] sm:$0x77]
      %341 = vst [vmem:[#allocation1] ss:$2 sm:$0xff] %v337
      %s342 = scalar_lea.vmem [#allocation1], 16
      %343 = vst [vmem:[%s342] ss:$2 sm:$0xff] %v338
      %v344 = vld.sshfl [vmem:[#allocation1] sm:$0xff pattern:$0x75316420]
      %v345 = vld.sshfl [vmem:[#allocation1 + $0x8] sm:$0xff pattern:$0x75316420]
      %v346 = vld.sshfl [vmem:[#allocation1 + $0x10] sm:$0xff pattern:$0x75316420]
      %v347 = vld.sshfl [vmem:[#allocation1 + $0x18] sm:$0xff pattern:$0x75316420]
      %v352 = vadd.f32 %v333, %v344
      %v353 = vadd.f32 %v334, %v345
      %v354 = vadd.f32 %v335, %v346
      %v355 = vadd.f32 %v336, %v347
      %v360 = vrot.slane %v353, 4
      %v361 = vrot.slane %v355, 4
      %vm362 = vcmask 1043456
      %v363 = vsel %vm362, %v352, %v360
      %v364 = vsel %vm362, %v354, %v361
      %367 = vst [vmem:[%s261] sm:$0x77] %v363
      %368 = vst [vmem:[%s261 + $0x8] sm:$0x77] %v364
      %s369 = smul.u32 4, %s19
      %p370 = scmp.lt.s32.totalorder %s18, 1
      %s371 = scalar_select %p370, %s18, 1
      %p372 = scmp.lt.s32.totalorder %s369, 3
      %s373 = scalar_select %p372, %s369, 3
      %s374 = smul.addr %s371, 4
      %s375 = sadd.s32 %s373, %s374
      %s376 = smul.addr %s375, 4
      %s377 = scalar_lea.vmem %s3, %s376
      // Predicated region
      $region33: #{_lambda_.23} parent=31 // pred_check
        %p378 = pneg %p128
      $region34: #{_lambda_.23} parent=31 // pred_check_branch
        %380 = sbr.rel (%p378) target = $region36
      $region35: #{_lambda_.23} parent=31 // pred_region
        %s381 = smul.u32 4, %s19
      $region36: #{_lambda_.23} parent=31 // pred_fallthru
        _
    $region32: #{_lambda_.23} parent=5 // pred_fallthru
      _
    %p382 = scmp.le.s32.totalorder 2, %s9
    // Predicated region
    $region37: #{_lambda_.23} parent=5 // pred_check
      %p383 = pneg %p382
    $region38: #{_lambda_.23} parent=5 // pred_check_branch
      %385 = sbr.rel (%p383) target = $region40
    $region39: #{_lambda_.23} parent=5 // pred_region
      %s386 = ssub.s32 %s9, 2
      // Predicated region
      $region41: #{_lambda_.23} parent=39 // pred_check
        %p387 = pneg %p134
      $region42: #{_lambda_.23} parent=39 // pred_check_branch
        %389 = sbr.rel (%p387) target = $region44
      $region43: #{_lambda_.23} parent=39 // pred_region
        %s390 = smul.u32 4, %s21
        %p391 = scmp.lt.s32.totalorder %s20, 1
        %s392 = scalar_select %p391, %s20, 1
        %p393 = scmp.lt.s32.totalorder %s390, 3
        %s394 = scalar_select %p393, %s390, 3
        %s395 = smul.addr %s392, 4
        %s396 = sadd.s32 %s394, %s395
        %s397 = smul.addr %s396, 4
        %s398 = scalar_lea.vmem %s3, %s397
      $region44: #{_lambda_.23} parent=39 // pred_fallthru
        _
    $region40: #{_lambda_.23} parent=5 // pred_fallthru
      _
  $region6: #{_lambda_.23} parent=0 // loop_footer
    %s13 = sadd.s32 1, %s9
  $region7: #{_lambda_.23} parent=0 // loop_footer_branch
    %8 = sbr.rel target = $region3
  $region8: #{_lambda_.23} parent=0 // loop_exit
    _

// kernel: _lambda_.19
$region0: #{_lambda_.19}
  #allocation0 [shape = 'u32[]', space=smem, size = 0x4, offset = 0x4, fixed_abs, tag = 'smem constant byte address 0x4 - core index']
  #allocation1 [shape = 'u32[72,128]{1,0:T(1,128)}', space=vmem, size = 0x9000, scoped, tag = 'internal scratch']
  %s0 = inlined_call_operand.vmem [shape: f32[1,1024], index: 0, kind: input, shape index: {}]
  %s1 = inlined_call_operand.vmem [shape: f32[24,1], index: 1, kind: input, shape index: {}]
  %s2 = inlined_call_operand.vmem [shape: f32[24,1], index: 2, kind: input, shape index: {}]
  %s3 = inlined_call_operand.vmem [shape: f32[32,24], index: 3, kind: input, shape index: {}]
  %s4 = inlined_call_operand.vmem [shape: f32[32,1], index: 4, kind: input, shape index: {}]
  %s5 = inlined_call_operand.vmem [shape: f32[16,24], index: 5, kind: input, shape index: {}]
  %s6 = inlined_call_operand.vmem [shape: f32[16,1], index: 6, kind: input, shape index: {}]
  %s7 = inlined_call_operand.vmem [shape: f32[32,1024], index: 7, kind: output, shape index: {0}]
  %s8 = inlined_call_operand.vmem [shape: f32[16,1024], index: 8, kind: output, shape index: {1}]
  %s9 = inlined_call_operand.hbm [shape: f32[16,1024], index: 9, kind: output, shape index: {2}]
  %10 = xla_tuple %s7, %s8, %s9
  %s11 = sld [smem:[#allocation0]]
  $region115: #{_lambda_.19} parent=0
    _
  %s13 = ssub.s32 1, %s11
  %s14 = scalar_select 0, %s13, %s11
  $region1: #{_lambda_.19} parent=0
    #allocation2 [shape = 'u8[131072]{0}', space=vmem, size = 0x20000, scoped, tag = 'output window, operand 0']
    #allocation3 [shape = 'u8[65536]{0}', space=vmem, size = 0x10000, scoped, tag = 'output window, operand 1']
    #allocation4 [shape = 'u8[65536]{0}', space=vmem, size = 0x10000, scoped, tag = 'output window, operand 2']
    #allocation5 [shape = 's32[2]{0}', space=sflag, size = 0x8, scoped, tag = 'scoped memory for _lambda_.19']
    %15 = vsyncpa [#allocation5], 0
    %s16 = scalar_lea.sflag [#allocation5], 1
    %17 = vsyncpa %s16, 0
    loop: start=0, step=1, limit=4
    $region2: #{_lambda_.19} parent=1 // loop_pre_header
      _
    $region3: #{_lambda_.19} parent=1 // loop_header
      %s19 = sphi 0, %s23
      %p20 = scmp.ge.s32.totalorder %s19, 4
      %s29 = sphi 0, %s31
      %s32 = sphi 0, %s29
      %s33 = sphi 0, %s32
      %s49 = sphi 0, %s33
      %s53 = sphi 0, %s53
      %s55 = sphi 0, %s53
      %s56 = sphi 0, %s55
      %s70 = sphi 0, %s56
      %s74 = sphi 0, %s74
      %s76 = sphi 0, %s74
      %s77 = sphi 0, %s76
      %s91 = sphi 0, %s77
      %s95 = sphi 0, %s95
      %s97 = sphi 0, %s95
      %s98 = sphi 0, %s97
      %s112 = sphi 0, %s98
      %s116 = sphi 0, %s116
      %s118 = sphi 0, %s116
      %s119 = sphi 0, %s118
      %s133 = sphi 0, %s119
      %s137 = sphi 0, %s137
      %s139 = sphi 0, %s137
      %s140 = sphi 0, %s139
      %s154 = sphi 0, %s140
      %s158 = sphi 0, %s158
      %s160 = sphi 0, %s158
      %s161 = sphi 0, %s160
      %s175 = sphi 0, %s161
      %s181 = sphi 0, %s183
      %s184 = sphi 0, %s181
      %s185 = sphi 0, %s184
      %s201 = sphi 0, %s185
      %s207 = sphi 0, %s209
      %s210 = sphi 0, %s207
      %s211 = sphi 0, %s210
      %s227 = sphi 0, %s211
      %s233 = sphi 0, %s235
      %s236 = sphi 0, %s233
      %s237 = sphi 0, %s236
      %s253 = sphi 0, %s237
    $region4: #{_lambda_.19} parent=1 // loop_header_branch
      %22 = sbr.rel (%p20) target = $region8
    $region5: #{_lambda_.19} parent=1 // loop_body
      %s24 = ssub.s32 %s19, 1
      %s25 = ssub.s32 %s19, 2
      %s26 = sadd.s32 %s19, 1
      %s27 = ssub.s32 %s19, %s26
      %p28 = scmp.eq.s32.totalorder %s27, 0
      %s30 = sadd.s32 %s29, 1
      %s31 = scalar_select %p28, %s29, %s30
      %p34 = pneg %p28
      %p35 = scmp.eq.s32.totalorder %s19, 1
      %p36 = por %p34, %p35
      %p37 = scmp.ne.s32.totalorder %s29, %s32
      %p38 = scmp.eq.s32.totalorder %s19, 0
      %p39 = por %p37, %p38
      %p40 = scmp.ne.s32.totalorder %s29, %s32
      %p41 = scmp.eq.s32.totalorder %s24, 1
      %p42 = por %p40, %p41
      %p43 = scmp.ne.s32.totalorder %s32, %s33
      %p44 = scmp.eq.s32.totalorder %s24, 0
      %p45 = por %p43, %p44
      %p46 = scmp.ne.s32.totalorder %s32, %s33
      %p47 = scmp.eq.s32.totalorder %s25, 1
      %p48 = por %p46, %p47
      %p50 = scmp.ne.s32.totalorder %s33, %s49
      %p51 = scmp.eq.s32.totalorder %s25, 0
      %p52 = por %p50, %p51
      %s54 = sadd.s32 %s53, 1
      %p57 = scmp.eq.s32.totalorder %s19, 1
      %p58 = scmp.ne.s32.totalorder %s53, %s55
      %p59 = scmp.eq.s32.totalorder %s19, 0
      %p60 = por %p58, %p59
      %p61 = scmp.ne.s32.totalorder %s53, %s55
      %p62 = scmp.eq.s32.totalorder %s24, 1
      %p63 = por %p61, %p62
      %p64 = scmp.ne.s32.totalorder %s55, %s56
      %p65 = scmp.eq.s32.totalorder %s24, 0
      %p66 = por %p64, %p65
      %p67 = scmp.ne.s32.totalorder %s55, %s56
      %p68 = scmp.eq.s32.totalorder %s25, 1
      %p69 = por %p67, %p68
      %p71 = scmp.ne.s32.totalorder %s56, %s70
      %p72 = scmp.eq.s32.totalorder %s25, 0
      %p73 = por %p71, %p72
      %s75 = sadd.s32 %s74, 1
      %p78 = scmp.eq.s32.totalorder %s19, 1
      %p79 = scmp.ne.s32.totalorder %s74, %s76
      %p80 = scmp.eq.s32.totalorder %s19, 0
      %p81 = por %p79, %p80
      %p82 = scmp.ne.s32.totalorder %s74, %s76
      %p83 = scmp.eq.s32.totalorder %s24, 1
      %p84 = por %p82, %p83
      %p85 = scmp.ne.s32.totalorder %s76, %s77
      %p86 = scmp.eq.s32.totalorder %s24, 0
      %p87 = por %p85, %p86
      %p88 = scmp.ne.s32.totalorder %s76, %s77
      %p89 = scmp.eq.s32.totalorder %s25, 1
      %p90 = por %p88, %p89
      %p92 = scmp.ne.s32.totalorder %s77, %s91
      %p93 = scmp.eq.s32.totalorder %s25, 0
      %p94 = por %p92, %p93
      %s96 = sadd.s32 %s95, 1
      %p99 = scmp.eq.s32.totalorder %s19, 1
      %p100 = scmp.ne.s32.totalorder %s95, %s97
      %p101 = scmp.eq.s32.totalorder %s19, 0
      %p102 = por %p100, %p101
      %p103 = scmp.ne.s32.totalorder %s95, %s97
      %p104 = scmp.eq.s32.totalorder %s24, 1
      %p105 = por %p103, %p104
      %p106 = scmp.ne.s32.totalorder %s97, %s98
      %p107 = scmp.eq.s32.totalorder %s24, 0
      %p108 = por %p106, %p107
      %p109 = scmp.ne.s32.totalorder %s97, %s98
      %p110 = scmp.eq.s32.totalorder %s25, 1
      %p111 = por %p109, %p110
      %p113 = scmp.ne.s32.totalorder %s98, %s112
      %p114 = scmp.eq.s32.totalorder %s25, 0
      %p115 = por %p113, %p114
      %s117 = sadd.s32 %s116, 1
      %p120 = scmp.eq.s32.totalorder %s19, 1
      %p121 = scmp.ne.s32.totalorder %s116, %s118
      %p122 = scmp.eq.s32.totalorder %s19, 0
      %p123 = por %p121, %p122
      %p124 = scmp.ne.s32.totalorder %s116, %s118
      %p125 = scmp.eq.s32.totalorder %s24, 1
      %p126 = por %p124, %p125
      %p127 = scmp.ne.s32.totalorder %s118, %s119
      %p128 = scmp.eq.s32.totalorder %s24, 0
      %p129 = por %p127, %p128
      %p130 = scmp.ne.s32.totalorder %s118, %s119
      %p131 = scmp.eq.s32.totalorder %s25, 1
      %p132 = por %p130, %p131
      %p134 = scmp.ne.s32.totalorder %s119, %s133
      %p135 = scmp.eq.s32.totalorder %s25, 0
      %p136 = por %p134, %p135
      %s138 = sadd.s32 %s137, 1
      %p141 = scmp.eq.s32.totalorder %s19, 1
      %p142 = scmp.ne.s32.totalorder %s137, %s139
      %p143 = scmp.eq.s32.totalorder %s19, 0
      %p144 = por %p142, %p143
      %p145 = scmp.ne.s32.totalorder %s137, %s139
      %p146 = scmp.eq.s32.totalorder %s24, 1
      %p147 = por %p145, %p146
      %p148 = scmp.ne.s32.totalorder %s139, %s140
      %p149 = scmp.eq.s32.totalorder %s24, 0
      %p150 = por %p148, %p149
      %p151 = scmp.ne.s32.totalorder %s139, %s140
      %p152 = scmp.eq.s32.totalorder %s25, 1
      %p153 = por %p151, %p152
      %p155 = scmp.ne.s32.totalorder %s140, %s154
      %p156 = scmp.eq.s32.totalorder %s25, 0
      %p157 = por %p155, %p156
      %s159 = sadd.s32 %s158, 1
      %p162 = scmp.eq.s32.totalorder %s19, 1
      %p163 = scmp.ne.s32.totalorder %s158, %s160
      %p164 = scmp.eq.s32.totalorder %s19, 0
      %p165 = por %p163, %p164
      %p166 = scmp.ne.s32.totalorder %s158, %s160
      %p167 = scmp.eq.s32.totalorder %s24, 1
      %p168 = por %p166, %p167
      %p169 = scmp.ne.s32.totalorder %s160, %s161
      %p170 = scmp.eq.s32.totalorder %s24, 0
      %p171 = por %p169, %p170
      %p172 = scmp.ne.s32.totalorder %s160, %s161
      %p173 = scmp.eq.s32.totalorder %s25, 1
      %p174 = por %p172, %p173
      %p176 = scmp.ne.s32.totalorder %s161, %s175
      %p177 = scmp.eq.s32.totalorder %s25, 0
      %p178 = por %p176, %p177
      %s179 = ssub.s32 %s19, %s26
      %p180 = scmp.eq.s32.totalorder %s179, 0
      %s182 = sadd.s32 %s181, 1
      %s183 = scalar_select %p180, %s181, %s182
      %p186 = pneg %p180
      %p187 = scmp.eq.s32.totalorder %s19, 1
      %p188 = por %p186, %p187
      %p189 = scmp.ne.s32.totalorder %s181, %s184
      %p190 = scmp.eq.s32.totalorder %s19, 0
      %p191 = por %p189, %p190
      %p192 = scmp.ne.s32.totalorder %s181, %s184
      %p193 = scmp.eq.s32.totalorder %s24, 1
      %p194 = por %p192, %p193
      %p195 = scmp.ne.s32.totalorder %s184, %s185
      %p196 = scmp.eq.s32.totalorder %s24, 0
      %p197 = por %p195, %p196
      %p198 = scmp.ne.s32.totalorder %s184, %s185
      %p199 = scmp.eq.s32.totalorder %s25, 1
      %p200 = por %p198, %p199
      %p202 = scmp.ne.s32.totalorder %s185, %s201
      %p203 = scmp.eq.s32.totalorder %s25, 0
      %p204 = por %p202, %p203
      %s205 = ssub.s32 %s19, %s26
      %p206 = scmp.eq.s32.totalorder %s205, 0
      %s208 = sadd.s32 %s207, 1
      %s209 = scalar_select %p206, %s207, %s208
      %p212 = pneg %p206
      %p213 = scmp.eq.s32.totalorder %s19, 1
      %p214 = por %p212, %p213
      %p215 = scmp.ne.s32.totalorder %s207, %s210
      %p216 = scmp.eq.s32.totalorder %s19, 0
      %p217 = por %p215, %p216
      %p218 = scmp.ne.s32.totalorder %s207, %s210
      %p219 = scmp.eq.s32.totalorder %s24, 1
      %p220 = por %p218, %p219
      %p221 = scmp.ne.s32.totalorder %s210, %s211
      %p222 = scmp.eq.s32.totalorder %s24, 0
      %p223 = por %p221, %p222
      %p224 = scmp.ne.s32.totalorder %s210, %s211
      %p225 = scmp.eq.s32.totalorder %s25, 1
      %p226 = por %p224, %p225
      %p228 = scmp.ne.s32.totalorder %s211, %s227
      %p229 = scmp.eq.s32.totalorder %s25, 0
      %p230 = por %p228, %p229
      %s231 = ssub.s32 %s19, %s26
      %p232 = scmp.eq.s32.totalorder %s231, 0
      %s234 = sadd.s32 %s233, 1
      %s235 = scalar_select %p232, %s233, %s234
      %p238 = pneg %p232
      %p239 = scmp.eq.s32.totalorder %s19, 1
      %p240 = por %p238, %p239
      %p241 = scmp.ne.s32.totalorder %s233, %s236
      %p242 = scmp.eq.s32.totalorder %s19, 0
      %p243 = por %p241, %p242
      %p244 = scmp.ne.s32.totalorder %s233, %s236
      %p245 = scmp.eq.s32.totalorder %s24, 1
      %p246 = por %p244, %p245
      %p247 = scmp.ne.s32.totalorder %s236, %s237
      %p248 = scmp.eq.s32.totalorder %s24, 0
      %p249 = por %p247, %p248
      %p250 = scmp.ne.s32.totalorder %s236, %s237
      %p251 = scmp.eq.s32.totalorder %s25, 1
      %p252 = por %p250, %p251
      %p254 = scmp.ne.s32.totalorder %s237, %s253
      %p255 = scmp.eq.s32.totalorder %s25, 0
      %p256 = por %p254, %p255
      %p257 = scmp.le.s32.totalorder 1, %s19
      %p258 = scmp.lt.s32.totalorder %s19, 3
      %p259 = pnand %p257, %p258
      %p260 = pneg %p259
      // Predicated region
      $region9: #{_lambda_.19} parent=5 // pred_check
        _
      $region10: #{_lambda_.19} parent=5 // pred_check_branch
        %262 = sbr.rel (%p259) target = $region12
      $region11: #{_lambda_.19} parent=5 // pred_region
        %s263 = ssub.s32 %s19, 1
        // Predicated region
        $region13: #{_lambda_.19} parent=11 // pred_check
          %p264 = pneg %p66
        $region14: #{_lambda_.19} parent=11 // pred_check_branch
          %266 = sbr.rel (%p264) target = $region16
        $region15: #{_lambda_.19} parent=11 // pred_region
          _
        $region16: #{_lambda_.19} parent=11 // pred_fallthru
          _
        // Predicated region
        $region17: #{_lambda_.19} parent=11 // pred_check
          %p267 = pneg %p87
        $region18: #{_lambda_.19} parent=11 // pred_check_branch
          %269 = sbr.rel (%p267) target = $region20
        $region19: #{_lambda_.19} parent=11 // pred_region
          _
        $region20: #{_lambda_.19} parent=11 // pred_fallthru
          _
        // Predicated region
        $region21: #{_lambda_.19} parent=11 // pred_check
          %p270 = pneg %p108
        $region22: #{_lambda_.19} parent=11 // pred_check_branch
          %272 = sbr.rel (%p270) target = $region24
        $region23: #{_lambda_.19} parent=11 // pred_region
          _
        $region24: #{_lambda_.19} parent=11 // pred_fallthru
          _
        // Predicated region
        $region25: #{_lambda_.19} parent=11 // pred_check
          %p273 = pneg %p129
        $region26: #{_lambda_.19} parent=11 // pred_check_branch
          %275 = sbr.rel (%p273) target = $region28
        $region27: #{_lambda_.19} parent=11 // pred_region
          _
        $region28: #{_lambda_.19} parent=11 // pred_fallthru
          _
        // Predicated region
        $region29: #{_lambda_.19} parent=11 // pred_check
          %p276 = pneg %p150
        $region30: #{_lambda_.19} parent=11 // pred_check_branch
          %278 = sbr.rel (%p276) target = $region32
        $region31: #{_lambda_.19} parent=11 // pred_region
          _
        $region32: #{_lambda_.19} parent=11 // pred_fallthru
          _
        // Predicated region
        $region33: #{_lambda_.19} parent=11 // pred_check
          %p279 = pneg %p171
        $region34: #{_lambda_.19} parent=11 // pred_check_branch
          %281 = sbr.rel (%p279) target = $region36
        $region35: #{_lambda_.19} parent=11 // pred_region
          _
        $region36: #{_lambda_.19} parent=11 // pred_fallthru
          _
      $region12: #{_lambda_.19} parent=5 // pred_fallthru
        _
      %p282 = scmp.lt.s32.totalorder %s19, 2
      // Predicated region
      $region37: #{_lambda_.19} parent=5 // pred_check
        %p283 = pneg %p282
      $region38: #{_lambda_.19} parent=5 // pred_check_branch
        %285 = sbr.rel (%p283) target = $region40
      $region39: #{_lambda_.19} parent=5 // pred_region
        // Predicated region
        $region41: #{_lambda_.19} parent=39 // pred_check
          %p286 = pneg %p39
        $region42: #{_lambda_.19} parent=39 // pred_check_branch
          %288 = sbr.rel (%p286) target = $region44
        $region43: #{_lambda_.19} parent=39 // pred_region
          %s289 = smul.u32 4, %s19
          %p290 = scmp.lt.s32.totalorder %s289, 7
          %s291 = scalar_select %p290, %s289, 7
          %s292 = scalar_lea.vmem %s0, %s291
          %s293 = smul.u32 4, %s19
        $region44: #{_lambda_.19} parent=39 // pred_fallthru
          _
      $region40: #{_lambda_.19} parent=5 // pred_fallthru
        _
      %p294 = scmp.le.s32.totalorder 1, %s19
      %p295 = scmp.lt.s32.totalorder %s19, 3
      %p296 = pnand %p294, %p295
      %p297 = pneg %p296
      // Predicated region
      $region45: #{_lambda_.19} parent=5 // pred_check
        _
      $region46: #{_lambda_.19} parent=5 // pred_check_branch
        %299 = sbr.rel (%p296) target = $region48
      $region47: #{_lambda_.19} parent=5 // pred_region
        %s300 = ssub.s32 %s19, 1
        %s301 = smul.u32 4, %s24
        %p302 = scmp.lt.s32.totalorder %s301, 7
        %s303 = scalar_select %p302, %s301, 7
        %s304 = scalar_lea.vmem %s0, %s303
        %p305 = pneg %p45
        %p306 = pneg %p42
        %p307 = pneg %p66
        %p308 = pneg %p63
        %p309 = pneg %p87
        %p310 = pneg %p84
        %p311 = pneg %p108
        %p312 = pneg %p105
        %p313 = pneg %p129
        %p314 = pneg %p126
        %p315 = pneg %p150
        %p316 = pneg %p147
        %p317 = pneg %p171
        %p318 = pneg %p168
        %p319 = pneg %p197
        %p320 = pneg %p194
        %s321 = sand.u32 %s184, 1
        %s322 = sand.u32 %s184, 1
        %s323 = smul.addr %s322, 128
        %s324 = scalar_lea.vmem [#allocation2], %s323
        %p325 = pneg %p223
        %p326 = pneg %p220
        %s327 = sand.u32 %s210, 1
        %s328 = sand.u32 %s210, 1
        %s329 = smul.addr %s328, 64
        %s330 = scalar_lea.vmem [#allocation3], %s329
        %p331 = pneg %p249
        %p332 = pneg %p246
        %s333 = sand.u32 %s236, 1
        %s334 = scalar_lea.sflag [#allocation5], %s333
        %s335 = sand.u32 %s236, 1
        %s336 = smul.addr %s335, 64
        %s337 = scalar_lea.vmem [#allocation4], %s336
        %s338 = smul.u32 4, %s24
        %p339 = scmp.lt.s32.totalorder %s338, 7
        %s340 = scalar_select %p339, %s338, 7
        %s341 = scalar_lea.vmem %s0, %s340
        %s342 = smul.u32 4, %s24
        %s343 = smul.u32 4, %s24
        %s344 = smul.u32 4, %s24
        %s345 = smul.u32 4, %s24
        %v346 = vld [vmem:[%s341] sm:$0xf]
        %v347 = vld [vmem:[%s1] sm:$0xff]
        %v348 = vld [vmem:[%s1 + $0x8] sm:$0xff]
        %v349 = vld [vmem:[%s1 + $0x10] sm:$0xff]
        %351 = vset.pattern.permute.xlu0 0
        %352 = vperm.xlu0 %351, %v347
        %v353 = vpop.permute.xlu0 %352
        %356 = vset.pattern.permute.xlu0 0
        %357 = vperm.xlu0 %356, %v348
        %v358 = vpop.permute.xlu0 %357
        %361 = vset.pattern.permute.xlu0 0
        %362 = vperm.xlu0 %361, %v349
        %v363 = vpop.permute.xlu0 %362
        %v366 = vperm.slane %v346, 0
        %v367 = vperm.slane %v346, 1
        %v368 = vperm.slane %v346, 2
        %v369 = vperm.slane %v346, 3
        %v374 = vmul.f32 %v353, %v366
        %v375 = vmul.f32 %v353, %v367
        %v376 = vmul.f32 %v353, %v368
        %v377 = vmul.f32 %v353, %v369
        %v378 = vmul.f32 %v358, %v366
        %v379 = vmul.f32 %v358, %v367
        %v380 = vmul.f32 %v358, %v368
        %v381 = vmul.f32 %v358, %v369
        %v382 = vmul.f32 %v363, %v366
        %v383 = vmul.f32 %v363, %v367
        %v384 = vmul.f32 %v363, %v368
        %v385 = vmul.f32 %v363, %v369
        %v386 = vld [vmem:[%s2] sm:$0xff]
        %v387 = vld [vmem:[%s2 + $0x8] sm:$0xff]
        %v388 = vld [vmem:[%s2 + $0x10] sm:$0xff]
        %390 = vset.pattern.permute.xlu0 0
        %391 = vperm.xlu0 %390, %v386
        %v392 = vpop.permute.xlu0 %391
        %395 = vset.pattern.permute.xlu0 0
        %396 = vperm.xlu0 %395, %v387
        %v397 = vpop.permute.xlu0 %396
        %400 = vset.pattern.permute.xlu0 0
        %401 = vperm.xlu0 %400, %v388
        %v402 = vpop.permute.xlu0 %401
        %v404 = vadd.f32 %v374, %v392
        %v405 = vadd.f32 %v375, %v392
        %v406 = vadd.f32 %v376, %v392
        %v407 = vadd.f32 %v377, %v392
        %v408 = vadd.f32 %v378, %v397
        %v409 = vadd.f32 %v379, %v397
        %v410 = vadd.f32 %v380, %v397
        %v411 = vadd.f32 %v381, %v397
        %v412 = vadd.f32 %v382, %v402
        %v413 = vadd.f32 %v383, %v402
        %v414 = vadd.f32 %v384, %v402
        %v415 = vadd.f32 %v385, %v402
        %v416 = vmax.f32 %v404, 0.0
        %v417 = vmax.f32 %v405, 0.0
        %v418 = vmax.f32 %v406, 0.0
        %v419 = vmax.f32 %v407, 0.0
        %v420 = vmax.f32 %v408, 0.0
        %v421 = vmax.f32 %v409, 0.0
        %v422 = vmax.f32 %v410, 0.0
        %v423 = vmax.f32 %v411, 0.0
        %v424 = vmax.f32 %v412, 0.0
        %v425 = vmax.f32 %v413, 0.0
        %v426 = vmax.f32 %v414, 0.0
        %v427 = vmax.f32 %v415, 0.0
        %v428 = vld [vmem:[%s3] sm:$0xff]
        %v429 = vld [vmem:[%s3 + $0x8] sm:$0xff]
        %v430 = vld [vmem:[%s3 + $0x10] sm:$0xff]
        %v431 = vld [vmem:[%s3 + $0x18] sm:$0xff]
        %v432 = vld [vmem:[%s4] sm:$0xff]
        %v433 = vld [vmem:[%s4 + $0x8] sm:$0xff]
        %v434 = vld [vmem:[%s4 + $0x10] sm:$0xff]
        %v435 = vld [vmem:[%s4 + $0x18] sm:$0xff]
        %437 = vset.pattern.permute.xlu0 0
        %438 = vperm.xlu0 %437, %v432
        %v439 = vpop.permute.xlu0 %438
        %442 = vset.pattern.permute.xlu0 0
        %443 = vperm.xlu0 %442, %v433
        %v444 = vpop.permute.xlu0 %443
        %447 = vset.pattern.permute.xlu0 0
        %448 = vperm.xlu0 %447, %v434
        %v449 = vpop.permute.xlu0 %448
        %452 = vset.pattern.permute.xlu0 0
        %453 = vperm.xlu0 %452, %v435
        %v454 = vpop.permute.xlu0 %453
        %vm456 = vcmask 195584
        %v458 = vsel %vm456, %v428, 0
        %v461 = vsel %vm456, %v429, 0
        %v464 = vsel %vm456, %v430, 0
        %v467 = vsel %vm456, %v431, 0
        %469 = vmatpush.msra.mxu0 0.0
        %470 = vmatpush.msra.mxu0 0.0
        %471 = vmatpush.msra.mxu0 0.0
        %472 = vmatpush.msra.mxu0 0.0
        %473 = vmatpush.msra.mxu0 0.0
        %474 = vmatpush.msra.mxu0 0.0
        %475 = vmatpush.msra.mxu0 0.0
        %476 = vmatpush.msra.mxu0 0.0
        %477 = vmatpush.msra.mxu0 0.0
        %478 = vmatpush.msra.mxu0 0.0
        %479 = vmatpush.msra.mxu0 0.0
        %480 = vmatpush.msra.mxu0 0.0
        %481 = vmatpush.msra.mxu0 0.0
        %482 = vmatpush.msra.mxu0 %v424
        %483 = vmatpush.msra.mxu0 %v420
        %484 = vmatpush.msra.mxu0 %v416
        %485 = vmatmul.f32.gmra.mxu0 %v458
        %v486 = vpop.f32.mrf.mxu0
        %v487 = vadd.f32 %v439, %v486
        %488 = vmatmul.f32.gmra.mxu0 %v461
        %v489 = vpop.f32.mrf.mxu0
        %v490 = vadd.f32 %v444, %v489
        %491 = vmatmul.f32.gmra.mxu0 %v464
        %v492 = vpop.f32.mrf.mxu0
        %v493 = vadd.f32 %v449, %v492
        %494 = vmatmul.f32.gmra.mxu0 %v467
        %v495 = vpop.f32.mrf.mxu0
        %v496 = vadd.f32 %v454, %v495
        %497 = vdwg.mxu0
        %498 = vmatpush.msra.mxu0 0.0
        %499 = vmatpush.msra.mxu0 0.0
        %500 = vmatpush.msra.mxu0 0.0
        %501 = vmatpush.msra.mxu0 0.0
        %502 = vmatpush.msra.mxu0 0.0
        %503 = vmatpush.msra.mxu0 0.0
        %504 = vmatpush.msra.mxu0 0.0
        %505 = vmatpush.msra.mxu0 0.0
        %506 = vmatpush.msra.mxu0 0.0
        %507 = vmatpush.msra.mxu0 0.0
        %508 = vmatpush.msra.mxu0 0.0
        %509 = vmatpush.msra.mxu0 0.0
        %510 = vmatpush.msra.mxu0 0.0
        %511 = vmatpush.msra.mxu0 %v425
        %512 = vmatpush.msra.mxu0 %v421
        %513 = vmatpush.msra.mxu0 %v417
        %514 = vmatmul.f32.gmra.mxu0 %v458
        %v515 = vpop.f32.mrf.mxu0
        %v516 = vadd.f32 %v439, %v515
        %517 = vmatmul.f32.gmra.mxu0 %v461
        %v518 = vpop.f32.mrf.mxu0
        %v519 = vadd.f32 %v444, %v518
        %520 = vmatmul.f32.gmra.mxu0 %v464
        %v521 = vpop.f32.mrf.mxu0
        %v522 = vadd.f32 %v449, %v521
        %523 = vmatmul.f32.gmra.mxu0 %v467
        %v524 = vpop.f32.mrf.mxu0
        %v525 = vadd.f32 %v454, %v524
        %526 = vdwg.mxu0
        %527 = vmatpush.msra.mxu0 0.0
        %528 = vmatpush.msra.mxu0 0.0
        %529 = vmatpush.msra.mxu0 0.0
        %530 = vmatpush.msra.mxu0 0.0
        %531 = vmatpush.msra.mxu0 0.0
        %532 = vmatpush.msra.mxu0 0.0
        %533 = vmatpush.msra.mxu0 0.0
        %534 = vmatpush.msra.mxu0 0.0
        %535 = vmatpush.msra.mxu0 0.0
        %536 = vmatpush.msra.mxu0 0.0
        %537 = vmatpush.msra.mxu0 0.0
        %538 = vmatpush.msra.mxu0 0.0
        %539 = vmatpush.msra.mxu0 0.0
        %540 = vmatpush.msra.mxu0 %v426
        %541 = vmatpush.msra.mxu0 %v422
        %542 = vmatpush.msra.mxu0 %v418
        %543 = vmatmul.f32.gmra.mxu0 %v458
        %v544 = vpop.f32.mrf.mxu0
        %v545 = vadd.f32 %v439, %v544
        %546 = vmatmul.f32.gmra.mxu0 %v461
        %v547 = vpop.f32.mrf.mxu0
        %v548 = vadd.f32 %v444, %v547
        %549 = vmatmul.f32.gmra.mxu0 %v464
        %v550 = vpop.f32.mrf.mxu0
        %v551 = vadd.f32 %v449, %v550
        %552 = vmatmul.f32.gmra.mxu0 %v467
        %v553 = vpop.f32.mrf.mxu0
        %v554 = vadd.f32 %v454, %v553
        %555 = vdwg.mxu0
        %556 = vmatpush.msra.mxu0 0.0
        %557 = vmatpush.msra.mxu0 0.0
        %558 = vmatpush.msra.mxu0 0.0
        %559 = vmatpush.msra.mxu0 0.0
        %560 = vmatpush.msra.mxu0 0.0
        %561 = vmatpush.msra.mxu0 0.0
        %562 = vmatpush.msra.mxu0 0.0
        %563 = vmatpush.msra.mxu0 0.0
        %564 = vmatpush.msra.mxu0 0.0
        %565 = vmatpush.msra.mxu0 0.0
        %566 = vmatpush.msra.mxu0 0.0
        %567 = vmatpush.msra.mxu0 0.0
        %568 = vmatpush.msra.mxu0 0.0
        %569 = vmatpush.msra.mxu0 %v427
        %570 = vmatpush.msra.mxu0 %v423
        %571 = vmatpush.msra.mxu0 %v419
        %572 = vmatmul.f32.gmra.mxu0 %v458
        %v573 = vpop.f32.mrf.mxu0
        %v574 = vadd.f32 %v439, %v573
        %575 = vmatmul.f32.gmra.mxu0 %v461
        %v576 = vpop.f32.mrf.mxu0
        %v577 = vadd.f32 %v444, %v576
        %578 = vmatmul.f32.gmra.mxu0 %v464
        %v579 = vpop.f32.mrf.mxu0
        %v580 = vadd.f32 %v449, %v579
        %581 = vmatmul.f32.gmra.mxu0 %v467
        %v582 = vpop.f32.mrf.mxu0
        %v583 = vadd.f32 %v454, %v582
        %584 = vdwg.mxu0
        %v585 = vmax.f32 %v487, 0.0
        %v586 = vmax.f32 %v516, 0.0
        %v587 = vmax.f32 %v545, 0.0
        %v588 = vmax.f32 %v574, 0.0
        %v589 = vmax.f32 %v490, 0.0
        %v590 = vmax.f32 %v519, 0.0
        %v591 = vmax.f32 %v548, 0.0
        %v592 = vmax.f32 %v577, 0.0
        %v593 = vmax.f32 %v493, 0.0
        %v594 = vmax.f32 %v522, 0.0
        %v595 = vmax.f32 %v551, 0.0
        %v596 = vmax.f32 %v580, 0.0
        %v597 = vmax.f32 %v496, 0.0
        %v598 = vmax.f32 %v525, 0.0
        %v599 = vmax.f32 %v554, 0.0
        %v600 = vmax.f32 %v583, 0.0
        %601 = vst [vmem:[%s324] sm:$0xff] %v585
        %602 = vst [vmem:[%s324 + $0x8] sm:$0xff] %v586
        %603 = vst [vmem:[%s324 + $0x10] sm:$0xff] %v587
        %604 = vst [vmem:[%s324 + $0x18] sm:$0xff] %v588
        %605 = vst [vmem:[%s324 + $0x20] sm:$0xff] %v589
        %606 = vst [vmem:[%s324 + $0x28] sm:$0xff] %v590
        %607 = vst [vmem:[%s324 + $0x30] sm:$0xff] %v591
        %608 = vst [vmem:[%s324 + $0x38] sm:$0xff] %v592
        %609 = vst [vmem:[%s324 + $0x40] sm:$0xff] %v593
        %610 = vst [vmem:[%s324 + $0x48] sm:$0xff] %v594
        %611 = vst [vmem:[%s324 + $0x50] sm:$0xff] %v595
        %612 = vst [vmem:[%s324 + $0x58] sm:$0xff] %v596
        %613 = vst [vmem:[%s324 + $0x60] sm:$0xff] %v597
        %614 = vst [vmem:[%s324 + $0x68] sm:$0xff] %v598
        %615 = vst [vmem:[%s324 + $0x70] sm:$0xff] %v599
        %616 = vst [vmem:[%s324 + $0x78] sm:$0xff] %v600
        %v617 = vld [vmem:[%s5] sm:$0xff]
        %v618 = vld [vmem:[%s5 + $0x8] sm:$0xff]
        %v619 = vld [vmem:[%s6] sm:$0xff]
        %v620 = vld [vmem:[%s6 + $0x8] sm:$0xff]
        %622 = vset.pattern.permute.xlu0 0
        %623 = vperm.xlu0 %622, %v619
        %v624 = vpop.permute.xlu0 %623
        %627 = vset.pattern.permute.xlu0 0
        %628 = vperm.xlu0 %627, %v620
        %v629 = vpop.permute.xlu0 %628
        %v632 = vsel %vm456, %v617, 0
        %v635 = vsel %vm456, %v618, 0
        %637 = vmatpush.msra.mxu0 0.0
        %638 = vmatpush.msra.mxu0 0.0
        %639 = vmatpush.msra.mxu0 0.0
        %640 = vmatpush.msra.mxu0 0.0
        %641 = vmatpush.msra.mxu0 0.0
        %642 = vmatpush.msra.mxu0 0.0
        %643 = vmatpush.msra.mxu0 0.0
        %644 = vmatpush.msra.mxu0 0.0
        %645 = vmatpush.msra.mxu0 0.0
        %646 = vmatpush.msra.mxu0 0.0
        %647 = vmatpush.msra.mxu0 0.0
        %648 = vmatpush.msra.mxu0 0.0
        %649 = vmatpush.msra.mxu0 0.0
        %650 = vmatpush.msra.mxu0 %v424
        %651 = vmatpush.msra.mxu0 %v420
        %652 = vmatpush.msra.mxu0 %v416
        %653 = vmatmul.f32.gmra.mxu0 %v632
        %v654 = vpop.f32.mrf.mxu0
        %v655 = vadd.f32 %v624, %v654
        %656 = vmatmul.f32.gmra.mxu0 %v635
        %v657 = vpop.f32.mrf.mxu0
        %v658 = vadd.f32 %v629, %v657
        %659 = vdwg.mxu0
        %660 = vmatpush.msra.mxu0 0.0
        %661 = vmatpush.msra.mxu0 0.0
        %662 = vmatpush.msra.mxu0 0.0
        %663 = vmatpush.msra.mxu0 0.0
        %664 = vmatpush.msra.mxu0 0.0
        %665 = vmatpush.msra.mxu0 0.0
        %666 = vmatpush.msra.mxu0 0.0
        %667 = vmatpush.msra.mxu0 0.0
        %668 = vmatpush.msra.mxu0 0.0
        %669 = vmatpush.msra.mxu0 0.0
        %670 = vmatpush.msra.mxu0 0.0
        %671 = vmatpush.msra.mxu0 0.0
        %672 = vmatpush.msra.mxu0 0.0
        %673 = vmatpush.msra.mxu0 %v425
        %674 = vmatpush.msra.mxu0 %v421
        %675 = vmatpush.msra.mxu0 %v417
        %676 = vmatmul.f32.gmra.mxu0 %v632
        %v677 = vpop.f32.mrf.mxu0
        %v678 = vadd.f32 %v624, %v677
        %679 = vmatmul.f32.gmra.mxu0 %v635
        %v680 = vpop.f32.mrf.mxu0
        %v681 = vadd.f32 %v629, %v680
        %682 = vdwg.mxu0
        %683 = vmatpush.msra.mxu0 0.0
        %684 = vmatpush.msra.mxu0 0.0
        %685 = vmatpush.msra.mxu0 0.0
        %686 = vmatpush.msra.mxu0 0.0
        %687 = vmatpush.msra.mxu0 0.0
        %688 = vmatpush.msra.mxu0 0.0
        %689 = vmatpush.msra.mxu0 0.0
        %690 = vmatpush.msra.mxu0 0.0
        %691 = vmatpush.msra.mxu0 0.0
        %692 = vmatpush.msra.mxu0 0.0
        %693 = vmatpush.msra.mxu0 0.0
        %694 = vmatpush.msra.mxu0 0.0
        %695 = vmatpush.msra.mxu0 0.0
        %696 = vmatpush.msra.mxu0 %v426
        %697 = vmatpush.msra.mxu0 %v422
        %698 = vmatpush.msra.mxu0 %v418
        %699 = vmatmul.f32.gmra.mxu0 %v632
        %v700 = vpop.f32.mrf.mxu0
        %v701 = vadd.f32 %v624, %v700
        %702 = vmatmul.f32.gmra.mxu0 %v635
        %v703 = vpop.f32.mrf.mxu0
        %v704 = vadd.f32 %v629, %v703
        %705 = vdwg.mxu0
        %706 = vmatpush.msra.mxu0 0.0
        %707 = vmatpush.msra.mxu0 0.0
        %708 = vmatpush.msra.mxu0 0.0
        %709 = vmatpush.msra.mxu0 0.0
        %710 = vmatpush.msra.mxu0 0.0
        %711 = vmatpush.msra.mxu0 0.0
        %712 = vmatpush.msra.mxu0 0.0
        %713 = vmatpush.msra.mxu0 0.0
        %714 = vmatpush.msra.mxu0 0.0
        %715 = vmatpush.msra.mxu0 0.0
        %716 = vmatpush.msra.mxu0 0.0
        %717 = vmatpush.msra.mxu0 0.0
        %718 = vmatpush.msra.mxu0 0.0
        %719 = vmatpush.msra.mxu0 %v427
        %720 = vmatpush.msra.mxu0 %v423
        %721 = vmatpush.msra.mxu0 %v419
        %722 = vmatmul.f32.gmra.mxu0 %v632
        %v723 = vpop.f32.mrf.mxu0
        %v724 = vadd.f32 %v624, %v723
        %725 = vmatmul.f32.gmra.mxu0 %v635
        %v726 = vpop.f32.mrf.mxu0
        %v727 = vadd.f32 %v629, %v726
        %728 = vdwg.mxu0
        %729 = vst [vmem:[%s337] sm:$0xff] %v655
        %730 = vst [vmem:[%s337 + $0x8] sm:$0xff] %v678
        %731 = vst [vmem:[%s337 + $0x10] sm:$0xff] %v701
        %732 = vst [vmem:[%s337 + $0x18] sm:$0xff] %v724
        %733 = vst [vmem:[%s337 + $0x20] sm:$0xff] %v658
        %734 = vst [vmem:[%s337 + $0x28] sm:$0xff] %v681
        %735 = vst [vmem:[%s337 + $0x30] sm:$0xff] %v704
        %736 = vst [vmem:[%s337 + $0x38] sm:$0xff] %v727
        %v737 = vtanh.pop %v655
        %v738 = vtanh.pop %v678
        %v739 = vtanh.pop %v701
        %v740 = vtanh.pop %v724
        %v741 = vtanh.pop %v658
        %v742 = vtanh.pop %v681
        %v743 = vtanh.pop %v704
        %v744 = vtanh.pop %v727
        %745 = vst [vmem:[%s330] sm:$0xff] %v737
        %746 = vst [vmem:[%s330 + $0x8] sm:$0xff] %v738
        %747 = vst [vmem:[%s330 + $0x10] sm:$0xff] %v739
        %748 = vst [vmem:[%s330 + $0x18] sm:$0xff] %v740
        %749 = vst [vmem:[%s330 + $0x20] sm:$0xff] %v741
        %750 = vst [vmem:[%s330 + $0x28] sm:$0xff] %v742
        %751 = vst [vmem:[%s330 + $0x30] sm:$0xff] %v743
        %752 = vst [vmem:[%s330 + $0x38] sm:$0xff] %v744
        %s753 = sand.u32 %s184, 1
        %s754 = sand.u32 %s184, 1
        %s755 = smul.addr %s754, 128
        %s756 = scalar_lea.vmem [#allocation2], %s755
        %s757 = sand.u32 %s210, 1
        %s758 = sand.u32 %s210, 1
        %s759 = smul.addr %s758, 64
        %s760 = scalar_lea.vmem [#allocation3], %s759
        %s761 = sand.u32 %s236, 1
        %s762 = scalar_lea.sflag [#allocation5], %s761
        %s763 = sand.u32 %s236, 1
        %s764 = smul.addr %s763, 64
        %s765 = scalar_lea.vmem [#allocation4], %s764
        // Predicated region
        $region49: #{_lambda_.19} parent=47 // pred_check
          %p766 = pneg %p194
        $region50: #{_lambda_.19} parent=47 // pred_check_branch
          %768 = sbr.rel (%p766) target = $region52
        $region51: #{_lambda_.19} parent=47 // pred_region
          %s769 = smul.u32 4, %s24
          %s770 = smul.addr %s769, 8
          %s771 = scalar_lea.vmem %s7, %s770
          // Predicated region
          $region53: #{_lambda_.19} parent=51 // pred_check
            _
          $region54: #{_lambda_.19} parent=51 // pred_check_branch
            %773 = sbr.rel (0) target = $region56
          $region55: #{_lambda_.19} parent=51 // pred_region
            // Predicated region
            $region57: #{_lambda_.19} parent=55 // pred_check
              _
            $region58: #{_lambda_.19} parent=55 // pred_check_branch
              %775 = sbr.rel (0) target = $region60
            $region59: #{_lambda_.19} parent=55 // pred_region
              loop: start=0, step=1, limit=1
              $region61: #{_lambda_.19} parent=59 // loop_pre_header
                _
              $region62: #{_lambda_.19} parent=59 // loop_header
                %s777 = sphi 0, %s781
                %p778 = scmp.ge.s32.totalorder %s777, 1
                %s782 = sphi %s756, %s756
                %s783 = sphi %s771, %s771
              $region63: #{_lambda_.19} parent=59 // loop_header_branch
                %780 = sbr.rel (%p778) target = $region67
              $region64: #{_lambda_.19} parent=59 // loop_body
                %v784 = vld [vmem:[%s782] sm:$0xff]
                %785 = vst [vmem:[%s783] sm:$0xff] %v784
                %v786 = vld [vmem:[%s782 + $0x8] sm:$0xff]
                %787 = vst [vmem:[%s783 + $0x8] sm:$0xff] %v786
                %v788 = vld [vmem:[%s782 + $0x10] sm:$0xff]
                %789 = vst [vmem:[%s783 + $0x10] sm:$0xff] %v788
                %v790 = vld [vmem:[%s782 + $0x18] sm:$0xff]
                %791 = vst [vmem:[%s783 + $0x18] sm:$0xff] %v790
                %v792 = vld [vmem:[%s782 + $0x20] sm:$0xff]
                %793 = vst [vmem:[%s783 + $0x40] sm:$0xff] %v792
                %v794 = vld [vmem:[%s782 + $0x28] sm:$0xff]
                %795 = vst [vmem:[%s783 + $0x48] sm:$0xff] %v794
                %v796 = vld [vmem:[%s782 + $0x30] sm:$0xff]
                %797 = vst [vmem:[%s783 + $0x50] sm:$0xff] %v796
                %v798 = vld [vmem:[%s782 + $0x38] sm:$0xff]
                %799 = vst [vmem:[%s783 + $0x58] sm:$0xff] %v798
                %v800 = vld [vmem:[%s782 + $0x40] sm:$0xff]
                %801 = vst [vmem:[%s783 + $0x80] sm:$0xff] %v800
                %v802 = vld [vmem:[%s782 + $0x48] sm:$0xff]
                %803 = vst [vmem:[%s783 + $0x88] sm:$0xff] %v802
                %v804 = vld [vmem:[%s782 + $0x50] sm:$0xff]
                %805 = vst [vmem:[%s783 + $0x90] sm:$0xff] %v804
                %v806 = vld [vmem:[%s782 + $0x58] sm:$0xff]
                %807 = vst [vmem:[%s783 + $0x98] sm:$0xff] %v806
                %v808 = vld [vmem:[%s782 + $0x60] sm:$0xff]
                %809 = vst [vmem:[%s783 + $0xc0] sm:$0xff] %v808
                %v810 = vld [vmem:[%s782 + $0x68] sm:$0xff]
                %811 = vst [vmem:[%s783 + $0xc8] sm:$0xff] %v810
                %v812 = vld [vmem:[%s782 + $0x70] sm:$0xff]
                %813 = vst [vmem:[%s783 + $0xd0] sm:$0xff] %v812
                %v814 = vld [vmem:[%s782 + $0x78] sm:$0xff]
                %815 = vst [vmem:[%s783 + $0xd8] sm:$0xff] %v814
              $region65: #{_lambda_.19} parent=59 // loop_footer
                %s781 = sadd.s32 1, %s777
              $region66: #{_lambda_.19} parent=59 // loop_footer_branch
                %776 = sbr.rel target = $region62
              $region67: #{_lambda_.19} parent=59 // loop_exit
                _
            $region60: #{_lambda_.19} parent=55 // pred_fallthru
              _
            // Predicated region
            $region68: #{_lambda_.19} parent=55 // pred_check
              _
            $region69: #{_lambda_.19} parent=55 // pred_check_branch
              %817 = sbr.rel target = $region71
            $region70: #{_lambda_.19} parent=55 // pred_region
              _
            $region71: #{_lambda_.19} parent=55 // pred_fallthru
              _
          $region56: #{_lambda_.19} parent=51 // pred_fallthru
            _
          %818 = vnop
        $region52: #{_lambda_.19} parent=47 // pred_fallthru
          _
        // Predicated region
        $region72: #{_lambda_.19} parent=47 // pred_check
          %p819 = pneg %p220
        $region73: #{_lambda_.19} parent=47 // pred_check_branch
          %821 = sbr.rel (%p819) target = $region75
        $region74: #{_lambda_.19} parent=47 // pred_region
          %s822 = smul.u32 4, %s24
          %s823 = smul.addr %s822, 8
          %s824 = scalar_lea.vmem %s8, %s823
          // Predicated region
          $region76: #{_lambda_.19} parent=74 // pred_check
            _
          $region77: #{_lambda_.19} parent=74 // pred_check_branch
            %826 = sbr.rel (0) target = $region79
          $region78: #{_lambda_.19} parent=74 // pred_region
            // Predicated region
            $region80: #{_lambda_.19} parent=78 // pred_check
              _
            $region81: #{_lambda_.19} parent=78 // pred_check_branch
              %828 = sbr.rel (0) target = $region83
            $region82: #{_lambda_.19} parent=78 // pred_region
              loop: start=0, step=1, limit=1
              $region84: #{_lambda_.19} parent=82 // loop_pre_header
                _
              $region85: #{_lambda_.19} parent=82 // loop_header
                %s830 = sphi 0, %s834
                %p831 = scmp.ge.s32.totalorder %s830, 1
                %s835 = sphi %s760, %s760
                %s836 = sphi %s824, %s824
              $region86: #{_lambda_.19} parent=82 // loop_header_branch
                %833 = sbr.rel (%p831) target = $region90
              $region87: #{_lambda_.19} parent=82 // loop_body
                %v837 = vld [vmem:[%s835] sm:$0xff]
                %838 = vst [vmem:[%s836] sm:$0xff] %v837
                %v839 = vld [vmem:[%s835 + $0x8] sm:$0xff]
                %840 = vst [vmem:[%s836 + $0x8] sm:$0xff] %v839
                %v841 = vld [vmem:[%s835 + $0x10] sm:$0xff]
                %842 = vst [vmem:[%s836 + $0x10] sm:$0xff] %v841
                %v843 = vld [vmem:[%s835 + $0x18] sm:$0xff]
                %844 = vst [vmem:[%s836 + $0x18] sm:$0xff] %v843
                %v845 = vld [vmem:[%s835 + $0x20] sm:$0xff]
                %846 = vst [vmem:[%s836 + $0x40] sm:$0xff] %v845
                %v847 = vld [vmem:[%s835 + $0x28] sm:$0xff]
                %848 = vst [vmem:[%s836 + $0x48] sm:$0xff] %v847
                %v849 = vld [vmem:[%s835 + $0x30] sm:$0xff]
                %850 = vst [vmem:[%s836 + $0x50] sm:$0xff] %v849
                %v851 = vld [vmem:[%s835 + $0x38] sm:$0xff]
                %852 = vst [vmem:[%s836 + $0x58] sm:$0xff] %v851
              $region88: #{_lambda_.19} parent=82 // loop_footer
                %s834 = sadd.s32 1, %s830
              $region89: #{_lambda_.19} parent=82 // loop_footer_branch
                %829 = sbr.rel target = $region85
              $region90: #{_lambda_.19} parent=82 // loop_exit
                _
            $region83: #{_lambda_.19} parent=78 // pred_fallthru
              _
            // Predicated region
            $region91: #{_lambda_.19} parent=78 // pred_check
              _
            $region92: #{_lambda_.19} parent=78 // pred_check_branch
              %854 = sbr.rel target = $region94
            $region93: #{_lambda_.19} parent=78 // pred_region
              _
            $region94: #{_lambda_.19} parent=78 // pred_fallthru
              _
          $region79: #{_lambda_.19} parent=74 // pred_fallthru
            _
          %855 = vnop
        $region75: #{_lambda_.19} parent=47 // pred_fallthru
          _
        // Predicated region
        $region95: #{_lambda_.19} parent=47 // pred_check
          %p856 = pneg %p246
        $region96: #{_lambda_.19} parent=47 // pred_check_branch
          %858 = sbr.rel (%p856) target = $region98
        $region97: #{_lambda_.19} parent=47 // pred_region
          %s859 = smul.u32 4, %s24
          %861 = vsyncadd %s762, 0
          %s862 = smul.addr %s859, 8
          %s863 = scalar_lea.hbm %s9, %s862
          %s864 = sshll.u32 %s765, 4
          %s865 = int_to_ptr.vmem [resolvable:$true] %s864
          %s866 = sshll.u32 %s863, 4
          %s867 = int_to_ptr.hbm [resolvable:$true] %s866
          %872 = dma.vmem_to_hbm [thread:$0]  %s865, 1024, %s867, %s762, 512, 1024, 32
        $region98: #{_lambda_.19} parent=47 // pred_fallthru
          _
      $region48: #{_lambda_.19} parent=5 // pred_fallthru
        _
      %p873 = scmp.le.s32.totalorder 2, %s19
      // Predicated region
      $region99: #{_lambda_.19} parent=5 // pred_check
        %p874 = pneg %p873
      $region100: #{_lambda_.19} parent=5 // pred_check_branch
        %876 = sbr.rel (%p874) target = $region102
      $region101: #{_lambda_.19} parent=5 // pred_region
        %s877 = ssub.s32 %s19, 2
        // Predicated region
        $region103: #{_lambda_.19} parent=101 // pred_check
          %p878 = pneg %p200
        $region104: #{_lambda_.19} parent=101 // pred_check_branch
          %880 = sbr.rel (%p878) target = $region106
        $region105: #{_lambda_.19} parent=101 // pred_region
          %s881 = sand.u32 %s185, 1
          %s882 = sand.u32 %s185, 1
          %s883 = smul.addr %s882, 128
          %s884 = scalar_lea.vmem [#allocation2], %s883
        $region106: #{_lambda_.19} parent=101 // pred_fallthru
          _
        // Predicated region
        $region107: #{_lambda_.19} parent=101 // pred_check
          %p885 = pneg %p226
        $region108: #{_lambda_.19} parent=101 // pred_check_branch
          %887 = sbr.rel (%p885) target = $region110
        $region109: #{_lambda_.19} parent=101 // pred_region
          %s888 = sand.u32 %s211, 1
          %s889 = sand.u32 %s211, 1
          %s890 = smul.addr %s889, 64
          %s891 = scalar_lea.vmem [#allocation3], %s890
        $region110: #{_lambda_.19} parent=101 // pred_fallthru
          _
        // Predicated region
        $region111: #{_lambda_.19} parent=101 // pred_check
          %p892 = pneg %p252
        $region112: #{_lambda_.19} parent=101 // pred_check_branch
          %894 = sbr.rel (%p892) target = $region114
        $region113: #{_lambda_.19} parent=101 // pred_region
          %s895 = sand.u32 %s237, 1
          %s896 = scalar_lea.sflag [#allocation5], %s895
          %s897 = sand.u32 %s237, 1
          %s898 = smul.addr %s897, 64
          %s899 = scalar_lea.vmem [#allocation4], %s898
          %901 = dma.done %s896, 1024
        $region114: #{_lambda_.19} parent=101 // pred_fallthru
          _
      $region102: #{_lambda_.19} parent=5 // pred_fallthru
        _
    $region6: #{_lambda_.19} parent=1 // loop_footer
      %s23 = sadd.s32 1, %s19
    $region7: #{_lambda_.19} parent=1 // loop_footer_branch
      %18 = sbr.rel target = $region3
    $region8: #{_lambda_.19} parent=1 // loop_exit
      _
    %902 = vsyncpa [#allocation5], 1
    %s903 = scalar_lea.sflag [#allocation5], 1
    %904 = vsyncpa %s903, 1

// kernel: _lambda_.22
$region0: #{_lambda_.22}
  #allocation0 [shape = 'u32[]', space=smem, size = 0x4, offset = 0x4, fixed_abs, tag = 'smem constant byte address 0x4 - core index']
  #allocation1 [shape = 'u32[72,128]{1,0:T(1,128)}', space=vmem, size = 0x9000, scoped, tag = 'internal scratch']
  %s0 = inlined_call_operand.vmem [shape: f32[1,1024], index: 0, kind: input, shape index: {}]
  %s1 = inlined_call_operand.vmem [shape: f32[1,1024], index: 1, kind: input, shape index: {}]
  %s2 = inlined_call_operand.vmem [shape: f32[32,1024], index: 2, kind: input, shape index: {}]
  %s3 = inlined_call_operand.vmem [shape: f32[16,1024], index: 3, kind: input, shape index: {}]
  %s4 = inlined_call_operand.vmem [shape: f32[32,1], index: 4, kind: input, shape index: {}]
  %s5 = inlined_call_operand.vmem [shape: f32[32,1], index: 5, kind: input, shape index: {}]
  %s6 = inlined_call_operand.vmem [shape: f32[32,32], index: 6, kind: input, shape index: {}]
  %s7 = inlined_call_operand.vmem [shape: f32[32,16], index: 7, kind: input, shape index: {}]
  %s8 = inlined_call_operand.vmem [shape: f32[32,1], index: 8, kind: input, shape index: {}]
  %s9 = inlined_call_operand.vmem [shape: f32[16,32], index: 9, kind: input, shape index: {}]
  %s10 = inlined_call_operand.vmem [shape: f32[16,16], index: 10, kind: input, shape index: {}]
  %s11 = inlined_call_operand.vmem [shape: f32[16,1], index: 11, kind: input, shape index: {}]
  %s12 = inlined_call_operand.vmem [shape: f32[3,16], index: 12, kind: input, shape index: {}]
  %s13 = inlined_call_operand.vmem [shape: f32[3,1], index: 13, kind: input, shape index: {}]
  %s14 = inlined_call_operand.vmem [shape: f32[3,1024], index: 14, kind: output, shape index: {0}]
  %s15 = inlined_call_operand.vmem [shape: f32[16,1024], index: 15, kind: output, shape index: {1}]
  %16 = xla_tuple %s14, %s15
  %s17 = sld [smem:[#allocation0]]
  $region162: #{_lambda_.22} parent=0
    _
  %s19 = ssub.s32 1, %s17
  %s20 = scalar_select 0, %s19, %s17
  $region1: #{_lambda_.22} parent=0
    #allocation2 [shape = 'u8[131072]{0}', space=vmem, size = 0x20000, scoped, tag = 'input window, operand 2']
    #allocation3 [shape = 'u8[65536]{0}', space=vmem, size = 0x10000, scoped, tag = 'input window, operand 3']
    #allocation4 [shape = 'u8[65536]{0}', space=vmem, size = 0x10000, scoped, tag = 'output window, operand 1']
    loop: start=0, step=1, limit=4
    $region2: #{_lambda_.22} parent=1 // loop_pre_header
      _
    $region3: #{_lambda_.22} parent=1 // loop_header
      %s22 = sphi 0, %s26
      %p23 = scmp.ge.s32.totalorder %s22, 4
      %s32 = sphi 0, %s34
      %s35 = sphi 0, %s32
      %s36 = sphi 0, %s35
      %s52 = sphi 0, %s36
      %s58 = sphi 0, %s60
      %s61 = sphi 0, %s58
      %s62 = sphi 0, %s61
      %s78 = sphi 0, %s62
      %s84 = sphi 0, %s86
      %s87 = sphi 0, %s84
      %s88 = sphi 0, %s87
      %s104 = sphi 0, %s88
      %s110 = sphi 0, %s112
      %s113 = sphi 0, %s110
      %s114 = sphi 0, %s113
      %s130 = sphi 0, %s114
      %s134 = sphi 0, %s134
      %s136 = sphi 0, %s134
      %s137 = sphi 0, %s136
      %s151 = sphi 0, %s137
      %s155 = sphi 0, %s155
      %s157 = sphi 0, %s155
      %s158 = sphi 0, %s157
      %s172 = sphi 0, %s158
      %s176 = sphi 0, %s176
      %s178 = sphi 0, %s176
      %s179 = sphi 0, %s178
      %s193 = sphi 0, %s179
      %s197 = sphi 0, %s197
      %s199 = sphi 0, %s197
      %s200 = sphi 0, %s199
      %s214 = sphi 0, %s200
      %s218 = sphi 0, %s218
      %s220 = sphi 0, %s218
      %s221 = sphi 0, %s220
      %s235 = sphi 0, %s221
      %s239 = sphi 0, %s239
      %s241 = sphi 0, %s239
      %s242 = sphi 0, %s241
      %s256 = sphi 0, %s242
      %s260 = sphi 0, %s260
      %s262 = sphi 0, %s260
      %s263 = sphi 0, %s262
      %s277 = sphi 0, %s263
      %s281 = sphi 0, %s281
      %s283 = sphi 0, %s281
      %s284 = sphi 0, %s283
      %s298 = sphi 0, %s284
      %s302 = sphi 0, %s302
      %s304 = sphi 0, %s302
      %s305 = sphi 0, %s304
      %s319 = sphi 0, %s305
      %s323 = sphi 0, %s323
      %s325 = sphi 0, %s323
      %s326 = sphi 0, %s325
      %s340 = sphi 0, %s326
      %s346 = sphi 0, %s348
      %s349 = sphi 0, %s346
      %s350 = sphi 0, %s349
      %s366 = sphi 0, %s350
      %s372 = sphi 0, %s374
      %s375 = sphi 0, %s372
      %s376 = sphi 0, %s375
      %s392 = sphi 0, %s376
    $region4: #{_lambda_.22} parent=1 // loop_header_branch
      %25 = sbr.rel (%p23) target = $region8
    $region5: #{_lambda_.22} parent=1 // loop_body
      %s27 = ssub.s32 %s22, 1
      %s28 = ssub.s32 %s22, 2
      %s29 = sadd.s32 %s22, 1
      %s30 = ssub.s32 %s22, %s29
      %p31 = scmp.eq.s32.totalorder %s30, 0
      %s33 = sadd.s32 %s32, 1
      %s34 = scalar_select %p31, %s32, %s33
      %p37 = pneg %p31
      %p38 = scmp.eq.s32.totalorder %s22, 1
      %p39 = por %p37, %p38
      %p40 = scmp.ne.s32.totalorder %s32, %s35
      %p41 = scmp.eq.s32.totalorder %s22, 0
      %p42 = por %p40, %p41
      %p43 = scmp.ne.s32.totalorder %s32, %s35
      %p44 = scmp.eq.s32.totalorder %s27, 1
      %p45 = por %p43, %p44
      %p46 = scmp.ne.s32.totalorder %s35, %s36
      %p47 = scmp.eq.s32.totalorder %s27, 0
      %p48 = por %p46, %p47
      %p49 = scmp.ne.s32.totalorder %s35, %s36
      %p50 = scmp.eq.s32.totalorder %s28, 1
      %p51 = por %p49, %p50
      %p53 = scmp.ne.s32.totalorder %s36, %s52
      %p54 = scmp.eq.s32.totalorder %s28, 0
      %p55 = por %p53, %p54
      %s56 = ssub.s32 %s22, %s29
      %p57 = scmp.eq.s32.totalorder %s56, 0
      %s59 = sadd.s32 %s58, 1
      %s60 = scalar_select %p57, %s58, %s59
      %p63 = pneg %p57
      %p64 = scmp.eq.s32.totalorder %s22, 1
      %p65 = por %p63, %p64
      %p66 = scmp.ne.s32.totalorder %s58, %s61
      %p67 = scmp.eq.s32.totalorder %s22, 0
      %p68 = por %p66, %p67
      %p69 = scmp.ne.s32.totalorder %s58, %s61
      %p70 = scmp.eq.s32.totalorder %s27, 1
      %p71 = por %p69, %p70
      %p72 = scmp.ne.s32.totalorder %s61, %s62
      %p73 = scmp.eq.s32.totalorder %s27, 0
      %p74 = por %p72, %p73
      %p75 = scmp.ne.s32.totalorder %s61, %s62
      %p76 = scmp.eq.s32.totalorder %s28, 1
      %p77 = por %p75, %p76
      %p79 = scmp.ne.s32.totalorder %s62, %s78
      %p80 = scmp.eq.s32.totalorder %s28, 0
      %p81 = por %p79, %p80
      %s82 = ssub.s32 %s22, %s29
      %p83 = scmp.eq.s32.totalorder %s82, 0
      %s85 = sadd.s32 %s84, 1
      %s86 = scalar_select %p83, %s84, %s85
      %p89 = pneg %p83
      %p90 = scmp.eq.s32.totalorder %s22, 1
      %p91 = por %p89, %p90
      %p92 = scmp.ne.s32.totalorder %s84, %s87
      %p93 = scmp.eq.s32.totalorder %s22, 0
      %p94 = por %p92, %p93
      %p95 = scmp.ne.s32.totalorder %s84, %s87
      %p96 = scmp.eq.s32.totalorder %s27, 1
      %p97 = por %p95, %p96
      %p98 = scmp.ne.s32.totalorder %s87, %s88
      %p99 = scmp.eq.s32.totalorder %s27, 0
      %p100 = por %p98, %p99
      %p101 = scmp.ne.s32.totalorder %s87, %s88
      %p102 = scmp.eq.s32.totalorder %s28, 1
      %p103 = por %p101, %p102
      %p105 = scmp.ne.s32.totalorder %s88, %s104
      %p106 = scmp.eq.s32.totalorder %s28, 0
      %p107 = por %p105, %p106
      %s108 = ssub.s32 %s22, %s29
      %p109 = scmp.eq.s32.totalorder %s108, 0
      %s111 = sadd.s32 %s110, 1
      %s112 = scalar_select %p109, %s110, %s111
      %p115 = pneg %p109
      %p116 = scmp.eq.s32.totalorder %s22, 1
      %p117 = por %p115, %p116
      %p118 = scmp.ne.s32.totalorder %s110, %s113
      %p119 = scmp.eq.s32.totalorder %s22, 0
      %p120 = por %p118, %p119
      %p121 = scmp.ne.s32.totalorder %s110, %s113
      %p122 = scmp.eq.s32.totalorder %s27, 1
      %p123 = por %p121, %p122
      %p124 = scmp.ne.s32.totalorder %s113, %s114
      %p125 = scmp.eq.s32.totalorder %s27, 0
      %p126 = por %p124, %p125
      %p127 = scmp.ne.s32.totalorder %s113, %s114
      %p128 = scmp.eq.s32.totalorder %s28, 1
      %p129 = por %p127, %p128
      %p131 = scmp.ne.s32.totalorder %s114, %s130
      %p132 = scmp.eq.s32.totalorder %s28, 0
      %p133 = por %p131, %p132
      %s135 = sadd.s32 %s134, 1
      %p138 = scmp.eq.s32.totalorder %s22, 1
      %p139 = scmp.ne.s32.totalorder %s134, %s136
      %p140 = scmp.eq.s32.totalorder %s22, 0
      %p141 = por %p139, %p140
      %p142 = scmp.ne.s32.totalorder %s134, %s136
      %p143 = scmp.eq.s32.totalorder %s27, 1
      %p144 = por %p142, %p143
      %p145 = scmp.ne.s32.totalorder %s136, %s137
      %p146 = scmp.eq.s32.totalorder %s27, 0
      %p147 = por %p145, %p146
      %p148 = scmp.ne.s32.totalorder %s136, %s137
      %p149 = scmp.eq.s32.totalorder %s28, 1
      %p150 = por %p148, %p149
      %p152 = scmp.ne.s32.totalorder %s137, %s151
      %p153 = scmp.eq.s32.totalorder %s28, 0
      %p154 = por %p152, %p153
      %s156 = sadd.s32 %s155, 1
      %p159 = scmp.eq.s32.totalorder %s22, 1
      %p160 = scmp.ne.s32.totalorder %s155, %s157
      %p161 = scmp.eq.s32.totalorder %s22, 0
      %p162 = por %p160, %p161
      %p163 = scmp.ne.s32.totalorder %s155, %s157
      %p164 = scmp.eq.s32.totalorder %s27, 1
      %p165 = por %p163, %p164
      %p166 = scmp.ne.s32.totalorder %s157, %s158
      %p167 = scmp.eq.s32.totalorder %s27, 0
      %p168 = por %p166, %p167
      %p169 = scmp.ne.s32.totalorder %s157, %s158
      %p170 = scmp.eq.s32.totalorder %s28, 1
      %p171 = por %p169, %p170
      %p173 = scmp.ne.s32.totalorder %s158, %s172
      %p174 = scmp.eq.s32.totalorder %s28, 0
      %p175 = por %p173, %p174
      %s177 = sadd.s32 %s176, 1
      %p180 = scmp.eq.s32.totalorder %s22, 1
      %p181 = scmp.ne.s32.totalorder %s176, %s178
      %p182 = scmp.eq.s32.totalorder %s22, 0
      %p183 = por %p181, %p182
      %p184 = scmp.ne.s32.totalorder %s176, %s178
      %p185 = scmp.eq.s32.totalorder %s27, 1
      %p186 = por %p184, %p185
      %p187 = scmp.ne.s32.totalorder %s178, %s179
      %p188 = scmp.eq.s32.totalorder %s27, 0
      %p189 = por %p187, %p188
      %p190 = scmp.ne.s32.totalorder %s178, %s179
      %p191 = scmp.eq.s32.totalorder %s28, 1
      %p192 = por %p190, %p191
      %p194 = scmp.ne.s32.totalorder %s179, %s193
      %p195 = scmp.eq.s32.totalorder %s28, 0
      %p196 = por %p194, %p195
      %s198 = sadd.s32 %s197, 1
      %p201 = scmp.eq.s32.totalorder %s22, 1
      %p202 = scmp.ne.s32.totalorder %s197, %s199
      %p203 = scmp.eq.s32.totalorder %s22, 0
      %p204 = por %p202, %p203
      %p205 = scmp.ne.s32.totalorder %s197, %s199
      %p206 = scmp.eq.s32.totalorder %s27, 1
      %p207 = por %p205, %p206
      %p208 = scmp.ne.s32.totalorder %s199, %s200
      %p209 = scmp.eq.s32.totalorder %s27, 0
      %p210 = por %p208, %p209
      %p211 = scmp.ne.s32.totalorder %s199, %s200
      %p212 = scmp.eq.s32.totalorder %s28, 1
      %p213 = por %p211, %p212
      %p215 = scmp.ne.s32.totalorder %s200, %s214
      %p216 = scmp.eq.s32.totalorder %s28, 0
      %p217 = por %p215, %p216
      %s219 = sadd.s32 %s218, 1
      %p222 = scmp.eq.s32.totalorder %s22, 1
      %p223 = scmp.ne.s32.totalorder %s218, %s220
      %p224 = scmp.eq.s32.totalorder %s22, 0
      %p225 = por %p223, %p224
      %p226 = scmp.ne.s32.totalorder %s218, %s220
      %p227 = scmp.eq.s32.totalorder %s27, 1
      %p228 = por %p226, %p227
      %p229 = scmp.ne.s32.totalorder %s220, %s221
      %p230 = scmp.eq.s32.totalorder %s27, 0
      %p231 = por %p229, %p230
      %p232 = scmp.ne.s32.totalorder %s220, %s221
      %p233 = scmp.eq.s32.totalorder %s28, 1
      %p234 = por %p232, %p233
      %p236 = scmp.ne.s32.totalorder %s221, %s235
      %p237 = scmp.eq.s32.totalorder %s28, 0
      %p238 = por %p236, %p237
      %s240 = sadd.s32 %s239, 1
      %p243 = scmp.eq.s32.totalorder %s22, 1
      %p244 = scmp.ne.s32.totalorder %s239, %s241
      %p245 = scmp.eq.s32.totalorder %s22, 0
      %p246 = por %p244, %p245
      %p247 = scmp.ne.s32.totalorder %s239, %s241
      %p248 = scmp.eq.s32.totalorder %s27, 1
      %p249 = por %p247, %p248
      %p250 = scmp.ne.s32.totalorder %s241, %s242
      %p251 = scmp.eq.s32.totalorder %s27, 0
      %p252 = por %p250, %p251
      %p253 = scmp.ne.s32.totalorder %s241, %s242
      %p254 = scmp.eq.s32.totalorder %s28, 1
      %p255 = por %p253, %p254
      %p257 = scmp.ne.s32.totalorder %s242, %s256
      %p258 = scmp.eq.s32.totalorder %s28, 0
      %p259 = por %p257, %p258
      %s261 = sadd.s32 %s260, 1
      %p264 = scmp.eq.s32.totalorder %s22, 1
      %p265 = scmp.ne.s32.totalorder %s260, %s262
      %p266 = scmp.eq.s32.totalorder %s22, 0
      %p267 = por %p265, %p266
      %p268 = scmp.ne.s32.totalorder %s260, %s262
      %p269 = scmp.eq.s32.totalorder %s27, 1
      %p270 = por %p268, %p269
      %p271 = scmp.ne.s32.totalorder %s262, %s263
      %p272 = scmp.eq.s32.totalorder %s27, 0
      %p273 = por %p271, %p272
      %p274 = scmp.ne.s32.totalorder %s262, %s263
      %p275 = scmp.eq.s32.totalorder %s28, 1
      %p276 = por %p274, %p275
      %p278 = scmp.ne.s32.totalorder %s263, %s277
      %p279 = scmp.eq.s32.totalorder %s28, 0
      %p280 = por %p278, %p279
      %s282 = sadd.s32 %s281, 1
      %p285 = scmp.eq.s32.totalorder %s22, 1
      %p286 = scmp.ne.s32.totalorder %s281, %s283
      %p287 = scmp.eq.s32.totalorder %s22, 0
      %p288 = por %p286, %p287
      %p289 = scmp.ne.s32.totalorder %s281, %s283
      %p290 = scmp.eq.s32.totalorder %s27, 1
      %p291 = por %p289, %p290
      %p292 = scmp.ne.s32.totalorder %s283, %s284
      %p293 = scmp.eq.s32.totalorder %s27, 0
      %p294 = por %p292, %p293
      %p295 = scmp.ne.s32.totalorder %s283, %s284
      %p296 = scmp.eq.s32.totalorder %s28, 1
      %p297 = por %p295, %p296
      %p299 = scmp.ne.s32.totalorder %s284, %s298
      %p300 = scmp.eq.s32.totalorder %s28, 0
      %p301 = por %p299, %p300
      %s303 = sadd.s32 %s302, 1
      %p306 = scmp.eq.s32.totalorder %s22, 1
      %p307 = scmp.ne.s32.totalorder %s302, %s304
      %p308 = scmp.eq.s32.totalorder %s22, 0
      %p309 = por %p307, %p308
      %p310 = scmp.ne.s32.totalorder %s302, %s304
      %p311 = scmp.eq.s32.totalorder %s27, 1
      %p312 = por %p310, %p311
      %p313 = scmp.ne.s32.totalorder %s304, %s305
      %p314 = scmp.eq.s32.totalorder %s27, 0
      %p315 = por %p313, %p314
      %p316 = scmp.ne.s32.totalorder %s304, %s305
      %p317 = scmp.eq.s32.totalorder %s28, 1
      %p318 = por %p316, %p317
      %p320 = scmp.ne.s32.totalorder %s305, %s319
      %p321 = scmp.eq.s32.totalorder %s28, 0
      %p322 = por %p320, %p321
      %s324 = sadd.s32 %s323, 1
      %p327 = scmp.eq.s32.totalorder %s22, 1
      %p328 = scmp.ne.s32.totalorder %s323, %s325
      %p329 = scmp.eq.s32.totalorder %s22, 0
      %p330 = por %p328, %p329
      %p331 = scmp.ne.s32.totalorder %s323, %s325
      %p332 = scmp.eq.s32.totalorder %s27, 1
      %p333 = por %p331, %p332
      %p334 = scmp.ne.s32.totalorder %s325, %s326
      %p335 = scmp.eq.s32.totalorder %s27, 0
      %p336 = por %p334, %p335
      %p337 = scmp.ne.s32.totalorder %s325, %s326
      %p338 = scmp.eq.s32.totalorder %s28, 1
      %p339 = por %p337, %p338
      %p341 = scmp.ne.s32.totalorder %s326, %s340
      %p342 = scmp.eq.s32.totalorder %s28, 0
      %p343 = por %p341, %p342
      %s344 = ssub.s32 %s22, %s29
      %p345 = scmp.eq.s32.totalorder %s344, 0
      %s347 = sadd.s32 %s346, 1
      %s348 = scalar_select %p345, %s346, %s347
      %p351 = pneg %p345
      %p352 = scmp.eq.s32.totalorder %s22, 1
      %p353 = por %p351, %p352
      %p354 = scmp.ne.s32.totalorder %s346, %s349
      %p355 = scmp.eq.s32.totalorder %s22, 0
      %p356 = por %p354, %p355
      %p357 = scmp.ne.s32.totalorder %s346, %s349
      %p358 = scmp.eq.s32.totalorder %s27, 1
      %p359 = por %p357, %p358
      %p360 = scmp.ne.s32.totalorder %s349, %s350
      %p361 = scmp.eq.s32.totalorder %s27, 0
      %p362 = por %p360, %p361
      %p363 = scmp.ne.s32.totalorder %s349, %s350
      %p364 = scmp.eq.s32.totalorder %s28, 1
      %p365 = por %p363, %p364
      %p367 = scmp.ne.s32.totalorder %s350, %s366
      %p368 = scmp.eq.s32.totalorder %s28, 0
      %p369 = por %p367, %p368
      %s370 = ssub.s32 %s22, %s29
      %p371 = scmp.eq.s32.totalorder %s370, 0
      %s373 = sadd.s32 %s372, 1
      %s374 = scalar_select %p371, %s372, %s373
      %p377 = pneg %p371
      %p378 = scmp.eq.s32.totalorder %s22, 1
      %p379 = por %p377, %p378
      %p380 = scmp.ne.s32.totalorder %s372, %s375
      %p381 = scmp.eq.s32.totalorder %s22, 0
      %p382 = por %p380, %p381
      %p383 = scmp.ne.s32.totalorder %s372, %s375
      %p384 = scmp.eq.s32.totalorder %s27, 1
      %p385 = por %p383, %p384
      %p386 = scmp.ne.s32.totalorder %s375, %s376
      %p387 = scmp.eq.s32.totalorder %s27, 0
      %p388 = por %p386, %p387
      %p389 = scmp.ne.s32.totalorder %s375, %s376
      %p390 = scmp.eq.s32.totalorder %s28, 1
      %p391 = por %p389, %p390
      %p393 = scmp.ne.s32.totalorder %s376, %s392
      %p394 = scmp.eq.s32.totalorder %s28, 0
      %p395 = por %p393, %p394
      %p396 = scmp.le.s32.totalorder 1, %s22
      %p397 = scmp.lt.s32.totalorder %s22, 3
      %p398 = pnand %p396, %p397
      %p399 = pneg %p398
      // Predicated region
      $region9: #{_lambda_.22} parent=5 // pred_check
        _
      $region10: #{_lambda_.22} parent=5 // pred_check_branch
        %401 = sbr.rel (%p398) target = $region12
      $region11: #{_lambda_.22} parent=5 // pred_region
        %s402 = ssub.s32 %s22, 1
        // Predicated region
        $region13: #{_lambda_.22} parent=11 // pred_check
          %p403 = pneg %p147
        $region14: #{_lambda_.22} parent=11 // pred_check_branch
          %405 = sbr.rel (%p403) target = $region16
        $region15: #{_lambda_.22} parent=11 // pred_region
          _
        $region16: #{_lambda_.22} parent=11 // pred_fallthru
          _
        // Predicated region
        $region17: #{_lambda_.22} parent=11 // pred_check
          %p406 = pneg %p168
        $region18: #{_lambda_.22} parent=11 // pred_check_branch
          %408 = sbr.rel (%p406) target = $region20
        $region19: #{_lambda_.22} parent=11 // pred_region
          _
        $region20: #{_lambda_.22} parent=11 // pred_fallthru
          _
        // Predicated region
        $region21: #{_lambda_.22} parent=11 // pred_check
          %p409 = pneg %p189
        $region22: #{_lambda_.22} parent=11 // pred_check_branch
          %411 = sbr.rel (%p409) target = $region24
        $region23: #{_lambda_.22} parent=11 // pred_region
          _
        $region24: #{_lambda_.22} parent=11 // pred_fallthru
          _
        // Predicated region
        $region25: #{_lambda_.22} parent=11 // pred_check
          %p412 = pneg %p210
        $region26: #{_lambda_.22} parent=11 // pred_check_branch
          %414 = sbr.rel (%p412) target = $region28
        $region27: #{_lambda_.22} parent=11 // pred_region
          _
        $region28: #{_lambda_.22} parent=11 // pred_fallthru
          _
        // Predicated region
        $region29: #{_lambda_.22} parent=11 // pred_check
          %p415 = pneg %p231
        $region30: #{_lambda_.22} parent=11 // pred_check_branch
          %417 = sbr.rel (%p415) target = $region32
        $region31: #{_lambda_.22} parent=11 // pred_region
          _
        $region32: #{_lambda_.22} parent=11 // pred_fallthru
          _
        // Predicated region
        $region33: #{_lambda_.22} parent=11 // pred_check
          %p418 = pneg %p252
        $region34: #{_lambda_.22} parent=11 // pred_check_branch
          %420 = sbr.rel (%p418) target = $region36
        $region35: #{_lambda_.22} parent=11 // pred_region
          _
        $region36: #{_lambda_.22} parent=11 // pred_fallthru
          _
        // Predicated region
        $region37: #{_lambda_.22} parent=11 // pred_check
          %p421 = pneg %p273
        $region38: #{_lambda_.22} parent=11 // pred_check_branch
          %423 = sbr.rel (%p421) target = $region40
        $region39: #{_lambda_.22} parent=11 // pred_region
          _
        $region40: #{_lambda_.22} parent=11 // pred_fallthru
          _
        // Predicated region
        $region41: #{_lambda_.22} parent=11 // pred_check
          %p424 = pneg %p294
        $region42: #{_lambda_.22} parent=11 // pred_check_branch
          %426 = sbr.rel (%p424) target = $region44
        $region43: #{_lambda_.22} parent=11 // pred_region
          _
        $region44: #{_lambda_.22} parent=11 // pred_fallthru
          _
        // Predicated region
        $region45: #{_lambda_.22} parent=11 // pred_check
          %p427 = pneg %p315
        $region46: #{_lambda_.22} parent=11 // pred_check_branch
          %429 = sbr.rel (%p427) target = $region48
        $region47: #{_lambda_.22} parent=11 // pred_region
          _
        $region48: #{_lambda_.22} parent=11 // pred_fallthru
          _
        // Predicated region
        $region49: #{_lambda_.22} parent=11 // pred_check
          %p430 = pneg %p336
        $region50: #{_lambda_.22} parent=11 // pred_check_branch
          %432 = sbr.rel (%p430) target = $region52
        $region51: #{_lambda_.22} parent=11 // pred_region
          _
        $region52: #{_lambda_.22} parent=11 // pred_fallthru
          _
      $region12: #{_lambda_.22} parent=5 // pred_fallthru
        _
      %p433 = scmp.lt.s32.totalorder %s22, 2
      // Predicated region
      $region53: #{_lambda_.22} parent=5 // pred_check
        %p434 = pneg %p433
      $region54: #{_lambda_.22} parent=5 // pred_check_branch
        %436 = sbr.rel (%p434) target = $region56
      $region55: #{_lambda_.22} parent=5 // pred_region
        // Predicated region
        $region57: #{_lambda_.22} parent=55 // pred_check
          %p437 = pneg %p42
        $region58: #{_lambda_.22} parent=55 // pred_check_branch
          %439 = sbr.rel (%p437) target = $region60
        $region59: #{_lambda_.22} parent=55 // pred_region
          %s440 = smul.u32 4, %s22
          %p441 = scmp.lt.s32.totalorder %s440, 7
          %s442 = scalar_select %p441, %s440, 7
          %s443 = scalar_lea.vmem %s0, %s442
          %s444 = smul.u32 4, %s22
        $region60: #{_lambda_.22} parent=55 // pred_fallthru
          _
        // Predicated region
        $region61: #{_lambda_.22} parent=55 // pred_check
          %p445 = pneg %p68
        $region62: #{_lambda_.22} parent=55 // pred_check_branch
          %447 = sbr.rel (%p445) target = $region64
        $region63: #{_lambda_.22} parent=55 // pred_region
          %s448 = smul.u32 4, %s22
          %p449 = scmp.lt.s32.totalorder %s448, 7
          %s450 = scalar_select %p449, %s448, 7
          %s451 = scalar_lea.vmem %s1, %s450
          %s452 = smul.u32 4, %s22
        $region64: #{_lambda_.22} parent=55 // pred_fallthru
          _
        // Predicated region
        $region65: #{_lambda_.22} parent=55 // pred_check
          %p453 = pneg %p94
        $region66: #{_lambda_.22} parent=55 // pred_check_branch
          %455 = sbr.rel (%p453) target = $region68
        $region67: #{_lambda_.22} parent=55 // pred_region
          %s456 = sand.u32 %s84, 1
          %s457 = sand.u32 %s84, 1
          %s458 = smul.addr %s457, 128
          %s459 = scalar_lea.vmem [#allocation2], %s458
          %s460 = smul.u32 4, %s22
          %s461 = smul.addr %s460, 8
          %s462 = scalar_lea.vmem %s2, %s461
          // Predicated region
          $region69: #{_lambda_.22} parent=67 // pred_check
            _
          $region70: #{_lambda_.22} parent=67 // pred_check_branch
            %464 = sbr.rel (0) target = $region72
          $region71: #{_lambda_.22} parent=67 // pred_region
            // Predicated region
            $region73: #{_lambda_.22} parent=71 // pred_check
              _
            $region74: #{_lambda_.22} parent=71 // pred_check_branch
              %466 = sbr.rel (0) target = $region76
            $region75: #{_lambda_.22} parent=71 // pred_region
              loop: start=0, step=1, limit=1
              $region77: #{_lambda_.22} parent=75 // loop_pre_header
                _
              $region78: #{_lambda_.22} parent=75 // loop_header
                %s468 = sphi 0, %s472
                %p469 = scmp.ge.s32.totalorder %s468, 1
                %s473 = sphi %s462, %s462
                %s474 = sphi %s459, %s459
              $region79: #{_lambda_.22} parent=75 // loop_header_branch
                %471 = sbr.rel (%p469) target = $region83
              $region80: #{_lambda_.22} parent=75 // loop_body
                %v475 = vld [vmem:[%s473] sm:$0xff]
                %476 = vst [vmem:[%s474] sm:$0xff] %v475
                %v477 = vld [vmem:[%s473 + $0x8] sm:$0xff]
                %478 = vst [vmem:[%s474 + $0x8] sm:$0xff] %v477
                %v479 = vld [vmem:[%s473 + $0x10] sm:$0xff]
                %480 = vst [vmem:[%s474 + $0x10] sm:$0xff] %v479
                %v481 = vld [vmem:[%s473 + $0x18] sm:$0xff]
                %482 = vst [vmem:[%s474 + $0x18] sm:$0xff] %v481
                %v483 = vld [vmem:[%s473 + $0x40] sm:$0xff]
                %484 = vst [vmem:[%s474 + $0x20] sm:$0xff] %v483
                %v485 = vld [vmem:[%s473 + $0x48] sm:$0xff]
                %486 = vst [vmem:[%s474 + $0x28] sm:$0xff] %v485
                %v487 = vld [vmem:[%s473 + $0x50] sm:$0xff]
                %488 = vst [vmem:[%s474 + $0x30] sm:$0xff] %v487
                %v489 = vld [vmem:[%s473 + $0x58] sm:$0xff]
                %490 = vst [vmem:[%s474 + $0x38] sm:$0xff] %v489
                %v491 = vld [vmem:[%s473 + $0x80] sm:$0xff]
                %492 = vst [vmem:[%s474 + $0x40] sm:$0xff] %v491
                %v493 = vld [vmem:[%s473 + $0x88] sm:$0xff]
                %494 = vst [vmem:[%s474 + $0x48] sm:$0xff] %v493
                %v495 = vld [vmem:[%s473 + $0x90] sm:$0xff]
                %496 = vst [vmem:[%s474 + $0x50] sm:$0xff] %v495
                %v497 = vld [vmem:[%s473 + $0x98] sm:$0xff]
                %498 = vst [vmem:[%s474 + $0x58] sm:$0xff] %v497
                %v499 = vld [vmem:[%s473 + $0xc0] sm:$0xff]
                %500 = vst [vmem:[%s474 + $0x60] sm:$0xff] %v499
                %v501 = vld [vmem:[%s473 + $0xc8] sm:$0xff]
                %502 = vst [vmem:[%s474 + $0x68] sm:$0xff] %v501
                %v503 = vld [vmem:[%s473 + $0xd0] sm:$0xff]
                %504 = vst [vmem:[%s474 + $0x70] sm:$0xff] %v503
                %v505 = vld [vmem:[%s473 + $0xd8] sm:$0xff]
                %506 = vst [vmem:[%s474 + $0x78] sm:$0xff] %v505
              $region81: #{_lambda_.22} parent=75 // loop_footer
                %s472 = sadd.s32 1, %s468
              $region82: #{_lambda_.22} parent=75 // loop_footer_branch
                %467 = sbr.rel target = $region78
              $region83: #{_lambda_.22} parent=75 // loop_exit
                _
            $region76: #{_lambda_.22} parent=71 // pred_fallthru
              _
            // Predicated region
            $region84: #{_lambda_.22} parent=71 // pred_check
              _
            $region85: #{_lambda_.22} parent=71 // pred_check_branch
              %508 = sbr.rel target = $region87
            $region86: #{_lambda_.22} parent=71 // pred_region
              _
            $region87: #{_lambda_.22} parent=71 // pred_fallthru
              _
          $region72: #{_lambda_.22} parent=67 // pred_fallthru
            _
          %509 = vnop
        $region68: #{_lambda_.22} parent=55 // pred_fallthru
          _
        // Predicated region
        $region88: #{_lambda_.22} parent=55 // pred_check
          %p510 = pneg %p120
        $region89: #{_lambda_.22} parent=55 // pred_check_branch
          %512 = sbr.rel (%p510) target = $region91
        $region90: #{_lambda_.22} parent=55 // pred_region
          %s513 = sand.u32 %s110, 1
          %s514 = sand.u32 %s110, 1
          %s515 = smul.addr %s514, 64
          %s516 = scalar_lea.vmem [#allocation3], %s515
          %s517 = smul.u32 4, %s22
          %s518 = smul.addr %s517, 8
          %s519 = scalar_lea.vmem %s3, %s518
          // Predicated region
          $region92: #{_lambda_.22} parent=90 // pred_check
            _
          $region93: #{_lambda_.22} parent=90 // pred_check_branch
            %521 = sbr.rel (0) target = $region95
          $region94: #{_lambda_.22} parent=90 // pred_region
            // Predicated region
            $region96: #{_lambda_.22} parent=94 // pred_check
              _
            $region97: #{_lambda_.22} parent=94 // pred_check_branch
              %523 = sbr.rel (0) target = $region99
            $region98: #{_lambda_.22} parent=94 // pred_region
              loop: start=0, step=1, limit=1
              $region100: #{_lambda_.22} parent=98 // loop_pre_header
                _
              $region101: #{_lambda_.22} parent=98 // loop_header
                %s525 = sphi 0, %s529
                %p526 = scmp.ge.s32.totalorder %s525, 1
                %s530 = sphi %s519, %s519
                %s531 = sphi %s516, %s516
              $region102: #{_lambda_.22} parent=98 // loop_header_branch
                %528 = sbr.rel (%p526) target = $region106
              $region103: #{_lambda_.22} parent=98 // loop_body
                %v532 = vld [vmem:[%s530] sm:$0xff]
                %533 = vst [vmem:[%s531] sm:$0xff] %v532
                %v534 = vld [vmem:[%s530 + $0x8] sm:$0xff]
                %535 = vst [vmem:[%s531 + $0x8] sm:$0xff] %v534
                %v536 = vld [vmem:[%s530 + $0x10] sm:$0xff]
                %537 = vst [vmem:[%s531 + $0x10] sm:$0xff] %v536
                %v538 = vld [vmem:[%s530 + $0x18] sm:$0xff]
                %539 = vst [vmem:[%s531 + $0x18] sm:$0xff] %v538
                %v540 = vld [vmem:[%s530 + $0x40] sm:$0xff]
                %541 = vst [vmem:[%s531 + $0x20] sm:$0xff] %v540
                %v542 = vld [vmem:[%s530 + $0x48] sm:$0xff]
                %543 = vst [vmem:[%s531 + $0x28] sm:$0xff] %v542
                %v544 = vld [vmem:[%s530 + $0x50] sm:$0xff]
                %545 = vst [vmem:[%s531 + $0x30] sm:$0xff] %v544
                %v546 = vld [vmem:[%s530 + $0x58] sm:$0xff]
                %547 = vst [vmem:[%s531 + $0x38] sm:$0xff] %v546
              $region104: #{_lambda_.22} parent=98 // loop_footer
                %s529 = sadd.s32 1, %s525
              $region105: #{_lambda_.22} parent=98 // loop_footer_branch
                %524 = sbr.rel target = $region101
              $region106: #{_lambda_.22} parent=98 // loop_exit
                _
            $region99: #{_lambda_.22} parent=94 // pred_fallthru
              _
            // Predicated region
            $region107: #{_lambda_.22} parent=94 // pred_check
              _
            $region108: #{_lambda_.22} parent=94 // pred_check_branch
              %549 = sbr.rel target = $region110
            $region109: #{_lambda_.22} parent=94 // pred_region
              _
            $region110: #{_lambda_.22} parent=94 // pred_fallthru
              _
          $region95: #{_lambda_.22} parent=90 // pred_fallthru
            _
          %550 = vnop
        $region91: #{_lambda_.22} parent=55 // pred_fallthru
          _
      $region56: #{_lambda_.22} parent=5 // pred_fallthru
        _
      %p551 = scmp.le.s32.totalorder 1, %s22
      %p552 = scmp.lt.s32.totalorder %s22, 3
      %p553 = pnand %p551, %p552
      %p554 = pneg %p553
      // Predicated region
      $region111: #{_lambda_.22} parent=5 // pred_check
        _
      $region112: #{_lambda_.22} parent=5 // pred_check_branch
        %556 = sbr.rel (%p553) target = $region114
      $region113: #{_lambda_.22} parent=5 // pred_region
        %s557 = ssub.s32 %s22, 1
        %s558 = sand.u32 %s87, 1
        %s559 = sand.u32 %s87, 1
        %s560 = smul.addr %s559, 128
        %s561 = scalar_lea.vmem [#allocation2], %s560
        // Predicated region
        $region115: #{_lambda_.22} parent=113 // pred_check
          %p562 = pneg %p100
        $region116: #{_lambda_.22} parent=113 // pred_check_branch
          %564 = sbr.rel (%p562) target = $region118
        $region117: #{_lambda_.22} parent=113 // pred_region
          _
        $region118: #{_lambda_.22} parent=113 // pred_fallthru
          _
        %s565 = sand.u32 %s113, 1
        %s566 = sand.u32 %s113, 1
        %s567 = smul.addr %s566, 64
        %s568 = scalar_lea.vmem [#allocation3], %s567
        // Predicated region
        $region119: #{_lambda_.22} parent=113 // pred_check
          %p569 = pneg %p126
        $region120: #{_lambda_.22} parent=113 // pred_check_branch
          %571 = sbr.rel (%p569) target = $region122
        $region121: #{_lambda_.22} parent=113 // pred_region
          _
        $region122: #{_lambda_.22} parent=113 // pred_fallthru
          _
        %s572 = smul.u32 4, %s27
        %p573 = scmp.lt.s32.totalorder %s572, 7
        %s574 = scalar_select %p573, %s572, 7
        %s575 = scalar_lea.vmem %s0, %s574
        %p576 = pneg %p48
        %p577 = pneg %p45
        %s578 = smul.u32 4, %s27
        %p579 = scmp.lt.s32.totalorder %s578, 7
        %s580 = scalar_select %p579, %s578, 7
        %s581 = scalar_lea.vmem %s1, %s580
        %p582 = pneg %p74
        %p583 = pneg %p71
        %s584 = sand.u32 %s87, 1
        %s585 = sand.u32 %s87, 1
        %s586 = smul.addr %s585, 128
        %s587 = scalar_lea.vmem [#allocation2], %s586
        %p588 = pneg %p100
        %p589 = pneg %p97
        %s590 = sand.u32 %s113, 1
        %s591 = sand.u32 %s113, 1
        %s592 = smul.addr %s591, 64
        %s593 = scalar_lea.vmem [#allocation3], %s592
        %p594 = pneg %p126
        %p595 = pneg %p123
        %p596 = pneg %p147
        %p597 = pneg %p144
        %p598 = pneg %p168
        %p599 = pneg %p165
        %p600 = pneg %p189
        %p601 = pneg %p186
        %p602 = pneg %p210
        %p603 = pneg %p207
        %p604 = pneg %p231
        %p605 = pneg %p228
        %p606 = pneg %p252
        %p607 = pneg %p249
        %p608 = pneg %p273
        %p609 = pneg %p270
        %p610 = pneg %p294
        %p611 = pneg %p291
        %p612 = pneg %p315
        %p613 = pneg %p312
        %p614 = pneg %p336
        %p615 = pneg %p333
        %p616 = pneg %p362
        %p617 = pneg %p359
        %s618 = smul.u32 4, %s27
        %p619 = scmp.lt.s32.totalorder %s618, 7
        %s620 = scalar_select %p619, %s618, 7
        %s621 = smul.addr %s620, 4
        %s622 = scalar_lea.vmem %s14, %s621
        %p623 = pneg %p388
        %p624 = pneg %p385
        %s625 = sand.u32 %s375, 1
        %s626 = sand.u32 %s375, 1
        %s627 = smul.addr %s626, 64
        %s628 = scalar_lea.vmem [#allocation4], %s627
        %s629 = smul.u32 4, %s27
        %p630 = scmp.lt.s32.totalorder %s629, 7
        %s631 = scalar_select %p630, %s629, 7
        %s632 = scalar_lea.vmem %s0, %s631
        %s633 = smul.u32 4, %s27
        %s634 = smul.u32 4, %s27
        %p635 = scmp.lt.s32.totalorder %s634, 7
        %s636 = scalar_select %p635, %s634, 7
        %s637 = scalar_lea.vmem %s1, %s636
        %s638 = smul.u32 4, %s27
        %s639 = smul.u32 4, %s27
        %s640 = smul.u32 4, %s27
        %s641 = smul.u32 4, %s27
        %p642 = scmp.lt.s32.totalorder %s641, 7
        %s643 = scalar_select %p642, %s641, 7
        %s644 = smul.addr %s643, 4
        %s645 = scalar_lea.vmem %s14, %s644
        %s646 = smul.u32 4, %s27
        %s647 = smul.u32 4, %s27
        %v648 = vld [vmem:[%s4] sm:$0xff]
        %v649 = vld [vmem:[%s4 + $0x8] sm:$0xff]
        %v650 = vld [vmem:[%s4 + $0x10] sm:$0xff]
        %v651 = vld [vmem:[%s4 + $0x18] sm:$0xff]
        %v652 = vld [vmem:[%s632] sm:$0xf]
        %654 = vset.pattern.permute.xlu0 0
        %655 = vperm.xlu0 %654, %v648
        %v656 = vpop.permute.xlu0 %655
        %659 = vset.pattern.permute.xlu0 0
        %660 = vperm.xlu0 %659, %v649
        %v661 = vpop.permute.xlu0 %660
        %664 = vset.pattern.permute.xlu0 0
        %665 = vperm.xlu0 %664, %v650
        %v666 = vpop.permute.xlu0 %665
        %669 = vset.pattern.permute.xlu0 0
        %670 = vperm.xlu0 %669, %v651
        %v671 = vpop.permute.xlu0 %670
        %v674 = vperm.slane %v652, 0
        %v675 = vperm.slane %v652, 1
        %v676 = vperm.slane %v652, 2
        %v677 = vperm.slane %v652, 3
        %v682 = vmul.f32 %v656, %v674
        %v683 = vmul.f32 %v656, %v675
        %v684 = vmul.f32 %v656, %v676
        %v685 = vmul.f32 %v656, %v677
        %v686 = vmul.f32 %v661, %v674
        %v687 = vmul.f32 %v661, %v675
        %v688 = vmul.f32 %v661, %v676
        %v689 = vmul.f32 %v661, %v677
        %v690 = vmul.f32 %v666, %v674
        %v691 = vmul.f32 %v666, %v675
        %v692 = vmul.f32 %v666, %v676
        %v693 = vmul.f32 %v666, %v677
        %v694 = vmul.f32 %v671, %v674
        %v695 = vmul.f32 %v671, %v675
        %v696 = vmul.f32 %v671, %v676
        %v697 = vmul.f32 %v671, %v677
        %v698 = vld [vmem:[%s5] sm:$0xff]
        %v699 = vld [vmem:[%s5 + $0x8] sm:$0xff]
        %v700 = vld [vmem:[%s5 + $0x10] sm:$0xff]
        %v701 = vld [vmem:[%s5 + $0x18] sm:$0xff]
        %v702 = vld [vmem:[%s637] sm:$0xf]
        %704 = vset.pattern.permute.xlu0 0
        %705 = vperm.xlu0 %704, %v698
        %v706 = vpop.permute.xlu0 %705
        %709 = vset.pattern.permute.xlu0 0
        %710 = vperm.xlu0 %709, %v699
        %v711 = vpop.permute.xlu0 %710
        %714 = vset.pattern.permute.xlu0 0
        %715 = vperm.xlu0 %714, %v700
        %v716 = vpop.permute.xlu0 %715
        %719 = vset.pattern.permute.xlu0 0
        %720 = vperm.xlu0 %719, %v701
        %v721 = vpop.permute.xlu0 %720
        %v724 = vperm.slane %v702, 0
        %v725 = vperm.slane %v702, 1
        %v726 = vperm.slane %v702, 2
        %v727 = vperm.slane %v702, 3
        %v732 = vmul.f32 %v706, %v724
        %v733 = vmul.f32 %v706, %v725
        %v734 = vmul.f32 %v706, %v726
        %v735 = vmul.f32 %v706, %v727
        %v736 = vmul.f32 %v711, %v724
        %v737 = vmul.f32 %v711, %v725
        %v738 = vmul.f32 %v711, %v726
        %v739 = vmul.f32 %v711, %v727
        %v740 = vmul.f32 %v716, %v724
        %v741 = vmul.f32 %v716, %v725
        %v742 = vmul.f32 %v716, %v726
        %v743 = vmul.f32 %v716, %v727
        %v744 = vmul.f32 %v721, %v724
        %v745 = vmul.f32 %v721, %v725
        %v746 = vmul.f32 %v721, %v726
        %v747 = vmul.f32 %v721, %v727
        %v748 = vadd.f32 %v682, %v732
        %v749 = vadd.f32 %v683, %v733
        %v750 = vadd.f32 %v684, %v734
        %v751 = vadd.f32 %v685, %v735
        %v752 = vadd.f32 %v686, %v736
        %v753 = vadd.f32 %v687, %v737
        %v754 = vadd.f32 %v688, %v738
        %v755 = vadd.f32 %v689, %v739
        %v756 = vadd.f32 %v690, %v740
        %v757 = vadd.f32 %v691, %v741
        %v758 = vadd.f32 %v692, %v742
        %v759 = vadd.f32 %v693, %v743
        %v760 = vadd.f32 %v694, %v744
        %v761 = vadd.f32 %v695, %v745
        %v762 = vadd.f32 %v696, %v746
        %v763 = vadd.f32 %v697, %v747
        %v764 = vld [vmem:[%s6] sm:$0xff]
        %v765 = vld [vmem:[%s6 + $0x8] sm:$0xff]
        %v766 = vld [vmem:[%s6 + $0x10] sm:$0xff]
        %v767 = vld [vmem:[%s6 + $0x18] sm:$0xff]
        %v768 = vld [vmem:[%s561] sm:$0xff]
        %v769 = vld [vmem:[%s561 + $0x8] sm:$0xff]
        %v770 = vld [vmem:[%s561 + $0x10] sm:$0xff]
        %v771 = vld [vmem:[%s561 + $0x18] sm:$0xff]
        %v772 = vld [vmem:[%s561 + $0x20] sm:$0xff]
        %v773 = vld [vmem:[%s561 + $0x28] sm:$0xff]
        %v774 = vld [vmem:[%s561 + $0x30] sm:$0xff]
        %v775 = vld [vmem:[%s561 + $0x38] sm:$0xff]
        %v776 = vld [vmem:[%s561 + $0x40] sm:$0xff]
        %v777 = vld [vmem:[%s561 + $0x48] sm:$0xff]
        %v778 = vld [vmem:[%s561 + $0x50] sm:$0xff]
        %v779 = vld [vmem:[%s561 + $0x58] sm:$0xff]
        %v780 = vld [vmem:[%s561 + $0x60] sm:$0xff]
        %v781 = vld [vmem:[%s561 + $0x68] sm:$0xff]
        %v782 = vld [vmem:[%s561 + $0x70] sm:$0xff]
        %v783 = vld [vmem:[%s561 + $0x78] sm:$0xff]
        %vm784 = vcmask 261120
        %v786 = vsel %vm784, %v764, 0
        %v789 = vsel %vm784, %v765, 0
        %v792 = vsel %vm784, %v766, 0
        %v795 = vsel %vm784, %v767, 0
        %797 = vmatpush.msra.mxu0 0.0
        %798 = vmatpush.msra.mxu0 0.0
        %799 = vmatpush.msra.mxu0 0.0
        %800 = vmatpush.msra.mxu0 0.0
        %801 = vmatpush.msra.mxu0 0.0
        %802 = vmatpush.msra.mxu0 0.0
        %803 = vmatpush.msra.mxu0 0.0
        %804 = vmatpush.msra.mxu0 0.0
        %805 = vmatpush.msra.mxu0 0.0
        %806 = vmatpush.msra.mxu0 0.0
        %807 = vmatpush.msra.mxu0 0.0
        %808 = vmatpush.msra.mxu0 0.0
        %809 = vmatpush.msra.mxu0 %v780
        %810 = vmatpush.msra.mxu0 %v776
        %811 = vmatpush.msra.mxu0 %v772
        %812 = vmatpush.msra.mxu0 %v768
        %813 = vmatmul.f32.gmra.mxu0 %v786
        %v814 = vpop.f32.mrf.mxu0
        %v815 = vadd.f32 0.0, %v814
        %816 = vmatmul.f32.gmra.mxu0 %v789
        %v817 = vpop.f32.mrf.mxu0
        %v818 = vadd.f32 0.0, %v817
        %819 = vmatmul.f32.gmra.mxu0 %v792
        %v820 = vpop.f32.mrf.mxu0
        %v821 = vadd.f32 0.0, %v820
        %822 = vmatmul.f32.gmra.mxu0 %v795
        %v823 = vpop.f32.mrf.mxu0
        %v824 = vadd.f32 0.0, %v823
        %825 = vdwg.mxu0
        %826 = vmatpush.msra.mxu0 0.0
        %827 = vmatpush.msra.mxu0 0.0
        %828 = vmatpush.msra.mxu0 0.0
        %829 = vmatpush.msra.mxu0 0.0
        %830 = vmatpush.msra.mxu0 0.0
        %831 = vmatpush.msra.mxu0 0.0
        %832 = vmatpush.msra.mxu0 0.0
        %833 = vmatpush.msra.mxu0 0.0
        %834 = vmatpush.msra.mxu0 0.0
        %835 = vmatpush.msra.mxu0 0.0
        %836 = vmatpush.msra.mxu0 0.0
        %837 = vmatpush.msra.mxu0 0.0
        %838 = vmatpush.msra.mxu0 %v781
        %839 = vmatpush.msra.mxu0 %v777
        %840 = vmatpush.msra.mxu0 %v773
        %841 = vmatpush.msra.mxu0 %v769
        %842 = vmatmul.f32.gmra.mxu0 %v786
        %v843 = vpop.f32.mrf.mxu0
        %v844 = vadd.f32 0.0, %v843
        %845 = vmatmul.f32.gmra.mxu0 %v789
        %v846 = vpop.f32.mrf.mxu0
        %v847 = vadd.f32 0.0, %v846
        %848 = vmatmul.f32.gmra.mxu0 %v792
        %v849 = vpop.f32.mrf.mxu0
        %v850 = vadd.f32 0.0, %v849
        %851 = vmatmul.f32.gmra.mxu0 %v795
        %v852 = vpop.f32.mrf.mxu0
        %v853 = vadd.f32 0.0, %v852
        %854 = vdwg.mxu0
        %855 = vmatpush.msra.mxu0 0.0
        %856 = vmatpush.msra.mxu0 0.0
        %857 = vmatpush.msra.mxu0 0.0
        %858 = vmatpush.msra.mxu0 0.0
        %859 = vmatpush.msra.mxu0 0.0
        %860 = vmatpush.msra.mxu0 0.0
        %861 = vmatpush.msra.mxu0 0.0
        %862 = vmatpush.msra.mxu0 0.0
        %863 = vmatpush.msra.mxu0 0.0
        %864 = vmatpush.msra.mxu0 0.0
        %865 = vmatpush.msra.mxu0 0.0
        %866 = vmatpush.msra.mxu0 0.0
        %867 = vmatpush.msra.mxu0 %v782
        %868 = vmatpush.msra.mxu0 %v778
        %869 = vmatpush.msra.mxu0 %v774
        %870 = vmatpush.msra.mxu0 %v770
        %871 = vmatmul.f32.gmra.mxu0 %v786
        %v872 = vpop.f32.mrf.mxu0
        %v873 = vadd.f32 0.0, %v872
        %874 = vmatmul.f32.gmra.mxu0 %v789
        %v875 = vpop.f32.mrf.mxu0
        %v876 = vadd.f32 0.0, %v875
        %877 = vmatmul.f32.gmra.mxu0 %v792
        %v878 = vpop.f32.mrf.mxu0
        %v879 = vadd.f32 0.0, %v878
        %880 = vmatmul.f32.gmra.mxu0 %v795
        %v881 = vpop.f32.mrf.mxu0
        %v882 = vadd.f32 0.0, %v881
        %883 = vdwg.mxu0
        %884 = vmatpush.msra.mxu0 0.0
        %885 = vmatpush.msra.mxu0 0.0
        %886 = vmatpush.msra.mxu0 0.0
        %887 = vmatpush.msra.mxu0 0.0
        %888 = vmatpush.msra.mxu0 0.0
        %889 = vmatpush.msra.mxu0 0.0
        %890 = vmatpush.msra.mxu0 0.0
        %891 = vmatpush.msra.mxu0 0.0
        %892 = vmatpush.msra.mxu0 0.0
        %893 = vmatpush.msra.mxu0 0.0
        %894 = vmatpush.msra.mxu0 0.0
        %895 = vmatpush.msra.mxu0 0.0
        %896 = vmatpush.msra.mxu0 %v783
        %897 = vmatpush.msra.mxu0 %v779
        %898 = vmatpush.msra.mxu0 %v775
        %899 = vmatpush.msra.mxu0 %v771
        %900 = vmatmul.f32.gmra.mxu0 %v786
        %v901 = vpop.f32.mrf.mxu0
        %v902 = vadd.f32 0.0, %v901
        %903 = vmatmul.f32.gmra.mxu0 %v789
        %v904 = vpop.f32.mrf.mxu0
        %v905 = vadd.f32 0.0, %v904
        %906 = vmatmul.f32.gmra.mxu0 %v792
        %v907 = vpop.f32.mrf.mxu0
        %v908 = vadd.f32 0.0, %v907
        %909 = vmatmul.f32.gmra.mxu0 %v795
        %v910 = vpop.f32.mrf.mxu0
        %v911 = vadd.f32 0.0, %v910
        %912 = vdwg.mxu0
        %v913 = vadd.f32 %v748, %v815
        %v914 = vadd.f32 %v749, %v844
        %v915 = vadd.f32 %v750, %v873
        %v916 = vadd.f32 %v751, %v902
        %v917 = vadd.f32 %v752, %v818
        %v918 = vadd.f32 %v753, %v847
        %v919 = vadd.f32 %v754, %v876
        %v920 = vadd.f32 %v755, %v905
        %v921 = vadd.f32 %v756, %v821
        %v922 = vadd.f32 %v757, %v850
        %v923 = vadd.f32 %v758, %v879
        %v924 = vadd.f32 %v759, %v908
        %v925 = vadd.f32 %v760, %v824
        %v926 = vadd.f32 %v761, %v853
        %v927 = vadd.f32 %v762, %v882
        %v928 = vadd.f32 %v763, %v911
        %v929 = vld [vmem:[%s7] sm:$0xff]
        %v930 = vld [vmem:[%s7 + $0x8] sm:$0xff]
        %v931 = vld [vmem:[%s7 + $0x10] sm:$0xff]
        %v932 = vld [vmem:[%s7 + $0x18] sm:$0xff]
        %v933 = vld [vmem:[%s568] sm:$0xff]
        %v934 = vld [vmem:[%s568 + $0x8] sm:$0xff]
        %v935 = vld [vmem:[%s568 + $0x10] sm:$0xff]
        %v936 = vld [vmem:[%s568 + $0x18] sm:$0xff]
        %v937 = vld [vmem:[%s568 + $0x20] sm:$0xff]
        %v938 = vld [vmem:[%s568 + $0x28] sm:$0xff]
        %v939 = vld [vmem:[%s568 + $0x30] sm:$0xff]
        %v940 = vld [vmem:[%s568 + $0x38] sm:$0xff]
        %vm941 = vcmask 130048
        %v943 = vsel %vm941, %v929, 0
        %v946 = vsel %vm941, %v930, 0
        %v949 = vsel %vm941, %v931, 0
        %v952 = vsel %vm941, %v932, 0
        %954 = vmatpush.msra.mxu0 0.0
        %955 = vmatpush.msra.mxu0 0.0
        %956 = vmatpush.msra.mxu0 0.0
        %957 = vmatpush.msra.mxu0 0.0
        %958 = vmatpush.msra.mxu0 0.0
        %959 = vmatpush.msra.mxu0 0.0
        %960 = vmatpush.msra.mxu0 0.0
        %961 = vmatpush.msra.mxu0 0.0
        %962 = vmatpush.msra.mxu0 0.0
        %963 = vmatpush.msra.mxu0 0.0
        %964 = vmatpush.msra.mxu0 0.0
        %965 = vmatpush.msra.mxu0 0.0
        %966 = vmatpush.msra.mxu0 0.0
        %967 = vmatpush.msra.mxu0 0.0
        %968 = vmatpush.msra.mxu0 %v937
        %969 = vmatpush.msra.mxu0 %v933
        %970 = vmatmul.f32.gmra.mxu0 %v943
        %v971 = vpop.f32.mrf.mxu0
        %v972 = vadd.f32 0.0, %v971
        %973 = vmatmul.f32.gmra.mxu0 %v946
        %v974 = vpop.f32.mrf.mxu0
        %v975 = vadd.f32 0.0, %v974
        %976 = vmatmul.f32.gmra.mxu0 %v949
        %v977 = vpop.f32.mrf.mxu0
        %v978 = vadd.f32 0.0, %v977
        %979 = vmatmul.f32.gmra.mxu0 %v952
        %v980 = vpop.f32.mrf.mxu0
        %v981 = vadd.f32 0.0, %v980
        %982 = vdwg.mxu0
        %983 = vmatpush.msra.mxu0 0.0
        %984 = vmatpush.msra.mxu0 0.0
        %985 = vmatpush.msra.mxu0 0.0
        %986 = vmatpush.msra.mxu0 0.0
        %987 = vmatpush.msra.mxu0 0.0
        %988 = vmatpush.msra.mxu0 0.0
        %989 = vmatpush.msra.mxu0 0.0
        %990 = vmatpush.msra.mxu0 0.0
        %991 = vmatpush.msra.mxu0 0.0
        %992 = vmatpush.msra.mxu0 0.0
        %993 = vmatpush.msra.mxu0 0.0
        %994 = vmatpush.msra.mxu0 0.0
        %995 = vmatpush.msra.mxu0 0.0
        %996 = vmatpush.msra.mxu0 0.0
        %997 = vmatpush.msra.mxu0 %v938
        %998 = vmatpush.msra.mxu0 %v934
        %999 = vmatmul.f32.gmra.mxu0 %v943
        %v1000 = vpop.f32.mrf.mxu0
        %v1001 = vadd.f32 0.0, %v1000
        %1002 = vmatmul.f32.gmra.mxu0 %v946
        %v1003 = vpop.f32.mrf.mxu0
        %v1004 = vadd.f32 0.0, %v1003
        %1005 = vmatmul.f32.gmra.mxu0 %v949
        %v1006 = vpop.f32.mrf.mxu0
        %v1007 = vadd.f32 0.0, %v1006
        %1008 = vmatmul.f32.gmra.mxu0 %v952
        %v1009 = vpop.f32.mrf.mxu0
        %v1010 = vadd.f32 0.0, %v1009
        %1011 = vdwg.mxu0
        %1012 = vmatpush.msra.mxu0 0.0
        %1013 = vmatpush.msra.mxu0 0.0
        %1014 = vmatpush.msra.mxu0 0.0
        %1015 = vmatpush.msra.mxu0 0.0
        %1016 = vmatpush.msra.mxu0 0.0
        %1017 = vmatpush.msra.mxu0 0.0
        %1018 = vmatpush.msra.mxu0 0.0
        %1019 = vmatpush.msra.mxu0 0.0
        %1020 = vmatpush.msra.mxu0 0.0
        %1021 = vmatpush.msra.mxu0 0.0
        %1022 = vmatpush.msra.mxu0 0.0
        %1023 = vmatpush.msra.mxu0 0.0
        %1024 = vmatpush.msra.mxu0 0.0
        %1025 = vmatpush.msra.mxu0 0.0
        %1026 = vmatpush.msra.mxu0 %v939
        %1027 = vmatpush.msra.mxu0 %v935
        %1028 = vmatmul.f32.gmra.mxu0 %v943
        %v1029 = vpop.f32.mrf.mxu0
        %v1030 = vadd.f32 0.0, %v1029
        %1031 = vmatmul.f32.gmra.mxu0 %v946
        %v1032 = vpop.f32.mrf.mxu0
        %v1033 = vadd.f32 0.0, %v1032
        %1034 = vmatmul.f32.gmra.mxu0 %v949
        %v1035 = vpop.f32.mrf.mxu0
        %v1036 = vadd.f32 0.0, %v1035
        %1037 = vmatmul.f32.gmra.mxu0 %v952
        %v1038 = vpop.f32.mrf.mxu0
        %v1039 = vadd.f32 0.0, %v1038
        %1040 = vdwg.mxu0
        %1041 = vmatpush.msra.mxu0 0.0
        %1042 = vmatpush.msra.mxu0 0.0
        %1043 = vmatpush.msra.mxu0 0.0
        %1044 = vmatpush.msra.mxu0 0.0
        %1045 = vmatpush.msra.mxu0 0.0
        %1046 = vmatpush.msra.mxu0 0.0
        %1047 = vmatpush.msra.mxu0 0.0
        %1048 = vmatpush.msra.mxu0 0.0
        %1049 = vmatpush.msra.mxu0 0.0
        %1050 = vmatpush.msra.mxu0 0.0
        %1051 = vmatpush.msra.mxu0 0.0
        %1052 = vmatpush.msra.mxu0 0.0
        %1053 = vmatpush.msra.mxu0 0.0
        %1054 = vmatpush.msra.mxu0 0.0
        %1055 = vmatpush.msra.mxu0 %v940
        %1056 = vmatpush.msra.mxu0 %v936
        %1057 = vmatmul.f32.gmra.mxu0 %v943
        %v1058 = vpop.f32.mrf.mxu0
        %v1059 = vadd.f32 0.0, %v1058
        %1060 = vmatmul.f32.gmra.mxu0 %v946
        %v1061 = vpop.f32.mrf.mxu0
        %v1062 = vadd.f32 0.0, %v1061
        %1063 = vmatmul.f32.gmra.mxu0 %v949
        %v1064 = vpop.f32.mrf.mxu0
        %v1065 = vadd.f32 0.0, %v1064
        %1066 = vmatmul.f32.gmra.mxu0 %v952
        %v1067 = vpop.f32.mrf.mxu0
        %v1068 = vadd.f32 0.0, %v1067
        %1069 = vdwg.mxu0
        %v1070 = vadd.f32 %v913, %v972
        %v1071 = vadd.f32 %v914, %v1001
        %v1072 = vadd.f32 %v915, %v1030
        %v1073 = vadd.f32 %v916, %v1059
        %v1074 = vadd.f32 %v917, %v975
        %v1075 = vadd.f32 %v918, %v1004
        %v1076 = vadd.f32 %v919, %v1033
        %v1077 = vadd.f32 %v920, %v1062
        %v1078 = vadd.f32 %v921, %v978
        %v1079 = vadd.f32 %v922, %v1007
        %v1080 = vadd.f32 %v923, %v1036
        %v1081 = vadd.f32 %v924, %v1065
        %v1082 = vadd.f32 %v925, %v981
        %v1083 = vadd.f32 %v926, %v1010
        %v1084 = vadd.f32 %v927, %v1039
        %v1085 = vadd.f32 %v928, %v1068
        %v1086 = vld [vmem:[%s8] sm:$0xff]
        %v1087 = vld [vmem:[%s8 + $0x8] sm:$0xff]
        %v1088 = vld [vmem:[%s8 + $0x10] sm:$0xff]
        %v1089 = vld [vmem:[%s8 + $0x18] sm:$0xff]
        %1091 = vset.pattern.permute.xlu0 0
        %1092 = vperm.xlu0 %1091, %v1086
        %v1093 = vpop.permute.xlu0 %1092
        %1096 = vset.pattern.permute.xlu0 0
        %1097 = vperm.xlu0 %1096, %v1087
        %v1098 = vpop.permute.xlu0 %1097
        %1101 = vset.pattern.permute.xlu0 0
        %1102 = vperm.xlu0 %1101, %v1088
        %v1103 = vpop.permute.xlu0 %1102
        %1106 = vset.pattern.permute.xlu0 0
        %1107 = vperm.xlu0 %1106, %v1089
        %v1108 = vpop.permute.xlu0 %1107
        %v1110 = vadd.f32 %v1070, %v1093
        %v1111 = vadd.f32 %v1071, %v1093
        %v1112 = vadd.f32 %v1072, %v1093
        %v1113 = vadd.f32 %v1073, %v1093
        %v1114 = vadd.f32 %v1074, %v1098
        %v1115 = vadd.f32 %v1075, %v1098
        %v1116 = vadd.f32 %v1076, %v1098
        %v1117 = vadd.f32 %v1077, %v1098
        %v1118 = vadd.f32 %v1078, %v1103
        %v1119 = vadd.f32 %v1079, %v1103
        %v1120 = vadd.f32 %v1080, %v1103
        %v1121 = vadd.f32 %v1081, %v1103
        %v1122 = vadd.f32 %v1082, %v1108
        %v1123 = vadd.f32 %v1083, %v1108
        %v1124 = vadd.f32 %v1084, %v1108
        %v1125 = vadd.f32 %v1085, %v1108
        %v1126 = vmax.f32 %v1110, 0.0
        %v1127 = vmax.f32 %v1111, 0.0
        %v1128 = vmax.f32 %v1112, 0.0
        %v1129 = vmax.f32 %v1113, 0.0
        %v1130 = vmax.f32 %v1114, 0.0
        %v1131 = vmax.f32 %v1115, 0.0
        %v1132 = vmax.f32 %v1116, 0.0
        %v1133 = vmax.f32 %v1117, 0.0
        %v1134 = vmax.f32 %v1118, 0.0
        %v1135 = vmax.f32 %v1119, 0.0
        %v1136 = vmax.f32 %v1120, 0.0
        %v1137 = vmax.f32 %v1121, 0.0
        %v1138 = vmax.f32 %v1122, 0.0
        %v1139 = vmax.f32 %v1123, 0.0
        %v1140 = vmax.f32 %v1124, 0.0
        %v1141 = vmax.f32 %v1125, 0.0
        %v1142 = vld [vmem:[%s9] sm:$0xff]
        %v1143 = vld [vmem:[%s9 + $0x8] sm:$0xff]
        %v1144 = vld [vmem:[%s10] sm:$0xff]
        %v1145 = vld [vmem:[%s10 + $0x8] sm:$0xff]
        %v1147 = vsel %vm941, %v1144, 0
        %v1150 = vsel %vm941, %v1145, 0
        %1152 = vmatpush.msra.mxu0 0.0
        %1153 = vmatpush.msra.mxu0 0.0
        %1154 = vmatpush.msra.mxu0 0.0
        %1155 = vmatpush.msra.mxu0 0.0
        %1156 = vmatpush.msra.mxu0 0.0
        %1157 = vmatpush.msra.mxu0 0.0
        %1158 = vmatpush.msra.mxu0 0.0
        %1159 = vmatpush.msra.mxu0 0.0
        %1160 = vmatpush.msra.mxu0 0.0
        %1161 = vmatpush.msra.mxu0 0.0
        %1162 = vmatpush.msra.mxu0 0.0
        %1163 = vmatpush.msra.mxu0 0.0
        %1164 = vmatpush.msra.mxu0 0.0
        %1165 = vmatpush.msra.mxu0 0.0
        %1166 = vmatpush.msra.mxu0 %v937
        %1167 = vmatpush.msra.mxu0 %v933
        %1168 = vmatmul.f32.gmra.mxu0 %v1147
        %v1169 = vpop.f32.mrf.mxu0
        %v1170 = vadd.f32 0.0, %v1169
        %1171 = vmatmul.f32.gmra.mxu0 %v1150
        %v1172 = vpop.f32.mrf.mxu0
        %v1173 = vadd.f32 0.0, %v1172
        %1174 = vdwg.mxu0
        %1175 = vmatpush.msra.mxu0 0.0
        %1176 = vmatpush.msra.mxu0 0.0
        %1177 = vmatpush.msra.mxu0 0.0
        %1178 = vmatpush.msra.mxu0 0.0
        %1179 = vmatpush.msra.mxu0 0.0
        %1180 = vmatpush.msra.mxu0 0.0
        %1181 = vmatpush.msra.mxu0 0.0
        %1182 = vmatpush.msra.mxu0 0.0
        %1183 = vmatpush.msra.mxu0 0.0
        %1184 = vmatpush.msra.mxu0 0.0
        %1185 = vmatpush.msra.mxu0 0.0
        %1186 = vmatpush.msra.mxu0 0.0
        %1187 = vmatpush.msra.mxu0 0.0
        %1188 = vmatpush.msra.mxu0 0.0
        %1189 = vmatpush.msra.mxu0 %v938
        %1190 = vmatpush.msra.mxu0 %v934
        %1191 = vmatmul.f32.gmra.mxu0 %v1147
        %v1192 = vpop.f32.mrf.mxu0
        %v1193 = vadd.f32 0.0, %v1192
        %1194 = vmatmul.f32.gmra.mxu0 %v1150
        %v1195 = vpop.f32.mrf.mxu0
        %v1196 = vadd.f32 0.0, %v1195
        %1197 = vdwg.mxu0
        %1198 = vmatpush.msra.mxu0 0.0
        %1199 = vmatpush.msra.mxu0 0.0
        %1200 = vmatpush.msra.mxu0 0.0
        %1201 = vmatpush.msra.mxu0 0.0
        %1202 = vmatpush.msra.mxu0 0.0
        %1203 = vmatpush.msra.mxu0 0.0
        %1204 = vmatpush.msra.mxu0 0.0
        %1205 = vmatpush.msra.mxu0 0.0
        %1206 = vmatpush.msra.mxu0 0.0
        %1207 = vmatpush.msra.mxu0 0.0
        %1208 = vmatpush.msra.mxu0 0.0
        %1209 = vmatpush.msra.mxu0 0.0
        %1210 = vmatpush.msra.mxu0 0.0
        %1211 = vmatpush.msra.mxu0 0.0
        %1212 = vmatpush.msra.mxu0 %v939
        %1213 = vmatpush.msra.mxu0 %v935
        %1214 = vmatmul.f32.gmra.mxu0 %v1147
        %v1215 = vpop.f32.mrf.mxu0
        %v1216 = vadd.f32 0.0, %v1215
        %1217 = vmatmul.f32.gmra.mxu0 %v1150
        %v1218 = vpop.f32.mrf.mxu0
        %v1219 = vadd.f32 0.0, %v1218
        %1220 = vdwg.mxu0
        %1221 = vmatpush.msra.mxu0 0.0
        %1222 = vmatpush.msra.mxu0 0.0
        %1223 = vmatpush.msra.mxu0 0.0
        %1224 = vmatpush.msra.mxu0 0.0
        %1225 = vmatpush.msra.mxu0 0.0
        %1226 = vmatpush.msra.mxu0 0.0
        %1227 = vmatpush.msra.mxu0 0.0
        %1228 = vmatpush.msra.mxu0 0.0
        %1229 = vmatpush.msra.mxu0 0.0
        %1230 = vmatpush.msra.mxu0 0.0
        %1231 = vmatpush.msra.mxu0 0.0
        %1232 = vmatpush.msra.mxu0 0.0
        %1233 = vmatpush.msra.mxu0 0.0
        %1234 = vmatpush.msra.mxu0 0.0
        %1235 = vmatpush.msra.mxu0 %v940
        %1236 = vmatpush.msra.mxu0 %v936
        %1237 = vmatmul.f32.gmra.mxu0 %v1147
        %v1238 = vpop.f32.mrf.mxu0
        %v1239 = vadd.f32 0.0, %v1238
        %1240 = vmatmul.f32.gmra.mxu0 %v1150
        %v1241 = vpop.f32.mrf.mxu0
        %v1242 = vadd.f32 0.0, %v1241
        %1243 = vdwg.mxu0
        %v1245 = vsel %vm784, %v1142, 0
        %v1248 = vsel %vm784, %v1143, 0
        %1250 = vmatpush.msra.mxu0 0.0
        %1251 = vmatpush.msra.mxu0 0.0
        %1252 = vmatpush.msra.mxu0 0.0
        %1253 = vmatpush.msra.mxu0 0.0
        %1254 = vmatpush.msra.mxu0 0.0
        %1255 = vmatpush.msra.mxu0 0.0
        %1256 = vmatpush.msra.mxu0 0.0
        %1257 = vmatpush.msra.mxu0 0.0
        %1258 = vmatpush.msra.mxu0 0.0
        %1259 = vmatpush.msra.mxu0 0.0
        %1260 = vmatpush.msra.mxu0 0.0
        %1261 = vmatpush.msra.mxu0 0.0
        %1262 = vmatpush.msra.mxu0 %v1138
        %1263 = vmatpush.msra.mxu0 %v1134
        %1264 = vmatpush.msra.mxu0 %v1130
        %1265 = vmatpush.msra.mxu0 %v1126
        %1266 = vmatmul.f32.gmra.mxu0 %v1245
        %v1267 = vpop.f32.mrf.mxu0
        %v1268 = vadd.f32 %v1170, %v1267
        %1269 = vmatmul.f32.gmra.mxu0 %v1248
        %v1270 = vpop.f32.mrf.mxu0
        %v1271 = vadd.f32 %v1173, %v1270
        %1272 = vdwg.mxu0
        %1273 = vmatpush.msra.mxu0 0.0
        %1274 = vmatpush.msra.mxu0 0.0
        %1275 = vmatpush.msra.mxu0 0.0
        %1276 = vmatpush.msra.mxu0 0.0
        %1277 = vmatpush.msra.mxu0 0.0
        %1278 = vmatpush.msra.mxu0 0.0
        %1279 = vmatpush.msra.mxu0 0.0
        %1280 = vmatpush.msra.mxu0 0.0
        %1281 = vmatpush.msra.mxu0 0.0
        %1282 = vmatpush.msra.mxu0 0.0
        %1283 = vmatpush.msra.mxu0 0.0
        %1284 = vmatpush.msra.mxu0 0.0
        %1285 = vmatpush.msra.mxu0 %v1139
        %1286 = vmatpush.msra.mxu0 %v1135
        %1287 = vmatpush.msra.mxu0 %v1131
        %1288 = vmatpush.msra.mxu0 %v1127
        %1289 = vmatmul.f32.gmra.mxu0 %v1245
        %v1290 = vpop.f32.mrf.mxu0
        %v1291 = vadd.f32 %v1193, %v1290
        %1292 = vmatmul.f32.gmra.mxu0 %v1248
        %v1293 = vpop.f32.mrf.mxu0
        %v1294 = vadd.f32 %v1196, %v1293
        %1295 = vdwg.mxu0
        %1296 = vmatpush.msra.mxu0 0.0
        %1297 = vmatpush.msra.mxu0 0.0
        %1298 = vmatpush.msra.mxu0 0.0
        %1299 = vmatpush.msra.mxu0 0.0
        %1300 = vmatpush.msra.mxu0 0.0
        %1301 = vmatpush.msra.mxu0 0.0
        %1302 = vmatpush.msra.mxu0 0.0
        %1303 = vmatpush.msra.mxu0 0.0
        %1304 = vmatpush.msra.mxu0 0.0
        %1305 = vmatpush.msra.mxu0 0.0
        %1306 = vmatpush.msra.mxu0 0.0
        %1307 = vmatpush.msra.mxu0 0.0
        %1308 = vmatpush.msra.mxu0 %v1140
        %1309 = vmatpush.msra.mxu0 %v1136
        %1310 = vmatpush.msra.mxu0 %v1132
        %1311 = vmatpush.msra.mxu0 %v1128
        %1312 = vmatmul.f32.gmra.mxu0 %v1245
        %v1313 = vpop.f32.mrf.mxu0
        %v1314 = vadd.f32 %v1216, %v1313
        %1315 = vmatmul.f32.gmra.mxu0 %v1248
        %v1316 = vpop.f32.mrf.mxu0
        %v1317 = vadd.f32 %v1219, %v1316
        %1318 = vdwg.mxu0
        %1319 = vmatpush.msra.mxu0 0.0
        %1320 = vmatpush.msra.mxu0 0.0
        %1321 = vmatpush.msra.mxu0 0.0
        %1322 = vmatpush.msra.mxu0 0.0
        %1323 = vmatpush.msra.mxu0 0.0
        %1324 = vmatpush.msra.mxu0 0.0
        %1325 = vmatpush.msra.mxu0 0.0
        %1326 = vmatpush.msra.mxu0 0.0
        %1327 = vmatpush.msra.mxu0 0.0
        %1328 = vmatpush.msra.mxu0 0.0
        %1329 = vmatpush.msra.mxu0 0.0
        %1330 = vmatpush.msra.mxu0 0.0
        %1331 = vmatpush.msra.mxu0 %v1141
        %1332 = vmatpush.msra.mxu0 %v1137
        %1333 = vmatpush.msra.mxu0 %v1133
        %1334 = vmatpush.msra.mxu0 %v1129
        %1335 = vmatmul.f32.gmra.mxu0 %v1245
        %v1336 = vpop.f32.mrf.mxu0
        %v1337 = vadd.f32 %v1239, %v1336
        %1338 = vmatmul.f32.gmra.mxu0 %v1248
        %v1339 = vpop.f32.mrf.mxu0
        %v1340 = vadd.f32 %v1242, %v1339
        %1341 = vdwg.mxu0
        %v1342 = vld [vmem:[%s11] sm:$0xff]
        %v1343 = vld [vmem:[%s11 + $0x8] sm:$0xff]
        %1345 = vset.pattern.permute.xlu0 0
        %1346 = vperm.xlu0 %1345, %v1342
        %v1347 = vpop.permute.xlu0 %1346
        %1350 = vset.pattern.permute.xlu0 0
        %1351 = vperm.xlu0 %1350, %v1343
        %v1352 = vpop.permute.xlu0 %1351
        %v1354 = vadd.f32 %v1268, %v1347
        %v1355 = vadd.f32 %v1291, %v1347
        %v1356 = vadd.f32 %v1314, %v1347
        %v1357 = vadd.f32 %v1337, %v1347
        %v1358 = vadd.f32 %v1271, %v1352
        %v1359 = vadd.f32 %v1294, %v1352
        %v1360 = vadd.f32 %v1317, %v1352
        %v1361 = vadd.f32 %v1340, %v1352
        %v1362 = vtanh.pop %v1354
        %v1363 = vtanh.pop %v1355
        %v1364 = vtanh.pop %v1356
        %v1365 = vtanh.pop %v1357
        %v1366 = vtanh.pop %v1358
        %v1367 = vtanh.pop %v1359
        %v1368 = vtanh.pop %v1360
        %v1369 = vtanh.pop %v1361
        %v1370 = vld [vmem:[%s12] sm:$0x7]
        %v1371 = vld [vmem:[%s13] sm:$0x7]
        %1373 = vset.pattern.permute.xlu0 0
        %1374 = vperm.xlu0 %1373, %v1371
        %v1375 = vpop.permute.xlu0 %1374
        %v1378 = vsel %vm941, %v1370, 0
        %1380 = vmatpush.msra.mxu0 0.0
        %1381 = vmatpush.msra.mxu0 0.0
        %1382 = vmatpush.msra.mxu0 0.0
        %1383 = vmatpush.msra.mxu0 0.0
        %1384 = vmatpush.msra.mxu0 0.0
        %1385 = vmatpush.msra.mxu0 0.0
        %1386 = vmatpush.msra.mxu0 0.0
        %1387 = vmatpush.msra.mxu0 0.0
        %1388 = vmatpush.msra.mxu0 0.0
        %1389 = vmatpush.msra.mxu0 0.0
        %1390 = vmatpush.msra.mxu0 0.0
        %1391 = vmatpush.msra.mxu0 0.0
        %1392 = vmatpush.msra.mxu0 0.0
        %1393 = vmatpush.msra.mxu0 0.0
        %1394 = vmatpush.msra.mxu0 %v1366
        %1395 = vmatpush.msra.mxu0 %v1362
        %1396 = vmatmul.f32.gmra.mxu0 %v1378
        %v1397 = vpop.f32.mrf.mxu0
        %v1398 = vadd.f32 %v1375, %v1397
        %1399 = vdwg.mxu0
        %1400 = vmatpush.msra.mxu0 0.0
        %1401 = vmatpush.msra.mxu0 0.0
        %1402 = vmatpush.msra.mxu0 0.0
        %1403 = vmatpush.msra.mxu0 0.0
        %1404 = vmatpush.msra.mxu0 0.0
        %1405 = vmatpush.msra.mxu0 0.0
        %1406 = vmatpush.msra.mxu0 0.0
        %1407 = vmatpush.msra.mxu0 0.0
        %1408 = vmatpush.msra.mxu0 0.0
        %1409 = vmatpush.msra.mxu0 0.0
        %1410 = vmatpush.msra.mxu0 0.0
        %1411 = vmatpush.msra.mxu0 0.0
        %1412 = vmatpush.msra.mxu0 0.0
        %1413 = vmatpush.msra.mxu0 0.0
        %1414 = vmatpush.msra.mxu0 %v1367
        %1415 = vmatpush.msra.mxu0 %v1363
        %1416 = vmatmul.f32.gmra.mxu0 %v1378
        %v1417 = vpop.f32.mrf.mxu0
        %v1418 = vadd.f32 %v1375, %v1417
        %1419 = vdwg.mxu0
        %1420 = vmatpush.msra.mxu0 0.0
        %1421 = vmatpush.msra.mxu0 0.0
        %1422 = vmatpush.msra.mxu0 0.0
        %1423 = vmatpush.msra.mxu0 0.0
        %1424 = vmatpush.msra.mxu0 0.0
        %1425 = vmatpush.msra.mxu0 0.0
        %1426 = vmatpush.msra.mxu0 0.0
        %1427 = vmatpush.msra.mxu0 0.0
        %1428 = vmatpush.msra.mxu0 0.0
        %1429 = vmatpush.msra.mxu0 0.0
        %1430 = vmatpush.msra.mxu0 0.0
        %1431 = vmatpush.msra.mxu0 0.0
        %1432 = vmatpush.msra.mxu0 0.0
        %1433 = vmatpush.msra.mxu0 0.0
        %1434 = vmatpush.msra.mxu0 %v1368
        %1435 = vmatpush.msra.mxu0 %v1364
        %1436 = vmatmul.f32.gmra.mxu0 %v1378
        %v1437 = vpop.f32.mrf.mxu0
        %v1438 = vadd.f32 %v1375, %v1437
        %1439 = vdwg.mxu0
        %1440 = vmatpush.msra.mxu0 0.0
        %1441 = vmatpush.msra.mxu0 0.0
        %1442 = vmatpush.msra.mxu0 0.0
        %1443 = vmatpush.msra.mxu0 0.0
        %1444 = vmatpush.msra.mxu0 0.0
        %1445 = vmatpush.msra.mxu0 0.0
        %1446 = vmatpush.msra.mxu0 0.0
        %1447 = vmatpush.msra.mxu0 0.0
        %1448 = vmatpush.msra.mxu0 0.0
        %1449 = vmatpush.msra.mxu0 0.0
        %1450 = vmatpush.msra.mxu0 0.0
        %1451 = vmatpush.msra.mxu0 0.0
        %1452 = vmatpush.msra.mxu0 0.0
        %1453 = vmatpush.msra.mxu0 0.0
        %1454 = vmatpush.msra.mxu0 %v1369
        %1455 = vmatpush.msra.mxu0 %v1365
        %1456 = vmatmul.f32.gmra.mxu0 %v1378
        %v1457 = vpop.f32.mrf.mxu0
        %v1458 = vadd.f32 %v1375, %v1457
        %1459 = vdwg.mxu0
        %v1464 = vrot.slane %v1418, 4
        %v1465 = vrot.slane %v1458, 4
        %vm1466 = vcmask 1043456
        %v1467 = vsel %vm1466, %v1398, %v1464
        %v1468 = vsel %vm1466, %v1438, %v1465
        %1471 = vst [vmem:[%s645] sm:$0x77] %v1467
        %1472 = vst [vmem:[%s645 + $0x8] sm:$0x77] %v1468
        %1473 = vst [vmem:[%s628] sm:$0xff] %v1362
        %1474 = vst [vmem:[%s628 + $0x8] sm:$0xff] %v1363
        %1475 = vst [vmem:[%s628 + $0x10] sm:$0xff] %v1364
        %1476 = vst [vmem:[%s628 + $0x18] sm:$0xff] %v1365
        %1477 = vst [vmem:[%s628 + $0x20] sm:$0xff] %v1366
        %1478 = vst [vmem:[%s628 + $0x28] sm:$0xff] %v1367
        %1479 = vst [vmem:[%s628 + $0x30] sm:$0xff] %v1368
        %1480 = vst [vmem:[%s628 + $0x38] sm:$0xff] %v1369
        %s1481 = smul.u32 4, %s27
        %p1482 = scmp.lt.s32.totalorder %s1481, 7
        %s1483 = scalar_select %p1482, %s1481, 7
        %s1484 = smul.addr %s1483, 4
        %s1485 = scalar_lea.vmem %s14, %s1484
        %s1486 = sand.u32 %s375, 1
        %s1487 = sand.u32 %s375, 1
        %s1488 = smul.addr %s1487, 64
        %s1489 = scalar_lea.vmem [#allocation4], %s1488
        // Predicated region
        $region123: #{_lambda_.22} parent=113 // pred_check
          %p1490 = pneg %p359
        $region124: #{_lambda_.22} parent=113 // pred_check_branch
          %1492 = sbr.rel (%p1490) target = $region126
        $region125: #{_lambda_.22} parent=113 // pred_region
          %s1493 = smul.u32 4, %s27
        $region126: #{_lambda_.22} parent=113 // pred_fallthru
          _
        // Predicated region
        $region127: #{_lambda_.22} parent=113 // pred_check
          %p1494 = pneg %p385
        $region128: #{_lambda_.22} parent=113 // pred_check_branch
          %1496 = sbr.rel (%p1494) target = $region130
        $region129: #{_lambda_.22} parent=113 // pred_region
          %s1497 = smul.u32 4, %s27
          %s1498 = smul.addr %s1497, 8
          %s1499 = scalar_lea.vmem %s15, %s1498
          // Predicated region
          $region131: #{_lambda_.22} parent=129 // pred_check
            _
          $region132: #{_lambda_.22} parent=129 // pred_check_branch
            %1501 = sbr.rel (0) target = $region134
          $region133: #{_lambda_.22} parent=129 // pred_region
            // Predicated region
            $region135: #{_lambda_.22} parent=133 // pred_check
              _
            $region136: #{_lambda_.22} parent=133 // pred_check_branch
              %1503 = sbr.rel (0) target = $region138
            $region137: #{_lambda_.22} parent=133 // pred_region
              loop: start=0, step=1, limit=1
              $region139: #{_lambda_.22} parent=137 // loop_pre_header
                _
              $region140: #{_lambda_.22} parent=137 // loop_header
                %s1505 = sphi 0, %s1509
                %p1506 = scmp.ge.s32.totalorder %s1505, 1
                %s1510 = sphi %s1489, %s1489
                %s1511 = sphi %s1499, %s1499
              $region141: #{_lambda_.22} parent=137 // loop_header_branch
                %1508 = sbr.rel (%p1506) target = $region145
              $region142: #{_lambda_.22} parent=137 // loop_body
                %v1512 = vld [vmem:[%s1510] sm:$0xff]
                %1513 = vst [vmem:[%s1511] sm:$0xff] %v1512
                %v1514 = vld [vmem:[%s1510 + $0x8] sm:$0xff]
                %1515 = vst [vmem:[%s1511 + $0x8] sm:$0xff] %v1514
                %v1516 = vld [vmem:[%s1510 + $0x10] sm:$0xff]
                %1517 = vst [vmem:[%s1511 + $0x10] sm:$0xff] %v1516
                %v1518 = vld [vmem:[%s1510 + $0x18] sm:$0xff]
                %1519 = vst [vmem:[%s1511 + $0x18] sm:$0xff] %v1518
                %v1520 = vld [vmem:[%s1510 + $0x20] sm:$0xff]
                %1521 = vst [vmem:[%s1511 + $0x40] sm:$0xff] %v1520
                %v1522 = vld [vmem:[%s1510 + $0x28] sm:$0xff]
                %1523 = vst [vmem:[%s1511 + $0x48] sm:$0xff] %v1522
                %v1524 = vld [vmem:[%s1510 + $0x30] sm:$0xff]
                %1525 = vst [vmem:[%s1511 + $0x50] sm:$0xff] %v1524
                %v1526 = vld [vmem:[%s1510 + $0x38] sm:$0xff]
                %1527 = vst [vmem:[%s1511 + $0x58] sm:$0xff] %v1526
              $region143: #{_lambda_.22} parent=137 // loop_footer
                %s1509 = sadd.s32 1, %s1505
              $region144: #{_lambda_.22} parent=137 // loop_footer_branch
                %1504 = sbr.rel target = $region140
              $region145: #{_lambda_.22} parent=137 // loop_exit
                _
            $region138: #{_lambda_.22} parent=133 // pred_fallthru
              _
            // Predicated region
            $region146: #{_lambda_.22} parent=133 // pred_check
              _
            $region147: #{_lambda_.22} parent=133 // pred_check_branch
              %1529 = sbr.rel target = $region149
            $region148: #{_lambda_.22} parent=133 // pred_region
              _
            $region149: #{_lambda_.22} parent=133 // pred_fallthru
              _
          $region134: #{_lambda_.22} parent=129 // pred_fallthru
            _
          %1530 = vnop
        $region130: #{_lambda_.22} parent=113 // pred_fallthru
          _
      $region114: #{_lambda_.22} parent=5 // pred_fallthru
        _
      %p1531 = scmp.le.s32.totalorder 2, %s22
      // Predicated region
      $region150: #{_lambda_.22} parent=5 // pred_check
        %p1532 = pneg %p1531
      $region151: #{_lambda_.22} parent=5 // pred_check_branch
        %1534 = sbr.rel (%p1532) target = $region153
      $region152: #{_lambda_.22} parent=5 // pred_region
        %s1535 = ssub.s32 %s22, 2
        // Predicated region
        $region154: #{_lambda_.22} parent=152 // pred_check
          %p1536 = pneg %p365
        $region155: #{_lambda_.22} parent=152 // pred_check_branch
          %1538 = sbr.rel (%p1536) target = $region157
        $region156: #{_lambda_.22} parent=152 // pred_region
          %s1539 = smul.u32 4, %s28
          %p1540 = scmp.lt.s32.totalorder %s1539, 7
          %s1541 = scalar_select %p1540, %s1539, 7
          %s1542 = smul.addr %s1541, 4
          %s1543 = scalar_lea.vmem %s14, %s1542
        $region157: #{_lambda_.22} parent=152 // pred_fallthru
          _
        // Predicated region
        $region158: #{_lambda_.22} parent=152 // pred_check
          %p1544 = pneg %p391
        $region159: #{_lambda_.22} parent=152 // pred_check_branch
          %1546 = sbr.rel (%p1544) target = $region161
        $region160: #{_lambda_.22} parent=152 // pred_region
          %s1547 = sand.u32 %s376, 1
          %s1548 = sand.u32 %s376, 1
          %s1549 = smul.addr %s1548, 64
          %s1550 = scalar_lea.vmem [#allocation4], %s1549
        $region161: #{_lambda_.22} parent=152 // pred_fallthru
          _
      $region153: #{_lambda_.22} parent=5 // pred_fallthru
        _
    $region6: #{_lambda_.22} parent=1 // loop_footer
      %s26 = sadd.s32 1, %s22
    $region7: #{_lambda_.22} parent=1 // loop_footer_branch
      %21 = sbr.rel target = $region3
    $region8: #{_lambda_.22} parent=1 // loop_exit
      _

// kernel: _lambda_.28
$region0: #{_lambda_.28}
  #allocation0 [shape = 'u32[]', space=smem, size = 0x4, offset = 0x4, fixed_abs, tag = 'smem constant byte address 0x4 - core index']
  #allocation1 [shape = 'u32[72,128]{1,0:T(1,128)}', space=vmem, size = 0x9000, scoped, tag = 'internal scratch']
  %s0 = inlined_call_operand.vmem [shape: f32[2,24,512], index: 0, kind: input, shape index: {}]
  %s1 = inlined_call_operand.vmem [shape: f32[2,3,512], index: 1, kind: input, shape index: {}]
  %s2 = inlined_call_operand.vmem [shape: f32[2,3,512], index: 2, kind: output, shape index: {}]
  %s3 = sld [smem:[#allocation0]]
  $region41: #{_lambda_.28} parent=0
    _
  %s5 = ssub.s32 1, %s3
  %s6 = scalar_select 0, %s5, %s3
  loop: start=0, step=1, limit=4
  $region2: #{_lambda_.28} parent=0 // loop_pre_header
    _
  $region3: #{_lambda_.28} parent=0 // loop_header
    %s8 = sphi 0, %s12
    %p9 = scmp.ge.s32.totalorder %s8, 4
    %s15 = sphi 0, %s27
    %s16 = sphi 0, %s23
    %s17 = sphi 0, %s15
    %s18 = sphi 0, %s16
    %s19 = sphi 0, %s17
    %s20 = sphi 0, %s18
    %s32 = sphi 0, %s34
    %s35 = sphi 0, %s32
    %s36 = sphi 0, %s35
    %s52 = sphi 0, %s36
    %s60 = sphi 0, %s62
    %s63 = sphi 0, %s60
    %s64 = sphi 0, %s63
    %s80 = sphi 0, %s64
    %s88 = sphi 0, %s90
    %s91 = sphi 0, %s88
    %s92 = sphi 0, %s91
    %s108 = sphi 0, %s92
  $region4: #{_lambda_.28} parent=0 // loop_header_branch
    %11 = sbr.rel (%p9) target = $region8
  $region5: #{_lambda_.28} parent=0 // loop_body
    %s13 = ssub.s32 %s8, 1
    %s14 = ssub.s32 %s8, 2
    %s21 = sadd.s32 1, %s16
    %p22 = scmp.ge.s32.totalorder %s21, 1
    %s23 = scalar_select %p22, 0, %s21
    %s24 = sadd.s32 1, %s15
    %s25 = scalar_select %p22, %s24, %s15
    %p26 = scmp.ge.s32.totalorder %s25, 2
    %s27 = scalar_select %p26, 0, %s25
    %s28 = ssub.s32 %s15, %s27
    %s29 = ssub.s32 %s16, %s23
    %s30 = sor.u32 %s28, %s29
    %p31 = scmp.eq.s32.totalorder %s30, 0
    %s33 = sadd.s32 %s32, 1
    %s34 = scalar_select %p31, %s32, %s33
    %p37 = pneg %p31
    %p38 = scmp.eq.s32.totalorder %s8, 1
    %p39 = por %p37, %p38
    %p40 = scmp.ne.s32.totalorder %s32, %s35
    %p41 = scmp.eq.s32.totalorder %s8, 0
    %p42 = por %p40, %p41
    %p43 = scmp.ne.s32.totalorder %s32, %s35
    %p44 = scmp.eq.s32.totalorder %s13, 1
    %p45 = por %p43, %p44
    %p46 = scmp.ne.s32.totalorder %s35, %s36
    %p47 = scmp.eq.s32.totalorder %s13, 0
    %p48 = por %p46, %p47
    %p49 = scmp.ne.s32.totalorder %s35, %s36
    %p50 = scmp.eq.s32.totalorder %s14, 1
    %p51 = por %p49, %p50
    %p53 = scmp.ne.s32.totalorder %s36, %s52
    %p54 = scmp.eq.s32.totalorder %s14, 0
    %p55 = por %p53, %p54
    %s56 = ssub.s32 %s15, %s27
    %s57 = ssub.s32 %s16, %s23
    %s58 = sor.u32 %s56, %s57
    %p59 = scmp.eq.s32.totalorder %s58, 0
    %s61 = sadd.s32 %s60, 1
    %s62 = scalar_select %p59, %s60, %s61
    %p65 = pneg %p59
    %p66 = scmp.eq.s32.totalorder %s8, 1
    %p67 = por %p65, %p66
    %p68 = scmp.ne.s32.totalorder %s60, %s63
    %p69 = scmp.eq.s32.totalorder %s8, 0
    %p70 = por %p68, %p69
    %p71 = scmp.ne.s32.totalorder %s60, %s63
    %p72 = scmp.eq.s32.totalorder %s13, 1
    %p73 = por %p71, %p72
    %p74 = scmp.ne.s32.totalorder %s63, %s64
    %p75 = scmp.eq.s32.totalorder %s13, 0
    %p76 = por %p74, %p75
    %p77 = scmp.ne.s32.totalorder %s63, %s64
    %p78 = scmp.eq.s32.totalorder %s14, 1
    %p79 = por %p77, %p78
    %p81 = scmp.ne.s32.totalorder %s64, %s80
    %p82 = scmp.eq.s32.totalorder %s14, 0
    %p83 = por %p81, %p82
    %s84 = ssub.s32 %s15, %s27
    %s85 = ssub.s32 %s16, %s23
    %s86 = sor.u32 %s84, %s85
    %p87 = scmp.eq.s32.totalorder %s86, 0
    %s89 = sadd.s32 %s88, 1
    %s90 = scalar_select %p87, %s88, %s89
    %p93 = pneg %p87
    %p94 = scmp.eq.s32.totalorder %s8, 1
    %p95 = por %p93, %p94
    %p96 = scmp.ne.s32.totalorder %s88, %s91
    %p97 = scmp.eq.s32.totalorder %s8, 0
    %p98 = por %p96, %p97
    %p99 = scmp.ne.s32.totalorder %s88, %s91
    %p100 = scmp.eq.s32.totalorder %s13, 1
    %p101 = por %p99, %p100
    %p102 = scmp.ne.s32.totalorder %s91, %s92
    %p103 = scmp.eq.s32.totalorder %s13, 0
    %p104 = por %p102, %p103
    %p105 = scmp.ne.s32.totalorder %s91, %s92
    %p106 = scmp.eq.s32.totalorder %s14, 1
    %p107 = por %p105, %p106
    %p109 = scmp.ne.s32.totalorder %s92, %s108
    %p110 = scmp.eq.s32.totalorder %s14, 0
    %p111 = por %p109, %p110
    %p112 = scmp.le.s32.totalorder 1, %s8
    %p113 = scmp.lt.s32.totalorder %s8, 3
    %p114 = pnand %p112, %p113
    %p115 = pneg %p114
    // Predicated region
    $region9: #{_lambda_.28} parent=5 // pred_check
      _
    $region10: #{_lambda_.28} parent=5 // pred_check_branch
      %117 = sbr.rel (%p114) target = $region12
    $region11: #{_lambda_.28} parent=5 // pred_region
      %s118 = ssub.s32 %s8, 1
    $region12: #{_lambda_.28} parent=5 // pred_fallthru
      _
    %p119 = scmp.lt.s32.totalorder %s8, 2
    // Predicated region
    $region13: #{_lambda_.28} parent=5 // pred_check
      %p120 = pneg %p119
    $region14: #{_lambda_.28} parent=5 // pred_check_branch
      %122 = sbr.rel (%p120) target = $region16
    $region15: #{_lambda_.28} parent=5 // pred_region
      // Predicated region
      $region17: #{_lambda_.28} parent=15 // pred_check
        %p123 = pneg %p42
      $region18: #{_lambda_.28} parent=15 // pred_check_branch
        %125 = sbr.rel (%p123) target = $region20
      $region19: #{_lambda_.28} parent=15 // pred_region
        %s126 = smul.u32 4, %s16
        %p127 = scmp.lt.s32.totalorder %s15, 1
        %s128 = scalar_select %p127, %s15, 1
        %p129 = scmp.lt.s32.totalorder %s126, 3
        %s130 = scalar_select %p129, %s126, 3
        %s131 = smul.addr %s128, 12
        %s132 = sadd.s32 %s130, %s131
        %s133 = smul.addr %s132, 8
        %s134 = scalar_lea.vmem %s0, %s133
        %s135 = smul.u32 4, %s16
      $region20: #{_lambda_.28} parent=15 // pred_fallthru
        _
      // Predicated region
      $region21: #{_lambda_.28} parent=15 // pred_check
        %p136 = pneg %p70
      $region22: #{_lambda_.28} parent=15 // pred_check_branch
        %138 = sbr.rel (%p136) target = $region24
      $region23: #{_lambda_.28} parent=15 // pred_region
        %s139 = smul.u32 4, %s16
        %p140 = scmp.lt.s32.totalorder %s15, 1
        %s141 = scalar_select %p140, %s15, 1
        %p142 = scmp.lt.s32.totalorder %s139, 3
        %s143 = scalar_select %p142, %s139, 3
        %s144 = smul.addr %s141, 4
        %s145 = sadd.s32 %s143, %s144
        %s146 = smul.addr %s145, 4
        %s147 = scalar_lea.vmem %s1, %s146
        %s148 = smul.u32 4, %s16
      $region24: #{_lambda_.28} parent=15 // pred_fallthru
        _
    $region16: #{_lambda_.28} parent=5 // pred_fallthru
      _
    %p149 = scmp.le.s32.totalorder 1, %s8
    %p150 = scmp.lt.s32.totalorder %s8, 3
    %p151 = pnand %p149, %p150
    %p152 = pneg %p151
    // Predicated region
    $region25: #{_lambda_.28} parent=5 // pred_check
      _
    $region26: #{_lambda_.28} parent=5 // pred_check_branch
      %154 = sbr.rel (%p151) target = $region28
    $region27: #{_lambda_.28} parent=5 // pred_region
      %s155 = ssub.s32 %s8, 1
      %s156 = smul.u32 4, %s18
      %p157 = scmp.lt.s32.totalorder %s17, 1
      %s158 = scalar_select %p157, %s17, 1
      %p159 = scmp.lt.s32.totalorder %s156, 3
      %s160 = scalar_select %p159, %s156, 3
      %s161 = smul.addr %s158, 12
      %s162 = sadd.s32 %s160, %s161
      %s163 = smul.addr %s162, 8
      %s164 = scalar_lea.vmem %s0, %s163
      %p165 = pneg %p48
      %p166 = pneg %p45
      %s167 = smul.u32 4, %s18
      %p168 = scmp.lt.s32.totalorder %s17, 1
      %s169 = scalar_select %p168, %s17, 1
      %p170 = scmp.lt.s32.totalorder %s167, 3
      %s171 = scalar_select %p170, %s167, 3
      %s172 = smul.addr %s169, 4
      %s173 = sadd.s32 %s171, %s172
      %s174 = smul.addr %s173, 4
      %s175 = scalar_lea.vmem %s1, %s174
      %p176 = pneg %p76
      %p177 = pneg %p73
      %p178 = pneg %p104
      %p179 = pneg %p101
      %s180 = smul.u32 4, %s18
      %p181 = scmp.lt.s32.totalorder %s17, 1
      %s182 = scalar_select %p181, %s17, 1
      %p183 = scmp.lt.s32.totalorder %s180, 3
      %s184 = scalar_select %p183, %s180, 3
      %s185 = smul.addr %s182, 4
      %s186 = sadd.s32 %s184, %s185
      %s187 = smul.addr %s186, 4
      %s188 = scalar_lea.vmem %s2, %s187
      %s189 = smul.u32 4, %s18
      %p190 = scmp.lt.s32.totalorder %s17, 1
      %s191 = scalar_select %p190, %s17, 1
      %p192 = scmp.lt.s32.totalorder %s189, 3
      %s193 = scalar_select %p192, %s189, 3
      %s194 = smul.addr %s191, 12
      %s195 = sadd.s32 %s193, %s194
      %s196 = smul.addr %s195, 8
      %s197 = scalar_lea.vmem %s0, %s196
      %s198 = smul.u32 4, %s18
      %s199 = smul.u32 4, %s18
      %p200 = scmp.lt.s32.totalorder %s17, 1
      %s201 = scalar_select %p200, %s17, 1
      %p202 = scmp.lt.s32.totalorder %s199, 3
      %s203 = scalar_select %p202, %s199, 3
      %s204 = smul.addr %s201, 4
      %s205 = sadd.s32 %s203, %s204
      %s206 = smul.addr %s205, 4
      %s207 = scalar_lea.vmem %s1, %s206
      %s208 = smul.u32 4, %s18
      %s209 = smul.u32 4, %s18
      %p210 = scmp.lt.s32.totalorder %s17, 1
      %s211 = scalar_select %p210, %s17, 1
      %p212 = scmp.lt.s32.totalorder %s209, 3
      %s213 = scalar_select %p212, %s209, 3
      %s214 = smul.addr %s211, 4
      %s215 = sadd.s32 %s213, %s214
      %s216 = smul.addr %s215, 4
      %s217 = scalar_lea.vmem %s2, %s216
      %s218 = smul.u32 4, %s18
      %v219 = vld [vmem:[%s197] sm:$0xff]
      %v220 = vld [vmem:[%s197 + $0x8] sm:$0xff]
      %v221 = vld [vmem:[%s197 + $0x10] sm:$0xff]
      %v222 = vld [vmem:[%s197 + $0x18] sm:$0xff]
      %v223 = vld [vmem:[%s197 + $0x20] sm:$0xff]
      %v224 = vld [vmem:[%s197 + $0x28] sm:$0xff]
      %v225 = vld [vmem:[%s197 + $0x30] sm:$0xff]
      %v226 = vld [vmem:[%s197 + $0x38] sm:$0xff]
      %v227 = vld [vmem:[%s197 + $0x40] sm:$0xff]
      %v228 = vld [vmem:[%s197 + $0x48] sm:$0xff]
      %v229 = vld [vmem:[%s197 + $0x50] sm:$0xff]
      %v230 = vld [vmem:[%s197 + $0x58] sm:$0xff]
      %v231 = vld [vmem:[%s207] sm:$0x77]
      %v232 = vld [vmem:[%s207 + $0x8] sm:$0x77]
      %v233 = vsub.f32 1.0, %v231
      %v234 = vsub.f32 1.0, %v232
      %v237 = vrot.slane %v233, 5
      %v238 = vrot.slane %v237, 4
      %v239 = vrot.slane %v234, 5
      %v240 = vrot.slane %v239, 4
      %v243 = vmul.f32 %v233, %v238
      %v244 = vmul.f32 %v234, %v240
      %v245 = vrot.slane %v233, 6
      %v246 = vrot.slane %v245, 4
      %v247 = vrot.slane %v234, 6
      %v248 = vrot.slane %v247, 4
      %v251 = vmul.f32 %v243, %v246
      %v252 = vmul.f32 %v244, %v248
      %v255 = vperm.slane %v251, 0
      %v256 = vperm.slane %v251, 4
      %v257 = vperm.slane %v252, 0
      %v258 = vperm.slane %v252, 4
      %v263 = vperm.slane %v255, 0
      %v264 = vperm.slane %v256, 0
      %v265 = vperm.slane %v257, 0
      %v266 = vperm.slane %v258, 0
      %v267 = vmul.f32 %v219, %v263
      %v268 = vmul.f32 %v220, %v264
      %v269 = vmul.f32 %v221, %v265
      %v270 = vmul.f32 %v222, %v266
      %v273 = vrot.slane %v231, 6
      %v274 = vrot.slane %v273, 4
      %v275 = vrot.slane %v232, 6
      %v276 = vrot.slane %v275, 4
      %v279 = vmul.f32 %v243, %v274
      %v280 = vmul.f32 %v244, %v276
      %v283 = vperm.slane %v279, 0
      %v284 = vperm.slane %v279, 4
      %v285 = vperm.slane %v280, 0
      %v286 = vperm.slane %v280, 4
      %v291 = vperm.slane %v283, 0
      %v292 = vperm.slane %v284, 0
      %v293 = vperm.slane %v285, 0
      %v294 = vperm.slane %v286, 0
      %v295 = vmul.f32 %v219, %v291
      %v296 = vmul.f32 %v220, %v292
      %v297 = vmul.f32 %v221, %v293
      %v298 = vmul.f32 %v222, %v294
      %v303 = vrot.slane %v295, 3
      %v304 = vrot.slane %v296, 3
      %v305 = vrot.slane %v297, 3
      %v306 = vrot.slane %v298, 3
      %v311 = vadd.f32 %v267, %v303
      %v312 = vadd.f32 %v268, %v304
      %v313 = vadd.f32 %v269, %v305
      %v314 = vadd.f32 %v270, %v306
      %v315 = vrot.slane %v231, 5
      %v316 = vrot.slane %v315, 4
      %v317 = vrot.slane %v232, 5
      %v318 = vrot.slane %v317, 4
      %v321 = vmul.f32 %v233, %v316
      %v322 = vmul.f32 %v234, %v318
      %v323 = vmul.f32 %v321, %v246
      %v324 = vmul.f32 %v322, %v248
      %v327 = vperm.slane %v323, 0
      %v328 = vperm.slane %v323, 4
      %v329 = vperm.slane %v324, 0
      %v330 = vperm.slane %v324, 4
      %v335 = vperm.slane %v327, 0
      %v336 = vperm.slane %v328, 0
      %v337 = vperm.slane %v329, 0
      %v338 = vperm.slane %v330, 0
      %v339 = vmul.f32 %v219, %v335
      %v340 = vmul.f32 %v220, %v336
      %v341 = vmul.f32 %v221, %v337
      %v342 = vmul.f32 %v222, %v338
      %v343 = vmul.f32 %v223, %v335
      %v344 = vmul.f32 %v224, %v336
      %v345 = vmul.f32 %v225, %v337
      %v346 = vmul.f32 %v226, %v338
      %vm355 = vcmask 1041408
      %v356 = vrot.slane %v339, 6
      %v357 = vrot.slane %v343, 6
      %v358 = vsel %vm355, %v356, %v357
      %v359 = vrot.slane %v340, 6
      %v360 = vrot.slane %v344, 6
      %v361 = vsel %vm355, %v359, %v360
      %v362 = vrot.slane %v341, 6
      %v363 = vrot.slane %v345, 6
      %v364 = vsel %vm355, %v362, %v363
      %v365 = vrot.slane %v342, 6
      %v366 = vrot.slane %v346, 6
      %v367 = vsel %vm355, %v365, %v366
      %v372 = vadd.f32 %v311, %v358
      %v373 = vadd.f32 %v312, %v361
      %v374 = vadd.f32 %v313, %v364
      %v375 = vadd.f32 %v314, %v367
      %v376 = vmul.f32 %v321, %v274
      %v377 = vmul.f32 %v322, %v276
      %v380 = vperm.slane %v376, 0
      %v381 = vperm.slane %v376, 4
      %v382 = vperm.slane %v377, 0
      %v383 = vperm.slane %v377, 4
      %v388 = vperm.slane %v380, 0
      %v389 = vperm.slane %v381, 0
      %v390 = vperm.slane %v382, 0
      %v391 = vperm.slane %v383, 0
      %v392 = vmul.f32 %v223, %v388
      %v393 = vmul.f32 %v224, %v389
      %v394 = vmul.f32 %v225, %v390
      %v395 = vmul.f32 %v226, %v391
      %v400 = vrot.slane %v392, 1
      %v401 = vrot.slane %v393, 1
      %v402 = vrot.slane %v394, 1
      %v403 = vrot.slane %v395, 1
      %v408 = vadd.f32 %v372, %v400
      %v409 = vadd.f32 %v373, %v401
      %v410 = vadd.f32 %v374, %v402
      %v411 = vadd.f32 %v375, %v403
      %v412 = vmul.f32 %v231, %v238
      %v413 = vmul.f32 %v232, %v240
      %v414 = vmul.f32 %v412, %v246
      %v415 = vmul.f32 %v413, %v248
      %v418 = vperm.slane %v414, 0
      %v419 = vperm.slane %v414, 4
      %v420 = vperm.slane %v415, 0
      %v421 = vperm.slane %v415, 4
      %v426 = vperm.slane %v418, 0
      %v427 = vperm.slane %v419, 0
      %v428 = vperm.slane %v420, 0
      %v429 = vperm.slane %v421, 0
      %v430 = vmul.f32 %v223, %v426
      %v431 = vmul.f32 %v224, %v427
      %v432 = vmul.f32 %v225, %v428
      %v433 = vmul.f32 %v226, %v429
      %v438 = vrot.slane %v430, 4
      %v439 = vrot.slane %v431, 4
      %v440 = vrot.slane %v432, 4
      %v441 = vrot.slane %v433, 4
      %v446 = vadd.f32 %v408, %v438
      %v447 = vadd.f32 %v409, %v439
      %v448 = vadd.f32 %v410, %v440
      %v449 = vadd.f32 %v411, %v441
      %v450 = vmul.f32 %v412, %v274
      %v451 = vmul.f32 %v413, %v276
      %v454 = vperm.slane %v450, 0
      %v455 = vperm.slane %v450, 4
      %v456 = vperm.slane %v451, 0
      %v457 = vperm.slane %v451, 4
      %v462 = vperm.slane %v454, 0
      %v463 = vperm.slane %v455, 0
      %v464 = vperm.slane %v456, 0
      %v465 = vperm.slane %v457, 0
      %v466 = vmul.f32 %v223, %v462
      %v467 = vmul.f32 %v224, %v463
      %v468 = vmul.f32 %v225, %v464
      %v469 = vmul.f32 %v226, %v465
      %v470 = vmul.f32 %v227, %v462
      %v471 = vmul.f32 %v228, %v463
      %v472 = vmul.f32 %v229, %v464
      %v473 = vmul.f32 %v230, %v465
      %vm482 = vcmask 1040384
      %v483 = vrot.slane %v466, 7
      %v484 = vrot.slane %v470, 7
      %v485 = vsel %vm482, %v483, %v484
      %v486 = vrot.slane %v467, 7
      %v487 = vrot.slane %v471, 7
      %v488 = vsel %vm482, %v486, %v487
      %v489 = vrot.slane %v468, 7
      %v490 = vrot.slane %v472, 7
      %v491 = vsel %vm482, %v489, %v490
      %v492 = vrot.slane %v469, 7
      %v493 = vrot.slane %v473, 7
      %v494 = vsel %vm482, %v492, %v493
      %v499 = vadd.f32 %v446, %v485
      %v500 = vadd.f32 %v447, %v488
      %v501 = vadd.f32 %v448, %v491
      %v502 = vadd.f32 %v449, %v494
      %v503 = vmul.f32 %v231, %v316
      %v504 = vmul.f32 %v232, %v318
      %v505 = vmul.f32 %v503, %v246
      %v506 = vmul.f32 %v504, %v248
      %v509 = vperm.slane %v505, 0
      %v510 = vperm.slane %v505, 4
      %v511 = vperm.slane %v506, 0
      %v512 = vperm.slane %v506, 4
      %v517 = vperm.slane %v509, 0
      %v518 = vperm.slane %v510, 0
      %v519 = vperm.slane %v511, 0
      %v520 = vperm.slane %v512, 0
      %v521 = vmul.f32 %v227, %v517
      %v522 = vmul.f32 %v228, %v518
      %v523 = vmul.f32 %v229, %v519
      %v524 = vmul.f32 %v230, %v520
      %v529 = vrot.slane %v521, 2
      %v530 = vrot.slane %v522, 2
      %v531 = vrot.slane %v523, 2
      %v532 = vrot.slane %v524, 2
      %v537 = vadd.f32 %v499, %v529
      %v538 = vadd.f32 %v500, %v530
      %v539 = vadd.f32 %v501, %v531
      %v540 = vadd.f32 %v502, %v532
      %v541 = vmul.f32 %v503, %v274
      %v542 = vmul.f32 %v504, %v276
      %v545 = vperm.slane %v541, 0
      %v546 = vperm.slane %v541, 4
      %v547 = vperm.slane %v542, 0
      %v548 = vperm.slane %v542, 4
      %v553 = vperm.slane %v545, 0
      %v554 = vperm.slane %v546, 0
      %v555 = vperm.slane %v547, 0
      %v556 = vperm.slane %v548, 0
      %v557 = vmul.f32 %v227, %v553
      %v558 = vmul.f32 %v228, %v554
      %v559 = vmul.f32 %v229, %v555
      %v560 = vmul.f32 %v230, %v556
      %v565 = vrot.slane %v557, 5
      %v566 = vrot.slane %v558, 5
      %v567 = vrot.slane %v559, 5
      %v568 = vrot.slane %v560, 5
      %v573 = vadd.f32 %v537, %v565
      %v574 = vadd.f32 %v538, %v566
      %v575 = vadd.f32 %v539, %v567
      %v576 = vadd.f32 %v540, %v568
      %v581 = vrot.slane %v574, 4
      %v582 = vrot.slane %v576, 4
      %vm583 = vcmask 1043456
      %v584 = vsel %vm583, %v573, %v581
      %v585 = vsel %vm583, %v575, %v582
      %588 = vst [vmem:[%s217] sm:$0x77] %v584
      %589 = vst [vmem:[%s217 + $0x8] sm:$0x77] %v585
      %s590 = smul.u32 4, %s18
      %p591 = scmp.lt.s32.totalorder %s17, 1
      %s592 = scalar_select %p591, %s17, 1
      %p593 = scmp.lt.s32.totalorder %s590, 3
      %s594 = scalar_select %p593, %s590, 3
      %s595 = smul.addr %s592, 4
      %s596 = sadd.s32 %s594, %s595
      %s597 = smul.addr %s596, 4
      %s598 = scalar_lea.vmem %s2, %s597
      // Predicated region
      $region29: #{_lambda_.28} parent=27 // pred_check
        %p599 = pneg %p101
      $region30: #{_lambda_.28} parent=27 // pred_check_branch
        %601 = sbr.rel (%p599) target = $region32
      $region31: #{_lambda_.28} parent=27 // pred_region
        %s602 = smul.u32 4, %s18
      $region32: #{_lambda_.28} parent=27 // pred_fallthru
        _
    $region28: #{_lambda_.28} parent=5 // pred_fallthru
      _
    %p603 = scmp.le.s32.totalorder 2, %s8
    // Predicated region
    $region33: #{_lambda_.28} parent=5 // pred_check
      %p604 = pneg %p603
    $region34: #{_lambda_.28} parent=5 // pred_check_branch
      %606 = sbr.rel (%p604) target = $region36
    $region35: #{_lambda_.28} parent=5 // pred_region
      %s607 = ssub.s32 %s8, 2
      // Predicated region
      $region37: #{_lambda_.28} parent=35 // pred_check
        %p608 = pneg %p107
      $region38: #{_lambda_.28} parent=35 // pred_check_branch
        %610 = sbr.rel (%p608) target = $region40
      $region39: #{_lambda_.28} parent=35 // pred_region
        %s611 = smul.u32 4, %s20
        %p612 = scmp.lt.s32.totalorder %s19, 1
        %s613 = scalar_select %p612, %s19, 1
        %p614 = scmp.lt.s32.totalorder %s611, 3
        %s615 = scalar_select %p614, %s611, 3
        %s616 = smul.addr %s613, 4
        %s617 = sadd.s32 %s615, %s616
        %s618 = smul.addr %s617, 4
        %s619 = scalar_lea.vmem %s2, %s618
      $region40: #{_lambda_.28} parent=35 // pred_fallthru
        _
    $region36: #{_lambda_.28} parent=5 // pred_fallthru
      _
  $region6: #{_lambda_.28} parent=0 // loop_footer
    %s12 = sadd.s32 1, %s8
  $region7: #{_lambda_.28} parent=0 // loop_footer_branch
    %7 = sbr.rel target = $region3
  $region8: #{_lambda_.28} parent=0 // loop_exit
    _

// kernel: _lambda_.31
$region0: #{_lambda_.31}
  #allocation0 [shape = 'u32[]', space=smem, size = 0x4, offset = 0x4, fixed_abs, tag = 'smem constant byte address 0x4 - core index']
  #allocation1 [shape = 'u32[72,128]{1,0:T(1,128)}', space=vmem, size = 0x9000, scoped, tag = 'internal scratch']
  %s0 = inlined_call_operand.vmem [shape: f32[1,1024], index: 0, kind: input, shape index: {}]
  %s1 = inlined_call_operand.vmem [shape: f32[1,1024], index: 1, kind: input, shape index: {}]
  %s2 = inlined_call_operand.vmem [shape: f32[32,1024], index: 2, kind: input, shape index: {}]
  %s3 = inlined_call_operand.vmem [shape: f32[16,1024], index: 3, kind: input, shape index: {}]
  %s4 = inlined_call_operand.vmem [shape: f32[32,1], index: 4, kind: input, shape index: {}]
  %s5 = inlined_call_operand.vmem [shape: f32[32,1], index: 5, kind: input, shape index: {}]
  %s6 = inlined_call_operand.vmem [shape: f32[32,32], index: 6, kind: input, shape index: {}]
  %s7 = inlined_call_operand.vmem [shape: f32[32,16], index: 7, kind: input, shape index: {}]
  %s8 = inlined_call_operand.vmem [shape: f32[32,1], index: 8, kind: input, shape index: {}]
  %s9 = inlined_call_operand.vmem [shape: f32[16,32], index: 9, kind: input, shape index: {}]
  %s10 = inlined_call_operand.vmem [shape: f32[16,16], index: 10, kind: input, shape index: {}]
  %s11 = inlined_call_operand.vmem [shape: f32[16,1], index: 11, kind: input, shape index: {}]
  %s12 = inlined_call_operand.vmem [shape: f32[3,16], index: 12, kind: input, shape index: {}]
  %s13 = inlined_call_operand.vmem [shape: f32[3,1], index: 13, kind: input, shape index: {}]
  %s14 = inlined_call_operand.vmem [shape: f32[3,1024], index: 14, kind: output, shape index: {0}]
  %s15 = inlined_call_operand.hbm [shape: f32[16,1024], index: 15, kind: output, shape index: {1}]
  %16 = xla_tuple %s14, %s15
  %s17 = sld [smem:[#allocation0]]
  $region143: #{_lambda_.31} parent=0
    _
  %s19 = ssub.s32 1, %s17
  %s20 = scalar_select 0, %s19, %s17
  $region1: #{_lambda_.31} parent=0
    #allocation2 [shape = 'u8[131072]{0}', space=vmem, size = 0x20000, scoped, tag = 'input window, operand 2']
    #allocation3 [shape = 'u8[65536]{0}', space=vmem, size = 0x10000, scoped, tag = 'input window, operand 3']
    #allocation4 [shape = 'u8[65536]{0}', space=vmem, size = 0x10000, scoped, tag = 'output window, operand 1']
    #allocation5 [shape = 's32[2]{0}', space=sflag, size = 0x8, scoped, tag = 'scoped memory for _lambda_.31']
    %21 = vsyncpa [#allocation5], 0
    %s22 = scalar_lea.sflag [#allocation5], 1
    %23 = vsyncpa %s22, 0
    loop: start=0, step=1, limit=4
    $region2: #{_lambda_.31} parent=1 // loop_pre_header
      _
    $region3: #{_lambda_.31} parent=1 // loop_header
      %s25 = sphi 0, %s29
      %p26 = scmp.ge.s32.totalorder %s25, 4
      %s35 = sphi 0, %s37
      %s38 = sphi 0, %s35
      %s39 = sphi 0, %s38
      %s55 = sphi 0, %s39
      %s61 = sphi 0, %s63
      %s64 = sphi 0, %s61
      %s65 = sphi 0, %s64
      %s81 = sphi 0, %s65
      %s87 = sphi 0, %s89
      %s90 = sphi 0, %s87
      %s91 = sphi 0, %s90
      %s107 = sphi 0, %s91
      %s113 = sphi 0, %s115
      %s116 = sphi 0, %s113
      %s117 = sphi 0, %s116
      %s133 = sphi 0, %s117
      %s137 = sphi 0, %s137
      %s139 = sphi 0, %s137
      %s140 = sphi 0, %s139
      %s154 = sphi 0, %s140
      %s158 = sphi 0, %s158
      %s160 = sphi 0, %s158
      %s161 = sphi 0, %s160
      %s175 = sphi 0, %s161
      %s179 = sphi 0, %s179
      %s181 = sphi 0, %s179
      %s182 = sphi 0, %s181
      %s196 = sphi 0, %s182
      %s200 = sphi 0, %s200
      %s202 = sphi 0, %s200
      %s203 = sphi 0, %s202
      %s217 = sphi 0, %s203
      %s221 = sphi 0, %s221
      %s223 = sphi 0, %s221
      %s224 = sphi 0, %s223
      %s238 = sphi 0, %s224
      %s242 = sphi 0, %s242
      %s244 = sphi 0, %s242
      %s245 = sphi 0, %s244
      %s259 = sphi 0, %s245
      %s263 = sphi 0, %s263
      %s265 = sphi 0, %s263
      %s266 = sphi 0, %s265
      %s280 = sphi 0, %s266
      %s284 = sphi 0, %s284
      %s286 = sphi 0, %s284
      %s287 = sphi 0, %s286
      %s301 = sphi 0, %s287
      %s305 = sphi 0, %s305
      %s307 = sphi 0, %s305
      %s308 = sphi 0, %s307
      %s322 = sphi 0, %s308
      %s326 = sphi 0, %s326
      %s328 = sphi 0, %s326
      %s329 = sphi 0, %s328
      %s343 = sphi 0, %s329
      %s349 = sphi 0, %s351
      %s352 = sphi 0, %s349
      %s353 = sphi 0, %s352
      %s369 = sphi 0, %s353
      %s375 = sphi 0, %s377
      %s378 = sphi 0, %s375
      %s379 = sphi 0, %s378
      %s395 = sphi 0, %s379
    $region4: #{_lambda_.31} parent=1 // loop_header_branch
      %28 = sbr.rel (%p26) target = $region8
    $region5: #{_lambda_.31} parent=1 // loop_body
      %s30 = ssub.s32 %s25, 1
      %s31 = ssub.s32 %s25, 2
      %s32 = sadd.s32 %s25, 1
      %s33 = ssub.s32 %s25, %s32
      %p34 = scmp.eq.s32.totalorder %s33, 0
      %s36 = sadd.s32 %s35, 1
      %s37 = scalar_select %p34, %s35, %s36
      %p40 = pneg %p34
      %p41 = scmp.eq.s32.totalorder %s25, 1
      %p42 = por %p40, %p41
      %p43 = scmp.ne.s32.totalorder %s35, %s38
      %p44 = scmp.eq.s32.totalorder %s25, 0
      %p45 = por %p43, %p44
      %p46 = scmp.ne.s32.totalorder %s35, %s38
      %p47 = scmp.eq.s32.totalorder %s30, 1
      %p48 = por %p46, %p47
      %p49 = scmp.ne.s32.totalorder %s38, %s39
      %p50 = scmp.eq.s32.totalorder %s30, 0
      %p51 = por %p49, %p50
      %p52 = scmp.ne.s32.totalorder %s38, %s39
      %p53 = scmp.eq.s32.totalorder %s31, 1
      %p54 = por %p52, %p53
      %p56 = scmp.ne.s32.totalorder %s39, %s55
      %p57 = scmp.eq.s32.totalorder %s31, 0
      %p58 = por %p56, %p57
      %s59 = ssub.s32 %s25, %s32
      %p60 = scmp.eq.s32.totalorder %s59, 0
      %s62 = sadd.s32 %s61, 1
      %s63 = scalar_select %p60, %s61, %s62
      %p66 = pneg %p60
      %p67 = scmp.eq.s32.totalorder %s25, 1
      %p68 = por %p66, %p67
      %p69 = scmp.ne.s32.totalorder %s61, %s64
      %p70 = scmp.eq.s32.totalorder %s25, 0
      %p71 = por %p69, %p70
      %p72 = scmp.ne.s32.totalorder %s61, %s64
      %p73 = scmp.eq.s32.totalorder %s30, 1
      %p74 = por %p72, %p73
      %p75 = scmp.ne.s32.totalorder %s64, %s65
      %p76 = scmp.eq.s32.totalorder %s30, 0
      %p77 = por %p75, %p76
      %p78 = scmp.ne.s32.totalorder %s64, %s65
      %p79 = scmp.eq.s32.totalorder %s31, 1
      %p80 = por %p78, %p79
      %p82 = scmp.ne.s32.totalorder %s65, %s81
      %p83 = scmp.eq.s32.totalorder %s31, 0
      %p84 = por %p82, %p83
      %s85 = ssub.s32 %s25, %s32
      %p86 = scmp.eq.s32.totalorder %s85, 0
      %s88 = sadd.s32 %s87, 1
      %s89 = scalar_select %p86, %s87, %s88
      %p92 = pneg %p86
      %p93 = scmp.eq.s32.totalorder %s25, 1
      %p94 = por %p92, %p93
      %p95 = scmp.ne.s32.totalorder %s87, %s90
      %p96 = scmp.eq.s32.totalorder %s25, 0
      %p97 = por %p95, %p96
      %p98 = scmp.ne.s32.totalorder %s87, %s90
      %p99 = scmp.eq.s32.totalorder %s30, 1
      %p100 = por %p98, %p99
      %p101 = scmp.ne.s32.totalorder %s90, %s91
      %p102 = scmp.eq.s32.totalorder %s30, 0
      %p103 = por %p101, %p102
      %p104 = scmp.ne.s32.totalorder %s90, %s91
      %p105 = scmp.eq.s32.totalorder %s31, 1
      %p106 = por %p104, %p105
      %p108 = scmp.ne.s32.totalorder %s91, %s107
      %p109 = scmp.eq.s32.totalorder %s31, 0
      %p110 = por %p108, %p109
      %s111 = ssub.s32 %s25, %s32
      %p112 = scmp.eq.s32.totalorder %s111, 0
      %s114 = sadd.s32 %s113, 1
      %s115 = scalar_select %p112, %s113, %s114
      %p118 = pneg %p112
      %p119 = scmp.eq.s32.totalorder %s25, 1
      %p120 = por %p118, %p119
      %p121 = scmp.ne.s32.totalorder %s113, %s116
      %p122 = scmp.eq.s32.totalorder %s25, 0
      %p123 = por %p121, %p122
      %p124 = scmp.ne.s32.totalorder %s113, %s116
      %p125 = scmp.eq.s32.totalorder %s30, 1
      %p126 = por %p124, %p125
      %p127 = scmp.ne.s32.totalorder %s116, %s117
      %p128 = scmp.eq.s32.totalorder %s30, 0
      %p129 = por %p127, %p128
      %p130 = scmp.ne.s32.totalorder %s116, %s117
      %p131 = scmp.eq.s32.totalorder %s31, 1
      %p132 = por %p130, %p131
      %p134 = scmp.ne.s32.totalorder %s117, %s133
      %p135 = scmp.eq.s32.totalorder %s31, 0
      %p136 = por %p134, %p135
      %s138 = sadd.s32 %s137, 1
      %p141 = scmp.eq.s32.totalorder %s25, 1
      %p142 = scmp.ne.s32.totalorder %s137, %s139
      %p143 = scmp.eq.s32.totalorder %s25, 0
      %p144 = por %p142, %p143
      %p145 = scmp.ne.s32.totalorder %s137, %s139
      %p146 = scmp.eq.s32.totalorder %s30, 1
      %p147 = por %p145, %p146
      %p148 = scmp.ne.s32.totalorder %s139, %s140
      %p149 = scmp.eq.s32.totalorder %s30, 0
      %p150 = por %p148, %p149
      %p151 = scmp.ne.s32.totalorder %s139, %s140
      %p152 = scmp.eq.s32.totalorder %s31, 1
      %p153 = por %p151, %p152
      %p155 = scmp.ne.s32.totalorder %s140, %s154
      %p156 = scmp.eq.s32.totalorder %s31, 0
      %p157 = por %p155, %p156
      %s159 = sadd.s32 %s158, 1
      %p162 = scmp.eq.s32.totalorder %s25, 1
      %p163 = scmp.ne.s32.totalorder %s158, %s160
      %p164 = scmp.eq.s32.totalorder %s25, 0
      %p165 = por %p163, %p164
      %p166 = scmp.ne.s32.totalorder %s158, %s160
      %p167 = scmp.eq.s32.totalorder %s30, 1
      %p168 = por %p166, %p167
      %p169 = scmp.ne.s32.totalorder %s160, %s161
      %p170 = scmp.eq.s32.totalorder %s30, 0
      %p171 = por %p169, %p170
      %p172 = scmp.ne.s32.totalorder %s160, %s161
      %p173 = scmp.eq.s32.totalorder %s31, 1
      %p174 = por %p172, %p173
      %p176 = scmp.ne.s32.totalorder %s161, %s175
      %p177 = scmp.eq.s32.totalorder %s31, 0
      %p178 = por %p176, %p177
      %s180 = sadd.s32 %s179, 1
      %p183 = scmp.eq.s32.totalorder %s25, 1
      %p184 = scmp.ne.s32.totalorder %s179, %s181
      %p185 = scmp.eq.s32.totalorder %s25, 0
      %p186 = por %p184, %p185
      %p187 = scmp.ne.s32.totalorder %s179, %s181
      %p188 = scmp.eq.s32.totalorder %s30, 1
      %p189 = por %p187, %p188
      %p190 = scmp.ne.s32.totalorder %s181, %s182
      %p191 = scmp.eq.s32.totalorder %s30, 0
      %p192 = por %p190, %p191
      %p193 = scmp.ne.s32.totalorder %s181, %s182
      %p194 = scmp.eq.s32.totalorder %s31, 1
      %p195 = por %p193, %p194
      %p197 = scmp.ne.s32.totalorder %s182, %s196
      %p198 = scmp.eq.s32.totalorder %s31, 0
      %p199 = por %p197, %p198
      %s201 = sadd.s32 %s200, 1
      %p204 = scmp.eq.s32.totalorder %s25, 1
      %p205 = scmp.ne.s32.totalorder %s200, %s202
      %p206 = scmp.eq.s32.totalorder %s25, 0
      %p207 = por %p205, %p206
      %p208 = scmp.ne.s32.totalorder %s200, %s202
      %p209 = scmp.eq.s32.totalorder %s30, 1
      %p210 = por %p208, %p209
      %p211 = scmp.ne.s32.totalorder %s202, %s203
      %p212 = scmp.eq.s32.totalorder %s30, 0
      %p213 = por %p211, %p212
      %p214 = scmp.ne.s32.totalorder %s202, %s203
      %p215 = scmp.eq.s32.totalorder %s31, 1
      %p216 = por %p214, %p215
      %p218 = scmp.ne.s32.totalorder %s203, %s217
      %p219 = scmp.eq.s32.totalorder %s31, 0
      %p220 = por %p218, %p219
      %s222 = sadd.s32 %s221, 1
      %p225 = scmp.eq.s32.totalorder %s25, 1
      %p226 = scmp.ne.s32.totalorder %s221, %s223
      %p227 = scmp.eq.s32.totalorder %s25, 0
      %p228 = por %p226, %p227
      %p229 = scmp.ne.s32.totalorder %s221, %s223
      %p230 = scmp.eq.s32.totalorder %s30, 1
      %p231 = por %p229, %p230
      %p232 = scmp.ne.s32.totalorder %s223, %s224
      %p233 = scmp.eq.s32.totalorder %s30, 0
      %p234 = por %p232, %p233
      %p235 = scmp.ne.s32.totalorder %s223, %s224
      %p236 = scmp.eq.s32.totalorder %s31, 1
      %p237 = por %p235, %p236
      %p239 = scmp.ne.s32.totalorder %s224, %s238
      %p240 = scmp.eq.s32.totalorder %s31, 0
      %p241 = por %p239, %p240
      %s243 = sadd.s32 %s242, 1
      %p246 = scmp.eq.s32.totalorder %s25, 1
      %p247 = scmp.ne.s32.totalorder %s242, %s244
      %p248 = scmp.eq.s32.totalorder %s25, 0
      %p249 = por %p247, %p248
      %p250 = scmp.ne.s32.totalorder %s242, %s244
      %p251 = scmp.eq.s32.totalorder %s30, 1
      %p252 = por %p250, %p251
      %p253 = scmp.ne.s32.totalorder %s244, %s245
      %p254 = scmp.eq.s32.totalorder %s30, 0
      %p255 = por %p253, %p254
      %p256 = scmp.ne.s32.totalorder %s244, %s245
      %p257 = scmp.eq.s32.totalorder %s31, 1
      %p258 = por %p256, %p257
      %p260 = scmp.ne.s32.totalorder %s245, %s259
      %p261 = scmp.eq.s32.totalorder %s31, 0
      %p262 = por %p260, %p261
      %s264 = sadd.s32 %s263, 1
      %p267 = scmp.eq.s32.totalorder %s25, 1
      %p268 = scmp.ne.s32.totalorder %s263, %s265
      %p269 = scmp.eq.s32.totalorder %s25, 0
      %p270 = por %p268, %p269
      %p271 = scmp.ne.s32.totalorder %s263, %s265
      %p272 = scmp.eq.s32.totalorder %s30, 1
      %p273 = por %p271, %p272
      %p274 = scmp.ne.s32.totalorder %s265, %s266
      %p275 = scmp.eq.s32.totalorder %s30, 0
      %p276 = por %p274, %p275
      %p277 = scmp.ne.s32.totalorder %s265, %s266
      %p278 = scmp.eq.s32.totalorder %s31, 1
      %p279 = por %p277, %p278
      %p281 = scmp.ne.s32.totalorder %s266, %s280
      %p282 = scmp.eq.s32.totalorder %s31, 0
      %p283 = por %p281, %p282
      %s285 = sadd.s32 %s284, 1
      %p288 = scmp.eq.s32.totalorder %s25, 1
      %p289 = scmp.ne.s32.totalorder %s284, %s286
      %p290 = scmp.eq.s32.totalorder %s25, 0
      %p291 = por %p289, %p290
      %p292 = scmp.ne.s32.totalorder %s284, %s286
      %p293 = scmp.eq.s32.totalorder %s30, 1
      %p294 = por %p292, %p293
      %p295 = scmp.ne.s32.totalorder %s286, %s287
      %p296 = scmp.eq.s32.totalorder %s30, 0
      %p297 = por %p295, %p296
      %p298 = scmp.ne.s32.totalorder %s286, %s287
      %p299 = scmp.eq.s32.totalorder %s31, 1
      %p300 = por %p298, %p299
      %p302 = scmp.ne.s32.totalorder %s287, %s301
      %p303 = scmp.eq.s32.totalorder %s31, 0
      %p304 = por %p302, %p303
      %s306 = sadd.s32 %s305, 1
      %p309 = scmp.eq.s32.totalorder %s25, 1
      %p310 = scmp.ne.s32.totalorder %s305, %s307
      %p311 = scmp.eq.s32.totalorder %s25, 0
      %p312 = por %p310, %p311
      %p313 = scmp.ne.s32.totalorder %s305, %s307
      %p314 = scmp.eq.s32.totalorder %s30, 1
      %p315 = por %p313, %p314
      %p316 = scmp.ne.s32.totalorder %s307, %s308
      %p317 = scmp.eq.s32.totalorder %s30, 0
      %p318 = por %p316, %p317
      %p319 = scmp.ne.s32.totalorder %s307, %s308
      %p320 = scmp.eq.s32.totalorder %s31, 1
      %p321 = por %p319, %p320
      %p323 = scmp.ne.s32.totalorder %s308, %s322
      %p324 = scmp.eq.s32.totalorder %s31, 0
      %p325 = por %p323, %p324
      %s327 = sadd.s32 %s326, 1
      %p330 = scmp.eq.s32.totalorder %s25, 1
      %p331 = scmp.ne.s32.totalorder %s326, %s328
      %p332 = scmp.eq.s32.totalorder %s25, 0
      %p333 = por %p331, %p332
      %p334 = scmp.ne.s32.totalorder %s326, %s328
      %p335 = scmp.eq.s32.totalorder %s30, 1
      %p336 = por %p334, %p335
      %p337 = scmp.ne.s32.totalorder %s328, %s329
      %p338 = scmp.eq.s32.totalorder %s30, 0
      %p339 = por %p337, %p338
      %p340 = scmp.ne.s32.totalorder %s328, %s329
      %p341 = scmp.eq.s32.totalorder %s31, 1
      %p342 = por %p340, %p341
      %p344 = scmp.ne.s32.totalorder %s329, %s343
      %p345 = scmp.eq.s32.totalorder %s31, 0
      %p346 = por %p344, %p345
      %s347 = ssub.s32 %s25, %s32
      %p348 = scmp.eq.s32.totalorder %s347, 0
      %s350 = sadd.s32 %s349, 1
      %s351 = scalar_select %p348, %s349, %s350
      %p354 = pneg %p348
      %p355 = scmp.eq.s32.totalorder %s25, 1
      %p356 = por %p354, %p355
      %p357 = scmp.ne.s32.totalorder %s349, %s352
      %p358 = scmp.eq.s32.totalorder %s25, 0
      %p359 = por %p357, %p358
      %p360 = scmp.ne.s32.totalorder %s349, %s352
      %p361 = scmp.eq.s32.totalorder %s30, 1
      %p362 = por %p360, %p361
      %p363 = scmp.ne.s32.totalorder %s352, %s353
      %p364 = scmp.eq.s32.totalorder %s30, 0
      %p365 = por %p363, %p364
      %p366 = scmp.ne.s32.totalorder %s352, %s353
      %p367 = scmp.eq.s32.totalorder %s31, 1
      %p368 = por %p366, %p367
      %p370 = scmp.ne.s32.totalorder %s353, %s369
      %p371 = scmp.eq.s32.totalorder %s31, 0
      %p372 = por %p370, %p371
      %s373 = ssub.s32 %s25, %s32
      %p374 = scmp.eq.s32.totalorder %s373, 0
      %s376 = sadd.s32 %s375, 1
      %s377 = scalar_select %p374, %s375, %s376
      %p380 = pneg %p374
      %p381 = scmp.eq.s32.totalorder %s25, 1
      %p382 = por %p380, %p381
      %p383 = scmp.ne.s32.totalorder %s375, %s378
      %p384 = scmp.eq.s32.totalorder %s25, 0
      %p385 = por %p383, %p384
      %p386 = scmp.ne.s32.totalorder %s375, %s378
      %p387 = scmp.eq.s32.totalorder %s30, 1
      %p388 = por %p386, %p387
      %p389 = scmp.ne.s32.totalorder %s378, %s379
      %p390 = scmp.eq.s32.totalorder %s30, 0
      %p391 = por %p389, %p390
      %p392 = scmp.ne.s32.totalorder %s378, %s379
      %p393 = scmp.eq.s32.totalorder %s31, 1
      %p394 = por %p392, %p393
      %p396 = scmp.ne.s32.totalorder %s379, %s395
      %p397 = scmp.eq.s32.totalorder %s31, 0
      %p398 = por %p396, %p397
      %p399 = scmp.le.s32.totalorder 1, %s25
      %p400 = scmp.lt.s32.totalorder %s25, 3
      %p401 = pnand %p399, %p400
      %p402 = pneg %p401
      // Predicated region
      $region9: #{_lambda_.31} parent=5 // pred_check
        _
      $region10: #{_lambda_.31} parent=5 // pred_check_branch
        %404 = sbr.rel (%p401) target = $region12
      $region11: #{_lambda_.31} parent=5 // pred_region
        %s405 = ssub.s32 %s25, 1
        // Predicated region
        $region13: #{_lambda_.31} parent=11 // pred_check
          %p406 = pneg %p150
        $region14: #{_lambda_.31} parent=11 // pred_check_branch
          %408 = sbr.rel (%p406) target = $region16
        $region15: #{_lambda_.31} parent=11 // pred_region
          _
        $region16: #{_lambda_.31} parent=11 // pred_fallthru
          _
        // Predicated region
        $region17: #{_lambda_.31} parent=11 // pred_check
          %p409 = pneg %p171
        $region18: #{_lambda_.31} parent=11 // pred_check_branch
          %411 = sbr.rel (%p409) target = $region20
        $region19: #{_lambda_.31} parent=11 // pred_region
          _
        $region20: #{_lambda_.31} parent=11 // pred_fallthru
          _
        // Predicated region
        $region21: #{_lambda_.31} parent=11 // pred_check
          %p412 = pneg %p192
        $region22: #{_lambda_.31} parent=11 // pred_check_branch
          %414 = sbr.rel (%p412) target = $region24
        $region23: #{_lambda_.31} parent=11 // pred_region
          _
        $region24: #{_lambda_.31} parent=11 // pred_fallthru
          _
        // Predicated region
        $region25: #{_lambda_.31} parent=11 // pred_check
          %p415 = pneg %p213
        $region26: #{_lambda_.31} parent=11 // pred_check_branch
          %417 = sbr.rel (%p415) target = $region28
        $region27: #{_lambda_.31} parent=11 // pred_region
          _
        $region28: #{_lambda_.31} parent=11 // pred_fallthru
          _
        // Predicated region
        $region29: #{_lambda_.31} parent=11 // pred_check
          %p418 = pneg %p234
        $region30: #{_lambda_.31} parent=11 // pred_check_branch
          %420 = sbr.rel (%p418) target = $region32
        $region31: #{_lambda_.31} parent=11 // pred_region
          _
        $region32: #{_lambda_.31} parent=11 // pred_fallthru
          _
        // Predicated region
        $region33: #{_lambda_.31} parent=11 // pred_check
          %p421 = pneg %p255
        $region34: #{_lambda_.31} parent=11 // pred_check_branch
          %423 = sbr.rel (%p421) target = $region36
        $region35: #{_lambda_.31} parent=11 // pred_region
          _
        $region36: #{_lambda_.31} parent=11 // pred_fallthru
          _
        // Predicated region
        $region37: #{_lambda_.31} parent=11 // pred_check
          %p424 = pneg %p276
        $region38: #{_lambda_.31} parent=11 // pred_check_branch
          %426 = sbr.rel (%p424) target = $region40
        $region39: #{_lambda_.31} parent=11 // pred_region
          _
        $region40: #{_lambda_.31} parent=11 // pred_fallthru
          _
        // Predicated region
        $region41: #{_lambda_.31} parent=11 // pred_check
          %p427 = pneg %p297
        $region42: #{_lambda_.31} parent=11 // pred_check_branch
          %429 = sbr.rel (%p427) target = $region44
        $region43: #{_lambda_.31} parent=11 // pred_region
          _
        $region44: #{_lambda_.31} parent=11 // pred_fallthru
          _
        // Predicated region
        $region45: #{_lambda_.31} parent=11 // pred_check
          %p430 = pneg %p318
        $region46: #{_lambda_.31} parent=11 // pred_check_branch
          %432 = sbr.rel (%p430) target = $region48
        $region47: #{_lambda_.31} parent=11 // pred_region
          _
        $region48: #{_lambda_.31} parent=11 // pred_fallthru
          _
        // Predicated region
        $region49: #{_lambda_.31} parent=11 // pred_check
          %p433 = pneg %p339
        $region50: #{_lambda_.31} parent=11 // pred_check_branch
          %435 = sbr.rel (%p433) target = $region52
        $region51: #{_lambda_.31} parent=11 // pred_region
          _
        $region52: #{_lambda_.31} parent=11 // pred_fallthru
          _
      $region12: #{_lambda_.31} parent=5 // pred_fallthru
        _
      %p436 = scmp.lt.s32.totalorder %s25, 2
      // Predicated region
      $region53: #{_lambda_.31} parent=5 // pred_check
        %p437 = pneg %p436
      $region54: #{_lambda_.31} parent=5 // pred_check_branch
        %439 = sbr.rel (%p437) target = $region56
      $region55: #{_lambda_.31} parent=5 // pred_region
        // Predicated region
        $region57: #{_lambda_.31} parent=55 // pred_check
          %p440 = pneg %p45
        $region58: #{_lambda_.31} parent=55 // pred_check_branch
          %442 = sbr.rel (%p440) target = $region60
        $region59: #{_lambda_.31} parent=55 // pred_region
          %s443 = smul.u32 4, %s25
          %p444 = scmp.lt.s32.totalorder %s443, 7
          %s445 = scalar_select %p444, %s443, 7
          %s446 = scalar_lea.vmem %s0, %s445
          %s447 = smul.u32 4, %s25
        $region60: #{_lambda_.31} parent=55 // pred_fallthru
          _
        // Predicated region
        $region61: #{_lambda_.31} parent=55 // pred_check
          %p448 = pneg %p71
        $region62: #{_lambda_.31} parent=55 // pred_check_branch
          %450 = sbr.rel (%p448) target = $region64
        $region63: #{_lambda_.31} parent=55 // pred_region
          %s451 = smul.u32 4, %s25
          %p452 = scmp.lt.s32.totalorder %s451, 7
          %s453 = scalar_select %p452, %s451, 7
          %s454 = scalar_lea.vmem %s1, %s453
          %s455 = smul.u32 4, %s25
        $region64: #{_lambda_.31} parent=55 // pred_fallthru
          _
        // Predicated region
        $region65: #{_lambda_.31} parent=55 // pred_check
          %p456 = pneg %p97
        $region66: #{_lambda_.31} parent=55 // pred_check_branch
          %458 = sbr.rel (%p456) target = $region68
        $region67: #{_lambda_.31} parent=55 // pred_region
          %s459 = sand.u32 %s87, 1
          %s460 = sand.u32 %s87, 1
          %s461 = smul.addr %s460, 128
          %s462 = scalar_lea.vmem [#allocation2], %s461
          %s463 = smul.u32 4, %s25
          %s464 = smul.addr %s463, 8
          %s465 = scalar_lea.vmem %s2, %s464
          // Predicated region
          $region69: #{_lambda_.31} parent=67 // pred_check
            _
          $region70: #{_lambda_.31} parent=67 // pred_check_branch
            %467 = sbr.rel (0) target = $region72
          $region71: #{_lambda_.31} parent=67 // pred_region
            // Predicated region
            $region73: #{_lambda_.31} parent=71 // pred_check
              _
            $region74: #{_lambda_.31} parent=71 // pred_check_branch
              %469 = sbr.rel (0) target = $region76
            $region75: #{_lambda_.31} parent=71 // pred_region
              loop: start=0, step=1, limit=1
              $region77: #{_lambda_.31} parent=75 // loop_pre_header
                _
              $region78: #{_lambda_.31} parent=75 // loop_header
                %s471 = sphi 0, %s475
                %p472 = scmp.ge.s32.totalorder %s471, 1
                %s476 = sphi %s465, %s465
                %s477 = sphi %s462, %s462
              $region79: #{_lambda_.31} parent=75 // loop_header_branch
                %474 = sbr.rel (%p472) target = $region83
              $region80: #{_lambda_.31} parent=75 // loop_body
                %v478 = vld [vmem:[%s476] sm:$0xff]
                %479 = vst [vmem:[%s477] sm:$0xff] %v478
                %v480 = vld [vmem:[%s476 + $0x8] sm:$0xff]
                %481 = vst [vmem:[%s477 + $0x8] sm:$0xff] %v480
                %v482 = vld [vmem:[%s476 + $0x10] sm:$0xff]
                %483 = vst [vmem:[%s477 + $0x10] sm:$0xff] %v482
                %v484 = vld [vmem:[%s476 + $0x18] sm:$0xff]
                %485 = vst [vmem:[%s477 + $0x18] sm:$0xff] %v484
                %v486 = vld [vmem:[%s476 + $0x40] sm:$0xff]
                %487 = vst [vmem:[%s477 + $0x20] sm:$0xff] %v486
                %v488 = vld [vmem:[%s476 + $0x48] sm:$0xff]
                %489 = vst [vmem:[%s477 + $0x28] sm:$0xff] %v488
                %v490 = vld [vmem:[%s476 + $0x50] sm:$0xff]
                %491 = vst [vmem:[%s477 + $0x30] sm:$0xff] %v490
                %v492 = vld [vmem:[%s476 + $0x58] sm:$0xff]
                %493 = vst [vmem:[%s477 + $0x38] sm:$0xff] %v492
                %v494 = vld [vmem:[%s476 + $0x80] sm:$0xff]
                %495 = vst [vmem:[%s477 + $0x40] sm:$0xff] %v494
                %v496 = vld [vmem:[%s476 + $0x88] sm:$0xff]
                %497 = vst [vmem:[%s477 + $0x48] sm:$0xff] %v496
                %v498 = vld [vmem:[%s476 + $0x90] sm:$0xff]
                %499 = vst [vmem:[%s477 + $0x50] sm:$0xff] %v498
                %v500 = vld [vmem:[%s476 + $0x98] sm:$0xff]
                %501 = vst [vmem:[%s477 + $0x58] sm:$0xff] %v500
                %v502 = vld [vmem:[%s476 + $0xc0] sm:$0xff]
                %503 = vst [vmem:[%s477 + $0x60] sm:$0xff] %v502
                %v504 = vld [vmem:[%s476 + $0xc8] sm:$0xff]
                %505 = vst [vmem:[%s477 + $0x68] sm:$0xff] %v504
                %v506 = vld [vmem:[%s476 + $0xd0] sm:$0xff]
                %507 = vst [vmem:[%s477 + $0x70] sm:$0xff] %v506
                %v508 = vld [vmem:[%s476 + $0xd8] sm:$0xff]
                %509 = vst [vmem:[%s477 + $0x78] sm:$0xff] %v508
              $region81: #{_lambda_.31} parent=75 // loop_footer
                %s475 = sadd.s32 1, %s471
              $region82: #{_lambda_.31} parent=75 // loop_footer_branch
                %470 = sbr.rel target = $region78
              $region83: #{_lambda_.31} parent=75 // loop_exit
                _
            $region76: #{_lambda_.31} parent=71 // pred_fallthru
              _
            // Predicated region
            $region84: #{_lambda_.31} parent=71 // pred_check
              _
            $region85: #{_lambda_.31} parent=71 // pred_check_branch
              %511 = sbr.rel target = $region87
            $region86: #{_lambda_.31} parent=71 // pred_region
              _
            $region87: #{_lambda_.31} parent=71 // pred_fallthru
              _
          $region72: #{_lambda_.31} parent=67 // pred_fallthru
            _
          %512 = vnop
        $region68: #{_lambda_.31} parent=55 // pred_fallthru
          _
        // Predicated region
        $region88: #{_lambda_.31} parent=55 // pred_check
          %p513 = pneg %p123
        $region89: #{_lambda_.31} parent=55 // pred_check_branch
          %515 = sbr.rel (%p513) target = $region91
        $region90: #{_lambda_.31} parent=55 // pred_region
          %s516 = sand.u32 %s113, 1
          %s517 = sand.u32 %s113, 1
          %s518 = smul.addr %s517, 64
          %s519 = scalar_lea.vmem [#allocation3], %s518
          %s520 = smul.u32 4, %s25
          %s521 = smul.addr %s520, 8
          %s522 = scalar_lea.vmem %s3, %s521
          // Predicated region
          $region92: #{_lambda_.31} parent=90 // pred_check
            _
          $region93: #{_lambda_.31} parent=90 // pred_check_branch
            %524 = sbr.rel (0) target = $region95
          $region94: #{_lambda_.31} parent=90 // pred_region
            // Predicated region
            $region96: #{_lambda_.31} parent=94 // pred_check
              _
            $region97: #{_lambda_.31} parent=94 // pred_check_branch
              %526 = sbr.rel (0) target = $region99
            $region98: #{_lambda_.31} parent=94 // pred_region
              loop: start=0, step=1, limit=1
              $region100: #{_lambda_.31} parent=98 // loop_pre_header
                _
              $region101: #{_lambda_.31} parent=98 // loop_header
                %s528 = sphi 0, %s532
                %p529 = scmp.ge.s32.totalorder %s528, 1
                %s533 = sphi %s522, %s522
                %s534 = sphi %s519, %s519
              $region102: #{_lambda_.31} parent=98 // loop_header_branch
                %531 = sbr.rel (%p529) target = $region106
              $region103: #{_lambda_.31} parent=98 // loop_body
                %v535 = vld [vmem:[%s533] sm:$0xff]
                %536 = vst [vmem:[%s534] sm:$0xff] %v535
                %v537 = vld [vmem:[%s533 + $0x8] sm:$0xff]
                %538 = vst [vmem:[%s534 + $0x8] sm:$0xff] %v537
                %v539 = vld [vmem:[%s533 + $0x10] sm:$0xff]
                %540 = vst [vmem:[%s534 + $0x10] sm:$0xff] %v539
                %v541 = vld [vmem:[%s533 + $0x18] sm:$0xff]
                %542 = vst [vmem:[%s534 + $0x18] sm:$0xff] %v541
                %v543 = vld [vmem:[%s533 + $0x40] sm:$0xff]
                %544 = vst [vmem:[%s534 + $0x20] sm:$0xff] %v543
                %v545 = vld [vmem:[%s533 + $0x48] sm:$0xff]
                %546 = vst [vmem:[%s534 + $0x28] sm:$0xff] %v545
                %v547 = vld [vmem:[%s533 + $0x50] sm:$0xff]
                %548 = vst [vmem:[%s534 + $0x30] sm:$0xff] %v547
                %v549 = vld [vmem:[%s533 + $0x58] sm:$0xff]
                %550 = vst [vmem:[%s534 + $0x38] sm:$0xff] %v549
              $region104: #{_lambda_.31} parent=98 // loop_footer
                %s532 = sadd.s32 1, %s528
              $region105: #{_lambda_.31} parent=98 // loop_footer_branch
                %527 = sbr.rel target = $region101
              $region106: #{_lambda_.31} parent=98 // loop_exit
                _
            $region99: #{_lambda_.31} parent=94 // pred_fallthru
              _
            // Predicated region
            $region107: #{_lambda_.31} parent=94 // pred_check
              _
            $region108: #{_lambda_.31} parent=94 // pred_check_branch
              %552 = sbr.rel target = $region110
            $region109: #{_lambda_.31} parent=94 // pred_region
              _
            $region110: #{_lambda_.31} parent=94 // pred_fallthru
              _
          $region95: #{_lambda_.31} parent=90 // pred_fallthru
            _
          %553 = vnop
        $region91: #{_lambda_.31} parent=55 // pred_fallthru
          _
      $region56: #{_lambda_.31} parent=5 // pred_fallthru
        _
      %p554 = scmp.le.s32.totalorder 1, %s25
      %p555 = scmp.lt.s32.totalorder %s25, 3
      %p556 = pnand %p554, %p555
      %p557 = pneg %p556
      // Predicated region
      $region111: #{_lambda_.31} parent=5 // pred_check
        _
      $region112: #{_lambda_.31} parent=5 // pred_check_branch
        %559 = sbr.rel (%p556) target = $region114
      $region113: #{_lambda_.31} parent=5 // pred_region
        %s560 = ssub.s32 %s25, 1
        %s561 = sand.u32 %s90, 1
        %s562 = sand.u32 %s90, 1
        %s563 = smul.addr %s562, 128
        %s564 = scalar_lea.vmem [#allocation2], %s563
        // Predicated region
        $region115: #{_lambda_.31} parent=113 // pred_check
          %p565 = pneg %p103
        $region116: #{_lambda_.31} parent=113 // pred_check_branch
          %567 = sbr.rel (%p565) target = $region118
        $region117: #{_lambda_.31} parent=113 // pred_region
          _
        $region118: #{_lambda_.31} parent=113 // pred_fallthru
          _
        %s568 = sand.u32 %s116, 1
        %s569 = sand.u32 %s116, 1
        %s570 = smul.addr %s569, 64
        %s571 = scalar_lea.vmem [#allocation3], %s570
        // Predicated region
        $region119: #{_lambda_.31} parent=113 // pred_check
          %p572 = pneg %p129
        $region120: #{_lambda_.31} parent=113 // pred_check_branch
          %574 = sbr.rel (%p572) target = $region122
        $region121: #{_lambda_.31} parent=113 // pred_region
          _
        $region122: #{_lambda_.31} parent=113 // pred_fallthru
          _
        %s575 = smul.u32 4, %s30
        %p576 = scmp.lt.s32.totalorder %s575, 7
        %s577 = scalar_select %p576, %s575, 7
        %s578 = scalar_lea.vmem %s0, %s577
        %p579 = pneg %p51
        %p580 = pneg %p48
        %s581 = smul.u32 4, %s30
        %p582 = scmp.lt.s32.totalorder %s581, 7
        %s583 = scalar_select %p582, %s581, 7
        %s584 = scalar_lea.vmem %s1, %s583
        %p585 = pneg %p77
        %p586 = pneg %p74
        %s587 = sand.u32 %s90, 1
        %s588 = sand.u32 %s90, 1
        %s589 = smul.addr %s588, 128
        %s590 = scalar_lea.vmem [#allocation2], %s589
        %p591 = pneg %p103
        %p592 = pneg %p100
        %s593 = sand.u32 %s116, 1
        %s594 = sand.u32 %s116, 1
        %s595 = smul.addr %s594, 64
        %s596 = scalar_lea.vmem [#allocation3], %s595
        %p597 = pneg %p129
        %p598 = pneg %p126
        %p599 = pneg %p150
        %p600 = pneg %p147
        %p601 = pneg %p171
        %p602 = pneg %p168
        %p603 = pneg %p192
        %p604 = pneg %p189
        %p605 = pneg %p213
        %p606 = pneg %p210
        %p607 = pneg %p234
        %p608 = pneg %p231
        %p609 = pneg %p255
        %p610 = pneg %p252
        %p611 = pneg %p276
        %p612 = pneg %p273
        %p613 = pneg %p297
        %p614 = pneg %p294
        %p615 = pneg %p318
        %p616 = pneg %p315
        %p617 = pneg %p339
        %p618 = pneg %p336
        %p619 = pneg %p365
        %p620 = pneg %p362
        %s621 = smul.u32 4, %s30
        %p622 = scmp.lt.s32.totalorder %s621, 7
        %s623 = scalar_select %p622, %s621, 7
        %s624 = smul.addr %s623, 4
        %s625 = scalar_lea.vmem %s14, %s624
        %p626 = pneg %p391
        %p627 = pneg %p388
        %s628 = sand.u32 %s378, 1
        %s629 = scalar_lea.sflag [#allocation5], %s628
        %s630 = sand.u32 %s378, 1
        %s631 = smul.addr %s630, 64
        %s632 = scalar_lea.vmem [#allocation4], %s631
        %s633 = smul.u32 4, %s30
        %p634 = scmp.lt.s32.totalorder %s633, 7
        %s635 = scalar_select %p634, %s633, 7
        %s636 = scalar_lea.vmem %s0, %s635
        %s637 = smul.u32 4, %s30
        %s638 = smul.u32 4, %s30
        %p639 = scmp.lt.s32.totalorder %s638, 7
        %s640 = scalar_select %p639, %s638, 7
        %s641 = scalar_lea.vmem %s1, %s640
        %s642 = smul.u32 4, %s30
        %s643 = smul.u32 4, %s30
        %s644 = smul.u32 4, %s30
        %s645 = smul.u32 4, %s30
        %p646 = scmp.lt.s32.totalorder %s645, 7
        %s647 = scalar_select %p646, %s645, 7
        %s648 = smul.addr %s647, 4
        %s649 = scalar_lea.vmem %s14, %s648
        %s650 = smul.u32 4, %s30
        %s651 = smul.u32 4, %s30
        %v652 = vld [vmem:[%s4] sm:$0xff]
        %v653 = vld [vmem:[%s4 + $0x8] sm:$0xff]
        %v654 = vld [vmem:[%s4 + $0x10] sm:$0xff]
        %v655 = vld [vmem:[%s4 + $0x18] sm:$0xff]
        %v656 = vld [vmem:[%s636] sm:$0xf]
        %658 = vset.pattern.permute.xlu0 0
        %659 = vperm.xlu0 %658, %v652
        %v660 = vpop.permute.xlu0 %659
        %663 = vset.pattern.permute.xlu0 0
        %664 = vperm.xlu0 %663, %v653
        %v665 = vpop.permute.xlu0 %664
        %668 = vset.pattern.permute.xlu0 0
        %669 = vperm.xlu0 %668, %v654
        %v670 = vpop.permute.xlu0 %669
        %673 = vset.pattern.permute.xlu0 0
        %674 = vperm.xlu0 %673, %v655
        %v675 = vpop.permute.xlu0 %674
        %v678 = vperm.slane %v656, 0
        %v679 = vperm.slane %v656, 1
        %v680 = vperm.slane %v656, 2
        %v681 = vperm.slane %v656, 3
        %v686 = vmul.f32 %v660, %v678
        %v687 = vmul.f32 %v660, %v679
        %v688 = vmul.f32 %v660, %v680
        %v689 = vmul.f32 %v660, %v681
        %v690 = vmul.f32 %v665, %v678
        %v691 = vmul.f32 %v665, %v679
        %v692 = vmul.f32 %v665, %v680
        %v693 = vmul.f32 %v665, %v681
        %v694 = vmul.f32 %v670, %v678
        %v695 = vmul.f32 %v670, %v679
        %v696 = vmul.f32 %v670, %v680
        %v697 = vmul.f32 %v670, %v681
        %v698 = vmul.f32 %v675, %v678
        %v699 = vmul.f32 %v675, %v679
        %v700 = vmul.f32 %v675, %v680
        %v701 = vmul.f32 %v675, %v681
        %v702 = vld [vmem:[%s5] sm:$0xff]
        %v703 = vld [vmem:[%s5 + $0x8] sm:$0xff]
        %v704 = vld [vmem:[%s5 + $0x10] sm:$0xff]
        %v705 = vld [vmem:[%s5 + $0x18] sm:$0xff]
        %v706 = vld [vmem:[%s641] sm:$0xf]
        %708 = vset.pattern.permute.xlu0 0
        %709 = vperm.xlu0 %708, %v702
        %v710 = vpop.permute.xlu0 %709
        %713 = vset.pattern.permute.xlu0 0
        %714 = vperm.xlu0 %713, %v703
        %v715 = vpop.permute.xlu0 %714
        %718 = vset.pattern.permute.xlu0 0
        %719 = vperm.xlu0 %718, %v704
        %v720 = vpop.permute.xlu0 %719
        %723 = vset.pattern.permute.xlu0 0
        %724 = vperm.xlu0 %723, %v705
        %v725 = vpop.permute.xlu0 %724
        %v728 = vperm.slane %v706, 0
        %v729 = vperm.slane %v706, 1
        %v730 = vperm.slane %v706, 2
        %v731 = vperm.slane %v706, 3
        %v736 = vmul.f32 %v710, %v728
        %v737 = vmul.f32 %v710, %v729
        %v738 = vmul.f32 %v710, %v730
        %v739 = vmul.f32 %v710, %v731
        %v740 = vmul.f32 %v715, %v728
        %v741 = vmul.f32 %v715, %v729
        %v742 = vmul.f32 %v715, %v730
        %v743 = vmul.f32 %v715, %v731
        %v744 = vmul.f32 %v720, %v728
        %v745 = vmul.f32 %v720, %v729
        %v746 = vmul.f32 %v720, %v730
        %v747 = vmul.f32 %v720, %v731
        %v748 = vmul.f32 %v725, %v728
        %v749 = vmul.f32 %v725, %v729
        %v750 = vmul.f32 %v725, %v730
        %v751 = vmul.f32 %v725, %v731
        %v752 = vadd.f32 %v686, %v736
        %v753 = vadd.f32 %v687, %v737
        %v754 = vadd.f32 %v688, %v738
        %v755 = vadd.f32 %v689, %v739
        %v756 = vadd.f32 %v690, %v740
        %v757 = vadd.f32 %v691, %v741
        %v758 = vadd.f32 %v692, %v742
        %v759 = vadd.f32 %v693, %v743
        %v760 = vadd.f32 %v694, %v744
        %v761 = vadd.f32 %v695, %v745
        %v762 = vadd.f32 %v696, %v746
        %v763 = vadd.f32 %v697, %v747
        %v764 = vadd.f32 %v698, %v748
        %v765 = vadd.f32 %v699, %v749
        %v766 = vadd.f32 %v700, %v750
        %v767 = vadd.f32 %v701, %v751
        %v768 = vld [vmem:[%s6] sm:$0xff]
        %v769 = vld [vmem:[%s6 + $0x8] sm:$0xff]
        %v770 = vld [vmem:[%s6 + $0x10] sm:$0xff]
        %v771 = vld [vmem:[%s6 + $0x18] sm:$0xff]
        %v772 = vld [vmem:[%s564] sm:$0xff]
        %v773 = vld [vmem:[%s564 + $0x8] sm:$0xff]
        %v774 = vld [vmem:[%s564 + $0x10] sm:$0xff]
        %v775 = vld [vmem:[%s564 + $0x18] sm:$0xff]
        %v776 = vld [vmem:[%s564 + $0x20] sm:$0xff]
        %v777 = vld [vmem:[%s564 + $0x28] sm:$0xff]
        %v778 = vld [vmem:[%s564 + $0x30] sm:$0xff]
        %v779 = vld [vmem:[%s564 + $0x38] sm:$0xff]
        %v780 = vld [vmem:[%s564 + $0x40] sm:$0xff]
        %v781 = vld [vmem:[%s564 + $0x48] sm:$0xff]
        %v782 = vld [vmem:[%s564 + $0x50] sm:$0xff]
        %v783 = vld [vmem:[%s564 + $0x58] sm:$0xff]
        %v784 = vld [vmem:[%s564 + $0x60] sm:$0xff]
        %v785 = vld [vmem:[%s564 + $0x68] sm:$0xff]
        %v786 = vld [vmem:[%s564 + $0x70] sm:$0xff]
        %v787 = vld [vmem:[%s564 + $0x78] sm:$0xff]
        %vm788 = vcmask 261120
        %v790 = vsel %vm788, %v768, 0
        %v793 = vsel %vm788, %v769, 0
        %v796 = vsel %vm788, %v770, 0
        %v799 = vsel %vm788, %v771, 0
        %801 = vmatpush.msra.mxu0 0.0
        %802 = vmatpush.msra.mxu0 0.0
        %803 = vmatpush.msra.mxu0 0.0
        %804 = vmatpush.msra.mxu0 0.0
        %805 = vmatpush.msra.mxu0 0.0
        %806 = vmatpush.msra.mxu0 0.0
        %807 = vmatpush.msra.mxu0 0.0
        %808 = vmatpush.msra.mxu0 0.0
        %809 = vmatpush.msra.mxu0 0.0
        %810 = vmatpush.msra.mxu0 0.0
        %811 = vmatpush.msra.mxu0 0.0
        %812 = vmatpush.msra.mxu0 0.0
        %813 = vmatpush.msra.mxu0 %v784
        %814 = vmatpush.msra.mxu0 %v780
        %815 = vmatpush.msra.mxu0 %v776
        %816 = vmatpush.msra.mxu0 %v772
        %817 = vmatmul.f32.gmra.mxu0 %v790
        %v818 = vpop.f32.mrf.mxu0
        %v819 = vadd.f32 0.0, %v818
        %820 = vmatmul.f32.gmra.mxu0 %v793
        %v821 = vpop.f32.mrf.mxu0
        %v822 = vadd.f32 0.0, %v821
        %823 = vmatmul.f32.gmra.mxu0 %v796
        %v824 = vpop.f32.mrf.mxu0
        %v825 = vadd.f32 0.0, %v824
        %826 = vmatmul.f32.gmra.mxu0 %v799
        %v827 = vpop.f32.mrf.mxu0
        %v828 = vadd.f32 0.0, %v827
        %829 = vdwg.mxu0
        %830 = vmatpush.msra.mxu0 0.0
        %831 = vmatpush.msra.mxu0 0.0
        %832 = vmatpush.msra.mxu0 0.0
        %833 = vmatpush.msra.mxu0 0.0
        %834 = vmatpush.msra.mxu0 0.0
        %835 = vmatpush.msra.mxu0 0.0
        %836 = vmatpush.msra.mxu0 0.0
        %837 = vmatpush.msra.mxu0 0.0
        %838 = vmatpush.msra.mxu0 0.0
        %839 = vmatpush.msra.mxu0 0.0
        %840 = vmatpush.msra.mxu0 0.0
        %841 = vmatpush.msra.mxu0 0.0
        %842 = vmatpush.msra.mxu0 %v785
        %843 = vmatpush.msra.mxu0 %v781
        %844 = vmatpush.msra.mxu0 %v777
        %845 = vmatpush.msra.mxu0 %v773
        %846 = vmatmul.f32.gmra.mxu0 %v790
        %v847 = vpop.f32.mrf.mxu0
        %v848 = vadd.f32 0.0, %v847
        %849 = vmatmul.f32.gmra.mxu0 %v793
        %v850 = vpop.f32.mrf.mxu0
        %v851 = vadd.f32 0.0, %v850
        %852 = vmatmul.f32.gmra.mxu0 %v796
        %v853 = vpop.f32.mrf.mxu0
        %v854 = vadd.f32 0.0, %v853
        %855 = vmatmul.f32.gmra.mxu0 %v799
        %v856 = vpop.f32.mrf.mxu0
        %v857 = vadd.f32 0.0, %v856
        %858 = vdwg.mxu0
        %859 = vmatpush.msra.mxu0 0.0
        %860 = vmatpush.msra.mxu0 0.0
        %861 = vmatpush.msra.mxu0 0.0
        %862 = vmatpush.msra.mxu0 0.0
        %863 = vmatpush.msra.mxu0 0.0
        %864 = vmatpush.msra.mxu0 0.0
        %865 = vmatpush.msra.mxu0 0.0
        %866 = vmatpush.msra.mxu0 0.0
        %867 = vmatpush.msra.mxu0 0.0
        %868 = vmatpush.msra.mxu0 0.0
        %869 = vmatpush.msra.mxu0 0.0
        %870 = vmatpush.msra.mxu0 0.0
        %871 = vmatpush.msra.mxu0 %v786
        %872 = vmatpush.msra.mxu0 %v782
        %873 = vmatpush.msra.mxu0 %v778
        %874 = vmatpush.msra.mxu0 %v774
        %875 = vmatmul.f32.gmra.mxu0 %v790
        %v876 = vpop.f32.mrf.mxu0
        %v877 = vadd.f32 0.0, %v876
        %878 = vmatmul.f32.gmra.mxu0 %v793
        %v879 = vpop.f32.mrf.mxu0
        %v880 = vadd.f32 0.0, %v879
        %881 = vmatmul.f32.gmra.mxu0 %v796
        %v882 = vpop.f32.mrf.mxu0
        %v883 = vadd.f32 0.0, %v882
        %884 = vmatmul.f32.gmra.mxu0 %v799
        %v885 = vpop.f32.mrf.mxu0
        %v886 = vadd.f32 0.0, %v885
        %887 = vdwg.mxu0
        %888 = vmatpush.msra.mxu0 0.0
        %889 = vmatpush.msra.mxu0 0.0
        %890 = vmatpush.msra.mxu0 0.0
        %891 = vmatpush.msra.mxu0 0.0
        %892 = vmatpush.msra.mxu0 0.0
        %893 = vmatpush.msra.mxu0 0.0
        %894 = vmatpush.msra.mxu0 0.0
        %895 = vmatpush.msra.mxu0 0.0
        %896 = vmatpush.msra.mxu0 0.0
        %897 = vmatpush.msra.mxu0 0.0
        %898 = vmatpush.msra.mxu0 0.0
        %899 = vmatpush.msra.mxu0 0.0
        %900 = vmatpush.msra.mxu0 %v787
        %901 = vmatpush.msra.mxu0 %v783
        %902 = vmatpush.msra.mxu0 %v779
        %903 = vmatpush.msra.mxu0 %v775
        %904 = vmatmul.f32.gmra.mxu0 %v790
        %v905 = vpop.f32.mrf.mxu0
        %v906 = vadd.f32 0.0, %v905
        %907 = vmatmul.f32.gmra.mxu0 %v793
        %v908 = vpop.f32.mrf.mxu0
        %v909 = vadd.f32 0.0, %v908
        %910 = vmatmul.f32.gmra.mxu0 %v796
        %v911 = vpop.f32.mrf.mxu0
        %v912 = vadd.f32 0.0, %v911
        %913 = vmatmul.f32.gmra.mxu0 %v799
        %v914 = vpop.f32.mrf.mxu0
        %v915 = vadd.f32 0.0, %v914
        %916 = vdwg.mxu0
        %v917 = vadd.f32 %v752, %v819
        %v918 = vadd.f32 %v753, %v848
        %v919 = vadd.f32 %v754, %v877
        %v920 = vadd.f32 %v755, %v906
        %v921 = vadd.f32 %v756, %v822
        %v922 = vadd.f32 %v757, %v851
        %v923 = vadd.f32 %v758, %v880
        %v924 = vadd.f32 %v759, %v909
        %v925 = vadd.f32 %v760, %v825
        %v926 = vadd.f32 %v761, %v854
        %v927 = vadd.f32 %v762, %v883
        %v928 = vadd.f32 %v763, %v912
        %v929 = vadd.f32 %v764, %v828
        %v930 = vadd.f32 %v765, %v857
        %v931 = vadd.f32 %v766, %v886
        %v932 = vadd.f32 %v767, %v915
        %v933 = vld [vmem:[%s7] sm:$0xff]
        %v934 = vld [vmem:[%s7 + $0x8] sm:$0xff]
        %v935 = vld [vmem:[%s7 + $0x10] sm:$0xff]
        %v936 = vld [vmem:[%s7 + $0x18] sm:$0xff]
        %v937 = vld [vmem:[%s571] sm:$0xff]
        %v938 = vld [vmem:[%s571 + $0x8] sm:$0xff]
        %v939 = vld [vmem:[%s571 + $0x10] sm:$0xff]
        %v940 = vld [vmem:[%s571 + $0x18] sm:$0xff]
        %v941 = vld [vmem:[%s571 + $0x20] sm:$0xff]
        %v942 = vld [vmem:[%s571 + $0x28] sm:$0xff]
        %v943 = vld [vmem:[%s571 + $0x30] sm:$0xff]
        %v944 = vld [vmem:[%s571 + $0x38] sm:$0xff]
        %vm945 = vcmask 130048
        %v947 = vsel %vm945, %v933, 0
        %v950 = vsel %vm945, %v934, 0
        %v953 = vsel %vm945, %v935, 0
        %v956 = vsel %vm945, %v936, 0
        %958 = vmatpush.msra.mxu0 0.0
        %959 = vmatpush.msra.mxu0 0.0
        %960 = vmatpush.msra.mxu0 0.0
        %961 = vmatpush.msra.mxu0 0.0
        %962 = vmatpush.msra.mxu0 0.0
        %963 = vmatpush.msra.mxu0 0.0
        %964 = vmatpush.msra.mxu0 0.0
        %965 = vmatpush.msra.mxu0 0.0
        %966 = vmatpush.msra.mxu0 0.0
        %967 = vmatpush.msra.mxu0 0.0
        %968 = vmatpush.msra.mxu0 0.0
        %969 = vmatpush.msra.mxu0 0.0
        %970 = vmatpush.msra.mxu0 0.0
        %971 = vmatpush.msra.mxu0 0.0
        %972 = vmatpush.msra.mxu0 %v941
        %973 = vmatpush.msra.mxu0 %v937
        %974 = vmatmul.f32.gmra.mxu0 %v947
        %v975 = vpop.f32.mrf.mxu0
        %v976 = vadd.f32 0.0, %v975
        %977 = vmatmul.f32.gmra.mxu0 %v950
        %v978 = vpop.f32.mrf.mxu0
        %v979 = vadd.f32 0.0, %v978
        %980 = vmatmul.f32.gmra.mxu0 %v953
        %v981 = vpop.f32.mrf.mxu0
        %v982 = vadd.f32 0.0, %v981
        %983 = vmatmul.f32.gmra.mxu0 %v956
        %v984 = vpop.f32.mrf.mxu0
        %v985 = vadd.f32 0.0, %v984
        %986 = vdwg.mxu0
        %987 = vmatpush.msra.mxu0 0.0
        %988 = vmatpush.msra.mxu0 0.0
        %989 = vmatpush.msra.mxu0 0.0
        %990 = vmatpush.msra.mxu0 0.0
        %991 = vmatpush.msra.mxu0 0.0
        %992 = vmatpush.msra.mxu0 0.0
        %993 = vmatpush.msra.mxu0 0.0
        %994 = vmatpush.msra.mxu0 0.0
        %995 = vmatpush.msra.mxu0 0.0
        %996 = vmatpush.msra.mxu0 0.0
        %997 = vmatpush.msra.mxu0 0.0
        %998 = vmatpush.msra.mxu0 0.0
        %999 = vmatpush.msra.mxu0 0.0
        %1000 = vmatpush.msra.mxu0 0.0
        %1001 = vmatpush.msra.mxu0 %v942
        %1002 = vmatpush.msra.mxu0 %v938
        %1003 = vmatmul.f32.gmra.mxu0 %v947
        %v1004 = vpop.f32.mrf.mxu0
        %v1005 = vadd.f32 0.0, %v1004
        %1006 = vmatmul.f32.gmra.mxu0 %v950
        %v1007 = vpop.f32.mrf.mxu0
        %v1008 = vadd.f32 0.0, %v1007
        %1009 = vmatmul.f32.gmra.mxu0 %v953
        %v1010 = vpop.f32.mrf.mxu0
        %v1011 = vadd.f32 0.0, %v1010
        %1012 = vmatmul.f32.gmra.mxu0 %v956
        %v1013 = vpop.f32.mrf.mxu0
        %v1014 = vadd.f32 0.0, %v1013
        %1015 = vdwg.mxu0
        %1016 = vmatpush.msra.mxu0 0.0
        %1017 = vmatpush.msra.mxu0 0.0
        %1018 = vmatpush.msra.mxu0 0.0
        %1019 = vmatpush.msra.mxu0 0.0
        %1020 = vmatpush.msra.mxu0 0.0
        %1021 = vmatpush.msra.mxu0 0.0
        %1022 = vmatpush.msra.mxu0 0.0
        %1023 = vmatpush.msra.mxu0 0.0
        %1024 = vmatpush.msra.mxu0 0.0
        %1025 = vmatpush.msra.mxu0 0.0
        %1026 = vmatpush.msra.mxu0 0.0
        %1027 = vmatpush.msra.mxu0 0.0
        %1028 = vmatpush.msra.mxu0 0.0
        %1029 = vmatpush.msra.mxu0 0.0
        %1030 = vmatpush.msra.mxu0 %v943
        %1031 = vmatpush.msra.mxu0 %v939
        %1032 = vmatmul.f32.gmra.mxu0 %v947
        %v1033 = vpop.f32.mrf.mxu0
        %v1034 = vadd.f32 0.0, %v1033
        %1035 = vmatmul.f32.gmra.mxu0 %v950
        %v1036 = vpop.f32.mrf.mxu0
        %v1037 = vadd.f32 0.0, %v1036
        %1038 = vmatmul.f32.gmra.mxu0 %v953
        %v1039 = vpop.f32.mrf.mxu0
        %v1040 = vadd.f32 0.0, %v1039
        %1041 = vmatmul.f32.gmra.mxu0 %v956
        %v1042 = vpop.f32.mrf.mxu0
        %v1043 = vadd.f32 0.0, %v1042
        %1044 = vdwg.mxu0
        %1045 = vmatpush.msra.mxu0 0.0
        %1046 = vmatpush.msra.mxu0 0.0
        %1047 = vmatpush.msra.mxu0 0.0
        %1048 = vmatpush.msra.mxu0 0.0
        %1049 = vmatpush.msra.mxu0 0.0
        %1050 = vmatpush.msra.mxu0 0.0
        %1051 = vmatpush.msra.mxu0 0.0
        %1052 = vmatpush.msra.mxu0 0.0
        %1053 = vmatpush.msra.mxu0 0.0
        %1054 = vmatpush.msra.mxu0 0.0
        %1055 = vmatpush.msra.mxu0 0.0
        %1056 = vmatpush.msra.mxu0 0.0
        %1057 = vmatpush.msra.mxu0 0.0
        %1058 = vmatpush.msra.mxu0 0.0
        %1059 = vmatpush.msra.mxu0 %v944
        %1060 = vmatpush.msra.mxu0 %v940
        %1061 = vmatmul.f32.gmra.mxu0 %v947
        %v1062 = vpop.f32.mrf.mxu0
        %v1063 = vadd.f32 0.0, %v1062
        %1064 = vmatmul.f32.gmra.mxu0 %v950
        %v1065 = vpop.f32.mrf.mxu0
        %v1066 = vadd.f32 0.0, %v1065
        %1067 = vmatmul.f32.gmra.mxu0 %v953
        %v1068 = vpop.f32.mrf.mxu0
        %v1069 = vadd.f32 0.0, %v1068
        %1070 = vmatmul.f32.gmra.mxu0 %v956
        %v1071 = vpop.f32.mrf.mxu0
        %v1072 = vadd.f32 0.0, %v1071
        %1073 = vdwg.mxu0
        %v1074 = vadd.f32 %v917, %v976
        %v1075 = vadd.f32 %v918, %v1005
        %v1076 = vadd.f32 %v919, %v1034
        %v1077 = vadd.f32 %v920, %v1063
        %v1078 = vadd.f32 %v921, %v979
        %v1079 = vadd.f32 %v922, %v1008
        %v1080 = vadd.f32 %v923, %v1037
        %v1081 = vadd.f32 %v924, %v1066
        %v1082 = vadd.f32 %v925, %v982
        %v1083 = vadd.f32 %v926, %v1011
        %v1084 = vadd.f32 %v927, %v1040
        %v1085 = vadd.f32 %v928, %v1069
        %v1086 = vadd.f32 %v929, %v985
        %v1087 = vadd.f32 %v930, %v1014
        %v1088 = vadd.f32 %v931, %v1043
        %v1089 = vadd.f32 %v932, %v1072
        %v1090 = vld [vmem:[%s8] sm:$0xff]
        %v1091 = vld [vmem:[%s8 + $0x8] sm:$0xff]
        %v1092 = vld [vmem:[%s8 + $0x10] sm:$0xff]
        %v1093 = vld [vmem:[%s8 + $0x18] sm:$0xff]
        %1095 = vset.pattern.permute.xlu0 0
        %1096 = vperm.xlu0 %1095, %v1090
        %v1097 = vpop.permute.xlu0 %1096
        %1100 = vset.pattern.permute.xlu0 0
        %1101 = vperm.xlu0 %1100, %v1091
        %v1102 = vpop.permute.xlu0 %1101
        %1105 = vset.pattern.permute.xlu0 0
        %1106 = vperm.xlu0 %1105, %v1092
        %v1107 = vpop.permute.xlu0 %1106
        %1110 = vset.pattern.permute.xlu0 0
        %1111 = vperm.xlu0 %1110, %v1093
        %v1112 = vpop.permute.xlu0 %1111
        %v1114 = vadd.f32 %v1074, %v1097
        %v1115 = vadd.f32 %v1075, %v1097
        %v1116 = vadd.f32 %v1076, %v1097
        %v1117 = vadd.f32 %v1077, %v1097
        %v1118 = vadd.f32 %v1078, %v1102
        %v1119 = vadd.f32 %v1079, %v1102
        %v1120 = vadd.f32 %v1080, %v1102
        %v1121 = vadd.f32 %v1081, %v1102
        %v1122 = vadd.f32 %v1082, %v1107
        %v1123 = vadd.f32 %v1083, %v1107
        %v1124 = vadd.f32 %v1084, %v1107
        %v1125 = vadd.f32 %v1085, %v1107
        %v1126 = vadd.f32 %v1086, %v1112
        %v1127 = vadd.f32 %v1087, %v1112
        %v1128 = vadd.f32 %v1088, %v1112
        %v1129 = vadd.f32 %v1089, %v1112
        %v1130 = vmax.f32 %v1114, 0.0
        %v1131 = vmax.f32 %v1115, 0.0
        %v1132 = vmax.f32 %v1116, 0.0
        %v1133 = vmax.f32 %v1117, 0.0
        %v1134 = vmax.f32 %v1118, 0.0
        %v1135 = vmax.f32 %v1119, 0.0
        %v1136 = vmax.f32 %v1120, 0.0
        %v1137 = vmax.f32 %v1121, 0.0
        %v1138 = vmax.f32 %v1122, 0.0
        %v1139 = vmax.f32 %v1123, 0.0
        %v1140 = vmax.f32 %v1124, 0.0
        %v1141 = vmax.f32 %v1125, 0.0
        %v1142 = vmax.f32 %v1126, 0.0
        %v1143 = vmax.f32 %v1127, 0.0
        %v1144 = vmax.f32 %v1128, 0.0
        %v1145 = vmax.f32 %v1129, 0.0
        %v1146 = vld [vmem:[%s9] sm:$0xff]
        %v1147 = vld [vmem:[%s9 + $0x8] sm:$0xff]
        %v1148 = vld [vmem:[%s10] sm:$0xff]
        %v1149 = vld [vmem:[%s10 + $0x8] sm:$0xff]
        %v1151 = vsel %vm945, %v1148, 0
        %v1154 = vsel %vm945, %v1149, 0
        %1156 = vmatpush.msra.mxu0 0.0
        %1157 = vmatpush.msra.mxu0 0.0
        %1158 = vmatpush.msra.mxu0 0.0
        %1159 = vmatpush.msra.mxu0 0.0
        %1160 = vmatpush.msra.mxu0 0.0
        %1161 = vmatpush.msra.mxu0 0.0
        %1162 = vmatpush.msra.mxu0 0.0
        %1163 = vmatpush.msra.mxu0 0.0
        %1164 = vmatpush.msra.mxu0 0.0
        %1165 = vmatpush.msra.mxu0 0.0
        %1166 = vmatpush.msra.mxu0 0.0
        %1167 = vmatpush.msra.mxu0 0.0
        %1168 = vmatpush.msra.mxu0 0.0
        %1169 = vmatpush.msra.mxu0 0.0
        %1170 = vmatpush.msra.mxu0 %v941
        %1171 = vmatpush.msra.mxu0 %v937
        %1172 = vmatmul.f32.gmra.mxu0 %v1151
        %v1173 = vpop.f32.mrf.mxu0
        %v1174 = vadd.f32 0.0, %v1173
        %1175 = vmatmul.f32.gmra.mxu0 %v1154
        %v1176 = vpop.f32.mrf.mxu0
        %v1177 = vadd.f32 0.0, %v1176
        %1178 = vdwg.mxu0
        %1179 = vmatpush.msra.mxu0 0.0
        %1180 = vmatpush.msra.mxu0 0.0
        %1181 = vmatpush.msra.mxu0 0.0
        %1182 = vmatpush.msra.mxu0 0.0
        %1183 = vmatpush.msra.mxu0 0.0
        %1184 = vmatpush.msra.mxu0 0.0
        %1185 = vmatpush.msra.mxu0 0.0
        %1186 = vmatpush.msra.mxu0 0.0
        %1187 = vmatpush.msra.mxu0 0.0
        %1188 = vmatpush.msra.mxu0 0.0
        %1189 = vmatpush.msra.mxu0 0.0
        %1190 = vmatpush.msra.mxu0 0.0
        %1191 = vmatpush.msra.mxu0 0.0
        %1192 = vmatpush.msra.mxu0 0.0
        %1193 = vmatpush.msra.mxu0 %v942
        %1194 = vmatpush.msra.mxu0 %v938
        %1195 = vmatmul.f32.gmra.mxu0 %v1151
        %v1196 = vpop.f32.mrf.mxu0
        %v1197 = vadd.f32 0.0, %v1196
        %1198 = vmatmul.f32.gmra.mxu0 %v1154
        %v1199 = vpop.f32.mrf.mxu0
        %v1200 = vadd.f32 0.0, %v1199
        %1201 = vdwg.mxu0
        %1202 = vmatpush.msra.mxu0 0.0
        %1203 = vmatpush.msra.mxu0 0.0
        %1204 = vmatpush.msra.mxu0 0.0
        %1205 = vmatpush.msra.mxu0 0.0
        %1206 = vmatpush.msra.mxu0 0.0
        %1207 = vmatpush.msra.mxu0 0.0
        %1208 = vmatpush.msra.mxu0 0.0
        %1209 = vmatpush.msra.mxu0 0.0
        %1210 = vmatpush.msra.mxu0 0.0
        %1211 = vmatpush.msra.mxu0 0.0
        %1212 = vmatpush.msra.mxu0 0.0
        %1213 = vmatpush.msra.mxu0 0.0
        %1214 = vmatpush.msra.mxu0 0.0
        %1215 = vmatpush.msra.mxu0 0.0
        %1216 = vmatpush.msra.mxu0 %v943
        %1217 = vmatpush.msra.mxu0 %v939
        %1218 = vmatmul.f32.gmra.mxu0 %v1151
        %v1219 = vpop.f32.mrf.mxu0
        %v1220 = vadd.f32 0.0, %v1219
        %1221 = vmatmul.f32.gmra.mxu0 %v1154
        %v1222 = vpop.f32.mrf.mxu0
        %v1223 = vadd.f32 0.0, %v1222
        %1224 = vdwg.mxu0
        %1225 = vmatpush.msra.mxu0 0.0
        %1226 = vmatpush.msra.mxu0 0.0
        %1227 = vmatpush.msra.mxu0 0.0
        %1228 = vmatpush.msra.mxu0 0.0
        %1229 = vmatpush.msra.mxu0 0.0
        %1230 = vmatpush.msra.mxu0 0.0
        %1231 = vmatpush.msra.mxu0 0.0
        %1232 = vmatpush.msra.mxu0 0.0
        %1233 = vmatpush.msra.mxu0 0.0
        %1234 = vmatpush.msra.mxu0 0.0
        %1235 = vmatpush.msra.mxu0 0.0
        %1236 = vmatpush.msra.mxu0 0.0
        %1237 = vmatpush.msra.mxu0 0.0
        %1238 = vmatpush.msra.mxu0 0.0
        %1239 = vmatpush.msra.mxu0 %v944
        %1240 = vmatpush.msra.mxu0 %v940
        %1241 = vmatmul.f32.gmra.mxu0 %v1151
        %v1242 = vpop.f32.mrf.mxu0
        %v1243 = vadd.f32 0.0, %v1242
        %1244 = vmatmul.f32.gmra.mxu0 %v1154
        %v1245 = vpop.f32.mrf.mxu0
        %v1246 = vadd.f32 0.0, %v1245
        %1247 = vdwg.mxu0
        %v1249 = vsel %vm788, %v1146, 0
        %v1252 = vsel %vm788, %v1147, 0
        %1254 = vmatpush.msra.mxu0 0.0
        %1255 = vmatpush.msra.mxu0 0.0
        %1256 = vmatpush.msra.mxu0 0.0
        %1257 = vmatpush.msra.mxu0 0.0
        %1258 = vmatpush.msra.mxu0 0.0
        %1259 = vmatpush.msra.mxu0 0.0
        %1260 = vmatpush.msra.mxu0 0.0
        %1261 = vmatpush.msra.mxu0 0.0
        %1262 = vmatpush.msra.mxu0 0.0
        %1263 = vmatpush.msra.mxu0 0.0
        %1264 = vmatpush.msra.mxu0 0.0
        %1265 = vmatpush.msra.mxu0 0.0
        %1266 = vmatpush.msra.mxu0 %v1142
        %1267 = vmatpush.msra.mxu0 %v1138
        %1268 = vmatpush.msra.mxu0 %v1134
        %1269 = vmatpush.msra.mxu0 %v1130
        %1270 = vmatmul.f32.gmra.mxu0 %v1249
        %v1271 = vpop.f32.mrf.mxu0
        %v1272 = vadd.f32 %v1174, %v1271
        %1273 = vmatmul.f32.gmra.mxu0 %v1252
        %v1274 = vpop.f32.mrf.mxu0
        %v1275 = vadd.f32 %v1177, %v1274
        %1276 = vdwg.mxu0
        %1277 = vmatpush.msra.mxu0 0.0
        %1278 = vmatpush.msra.mxu0 0.0
        %1279 = vmatpush.msra.mxu0 0.0
        %1280 = vmatpush.msra.mxu0 0.0
        %1281 = vmatpush.msra.mxu0 0.0
        %1282 = vmatpush.msra.mxu0 0.0
        %1283 = vmatpush.msra.mxu0 0.0
        %1284 = vmatpush.msra.mxu0 0.0
        %1285 = vmatpush.msra.mxu0 0.0
        %1286 = vmatpush.msra.mxu0 0.0
        %1287 = vmatpush.msra.mxu0 0.0
        %1288 = vmatpush.msra.mxu0 0.0
        %1289 = vmatpush.msra.mxu0 %v1143
        %1290 = vmatpush.msra.mxu0 %v1139
        %1291 = vmatpush.msra.mxu0 %v1135
        %1292 = vmatpush.msra.mxu0 %v1131
        %1293 = vmatmul.f32.gmra.mxu0 %v1249
        %v1294 = vpop.f32.mrf.mxu0
        %v1295 = vadd.f32 %v1197, %v1294
        %1296 = vmatmul.f32.gmra.mxu0 %v1252
        %v1297 = vpop.f32.mrf.mxu0
        %v1298 = vadd.f32 %v1200, %v1297
        %1299 = vdwg.mxu0
        %1300 = vmatpush.msra.mxu0 0.0
        %1301 = vmatpush.msra.mxu0 0.0
        %1302 = vmatpush.msra.mxu0 0.0
        %1303 = vmatpush.msra.mxu0 0.0
        %1304 = vmatpush.msra.mxu0 0.0
        %1305 = vmatpush.msra.mxu0 0.0
        %1306 = vmatpush.msra.mxu0 0.0
        %1307 = vmatpush.msra.mxu0 0.0
        %1308 = vmatpush.msra.mxu0 0.0
        %1309 = vmatpush.msra.mxu0 0.0
        %1310 = vmatpush.msra.mxu0 0.0
        %1311 = vmatpush.msra.mxu0 0.0
        %1312 = vmatpush.msra.mxu0 %v1144
        %1313 = vmatpush.msra.mxu0 %v1140
        %1314 = vmatpush.msra.mxu0 %v1136
        %1315 = vmatpush.msra.mxu0 %v1132
        %1316 = vmatmul.f32.gmra.mxu0 %v1249
        %v1317 = vpop.f32.mrf.mxu0
        %v1318 = vadd.f32 %v1220, %v1317
        %1319 = vmatmul.f32.gmra.mxu0 %v1252
        %v1320 = vpop.f32.mrf.mxu0
        %v1321 = vadd.f32 %v1223, %v1320
        %1322 = vdwg.mxu0
        %1323 = vmatpush.msra.mxu0 0.0
        %1324 = vmatpush.msra.mxu0 0.0
        %1325 = vmatpush.msra.mxu0 0.0
        %1326 = vmatpush.msra.mxu0 0.0
        %1327 = vmatpush.msra.mxu0 0.0
        %1328 = vmatpush.msra.mxu0 0.0
        %1329 = vmatpush.msra.mxu0 0.0
        %1330 = vmatpush.msra.mxu0 0.0
        %1331 = vmatpush.msra.mxu0 0.0
        %1332 = vmatpush.msra.mxu0 0.0
        %1333 = vmatpush.msra.mxu0 0.0
        %1334 = vmatpush.msra.mxu0 0.0
        %1335 = vmatpush.msra.mxu0 %v1145
        %1336 = vmatpush.msra.mxu0 %v1141
        %1337 = vmatpush.msra.mxu0 %v1137
        %1338 = vmatpush.msra.mxu0 %v1133
        %1339 = vmatmul.f32.gmra.mxu0 %v1249
        %v1340 = vpop.f32.mrf.mxu0
        %v1341 = vadd.f32 %v1243, %v1340
        %1342 = vmatmul.f32.gmra.mxu0 %v1252
        %v1343 = vpop.f32.mrf.mxu0
        %v1344 = vadd.f32 %v1246, %v1343
        %1345 = vdwg.mxu0
        %v1346 = vld [vmem:[%s11] sm:$0xff]
        %v1347 = vld [vmem:[%s11 + $0x8] sm:$0xff]
        %1349 = vset.pattern.permute.xlu0 0
        %1350 = vperm.xlu0 %1349, %v1346
        %v1351 = vpop.permute.xlu0 %1350
        %1354 = vset.pattern.permute.xlu0 0
        %1355 = vperm.xlu0 %1354, %v1347
        %v1356 = vpop.permute.xlu0 %1355
        %v1358 = vadd.f32 %v1272, %v1351
        %v1359 = vadd.f32 %v1295, %v1351
        %v1360 = vadd.f32 %v1318, %v1351
        %v1361 = vadd.f32 %v1341, %v1351
        %v1362 = vadd.f32 %v1275, %v1356
        %v1363 = vadd.f32 %v1298, %v1356
        %v1364 = vadd.f32 %v1321, %v1356
        %v1365 = vadd.f32 %v1344, %v1356
        %v1366 = vtanh.pop %v1358
        %v1367 = vtanh.pop %v1359
        %v1368 = vtanh.pop %v1360
        %v1369 = vtanh.pop %v1361
        %v1370 = vtanh.pop %v1362
        %v1371 = vtanh.pop %v1363
        %v1372 = vtanh.pop %v1364
        %v1373 = vtanh.pop %v1365
        %v1374 = vld [vmem:[%s12] sm:$0x7]
        %v1375 = vld [vmem:[%s13] sm:$0x7]
        %1377 = vset.pattern.permute.xlu0 0
        %1378 = vperm.xlu0 %1377, %v1375
        %v1379 = vpop.permute.xlu0 %1378
        %v1382 = vsel %vm945, %v1374, 0
        %1384 = vmatpush.msra.mxu0 0.0
        %1385 = vmatpush.msra.mxu0 0.0
        %1386 = vmatpush.msra.mxu0 0.0
        %1387 = vmatpush.msra.mxu0 0.0
        %1388 = vmatpush.msra.mxu0 0.0
        %1389 = vmatpush.msra.mxu0 0.0
        %1390 = vmatpush.msra.mxu0 0.0
        %1391 = vmatpush.msra.mxu0 0.0
        %1392 = vmatpush.msra.mxu0 0.0
        %1393 = vmatpush.msra.mxu0 0.0
        %1394 = vmatpush.msra.mxu0 0.0
        %1395 = vmatpush.msra.mxu0 0.0
        %1396 = vmatpush.msra.mxu0 0.0
        %1397 = vmatpush.msra.mxu0 0.0
        %1398 = vmatpush.msra.mxu0 %v1370
        %1399 = vmatpush.msra.mxu0 %v1366
        %1400 = vmatmul.f32.gmra.mxu0 %v1382
        %v1401 = vpop.f32.mrf.mxu0
        %v1402 = vadd.f32 %v1379, %v1401
        %1403 = vdwg.mxu0
        %1404 = vmatpush.msra.mxu0 0.0
        %1405 = vmatpush.msra.mxu0 0.0
        %1406 = vmatpush.msra.mxu0 0.0
        %1407 = vmatpush.msra.mxu0 0.0
        %1408 = vmatpush.msra.mxu0 0.0
        %1409 = vmatpush.msra.mxu0 0.0
        %1410 = vmatpush.msra.mxu0 0.0
        %1411 = vmatpush.msra.mxu0 0.0
        %1412 = vmatpush.msra.mxu0 0.0
        %1413 = vmatpush.msra.mxu0 0.0
        %1414 = vmatpush.msra.mxu0 0.0
        %1415 = vmatpush.msra.mxu0 0.0
        %1416 = vmatpush.msra.mxu0 0.0
        %1417 = vmatpush.msra.mxu0 0.0
        %1418 = vmatpush.msra.mxu0 %v1371
        %1419 = vmatpush.msra.mxu0 %v1367
        %1420 = vmatmul.f32.gmra.mxu0 %v1382
        %v1421 = vpop.f32.mrf.mxu0
        %v1422 = vadd.f32 %v1379, %v1421
        %1423 = vdwg.mxu0
        %1424 = vmatpush.msra.mxu0 0.0
        %1425 = vmatpush.msra.mxu0 0.0
        %1426 = vmatpush.msra.mxu0 0.0
        %1427 = vmatpush.msra.mxu0 0.0
        %1428 = vmatpush.msra.mxu0 0.0
        %1429 = vmatpush.msra.mxu0 0.0
        %1430 = vmatpush.msra.mxu0 0.0
        %1431 = vmatpush.msra.mxu0 0.0
        %1432 = vmatpush.msra.mxu0 0.0
        %1433 = vmatpush.msra.mxu0 0.0
        %1434 = vmatpush.msra.mxu0 0.0
        %1435 = vmatpush.msra.mxu0 0.0
        %1436 = vmatpush.msra.mxu0 0.0
        %1437 = vmatpush.msra.mxu0 0.0
        %1438 = vmatpush.msra.mxu0 %v1372
        %1439 = vmatpush.msra.mxu0 %v1368
        %1440 = vmatmul.f32.gmra.mxu0 %v1382
        %v1441 = vpop.f32.mrf.mxu0
        %v1442 = vadd.f32 %v1379, %v1441
        %1443 = vdwg.mxu0
        %1444 = vmatpush.msra.mxu0 0.0
        %1445 = vmatpush.msra.mxu0 0.0
        %1446 = vmatpush.msra.mxu0 0.0
        %1447 = vmatpush.msra.mxu0 0.0
        %1448 = vmatpush.msra.mxu0 0.0
        %1449 = vmatpush.msra.mxu0 0.0
        %1450 = vmatpush.msra.mxu0 0.0
        %1451 = vmatpush.msra.mxu0 0.0
        %1452 = vmatpush.msra.mxu0 0.0
        %1453 = vmatpush.msra.mxu0 0.0
        %1454 = vmatpush.msra.mxu0 0.0
        %1455 = vmatpush.msra.mxu0 0.0
        %1456 = vmatpush.msra.mxu0 0.0
        %1457 = vmatpush.msra.mxu0 0.0
        %1458 = vmatpush.msra.mxu0 %v1373
        %1459 = vmatpush.msra.mxu0 %v1369
        %1460 = vmatmul.f32.gmra.mxu0 %v1382
        %v1461 = vpop.f32.mrf.mxu0
        %v1462 = vadd.f32 %v1379, %v1461
        %1463 = vdwg.mxu0
        %v1468 = vrot.slane %v1422, 4
        %v1469 = vrot.slane %v1462, 4
        %vm1470 = vcmask 1043456
        %v1471 = vsel %vm1470, %v1402, %v1468
        %v1472 = vsel %vm1470, %v1442, %v1469
        %1475 = vst [vmem:[%s649] sm:$0x77] %v1471
        %1476 = vst [vmem:[%s649 + $0x8] sm:$0x77] %v1472
        %1477 = vst [vmem:[%s632] sm:$0xff] %v1366
        %1478 = vst [vmem:[%s632 + $0x8] sm:$0xff] %v1367
        %1479 = vst [vmem:[%s632 + $0x10] sm:$0xff] %v1368
        %1480 = vst [vmem:[%s632 + $0x18] sm:$0xff] %v1369
        %1481 = vst [vmem:[%s632 + $0x20] sm:$0xff] %v1370
        %1482 = vst [vmem:[%s632 + $0x28] sm:$0xff] %v1371
        %1483 = vst [vmem:[%s632 + $0x30] sm:$0xff] %v1372
        %1484 = vst [vmem:[%s632 + $0x38] sm:$0xff] %v1373
        %s1485 = smul.u32 4, %s30
        %p1486 = scmp.lt.s32.totalorder %s1485, 7
        %s1487 = scalar_select %p1486, %s1485, 7
        %s1488 = smul.addr %s1487, 4
        %s1489 = scalar_lea.vmem %s14, %s1488
        %s1490 = sand.u32 %s378, 1
        %s1491 = scalar_lea.sflag [#allocation5], %s1490
        %s1492 = sand.u32 %s378, 1
        %s1493 = smul.addr %s1492, 64
        %s1494 = scalar_lea.vmem [#allocation4], %s1493
        // Predicated region
        $region123: #{_lambda_.31} parent=113 // pred_check
          %p1495 = pneg %p362
        $region124: #{_lambda_.31} parent=113 // pred_check_branch
          %1497 = sbr.rel (%p1495) target = $region126
        $region125: #{_lambda_.31} parent=113 // pred_region
          %s1498 = smul.u32 4, %s30
        $region126: #{_lambda_.31} parent=113 // pred_fallthru
          _
        // Predicated region
        $region127: #{_lambda_.31} parent=113 // pred_check
          %p1499 = pneg %p388
        $region128: #{_lambda_.31} parent=113 // pred_check_branch
          %1501 = sbr.rel (%p1499) target = $region130
        $region129: #{_lambda_.31} parent=113 // pred_region
          %s1502 = smul.u32 4, %s30
          %1504 = vsyncadd %s1491, 0
          %s1505 = smul.addr %s1502, 8
          %s1506 = scalar_lea.hbm %s15, %s1505
          %s1507 = sshll.u32 %s1494, 4
          %s1508 = int_to_ptr.vmem [resolvable:$true] %s1507
          %s1509 = sshll.u32 %s1506, 4
          %s1510 = int_to_ptr.hbm [resolvable:$true] %s1509
          %1515 = dma.vmem_to_hbm [thread:$0]  %s1508, 1024, %s1510, %s1491, 512, 1024, 32
        $region130: #{_lambda_.31} parent=113 // pred_fallthru
          _
      $region114: #{_lambda_.31} parent=5 // pred_fallthru
        _
      %p1516 = scmp.le.s32.totalorder 2, %s25
      // Predicated region
      $region131: #{_lambda_.31} parent=5 // pred_check
        %p1517 = pneg %p1516
      $region132: #{_lambda_.31} parent=5 // pred_check_branch
        %1519 = sbr.rel (%p1517) target = $region134
      $region133: #{_lambda_.31} parent=5 // pred_region
        %s1520 = ssub.s32 %s25, 2
        // Predicated region
        $region135: #{_lambda_.31} parent=133 // pred_check
          %p1521 = pneg %p368
        $region136: #{_lambda_.31} parent=133 // pred_check_branch
          %1523 = sbr.rel (%p1521) target = $region138
        $region137: #{_lambda_.31} parent=133 // pred_region
          %s1524 = smul.u32 4, %s31
          %p1525 = scmp.lt.s32.totalorder %s1524, 7
          %s1526 = scalar_select %p1525, %s1524, 7
          %s1527 = smul.addr %s1526, 4
          %s1528 = scalar_lea.vmem %s14, %s1527
        $region138: #{_lambda_.31} parent=133 // pred_fallthru
          _
        // Predicated region
        $region139: #{_lambda_.31} parent=133 // pred_check
          %p1529 = pneg %p394
        $region140: #{_lambda_.31} parent=133 // pred_check_branch
          %1531 = sbr.rel (%p1529) target = $region142
        $region141: #{_lambda_.31} parent=133 // pred_region
          %s1532 = sand.u32 %s379, 1
          %s1533 = scalar_lea.sflag [#allocation5], %s1532
          %s1534 = sand.u32 %s379, 1
          %s1535 = smul.addr %s1534, 64
          %s1536 = scalar_lea.vmem [#allocation4], %s1535
          %1538 = dma.done %s1533, 1024
        $region142: #{_lambda_.31} parent=133 // pred_fallthru
          _
      $region134: #{_lambda_.31} parent=5 // pred_fallthru
        _
    $region6: #{_lambda_.31} parent=1 // loop_footer
      %s29 = sadd.s32 1, %s25
    $region7: #{_lambda_.31} parent=1 // loop_footer_branch
      %24 = sbr.rel target = $region3
    $region8: #{_lambda_.31} parent=1 // loop_exit
      _
    %1539 = vsyncpa [#allocation5], 1
    %s1540 = scalar_lea.sflag [#allocation5], 1
    %1541 = vsyncpa %s1540, 1

</llo_original>
